<compile_context>
chip_gen: v6e
topology: v6e:2x2x1
jax: 0.10.0
libtpu: 0.0.40
codegen_flags: <defaults>
</compile_context>

<pallas_src>
import math

import jax
import jax.numpy as jnp
from jax import lax
from jax.experimental import pallas as pl
from jax.experimental.pallas import tpu as pltpu


def _round_up(n: int, m: int) -> int:
    return ((n + m - 1) // m) * m


def _fori(lo, hi, body, init, unroll):
    """lax.fori_loop with partial unroll (falls back if kwarg unsupported)."""
    try:
        return lax.fori_loop(lo, hi, body, init, unroll=unroll)
    except TypeError:
        return lax.fori_loop(lo, hi, body, init)


def _use_bf16_gate_activations() -> bool:
    """bf16 EUP/VPU exists on v6e/v7x; keep gate math f32 on v5e and older."""
    try:
        kind = jax.devices()[0].device_kind.lower()
    except Exception:
        return False
    return ("v6" in kind) or ("v7" in kind)


def _tpu_vmem_budget_bytes() -> int:
    """~84% of physical VMEM (headroom for compiler-internal scratch)."""
    phys = None
    try:
        phys = int(pltpu.get_tpu_info().vmem_capacity_bytes)
    except Exception:
        phys = None
    if phys is None or phys <= 0:
        try:
            kind = jax.devices()[0].device_kind.lower()
            phys = (64 << 20) if "v7" in kind else (128 << 20)
        except Exception:
            phys = 64 << 20
    return (phys * 27) // 32


def _pick_time_chunk(S: int, Bp: int, Hp: int, budget_bytes: int = 8 << 20) -> int:
    """Largest divisor of S whose bf16 gate-projection chunk fits the budget."""
    bytes_per_step = Bp * 4 * Hp * 2          # one timestep of gx in bf16
    max_tc = max(1, budget_bytes // bytes_per_step)
    if S <= max_tc:
        return S
    for tc in range(int(max_tc), 0, -1):
        if S % tc == 0:
            return tc
    return 1


# ----------------------------------------------------------------------------
# Fused CharLSTM kernel factory (fixed num_layers / S / padded B / padded H).
# ----------------------------------------------------------------------------
def _make_char_lstm_kernel(num_layers: int, seq_len: int, Bp: int, Hp: int,
                           Tc: int, bf16_gates: bool):
    n_chunks = seq_len // Tc
    step_unroll = max(1, min(Tc, 8))
    gate_dtype = jnp.bfloat16 if bf16_gates else jnp.float32

    def kernel(*refs):
        # --- inputs ---------------------------------------------------------
        x_ref, h0_ref, c0_ref = refs[0], refs[1], refs[2]      # x: (S*Bp, Ep) bf16
        w_refs = refs[3:3 + 3 * num_layers]                    # per layer: wih, whh, b
        fc_w_ref = refs[3 + 3 * num_layers]                    # (Hp, Vp) bf16
        fc_b_ref = refs[4 + 3 * num_layers]                    # (1, Vp)  f32
        # --- outputs --------------------------------------------------------
        logits_ref = refs[5 + 3 * num_layers]                  # (Bp, Vp) f32
        hn_ref = refs[6 + 3 * num_layers]                      # (L, Bp, Hp) f32
        cn_ref = refs[7 + 3 * num_layers]                      # (L, Bp, Hp) f32
        # --- scratch --------------------------------------------------------
        gx_scr = refs[8 + 3 * num_layers]                      # (Tc*Bp, 4Hp) bf16
        y_scr = refs[9 + 3 * num_layers]                       # (S*Bp, Hp)  bf16

        h_last = None
        for layer in range(num_layers):
            wih_ref = w_refs[3 * layer + 0]                    # (D, 4Hp) bf16
            whh_ref = w_refs[3 * layer + 1]                    # (Hp, 4Hp) bf16
            b_ref = w_refs[3 * layer + 2]                      # (1, 4Hp) f32
            write_y = layer < num_layers - 1
            xin_ref = x_ref if layer == 0 else y_scr

            def chunk_body(ci, carry, _xin=xin_ref, _wih=wih_ref,
                           _whh=whh_ref, _b=b_ref, _write_y=write_y):
                base = ci * (Tc * Bp)
                if not isinstance(base, int):
                    base = pl.multiple_of(base, Bp)

                # (1) Hoisted input projection for this time chunk: one MXU
                #     matmul off the serial path; stored bf16 (half the VMEM
                #     and half the store-slot traffic).
                gx_scr[...] = jnp.dot(
                    _xin[pl.ds(base, Tc * Bp), :], _wih[...],
                    preferred_element_type=jnp.float32).astype(gx_scr.dtype)

                bias = _b[...]                                  # (1, 4Hp) f32

                # (2) Serial recurrence: only h @ W_hh^T per step; h/c carried
                #     as f32 values, gate slices are 128-lane aligned views.
                def step(ti, hc):
                    h, c = hc
                    row = pl.multiple_of(ti * Bp, Bp)
                    # f32 gate accumulation: bf16 gx + f32 MXU result + f32 bias.
                    gates = (gx_scr[pl.ds(row, Bp), :].astype(jnp.float32)
                             + jnp.dot(h.astype(jnp.bfloat16), _whh[...],
                                       preferred_element_type=jnp.float32)
                             + bias)
                    ga = gates.astype(gate_dtype)   # bf16 EUP path on v6e/v7x
                    # PyTorch gate order: i, f, g, o
                    i_g = jax.nn.sigmoid(ga[:, 0 * Hp:1 * Hp]).astype(jnp.float32)
                    f_g = jax.nn.sigmoid(ga[:, 1 * Hp:2 * Hp]).astype(jnp.float32)
                    g_g = jnp.tanh(ga[:, 2 * Hp:3 * Hp]).astype(jnp.float32)
                    o_g = jax.nn.sigmoid(ga[:, 3 * Hp:4 * Hp]).astype(jnp.float32)
                    c_new = f_g * c + i_g * g_g                 # cell math in f32
                    h_new = o_g * jnp.tanh(c_new)
                    if _write_y:                # last layer: no y store at all
                        y_scr[pl.ds(base + row, Bp), :] = h_new.astype(y_scr.dtype)
                    return h_new, c_new

                return _fori(0, Tc, step, carry, unroll=step_unroll)

            carry = (h0_ref[layer], c0_ref[layer])
            if n_chunks == 1:
                carry = chunk_body(0, carry)
            else:
                carry = lax.fori_loop(0, n_chunks, chunk_body, carry)
            h_n, c_n = carry

            hn_ref[layer] = h_n
            cn_ref[layer] = c_n
            h_last = h_n

        # (3) Fused final FC on the last time step's hidden state.
        logits_ref[...] = (
            jnp.dot(h_last.astype(jnp.bfloat16), fc_w_ref[...],
                    preferred_element_type=jnp.float32)
            + fc_b_ref[...])

    return kernel


# ----------------------------------------------------------------------------
# Parameter construction (mirrors nn.Embedding / nn.LSTM / nn.Linear).
# Stores both the original f32 parameters (for the reference check) and the
# padded / transposed / bf16 kernel-side parameters.
# ----------------------------------------------------------------------------
def init_params(key, vocab_size, embedding_dim, hidden_dim, num_layers):
    Hp = _round_up(hidden_dim, 128)
    Ep = _round_up(embedding_dim, 128)
    Vp = _round_up(vocab_size, 128)

    keys = jax.random.split(key, 3 + 4 * num_layers)
    k = iter(keys)

    embed = jax.random.normal(next(k), (vocab_size, embedding_dim), jnp.float32)

    bound = 1.0 / math.sqrt(hidden_dim)
    torch_layers = []
    for layer in range(num_layers):
        in_dim = embedding_dim if layer == 0 else hidden_dim
        w_ih = jax.random.uniform(next(k), (4 * hidden_dim, in_dim),
                                  jnp.float32, -bound, bound)
        w_hh = jax.random.uniform(next(k), (4 * hidden_dim, hidden_dim),
                                  jnp.float32, -bound, bound)
        b_ih = jax.random.uniform(next(k), (4 * hidden_dim,),
                                  jnp.float32, -bound, bound)
        b_hh = jax.random.uniform(next(k), (4 * hidden_dim,),
                                  jnp.float32, -bound, bound)
        torch_layers.append({"w_ih": w_ih, "w_hh": w_hh, "b": b_ih + b_hh})

    fc_w = jax.random.uniform(next(k), (vocab_size, hidden_dim),
                              jnp.float32, -bound, bound)
    fc_b = jax.random.uniform(next(k), (vocab_size,),
                              jnp.float32, -bound, bound)

    # --- padded / transposed / bf16 kernel-side parameters -------------------
    def pad_gate_w(w, in_dim, in_dim_p):
        # (4H, D) -> per-gate pad to (4, Hp, Dp) -> (Dp, 4Hp) bf16
        w4 = w.reshape(4, hidden_dim, in_dim)
        w4 = jnp.pad(w4, ((0, 0), (0, Hp - hidden_dim), (0, in_dim_p - in_dim)))
        return jnp.transpose(w4.reshape(4 * Hp, in_dim_p)).astype(jnp.bfloat16)

    def pad_gate_b(b):
        b4 = jnp.pad(b.reshape(4, hidden_dim), ((0, 0), (0, Hp - hidden_dim)))
        return b4.reshape(1, 4 * Hp)            # bias stays in f32

    lstm = []
    for layer, tl in enumerate(torch_layers):
        in_dim = embedding_dim if layer == 0 else hidden_dim
        in_dim_p = Ep if layer == 0 else Hp
        lstm.append({
            "w_ih_t": pad_gate_w(tl["w_ih"], in_dim, in_dim_p),   # (Dp, 4Hp) bf16
            "w_hh_t": pad_gate_w(tl["w_hh"], hidden_dim, Hp),     # (Hp, 4Hp) bf16
            "b": pad_gate_b(tl["b"]),                             # (1, 4Hp)  f32
        })

    params = {
        "dims": dict(E=embedding_dim, Ep=Ep, H=hidden_dim, Hp=Hp,
                     V=vocab_size, Vp=Vp),
        "embed": jnp.pad(embed, ((0, 0), (0, Ep - embedding_dim))),   # (V, Ep) f32
        "lstm": lstm,
        "fc_w_t": jnp.transpose(
            jnp.pad(fc_w, ((0, Vp - vocab_size), (0, Hp - hidden_dim)))
        ).astype(jnp.bfloat16),                                        # (Hp, Vp) bf16
        "fc_b": jnp.pad(fc_b, (0, Vp - vocab_size)).reshape(1, Vp),    # (1, Vp)  f32
        "ref": {"embed": embed, "layers": torch_layers,
                "fc_w": fc_w, "fc_b": fc_b},
    }
    return params


# ----------------------------------------------------------------------------
# Forward pass: embedding gather in XLA glue, everything else in one kernel.
# ----------------------------------------------------------------------------
def char_lstm_forward(params, x_ids, hidden=None, bf16_gates=None):
    """x_ids: (B, S) int32 ids. Returns (logits (B,V), (h_n, c_n) (L,B,H))."""
    B, S = x_ids.shape
    dims = params["dims"]
    H, Hp = dims["H"], dims["Hp"]
    V, Vp = dims["V"], dims["Vp"]
    Ep = dims["Ep"]
    L = len(params["lstm"])
    Bp = _round_up(B, 16)        # bf16 sublane tile (also a multiple of 8)
    if bf16_gates is None:
        bf16_gates = _use_bf16_gate_activations()

    # Embedding gather straight into time-major layout; pad batch, flatten to
    # (S*Bp, Ep), cast to bf16 for the MXU.
    emb = jnp.take(params["embed"], x_ids.T, axis=0)          # (S, B, Ep) f32
    x = jnp.pad(emb, ((0, 0), (0, Bp - B), (0, 0)))
    x = x.reshape(S * Bp, Ep).astype(jnp.bfloat16)

    if hidden is None:
        h0 = jnp.zeros((L, Bp, Hp), jnp.float32)
        c0 = jnp.zeros((L, Bp, Hp), jnp.float32)
    else:
        h_in, c_in = hidden
        pad = ((0, 0), (0, Bp - B), (0, Hp - H))
        h0 = jnp.pad(h_in.astype(jnp.float32), pad)
        c0 = jnp.pad(c_in.astype(jnp.float32), pad)

    layer_args = []
    for p in params["lstm"]:
        layer_args += [p["w_ih_t"], p["w_hh_t"], p["b"]]
    inputs = (x, h0, c0, *layer_args, params["fc_w_t"], params["fc_b"])

    Tc = _pick_time_chunk(S, Bp, Hp)

    # VMEM budget: no double-buffer factor (gridless call, nothing pipelined);
    # generation-aware cap with headroom for compiler-internal scratch.
    in_bytes = sum(int(a.size) * a.dtype.itemsize for a in inputs)
    out_bytes = (Bp * Vp + 2 * L * Bp * Hp) * 4
    scr_bytes = Tc * Bp * 4 * Hp * 2 + S * Bp * Hp * 2
    need = in_bytes + out_bytes + scr_bytes + (4 << 20)
    vmem_limit = int(min(max(need, 16 << 20), _tpu_vmem_budget_bytes()))

    kernel = _make_char_lstm_kernel(L, S, Bp, Hp, Tc, bf16_gates)
    logits_p, hn_p, cn_p = pl.pallas_call(
        kernel,
        out_shape=(
            jax.ShapeDtypeStruct((Bp, Vp), jnp.float32),
            jax.ShapeDtypeStruct((L, Bp, Hp), jnp.float32),
            jax.ShapeDtypeStruct((L, Bp, Hp), jnp.float32),
        ),
        scratch_shapes=[
            pltpu.VMEM((Tc * Bp, 4 * Hp), jnp.bfloat16),   # chunked input projection
            pltpu.VMEM((S * Bp, Hp), jnp.bfloat16),        # inter-layer y sequence
        ],
        compiler_params=pltpu.CompilerParams(vmem_limit_bytes=vmem_limit),
    )(*inputs)

    logits = logits_p[:B, :V]
    return logits, (hn_p[:, :B, :H], cn_p[:, :B, :H])


# ----------------------------------------------------------------------------
# Pure-JAX reference (mirrors the kernel's bf16 rounding of weights, the bf16
# gx scratch and — when enabled — the bf16 gate activations, so the comparison
# isolates kernel bugs rather than quantization choices).
# ----------------------------------------------------------------------------
def _reference_forward(params, x_ids, hidden=None, bf16_gates=False):
    ref = params["ref"]
    B, S = x_ids.shape
    L = len(ref["layers"])
    H = params["dims"]["H"]

    def q(a):  # bf16 round-trip
        return a.astype(jnp.bfloat16).astype(jnp.float32)

    emb = q(ref["embed"][x_ids])                 # (B, S, E)
    if hidden is None:
        hs = [jnp.zeros((B, H), jnp.float32) for _ in range(L)]
        cs = [jnp.zeros((B, H), jnp.float32) for _ in range(L)]
    else:
        hs = [hidden[0][l] for l in range(L)]
        cs = [hidden[1][l] for l in range(L)]

    layer_in = emb
    for l, p in enumerate(ref["layers"]):
        w_ih, w_hh, b = q(p["w_ih"]), q(p["w_hh"]), p["b"]
        h, c = hs[l], cs[l]
        outs = []
        for t in range(S):
            x_t = layer_in[:, t, :]
            gx = q(x_t @ w_ih.T)                 # mirrors bf16 gx scratch
            g = gx + q(h) @ w_hh.T + b           # f32 accumulation (+ f32 bias)
            ga = g.astype(jnp.bfloat16) if bf16_gates else g
            i_g = jax.nn.sigmoid(ga[:, 0 * H:1 * H]).astype(jnp.float32)
            f_g = jax.nn.sigmoid(ga[:, 1 * H:2 * H]).astype(jnp.float32)
            g_g = jnp.tanh(ga[:, 2 * H:3 * H]).astype(jnp.float32)
            o_g = jax.nn.sigmoid(ga[:, 3 * H:4 * H]).astype(jnp.float32)
            c = f_g * c + i_g * g_g
            h = o_g * jnp.tanh(c)
            outs.append(q(h))                    # next layer consumes bf16 y
        hs[l], cs[l] = h, c
        layer_in = jnp.stack(outs, axis=1)       # (B, S, H)

    logits = q(hs[-1]) @ q(ref["fc_w"]).T + ref["fc_b"]
    return logits, (jnp.stack(hs), jnp.stack(cs))


if __name__ == "__main__":
    vocab_size, embedding_dim, hidden_dim, num_layers = 32, 16, 32, 2
    batch, seq = 2, 8

    key = jax.random.PRNGKey(0)
    k_param, k_data = jax.random.split(key)
    params = init_params(k_param, vocab_size, embedding_dim, hidden_dim,
                         num_layers)
    x_ids = jax.random.randint(k_data, (batch, seq), 0, vocab_size,
                               dtype=jnp.int32)

    bf16_gates = _use_bf16_gate_activations()
    logits, (h_n, c_n) = char_lstm_forward(params, x_ids, hidden=None,
                                           bf16_gates=bf16_gates)
    jax.block_until_ready((logits, h_n, c_n))

    assert logits.shape == (batch, vocab_size)
    assert h_n.shape == (num_layers, batch, hidden_dim)
    assert c_n.shape == (num_layers, batch, hidden_dim)

    # Numerical sanity check against the pure-JAX reference.
    ref_logits, (ref_h, ref_c) = _reference_forward(params, x_ids, hidden=None,
                                                    bf16_gates=bf16_gates)
    tol = 5e-2
    assert jnp.allclose(logits, ref_logits, atol=tol, rtol=tol), \
        float(jnp.max(jnp.abs(logits - ref_logits)))
    assert jnp.allclose(h_n, ref_h, atol=tol, rtol=tol), \
        float(jnp.max(jnp.abs(h_n - ref_h)))
    assert jnp.allclose(c_n, ref_c, atol=tol, rtol=tol), \
        float(jnp.max(jnp.abs(c_n - ref_c)))

    print("KERNEL_OK")
</pallas_src>

<mosaic_0001>
module attributes {stable_mosaic.version = 11 : i64} {
  func.func @kernel(%arg0: memref<128x128xbf16, #tpu.memory_space<vmem>>, %arg1: memref<2x16x128xf32, #tpu.memory_space<vmem>>, %arg2: memref<2x16x128xf32, #tpu.memory_space<vmem>>, %arg3: memref<128x512xbf16, #tpu.memory_space<vmem>>, %arg4: memref<128x512xbf16, #tpu.memory_space<vmem>>, %arg5: memref<1x512xf32, #tpu.memory_space<vmem>>, %arg6: memref<128x512xbf16, #tpu.memory_space<vmem>>, %arg7: memref<128x512xbf16, #tpu.memory_space<vmem>>, %arg8: memref<1x512xf32, #tpu.memory_space<vmem>>, %arg9: memref<128x128xbf16, #tpu.memory_space<vmem>>, %arg10: memref<1x128xf32, #tpu.memory_space<vmem>>, %arg11: memref<16x128xf32, #tpu.memory_space<vmem>>, %arg12: memref<2x16x128xf32, #tpu.memory_space<vmem>>, %arg13: memref<2x16x128xf32, #tpu.memory_space<vmem>>, %arg14: memref<128x512xbf16, #tpu.memory_space<vmem>>, %arg15: memref<128x128xbf16, #tpu.memory_space<vmem>>) attributes {dimension_semantics = [], scalar_prefetch = 0 : i64, scratch_operands = 2 : i64, tpu.core_type = #tpu.core_type<tc>} {
    %c0 = arith.constant 0 : index
    %c0_0 = arith.constant 0 : index
    %c0_1 = arith.constant 0 : index
    %0 = vector.load %arg1[%c0, %c0_0, %c0_1] : memref<2x16x128xf32, #tpu.memory_space<vmem>>, vector<1x16x128xf32>
    %1 = vector.shape_cast %0 : vector<1x16x128xf32> to vector<16x128xf32>
    %c0_2 = arith.constant 0 : index
    %c0_3 = arith.constant 0 : index
    %c0_4 = arith.constant 0 : index
    %2 = vector.load %arg2[%c0_2, %c0_3, %c0_4] : memref<2x16x128xf32, #tpu.memory_space<vmem>>, vector<1x16x128xf32>
    %3 = vector.shape_cast %2 : vector<1x16x128xf32> to vector<16x128xf32>
    %c0_5 = arith.constant 0 : index
    %c0_6 = arith.constant 0 : index
    %4 = vector.load %arg0[%c0_5, %c0_6] : memref<128x128xbf16, #tpu.memory_space<vmem>>, vector<128x128xbf16>
    %c0_7 = arith.constant 0 : index
    %c0_8 = arith.constant 0 : index
    %5 = vector.load %arg3[%c0_7, %c0_8] : memref<128x512xbf16, #tpu.memory_space<vmem>>, vector<128x512xbf16>
    %cst = arith.constant dense<0.000000e+00> : vector<128x512xf32>
    %6 = tpu.matmul %4, %5, %cst {dimension_numbers = #tpu.dot_dimension_numbers<[1], [0], [0], [1], [0, 0, 1, 1], [], []>} : vector<128x128xbf16>, vector<128x512xbf16>, vector<128x512xf32> -> vector<128x512xf32>
    %7 = arith.truncf %6 : vector<128x512xf32> to vector<128x512xbf16>
    %c0_9 = arith.constant 0 : index
    %c0_10 = arith.constant 0 : index
    %8 = vector.load %arg14[%c0_9, %c0_10] : memref<128x512xbf16, #tpu.memory_space<vmem>>, vector<128x512xbf16>
    tpu.vector_store %arg14[%c0_9, %c0_10], %7 {strides = array<i32>} : memref<128x512xbf16, #tpu.memory_space<vmem>>, vector<128x512xbf16>,
    %c0_11 = arith.constant 0 : index
    %c0_12 = arith.constant 0 : index
    %9 = vector.load %arg5[%c0_11, %c0_12] : memref<1x512xf32, #tpu.memory_space<vmem>>, vector<1x512xf32>
    %c0_i32 = arith.constant 0 : i32
    %c16_i32 = arith.constant 16 : i32
    %10 = arith.muli %c0_i32, %c16_i32 : i32
    %11 = tpu.assume_multiple %10, 16 : i32
    %12 = arith.index_cast %11 : i32 to index
    %c0_13 = arith.constant 0 : index
    %13 = vector.load %arg14[%12, %c0_13] : memref<128x512xbf16, #tpu.memory_space<vmem>>, vector<16x512xbf16>
    %14 = arith.extf %13 : vector<16x512xbf16> to vector<16x512xf32>
    %15 = arith.truncf %1 : vector<16x128xf32> to vector<16x128xbf16>
    %c0_14 = arith.constant 0 : index
    %c0_15 = arith.constant 0 : index
    %16 = vector.load %arg4[%c0_14, %c0_15] : memref<128x512xbf16, #tpu.memory_space<vmem>>, vector<128x512xbf16>
    %cst_16 = arith.constant dense<0.000000e+00> : vector<16x512xf32>
    %17 = tpu.matmul %15, %16, %cst_16 {dimension_numbers = #tpu.dot_dimension_numbers<[1], [0], [0], [1], [0, 0, 1, 1], [], []>} : vector<16x128xbf16>, vector<128x512xbf16>, vector<16x512xf32> -> vector<16x512xf32>
    %18 = arith.addf %14, %17 : vector<16x512xf32>
    %19 = vector.broadcast %9 : vector<1x512xf32> to vector<16x512xf32>
    %20 = arith.addf %18, %19 : vector<16x512xf32>
    %21 = vector.extract_strided_slice %20 {offsets = [0, 0], sizes = [16, 128], strides = [1, 1]} : vector<16x512xf32> to vector<16x128xf32>
    %22 = arith.negf %21 : vector<16x128xf32>
    %23 = math.exp %22 : vector<16x128xf32>
    %cst_17 = arith.constant 1.000000e+00 : f32
    %24 = vector.broadcast %cst_17 : f32 to vector<16x128xf32>
    %25 = arith.addf %24, %23 : vector<16x128xf32>
    %26 = arith.divf %24, %25 : vector<16x128xf32>
    %27 = vector.extract_strided_slice %20 {offsets = [0, 128], sizes = [16, 128], strides = [1, 1]} : vector<16x512xf32> to vector<16x128xf32>
    %28 = arith.negf %27 : vector<16x128xf32>
    %29 = math.exp %28 : vector<16x128xf32>
    %cst_18 = arith.constant 1.000000e+00 : f32
    %30 = vector.broadcast %cst_18 : f32 to vector<16x128xf32>
    %31 = arith.addf %30, %29 : vector<16x128xf32>
    %32 = arith.divf %30, %31 : vector<16x128xf32>
    %33 = vector.extract_strided_slice %20 {offsets = [0, 256], sizes = [16, 128], strides = [1, 1]} : vector<16x512xf32> to vector<16x128xf32>
    %34 = math.tanh %33 : vector<16x128xf32>
    %35 = vector.extract_strided_slice %20 {offsets = [0, 384], sizes = [16, 128], strides = [1, 1]} : vector<16x512xf32> to vector<16x128xf32>
    %36 = arith.negf %35 : vector<16x128xf32>
    %37 = math.exp %36 : vector<16x128xf32>
    %cst_19 = arith.constant 1.000000e+00 : f32
    %38 = vector.broadcast %cst_19 : f32 to vector<16x128xf32>
    %39 = arith.addf %38, %37 : vector<16x128xf32>
    %40 = arith.divf %38, %39 : vector<16x128xf32>
    %41 = arith.mulf %32, %3 : vector<16x128xf32>
    %42 = arith.mulf %26, %34 : vector<16x128xf32>
    %43 = arith.addf %41, %42 : vector<16x128xf32>
    %44 = math.tanh %43 : vector<16x128xf32>
    %45 = arith.mulf %40, %44 : vector<16x128xf32>
    %46 = arith.truncf %45 : vector<16x128xf32> to vector<16x128xbf16>
    %c0_i32_20 = arith.constant 0 : i32
    %47 = arith.addi %c0_i32_20, %11 : i32
    %48 = arith.index_cast %47 : i32 to index
    %c0_21 = arith.constant 0 : index
    %49 = vector.load %arg15[%48, %c0_21] : memref<128x128xbf16, #tpu.memory_space<vmem>>, vector<16x128xbf16>
    tpu.vector_store %arg15[%48, %c0_21], %46 {strides = array<i32>} : memref<128x128xbf16, #tpu.memory_space<vmem>>, vector<16x128xbf16>,
    %c1_i32 = arith.constant 1 : i32
    %c16_i32_22 = arith.constant 16 : i32
    %50 = arith.muli %c1_i32, %c16_i32_22 : i32
    %51 = tpu.assume_multiple %50, 16 : i32
    %52 = arith.index_cast %51 : i32 to index
    %c0_23 = arith.constant 0 : index
    %53 = vector.load %arg14[%52, %c0_23] : memref<128x512xbf16, #tpu.memory_space<vmem>>, vector<16x512xbf16>
    %54 = arith.extf %53 : vector<16x512xbf16> to vector<16x512xf32>
    %55 = arith.truncf %45 : vector<16x128xf32> to vector<16x128xbf16>
    %c0_24 = arith.constant 0 : index
    %c0_25 = arith.constant 0 : index
    %56 = vector.load %arg4[%c0_24, %c0_25] : memref<128x512xbf16, #tpu.memory_space<vmem>>, vector<128x512xbf16>
    %cst_26 = arith.constant dense<0.000000e+00> : vector<16x512xf32>
    %57 = tpu.matmul %55, %56, %cst_26 {dimension_numbers = #tpu.dot_dimension_numbers<[1], [0], [0], [1], [0, 0, 1, 1], [], []>} : vector<16x128xbf16>, vector<128x512xbf16>, vector<16x512xf32> -> vector<16x512xf32>
    %58 = arith.addf %54, %57 : vector<16x512xf32>
    %59 = vector.broadcast %9 : vector<1x512xf32> to vector<16x512xf32>
    %60 = arith.addf %58, %59 : vector<16x512xf32>
    %61 = vector.extract_strided_slice %60 {offsets = [0, 0], sizes = [16, 128], strides = [1, 1]} : vector<16x512xf32> to vector<16x128xf32>
    %62 = arith.negf %61 : vector<16x128xf32>
    %63 = math.exp %62 : vector<16x128xf32>
    %cst_27 = arith.constant 1.000000e+00 : f32
    %64 = vector.broadcast %cst_27 : f32 to vector<16x128xf32>
    %65 = arith.addf %64, %63 : vector<16x128xf32>
    %66 = arith.divf %64, %65 : vector<16x128xf32>
    %67 = vector.extract_strided_slice %60 {offsets = [0, 128], sizes = [16, 128], strides = [1, 1]} : vector<16x512xf32> to vector<16x128xf32>
    %68 = arith.negf %67 : vector<16x128xf32>
    %69 = math.exp %68 : vector<16x128xf32>
    %cst_28 = arith.constant 1.000000e+00 : f32
    %70 = vector.broadcast %cst_28 : f32 to vector<16x128xf32>
    %71 = arith.addf %70, %69 : vector<16x128xf32>
    %72 = arith.divf %70, %71 : vector<16x128xf32>
    %73 = vector.extract_strided_slice %60 {offsets = [0, 256], sizes = [16, 128], strides = [1, 1]} : vector<16x512xf32> to vector<16x128xf32>
    %74 = math.tanh %73 : vector<16x128xf32>
    %75 = vector.extract_strided_slice %60 {offsets = [0, 384], sizes = [16, 128], strides = [1, 1]} : vector<16x512xf32> to vector<16x128xf32>
    %76 = arith.negf %75 : vector<16x128xf32>
    %77 = math.exp %76 : vector<16x128xf32>
    %cst_29 = arith.constant 1.000000e+00 : f32
    %78 = vector.broadcast %cst_29 : f32 to vector<16x128xf32>
    %79 = arith.addf %78, %77 : vector<16x128xf32>
    %80 = arith.divf %78, %79 : vector<16x128xf32>
    %81 = arith.mulf %72, %43 : vector<16x128xf32>
    %82 = arith.mulf %66, %74 : vector<16x128xf32>
    %83 = arith.addf %81, %82 : vector<16x128xf32>
    %84 = math.tanh %83 : vector<16x128xf32>
    %85 = arith.mulf %80, %84 : vector<16x128xf32>
    %86 = arith.truncf %85 : vector<16x128xf32> to vector<16x128xbf16>
    %c0_i32_30 = arith.constant 0 : i32
    %87 = arith.addi %c0_i32_30, %51 : i32
    %88 = arith.index_cast %87 : i32 to index
    %c0_31 = arith.constant 0 : index
    %89 = vector.load %arg15[%88, %c0_31] : memref<128x128xbf16, #tpu.memory_space<vmem>>, vector<16x128xbf16>
    tpu.vector_store %arg15[%88, %c0_31], %86 {strides = array<i32>} : memref<128x128xbf16, #tpu.memory_space<vmem>>, vector<16x128xbf16>,
    %c2_i32 = arith.constant 2 : i32
    %c16_i32_32 = arith.constant 16 : i32
    %90 = arith.muli %c2_i32, %c16_i32_32 : i32
    %91 = tpu.assume_multiple %90, 16 : i32
    %92 = arith.index_cast %91 : i32 to index
    %c0_33 = arith.constant 0 : index
    %93 = vector.load %arg14[%92, %c0_33] : memref<128x512xbf16, #tpu.memory_space<vmem>>, vector<16x512xbf16>
    %94 = arith.extf %93 : vector<16x512xbf16> to vector<16x512xf32>
    %95 = arith.truncf %85 : vector<16x128xf32> to vector<16x128xbf16>
    %c0_34 = arith.constant 0 : index
    %c0_35 = arith.constant 0 : index
    %96 = vector.load %arg4[%c0_34, %c0_35] : memref<128x512xbf16, #tpu.memory_space<vmem>>, vector<128x512xbf16>
    %cst_36 = arith.constant dense<0.000000e+00> : vector<16x512xf32>
    %97 = tpu.matmul %95, %96, %cst_36 {dimension_numbers = #tpu.dot_dimension_numbers<[1], [0], [0], [1], [0, 0, 1, 1], [], []>} : vector<16x128xbf16>, vector<128x512xbf16>, vector<16x512xf32> -> vector<16x512xf32>
    %98 = arith.addf %94, %97 : vector<16x512xf32>
    %99 = vector.broadcast %9 : vector<1x512xf32> to vector<16x512xf32>
    %100 = arith.addf %98, %99 : vector<16x512xf32>
    %101 = vector.extract_strided_slice %100 {offsets = [0, 0], sizes = [16, 128], strides = [1, 1]} : vector<16x512xf32> to vector<16x128xf32>
    %102 = arith.negf %101 : vector<16x128xf32>
    %103 = math.exp %102 : vector<16x128xf32>
    %cst_37 = arith.constant 1.000000e+00 : f32
    %104 = vector.broadcast %cst_37 : f32 to vector<16x128xf32>
    %105 = arith.addf %104, %103 : vector<16x128xf32>
    %106 = arith.divf %104, %105 : vector<16x128xf32>
    %107 = vector.extract_strided_slice %100 {offsets = [0, 128], sizes = [16, 128], strides = [1, 1]} : vector<16x512xf32> to vector<16x128xf32>
    %108 = arith.negf %107 : vector<16x128xf32>
    %109 = math.exp %108 : vector<16x128xf32>
    %cst_38 = arith.constant 1.000000e+00 : f32
    %110 = vector.broadcast %cst_38 : f32 to vector<16x128xf32>
    %111 = arith.addf %110, %109 : vector<16x128xf32>
    %112 = arith.divf %110, %111 : vector<16x128xf32>
    %113 = vector.extract_strided_slice %100 {offsets = [0, 256], sizes = [16, 128], strides = [1, 1]} : vector<16x512xf32> to vector<16x128xf32>
    %114 = math.tanh %113 : vector<16x128xf32>
    %115 = vector.extract_strided_slice %100 {offsets = [0, 384], sizes = [16, 128], strides = [1, 1]} : vector<16x512xf32> to vector<16x128xf32>
    %116 = arith.negf %115 : vector<16x128xf32>
    %117 = math.exp %116 : vector<16x128xf32>
    %cst_39 = arith.constant 1.000000e+00 : f32
    %118 = vector.broadcast %cst_39 : f32 to vector<16x128xf32>
    %119 = arith.addf %118, %117 : vector<16x128xf32>
    %120 = arith.divf %118, %119 : vector<16x128xf32>
    %121 = arith.mulf %112, %83 : vector<16x128xf32>
    %122 = arith.mulf %106, %114 : vector<16x128xf32>
    %123 = arith.addf %121, %122 : vector<16x128xf32>
    %124 = math.tanh %123 : vector<16x128xf32>
    %125 = arith.mulf %120, %124 : vector<16x128xf32>
    %126 = arith.truncf %125 : vector<16x128xf32> to vector<16x128xbf16>
    %c0_i32_40 = arith.constant 0 : i32
    %127 = arith.addi %c0_i32_40, %91 : i32
    %128 = arith.index_cast %127 : i32 to index
    %c0_41 = arith.constant 0 : index
    %129 = vector.load %arg15[%128, %c0_41] : memref<128x128xbf16, #tpu.memory_space<vmem>>, vector<16x128xbf16>
    tpu.vector_store %arg15[%128, %c0_41], %126 {strides = array<i32>} : memref<128x128xbf16, #tpu.memory_space<vmem>>, vector<16x128xbf16>,
    %c3_i32 = arith.constant 3 : i32
    %c16_i32_42 = arith.constant 16 : i32
    %130 = arith.muli %c3_i32, %c16_i32_42 : i32
    %131 = tpu.assume_multiple %130, 16 : i32
    %132 = arith.index_cast %131 : i32 to index
    %c0_43 = arith.constant 0 : index
    %133 = vector.load %arg14[%132, %c0_43] : memref<128x512xbf16, #tpu.memory_space<vmem>>, vector<16x512xbf16>
    %134 = arith.extf %133 : vector<16x512xbf16> to vector<16x512xf32>
    %135 = arith.truncf %125 : vector<16x128xf32> to vector<16x128xbf16>
    %c0_44 = arith.constant 0 : index
    %c0_45 = arith.constant 0 : index
    %136 = vector.load %arg4[%c0_44, %c0_45] : memref<128x512xbf16, #tpu.memory_space<vmem>>, vector<128x512xbf16>
    %cst_46 = arith.constant dense<0.000000e+00> : vector<16x512xf32>
    %137 = tpu.matmul %135, %136, %cst_46 {dimension_numbers = #tpu.dot_dimension_numbers<[1], [0], [0], [1], [0, 0, 1, 1], [], []>} : vector<16x128xbf16>, vector<128x512xbf16>, vector<16x512xf32> -> vector<16x512xf32>
    %138 = arith.addf %134, %137 : vector<16x512xf32>
    %139 = vector.broadcast %9 : vector<1x512xf32> to vector<16x512xf32>
    %140 = arith.addf %138, %139 : vector<16x512xf32>
    %141 = vector.extract_strided_slice %140 {offsets = [0, 0], sizes = [16, 128], strides = [1, 1]} : vector<16x512xf32> to vector<16x128xf32>
    %142 = arith.negf %141 : vector<16x128xf32>
    %143 = math.exp %142 : vector<16x128xf32>
    %cst_47 = arith.constant 1.000000e+00 : f32
    %144 = vector.broadcast %cst_47 : f32 to vector<16x128xf32>
    %145 = arith.addf %144, %143 : vector<16x128xf32>
    %146 = arith.divf %144, %145 : vector<16x128xf32>
    %147 = vector.extract_strided_slice %140 {offsets = [0, 128], sizes = [16, 128], strides = [1, 1]} : vector<16x512xf32> to vector<16x128xf32>
    %148 = arith.negf %147 : vector<16x128xf32>
    %149 = math.exp %148 : vector<16x128xf32>
    %cst_48 = arith.constant 1.000000e+00 : f32
    %150 = vector.broadcast %cst_48 : f32 to vector<16x128xf32>
    %151 = arith.addf %150, %149 : vector<16x128xf32>
    %152 = arith.divf %150, %151 : vector<16x128xf32>
    %153 = vector.extract_strided_slice %140 {offsets = [0, 256], sizes = [16, 128], strides = [1, 1]} : vector<16x512xf32> to vector<16x128xf32>
    %154 = math.tanh %153 : vector<16x128xf32>
    %155 = vector.extract_strided_slice %140 {offsets = [0, 384], sizes = [16, 128], strides = [1, 1]} : vector<16x512xf32> to vector<16x128xf32>
    %156 = arith.negf %155 : vector<16x128xf32>
    %157 = math.exp %156 : vector<16x128xf32>
    %cst_49 = arith.constant 1.000000e+00 : f32
    %158 = vector.broadcast %cst_49 : f32 to vector<16x128xf32>
    %159 = arith.addf %158, %157 : vector<16x128xf32>
    %160 = arith.divf %158, %159 : vector<16x128xf32>
    %161 = arith.mulf %152, %123 : vector<16x128xf32>
    %162 = arith.mulf %146, %154 : vector<16x128xf32>
    %163 = arith.addf %161, %162 : vector<16x128xf32>
    %164 = math.tanh %163 : vector<16x128xf32>
    %165 = arith.mulf %160, %164 : vector<16x128xf32>
    %166 = arith.truncf %165 : vector<16x128xf32> to vector<16x128xbf16>
    %c0_i32_50 = arith.constant 0 : i32
    %167 = arith.addi %c0_i32_50, %131 : i32
    %168 = arith.index_cast %167 : i32 to index
    %c0_51 = arith.constant 0 : index
    %169 = vector.load %arg15[%168, %c0_51] : memref<128x128xbf16, #tpu.memory_space<vmem>>, vector<16x128xbf16>
    tpu.vector_store %arg15[%168, %c0_51], %166 {strides = array<i32>} : memref<128x128xbf16, #tpu.memory_space<vmem>>, vector<16x128xbf16>,
    %c4_i32 = arith.constant 4 : i32
    %c16_i32_52 = arith.constant 16 : i32
    %170 = arith.muli %c4_i32, %c16_i32_52 : i32
    %171 = tpu.assume_multiple %170, 16 : i32
    %172 = arith.index_cast %171 : i32 to index
    %c0_53 = arith.constant 0 : index
    %173 = vector.load %arg14[%172, %c0_53] : memref<128x512xbf16, #tpu.memory_space<vmem>>, vector<16x512xbf16>
    %174 = arith.extf %173 : vector<16x512xbf16> to vector<16x512xf32>
    %175 = arith.truncf %165 : vector<16x128xf32> to vector<16x128xbf16>
    %c0_54 = arith.constant 0 : index
    %c0_55 = arith.constant 0 : index
    %176 = vector.load %arg4[%c0_54, %c0_55] : memref<128x512xbf16, #tpu.memory_space<vmem>>, vector<128x512xbf16>
    %cst_56 = arith.constant dense<0.000000e+00> : vector<16x512xf32>
    %177 = tpu.matmul %175, %176, %cst_56 {dimension_numbers = #tpu.dot_dimension_numbers<[1], [0], [0], [1], [0, 0, 1, 1], [], []>} : vector<16x128xbf16>, vector<128x512xbf16>, vector<16x512xf32> -> vector<16x512xf32>
    %178 = arith.addf %174, %177 : vector<16x512xf32>
    %179 = vector.broadcast %9 : vector<1x512xf32> to vector<16x512xf32>
    %180 = arith.addf %178, %179 : vector<16x512xf32>
    %181 = vector.extract_strided_slice %180 {offsets = [0, 0], sizes = [16, 128], strides = [1, 1]} : vector<16x512xf32> to vector<16x128xf32>
    %182 = arith.negf %181 : vector<16x128xf32>
    %183 = math.exp %182 : vector<16x128xf32>
    %cst_57 = arith.constant 1.000000e+00 : f32
    %184 = vector.broadcast %cst_57 : f32 to vector<16x128xf32>
    %185 = arith.addf %184, %183 : vector<16x128xf32>
    %186 = arith.divf %184, %185 : vector<16x128xf32>
    %187 = vector.extract_strided_slice %180 {offsets = [0, 128], sizes = [16, 128], strides = [1, 1]} : vector<16x512xf32> to vector<16x128xf32>
    %188 = arith.negf %187 : vector<16x128xf32>
    %189 = math.exp %188 : vector<16x128xf32>
    %cst_58 = arith.constant 1.000000e+00 : f32
    %190 = vector.broadcast %cst_58 : f32 to vector<16x128xf32>
    %191 = arith.addf %190, %189 : vector<16x128xf32>
    %192 = arith.divf %190, %191 : vector<16x128xf32>
    %193 = vector.extract_strided_slice %180 {offsets = [0, 256], sizes = [16, 128], strides = [1, 1]} : vector<16x512xf32> to vector<16x128xf32>
    %194 = math.tanh %193 : vector<16x128xf32>
    %195 = vector.extract_strided_slice %180 {offsets = [0, 384], sizes = [16, 128], strides = [1, 1]} : vector<16x512xf32> to vector<16x128xf32>
    %196 = arith.negf %195 : vector<16x128xf32>
    %197 = math.exp %196 : vector<16x128xf32>
    %cst_59 = arith.constant 1.000000e+00 : f32
    %198 = vector.broadcast %cst_59 : f32 to vector<16x128xf32>
    %199 = arith.addf %198, %197 : vector<16x128xf32>
    %200 = arith.divf %198, %199 : vector<16x128xf32>
    %201 = arith.mulf %192, %163 : vector<16x128xf32>
    %202 = arith.mulf %186, %194 : vector<16x128xf32>
    %203 = arith.addf %201, %202 : vector<16x128xf32>
    %204 = math.tanh %203 : vector<16x128xf32>
    %205 = arith.mulf %200, %204 : vector<16x128xf32>
    %206 = arith.truncf %205 : vector<16x128xf32> to vector<16x128xbf16>
    %c0_i32_60 = arith.constant 0 : i32
    %207 = arith.addi %c0_i32_60, %171 : i32
    %208 = arith.index_cast %207 : i32 to index
    %c0_61 = arith.constant 0 : index
    %209 = vector.load %arg15[%208, %c0_61] : memref<128x128xbf16, #tpu.memory_space<vmem>>, vector<16x128xbf16>
    tpu.vector_store %arg15[%208, %c0_61], %206 {strides = array<i32>} : memref<128x128xbf16, #tpu.memory_space<vmem>>, vector<16x128xbf16>,
    %c5_i32 = arith.constant 5 : i32
    %c16_i32_62 = arith.constant 16 : i32
    %210 = arith.muli %c5_i32, %c16_i32_62 : i32
    %211 = tpu.assume_multiple %210, 16 : i32
    %212 = arith.index_cast %211 : i32 to index
    %c0_63 = arith.constant 0 : index
    %213 = vector.load %arg14[%212, %c0_63] : memref<128x512xbf16, #tpu.memory_space<vmem>>, vector<16x512xbf16>
    %214 = arith.extf %213 : vector<16x512xbf16> to vector<16x512xf32>
    %215 = arith.truncf %205 : vector<16x128xf32> to vector<16x128xbf16>
    %c0_64 = arith.constant 0 : index
    %c0_65 = arith.constant 0 : index
    %216 = vector.load %arg4[%c0_64, %c0_65] : memref<128x512xbf16, #tpu.memory_space<vmem>>, vector<128x512xbf16>
    %cst_66 = arith.constant dense<0.000000e+00> : vector<16x512xf32>
    %217 = tpu.matmul %215, %216, %cst_66 {dimension_numbers = #tpu.dot_dimension_numbers<[1], [0], [0], [1], [0, 0, 1, 1], [], []>} : vector<16x128xbf16>, vector<128x512xbf16>, vector<16x512xf32> -> vector<16x512xf32>
    %218 = arith.addf %214, %217 : vector<16x512xf32>
    %219 = vector.broadcast %9 : vector<1x512xf32> to vector<16x512xf32>
    %220 = arith.addf %218, %219 : vector<16x512xf32>
    %221 = vector.extract_strided_slice %220 {offsets = [0, 0], sizes = [16, 128], strides = [1, 1]} : vector<16x512xf32> to vector<16x128xf32>
    %222 = arith.negf %221 : vector<16x128xf32>
    %223 = math.exp %222 : vector<16x128xf32>
    %cst_67 = arith.constant 1.000000e+00 : f32
    %224 = vector.broadcast %cst_67 : f32 to vector<16x128xf32>
    %225 = arith.addf %224, %223 : vector<16x128xf32>
    %226 = arith.divf %224, %225 : vector<16x128xf32>
    %227 = vector.extract_strided_slice %220 {offsets = [0, 128], sizes = [16, 128], strides = [1, 1]} : vector<16x512xf32> to vector<16x128xf32>
    %228 = arith.negf %227 : vector<16x128xf32>
    %229 = math.exp %228 : vector<16x128xf32>
    %cst_68 = arith.constant 1.000000e+00 : f32
    %230 = vector.broadcast %cst_68 : f32 to vector<16x128xf32>
    %231 = arith.addf %230, %229 : vector<16x128xf32>
    %232 = arith.divf %230, %231 : vector<16x128xf32>
    %233 = vector.extract_strided_slice %220 {offsets = [0, 256], sizes = [16, 128], strides = [1, 1]} : vector<16x512xf32> to vector<16x128xf32>
    %234 = math.tanh %233 : vector<16x128xf32>
    %235 = vector.extract_strided_slice %220 {offsets = [0, 384], sizes = [16, 128], strides = [1, 1]} : vector<16x512xf32> to vector<16x128xf32>
    %236 = arith.negf %235 : vector<16x128xf32>
    %237 = math.exp %236 : vector<16x128xf32>
    %cst_69 = arith.constant 1.000000e+00 : f32
    %238 = vector.broadcast %cst_69 : f32 to vector<16x128xf32>
    %239 = arith.addf %238, %237 : vector<16x128xf32>
    %240 = arith.divf %238, %239 : vector<16x128xf32>
    %241 = arith.mulf %232, %203 : vector<16x128xf32>
    %242 = arith.mulf %226, %234 : vector<16x128xf32>
    %243 = arith.addf %241, %242 : vector<16x128xf32>
    %244 = math.tanh %243 : vector<16x128xf32>
    %245 = arith.mulf %240, %244 : vector<16x128xf32>
    %246 = arith.truncf %245 : vector<16x128xf32> to vector<16x128xbf16>
    %c0_i32_70 = arith.constant 0 : i32
    %247 = arith.addi %c0_i32_70, %211 : i32
    %248 = arith.index_cast %247 : i32 to index
    %c0_71 = arith.constant 0 : index
    %249 = vector.load %arg15[%248, %c0_71] : memref<128x128xbf16, #tpu.memory_space<vmem>>, vector<16x128xbf16>
    tpu.vector_store %arg15[%248, %c0_71], %246 {strides = array<i32>} : memref<128x128xbf16, #tpu.memory_space<vmem>>, vector<16x128xbf16>,
    %c6_i32 = arith.constant 6 : i32
    %c16_i32_72 = arith.constant 16 : i32
    %250 = arith.muli %c6_i32, %c16_i32_72 : i32
    %251 = tpu.assume_multiple %250, 16 : i32
    %252 = arith.index_cast %251 : i32 to index
    %c0_73 = arith.constant 0 : index
    %253 = vector.load %arg14[%252, %c0_73] : memref<128x512xbf16, #tpu.memory_space<vmem>>, vector<16x512xbf16>
    %254 = arith.extf %253 : vector<16x512xbf16> to vector<16x512xf32>
    %255 = arith.truncf %245 : vector<16x128xf32> to vector<16x128xbf16>
    %c0_74 = arith.constant 0 : index
    %c0_75 = arith.constant 0 : index
    %256 = vector.load %arg4[%c0_74, %c0_75] : memref<128x512xbf16, #tpu.memory_space<vmem>>, vector<128x512xbf16>
    %cst_76 = arith.constant dense<0.000000e+00> : vector<16x512xf32>
    %257 = tpu.matmul %255, %256, %cst_76 {dimension_numbers = #tpu.dot_dimension_numbers<[1], [0], [0], [1], [0, 0, 1, 1], [], []>} : vector<16x128xbf16>, vector<128x512xbf16>, vector<16x512xf32> -> vector<16x512xf32>
    %258 = arith.addf %254, %257 : vector<16x512xf32>
    %259 = vector.broadcast %9 : vector<1x512xf32> to vector<16x512xf32>
    %260 = arith.addf %258, %259 : vector<16x512xf32>
    %261 = vector.extract_strided_slice %260 {offsets = [0, 0], sizes = [16, 128], strides = [1, 1]} : vector<16x512xf32> to vector<16x128xf32>
    %262 = arith.negf %261 : vector<16x128xf32>
    %263 = math.exp %262 : vector<16x128xf32>
    %cst_77 = arith.constant 1.000000e+00 : f32
    %264 = vector.broadcast %cst_77 : f32 to vector<16x128xf32>
    %265 = arith.addf %264, %263 : vector<16x128xf32>
    %266 = arith.divf %264, %265 : vector<16x128xf32>
    %267 = vector.extract_strided_slice %260 {offsets = [0, 128], sizes = [16, 128], strides = [1, 1]} : vector<16x512xf32> to vector<16x128xf32>
    %268 = arith.negf %267 : vector<16x128xf32>
    %269 = math.exp %268 : vector<16x128xf32>
    %cst_78 = arith.constant 1.000000e+00 : f32
    %270 = vector.broadcast %cst_78 : f32 to vector<16x128xf32>
    %271 = arith.addf %270, %269 : vector<16x128xf32>
    %272 = arith.divf %270, %271 : vector<16x128xf32>
    %273 = vector.extract_strided_slice %260 {offsets = [0, 256], sizes = [16, 128], strides = [1, 1]} : vector<16x512xf32> to vector<16x128xf32>
    %274 = math.tanh %273 : vector<16x128xf32>
    %275 = vector.extract_strided_slice %260 {offsets = [0, 384], sizes = [16, 128], strides = [1, 1]} : vector<16x512xf32> to vector<16x128xf32>
    %276 = arith.negf %275 : vector<16x128xf32>
    %277 = math.exp %276 : vector<16x128xf32>
    %cst_79 = arith.constant 1.000000e+00 : f32
    %278 = vector.broadcast %cst_79 : f32 to vector<16x128xf32>
    %279 = arith.addf %278, %277 : vector<16x128xf32>
    %280 = arith.divf %278, %279 : vector<16x128xf32>
    %281 = arith.mulf %272, %243 : vector<16x128xf32>
    %282 = arith.mulf %266, %274 : vector<16x128xf32>
    %283 = arith.addf %281, %282 : vector<16x128xf32>
    %284 = math.tanh %283 : vector<16x128xf32>
    %285 = arith.mulf %280, %284 : vector<16x128xf32>
    %286 = arith.truncf %285 : vector<16x128xf32> to vector<16x128xbf16>
    %c0_i32_80 = arith.constant 0 : i32
    %287 = arith.addi %c0_i32_80, %251 : i32
    %288 = arith.index_cast %287 : i32 to index
    %c0_81 = arith.constant 0 : index
    %289 = vector.load %arg15[%288, %c0_81] : memref<128x128xbf16, #tpu.memory_space<vmem>>, vector<16x128xbf16>
    tpu.vector_store %arg15[%288, %c0_81], %286 {strides = array<i32>} : memref<128x128xbf16, #tpu.memory_space<vmem>>, vector<16x128xbf16>,
    %c7_i32 = arith.constant 7 : i32
    %c16_i32_82 = arith.constant 16 : i32
    %290 = arith.muli %c7_i32, %c16_i32_82 : i32
    %291 = tpu.assume_multiple %290, 16 : i32
    %292 = arith.index_cast %291 : i32 to index
    %c0_83 = arith.constant 0 : index
    %293 = vector.load %arg14[%292, %c0_83] : memref<128x512xbf16, #tpu.memory_space<vmem>>, vector<16x512xbf16>
    %294 = arith.extf %293 : vector<16x512xbf16> to vector<16x512xf32>
    %295 = arith.truncf %285 : vector<16x128xf32> to vector<16x128xbf16>
    %c0_84 = arith.constant 0 : index
    %c0_85 = arith.constant 0 : index
    %296 = vector.load %arg4[%c0_84, %c0_85] : memref<128x512xbf16, #tpu.memory_space<vmem>>, vector<128x512xbf16>
    %cst_86 = arith.constant dense<0.000000e+00> : vector<16x512xf32>
    %297 = tpu.matmul %295, %296, %cst_86 {dimension_numbers = #tpu.dot_dimension_numbers<[1], [0], [0], [1], [0, 0, 1, 1], [], []>} : vector<16x128xbf16>, vector<128x512xbf16>, vector<16x512xf32> -> vector<16x512xf32>
    %298 = arith.addf %294, %297 : vector<16x512xf32>
    %299 = vector.broadcast %9 : vector<1x512xf32> to vector<16x512xf32>
    %300 = arith.addf %298, %299 : vector<16x512xf32>
    %301 = vector.extract_strided_slice %300 {offsets = [0, 0], sizes = [16, 128], strides = [1, 1]} : vector<16x512xf32> to vector<16x128xf32>
    %302 = arith.negf %301 : vector<16x128xf32>
    %303 = math.exp %302 : vector<16x128xf32>
    %cst_87 = arith.constant 1.000000e+00 : f32
    %304 = vector.broadcast %cst_87 : f32 to vector<16x128xf32>
    %305 = arith.addf %304, %303 : vector<16x128xf32>
    %306 = arith.divf %304, %305 : vector<16x128xf32>
    %307 = vector.extract_strided_slice %300 {offsets = [0, 128], sizes = [16, 128], strides = [1, 1]} : vector<16x512xf32> to vector<16x128xf32>
    %308 = arith.negf %307 : vector<16x128xf32>
    %309 = math.exp %308 : vector<16x128xf32>
    %cst_88 = arith.constant 1.000000e+00 : f32
    %310 = vector.broadcast %cst_88 : f32 to vector<16x128xf32>
    %311 = arith.addf %310, %309 : vector<16x128xf32>
    %312 = arith.divf %310, %311 : vector<16x128xf32>
    %313 = vector.extract_strided_slice %300 {offsets = [0, 256], sizes = [16, 128], strides = [1, 1]} : vector<16x512xf32> to vector<16x128xf32>
    %314 = math.tanh %313 : vector<16x128xf32>
    %315 = vector.extract_strided_slice %300 {offsets = [0, 384], sizes = [16, 128], strides = [1, 1]} : vector<16x512xf32> to vector<16x128xf32>
    %316 = arith.negf %315 : vector<16x128xf32>
    %317 = math.exp %316 : vector<16x128xf32>
    %cst_89 = arith.constant 1.000000e+00 : f32
    %318 = vector.broadcast %cst_89 : f32 to vector<16x128xf32>
    %319 = arith.addf %318, %317 : vector<16x128xf32>
    %320 = arith.divf %318, %319 : vector<16x128xf32>
    %321 = arith.mulf %312, %283 : vector<16x128xf32>
    %322 = arith.mulf %306, %314 : vector<16x128xf32>
    %323 = arith.addf %321, %322 : vector<16x128xf32>
    %324 = math.tanh %323 : vector<16x128xf32>
    %325 = arith.mulf %320, %324 : vector<16x128xf32>
    %326 = arith.truncf %325 : vector<16x128xf32> to vector<16x128xbf16>
    %c0_i32_90 = arith.constant 0 : i32
    %327 = arith.addi %c0_i32_90, %291 : i32
    %328 = arith.index_cast %327 : i32 to index
    %c0_91 = arith.constant 0 : index
    %329 = vector.load %arg15[%328, %c0_91] : memref<128x128xbf16, #tpu.memory_space<vmem>>, vector<16x128xbf16>
    tpu.vector_store %arg15[%328, %c0_91], %326 {strides = array<i32>} : memref<128x128xbf16, #tpu.memory_space<vmem>>, vector<16x128xbf16>,
    %c8_i32 = arith.constant 8 : i32
    %c0_92 = arith.constant 0 : index
    %c0_93 = arith.constant 0 : index
    %c0_94 = arith.constant 0 : index
    %330 = vector.load %arg12[%c0_92, %c0_93, %c0_94] : memref<2x16x128xf32, #tpu.memory_space<vmem>>, vector<1x16x128xf32>
    %331 = vector.shape_cast %330 : vector<1x16x128xf32> to vector<16x128xf32>
    %332 = vector.shape_cast %325 : vector<16x128xf32> to vector<1x16x128xf32>
    tpu.vector_store %arg12[%c0_92, %c0_93, %c0_94], %332 {strides = array<i32>} : memref<2x16x128xf32, #tpu.memory_space<vmem>>, vector<1x16x128xf32>,
    %c0_95 = arith.constant 0 : index
    %c0_96 = arith.constant 0 : index
    %c0_97 = arith.constant 0 : index
    %333 = vector.load %arg13[%c0_95, %c0_96, %c0_97] : memref<2x16x128xf32, #tpu.memory_space<vmem>>, vector<1x16x128xf32>
    %334 = vector.shape_cast %333 : vector<1x16x128xf32> to vector<16x128xf32>
    %335 = vector.shape_cast %323 : vector<16x128xf32> to vector<1x16x128xf32>
    tpu.vector_store %arg13[%c0_95, %c0_96, %c0_97], %335 {strides = array<i32>} : memref<2x16x128xf32, #tpu.memory_space<vmem>>, vector<1x16x128xf32>,
    %c1 = arith.constant 1 : index
    %c0_98 = arith.constant 0 : index
    %c0_99 = arith.constant 0 : index
    %336 = vector.load %arg1[%c1, %c0_98, %c0_99] : memref<2x16x128xf32, #tpu.memory_space<vmem>>, vector<1x16x128xf32>
    %337 = vector.shape_cast %336 : vector<1x16x128xf32> to vector<16x128xf32>
    %c1_100 = arith.constant 1 : index
    %c0_101 = arith.constant 0 : index
    %c0_102 = arith.constant 0 : index
    %338 = vector.load %arg2[%c1_100, %c0_101, %c0_102] : memref<2x16x128xf32, #tpu.memory_space<vmem>>, vector<1x16x128xf32>
    %339 = vector.shape_cast %338 : vector<1x16x128xf32> to vector<16x128xf32>
    %c0_103 = arith.constant 0 : index
    %c0_104 = arith.constant 0 : index
    %340 = vector.load %arg15[%c0_103, %c0_104] : memref<128x128xbf16, #tpu.memory_space<vmem>>, vector<128x128xbf16>
    %c0_105 = arith.constant 0 : index
    %c0_106 = arith.constant 0 : index
    %341 = vector.load %arg6[%c0_105, %c0_106] : memref<128x512xbf16, #tpu.memory_space<vmem>>, vector<128x512xbf16>
    %cst_107 = arith.constant dense<0.000000e+00> : vector<128x512xf32>
    %342 = tpu.matmul %340, %341, %cst_107 {dimension_numbers = #tpu.dot_dimension_numbers<[1], [0], [0], [1], [0, 0, 1, 1], [], []>} : vector<128x128xbf16>, vector<128x512xbf16>, vector<128x512xf32> -> vector<128x512xf32>
    %343 = arith.truncf %342 : vector<128x512xf32> to vector<128x512xbf16>
    %c0_108 = arith.constant 0 : index
    %c0_109 = arith.constant 0 : index
    %344 = vector.load %arg14[%c0_108, %c0_109] : memref<128x512xbf16, #tpu.memory_space<vmem>>, vector<128x512xbf16>
    tpu.vector_store %arg14[%c0_108, %c0_109], %343 {strides = array<i32>} : memref<128x512xbf16, #tpu.memory_space<vmem>>, vector<128x512xbf16>,
    %c0_110 = arith.constant 0 : index
    %c0_111 = arith.constant 0 : index
    %345 = vector.load %arg8[%c0_110, %c0_111] : memref<1x512xf32, #tpu.memory_space<vmem>>, vector<1x512xf32>
    %c0_i32_112 = arith.constant 0 : i32
    %c16_i32_113 = arith.constant 16 : i32
    %346 = arith.muli %c0_i32_112, %c16_i32_113 : i32
    %347 = tpu.assume_multiple %346, 16 : i32
    %348 = arith.index_cast %347 : i32 to index
    %c0_114 = arith.constant 0 : index
    %349 = vector.load %arg14[%348, %c0_114] : memref<128x512xbf16, #tpu.memory_space<vmem>>, vector<16x512xbf16>
    %350 = arith.extf %349 : vector<16x512xbf16> to vector<16x512xf32>
    %351 = arith.truncf %337 : vector<16x128xf32> to vector<16x128xbf16>
    %c0_115 = arith.constant 0 : index
    %c0_116 = arith.constant 0 : index
    %352 = vector.load %arg7[%c0_115, %c0_116] : memref<128x512xbf16, #tpu.memory_space<vmem>>, vector<128x512xbf16>
    %cst_117 = arith.constant dense<0.000000e+00> : vector<16x512xf32>
    %353 = tpu.matmul %351, %352, %cst_117 {dimension_numbers = #tpu.dot_dimension_numbers<[1], [0], [0], [1], [0, 0, 1, 1], [], []>} : vector<16x128xbf16>, vector<128x512xbf16>, vector<16x512xf32> -> vector<16x512xf32>
    %354 = arith.addf %350, %353 : vector<16x512xf32>
    %355 = vector.broadcast %345 : vector<1x512xf32> to vector<16x512xf32>
    %356 = arith.addf %354, %355 : vector<16x512xf32>
    %357 = vector.extract_strided_slice %356 {offsets = [0, 0], sizes = [16, 128], strides = [1, 1]} : vector<16x512xf32> to vector<16x128xf32>
    %358 = arith.negf %357 : vector<16x128xf32>
    %359 = math.exp %358 : vector<16x128xf32>
    %cst_118 = arith.constant 1.000000e+00 : f32
    %360 = vector.broadcast %cst_118 : f32 to vector<16x128xf32>
    %361 = arith.addf %360, %359 : vector<16x128xf32>
    %362 = arith.divf %360, %361 : vector<16x128xf32>
    %363 = vector.extract_strided_slice %356 {offsets = [0, 128], sizes = [16, 128], strides = [1, 1]} : vector<16x512xf32> to vector<16x128xf32>
    %364 = arith.negf %363 : vector<16x128xf32>
    %365 = math.exp %364 : vector<16x128xf32>
    %cst_119 = arith.constant 1.000000e+00 : f32
    %366 = vector.broadcast %cst_119 : f32 to vector<16x128xf32>
    %367 = arith.addf %366, %365 : vector<16x128xf32>
    %368 = arith.divf %366, %367 : vector<16x128xf32>
    %369 = vector.extract_strided_slice %356 {offsets = [0, 256], sizes = [16, 128], strides = [1, 1]} : vector<16x512xf32> to vector<16x128xf32>
    %370 = math.tanh %369 : vector<16x128xf32>
    %371 = vector.extract_strided_slice %356 {offsets = [0, 384], sizes = [16, 128], strides = [1, 1]} : vector<16x512xf32> to vector<16x128xf32>
    %372 = arith.negf %371 : vector<16x128xf32>
    %373 = math.exp %372 : vector<16x128xf32>
    %cst_120 = arith.constant 1.000000e+00 : f32
    %374 = vector.broadcast %cst_120 : f32 to vector<16x128xf32>
    %375 = arith.addf %374, %373 : vector<16x128xf32>
    %376 = arith.divf %374, %375 : vector<16x128xf32>
    %377 = arith.mulf %368, %339 : vector<16x128xf32>
    %378 = arith.mulf %362, %370 : vector<16x128xf32>
    %379 = arith.addf %377, %378 : vector<16x128xf32>
    %380 = math.tanh %379 : vector<16x128xf32>
    %381 = arith.mulf %376, %380 : vector<16x128xf32>
    %c1_i32_121 = arith.constant 1 : i32
    %c16_i32_122 = arith.constant 16 : i32
    %382 = arith.muli %c1_i32_121, %c16_i32_122 : i32
    %383 = tpu.assume_multiple %382, 16 : i32
    %384 = arith.index_cast %383 : i32 to index
    %c0_123 = arith.constant 0 : index
    %385 = vector.load %arg14[%384, %c0_123] : memref<128x512xbf16, #tpu.memory_space<vmem>>, vector<16x512xbf16>
    %386 = arith.extf %385 : vector<16x512xbf16> to vector<16x512xf32>
    %387 = arith.truncf %381 : vector<16x128xf32> to vector<16x128xbf16>
    %c0_124 = arith.constant 0 : index
    %c0_125 = arith.constant 0 : index
    %388 = vector.load %arg7[%c0_124, %c0_125] : memref<128x512xbf16, #tpu.memory_space<vmem>>, vector<128x512xbf16>
    %cst_126 = arith.constant dense<0.000000e+00> : vector<16x512xf32>
    %389 = tpu.matmul %387, %388, %cst_126 {dimension_numbers = #tpu.dot_dimension_numbers<[1], [0], [0], [1], [0, 0, 1, 1], [], []>} : vector<16x128xbf16>, vector<128x512xbf16>, vector<16x512xf32> -> vector<16x512xf32>
    %390 = arith.addf %386, %389 : vector<16x512xf32>
    %391 = vector.broadcast %345 : vector<1x512xf32> to vector<16x512xf32>
    %392 = arith.addf %390, %391 : vector<16x512xf32>
    %393 = vector.extract_strided_slice %392 {offsets = [0, 0], sizes = [16, 128], strides = [1, 1]} : vector<16x512xf32> to vector<16x128xf32>
    %394 = arith.negf %393 : vector<16x128xf32>
    %395 = math.exp %394 : vector<16x128xf32>
    %cst_127 = arith.constant 1.000000e+00 : f32
    %396 = vector.broadcast %cst_127 : f32 to vector<16x128xf32>
    %397 = arith.addf %396, %395 : vector<16x128xf32>
    %398 = arith.divf %396, %397 : vector<16x128xf32>
    %399 = vector.extract_strided_slice %392 {offsets = [0, 128], sizes = [16, 128], strides = [1, 1]} : vector<16x512xf32> to vector<16x128xf32>
    %400 = arith.negf %399 : vector<16x128xf32>
    %401 = math.exp %400 : vector<16x128xf32>
    %cst_128 = arith.constant 1.000000e+00 : f32
    %402 = vector.broadcast %cst_128 : f32 to vector<16x128xf32>
    %403 = arith.addf %402, %401 : vector<16x128xf32>
    %404 = arith.divf %402, %403 : vector<16x128xf32>
    %405 = vector.extract_strided_slice %392 {offsets = [0, 256], sizes = [16, 128], strides = [1, 1]} : vector<16x512xf32> to vector<16x128xf32>
    %406 = math.tanh %405 : vector<16x128xf32>
    %407 = vector.extract_strided_slice %392 {offsets = [0, 384], sizes = [16, 128], strides = [1, 1]} : vector<16x512xf32> to vector<16x128xf32>
    %408 = arith.negf %407 : vector<16x128xf32>
    %409 = math.exp %408 : vector<16x128xf32>
    %cst_129 = arith.constant 1.000000e+00 : f32
    %410 = vector.broadcast %cst_129 : f32 to vector<16x128xf32>
    %411 = arith.addf %410, %409 : vector<16x128xf32>
    %412 = arith.divf %410, %411 : vector<16x128xf32>
    %413 = arith.mulf %404, %379 : vector<16x128xf32>
    %414 = arith.mulf %398, %406 : vector<16x128xf32>
    %415 = arith.addf %413, %414 : vector<16x128xf32>
    %416 = math.tanh %415 : vector<16x128xf32>
    %417 = arith.mulf %412, %416 : vector<16x128xf32>
    %c2_i32_130 = arith.constant 2 : i32
    %c16_i32_131 = arith.constant 16 : i32
    %418 = arith.muli %c2_i32_130, %c16_i32_131 : i32
    %419 = tpu.assume_multiple %418, 16 : i32
    %420 = arith.index_cast %419 : i32 to index
    %c0_132 = arith.constant 0 : index
    %421 = vector.load %arg14[%420, %c0_132] : memref<128x512xbf16, #tpu.memory_space<vmem>>, vector<16x512xbf16>
    %422 = arith.extf %421 : vector<16x512xbf16> to vector<16x512xf32>
    %423 = arith.truncf %417 : vector<16x128xf32> to vector<16x128xbf16>
    %c0_133 = arith.constant 0 : index
    %c0_134 = arith.constant 0 : index
    %424 = vector.load %arg7[%c0_133, %c0_134] : memref<128x512xbf16, #tpu.memory_space<vmem>>, vector<128x512xbf16>
    %cst_135 = arith.constant dense<0.000000e+00> : vector<16x512xf32>
    %425 = tpu.matmul %423, %424, %cst_135 {dimension_numbers = #tpu.dot_dimension_numbers<[1], [0], [0], [1], [0, 0, 1, 1], [], []>} : vector<16x128xbf16>, vector<128x512xbf16>, vector<16x512xf32> -> vector<16x512xf32>
    %426 = arith.addf %422, %425 : vector<16x512xf32>
    %427 = vector.broadcast %345 : vector<1x512xf32> to vector<16x512xf32>
    %428 = arith.addf %426, %427 : vector<16x512xf32>
    %429 = vector.extract_strided_slice %428 {offsets = [0, 0], sizes = [16, 128], strides = [1, 1]} : vector<16x512xf32> to vector<16x128xf32>
    %430 = arith.negf %429 : vector<16x128xf32>
    %431 = math.exp %430 : vector<16x128xf32>
    %cst_136 = arith.constant 1.000000e+00 : f32
    %432 = vector.broadcast %cst_136 : f32 to vector<16x128xf32>
    %433 = arith.addf %432, %431 : vector<16x128xf32>
    %434 = arith.divf %432, %433 : vector<16x128xf32>
    %435 = vector.extract_strided_slice %428 {offsets = [0, 128], sizes = [16, 128], strides = [1, 1]} : vector<16x512xf32> to vector<16x128xf32>
    %436 = arith.negf %435 : vector<16x128xf32>
    %437 = math.exp %436 : vector<16x128xf32>
    %cst_137 = arith.constant 1.000000e+00 : f32
    %438 = vector.broadcast %cst_137 : f32 to vector<16x128xf32>
    %439 = arith.addf %438, %437 : vector<16x128xf32>
    %440 = arith.divf %438, %439 : vector<16x128xf32>
    %441 = vector.extract_strided_slice %428 {offsets = [0, 256], sizes = [16, 128], strides = [1, 1]} : vector<16x512xf32> to vector<16x128xf32>
    %442 = math.tanh %441 : vector<16x128xf32>
    %443 = vector.extract_strided_slice %428 {offsets = [0, 384], sizes = [16, 128], strides = [1, 1]} : vector<16x512xf32> to vector<16x128xf32>
    %444 = arith.negf %443 : vector<16x128xf32>
    %445 = math.exp %444 : vector<16x128xf32>
    %cst_138 = arith.constant 1.000000e+00 : f32
    %446 = vector.broadcast %cst_138 : f32 to vector<16x128xf32>
    %447 = arith.addf %446, %445 : vector<16x128xf32>
    %448 = arith.divf %446, %447 : vector<16x128xf32>
    %449 = arith.mulf %440, %415 : vector<16x128xf32>
    %450 = arith.mulf %434, %442 : vector<16x128xf32>
    %451 = arith.addf %449, %450 : vector<16x128xf32>
    %452 = math.tanh %451 : vector<16x128xf32>
    %453 = arith.mulf %448, %452 : vector<16x128xf32>
    %c3_i32_139 = arith.constant 3 : i32
    %c16_i32_140 = arith.constant 16 : i32
    %454 = arith.muli %c3_i32_139, %c16_i32_140 : i32
    %455 = tpu.assume_multiple %454, 16 : i32
    %456 = arith.index_cast %455 : i32 to index
    %c0_141 = arith.constant 0 : index
    %457 = vector.load %arg14[%456, %c0_141] : memref<128x512xbf16, #tpu.memory_space<vmem>>, vector<16x512xbf16>
    %458 = arith.extf %457 : vector<16x512xbf16> to vector<16x512xf32>
    %459 = arith.truncf %453 : vector<16x128xf32> to vector<16x128xbf16>
    %c0_142 = arith.constant 0 : index
    %c0_143 = arith.constant 0 : index
    %460 = vector.load %arg7[%c0_142, %c0_143] : memref<128x512xbf16, #tpu.memory_space<vmem>>, vector<128x512xbf16>
    %cst_144 = arith.constant dense<0.000000e+00> : vector<16x512xf32>
    %461 = tpu.matmul %459, %460, %cst_144 {dimension_numbers = #tpu.dot_dimension_numbers<[1], [0], [0], [1], [0, 0, 1, 1], [], []>} : vector<16x128xbf16>, vector<128x512xbf16>, vector<16x512xf32> -> vector<16x512xf32>
    %462 = arith.addf %458, %461 : vector<16x512xf32>
    %463 = vector.broadcast %345 : vector<1x512xf32> to vector<16x512xf32>
    %464 = arith.addf %462, %463 : vector<16x512xf32>
    %465 = vector.extract_strided_slice %464 {offsets = [0, 0], sizes = [16, 128], strides = [1, 1]} : vector<16x512xf32> to vector<16x128xf32>
    %466 = arith.negf %465 : vector<16x128xf32>
    %467 = math.exp %466 : vector<16x128xf32>
    %cst_145 = arith.constant 1.000000e+00 : f32
    %468 = vector.broadcast %cst_145 : f32 to vector<16x128xf32>
    %469 = arith.addf %468, %467 : vector<16x128xf32>
    %470 = arith.divf %468, %469 : vector<16x128xf32>
    %471 = vector.extract_strided_slice %464 {offsets = [0, 128], sizes = [16, 128], strides = [1, 1]} : vector<16x512xf32> to vector<16x128xf32>
    %472 = arith.negf %471 : vector<16x128xf32>
    %473 = math.exp %472 : vector<16x128xf32>
    %cst_146 = arith.constant 1.000000e+00 : f32
    %474 = vector.broadcast %cst_146 : f32 to vector<16x128xf32>
    %475 = arith.addf %474, %473 : vector<16x128xf32>
    %476 = arith.divf %474, %475 : vector<16x128xf32>
    %477 = vector.extract_strided_slice %464 {offsets = [0, 256], sizes = [16, 128], strides = [1, 1]} : vector<16x512xf32> to vector<16x128xf32>
    %478 = math.tanh %477 : vector<16x128xf32>
    %479 = vector.extract_strided_slice %464 {offsets = [0, 384], sizes = [16, 128], strides = [1, 1]} : vector<16x512xf32> to vector<16x128xf32>
    %480 = arith.negf %479 : vector<16x128xf32>
    %481 = math.exp %480 : vector<16x128xf32>
    %cst_147 = arith.constant 1.000000e+00 : f32
    %482 = vector.broadcast %cst_147 : f32 to vector<16x128xf32>
    %483 = arith.addf %482, %481 : vector<16x128xf32>
    %484 = arith.divf %482, %483 : vector<16x128xf32>
    %485 = arith.mulf %476, %451 : vector<16x128xf32>
    %486 = arith.mulf %470, %478 : vector<16x128xf32>
    %487 = arith.addf %485, %486 : vector<16x128xf32>
    %488 = math.tanh %487 : vector<16x128xf32>
    %489 = arith.mulf %484, %488 : vector<16x128xf32>
    %c4_i32_148 = arith.constant 4 : i32
    %c16_i32_149 = arith.constant 16 : i32
    %490 = arith.muli %c4_i32_148, %c16_i32_149 : i32
    %491 = tpu.assume_multiple %490, 16 : i32
    %492 = arith.index_cast %491 : i32 to index
    %c0_150 = arith.constant 0 : index
    %493 = vector.load %arg14[%492, %c0_150] : memref<128x512xbf16, #tpu.memory_space<vmem>>, vector<16x512xbf16>
    %494 = arith.extf %493 : vector<16x512xbf16> to vector<16x512xf32>
    %495 = arith.truncf %489 : vector<16x128xf32> to vector<16x128xbf16>
    %c0_151 = arith.constant 0 : index
    %c0_152 = arith.constant 0 : index
    %496 = vector.load %arg7[%c0_151, %c0_152] : memref<128x512xbf16, #tpu.memory_space<vmem>>, vector<128x512xbf16>
    %cst_153 = arith.constant dense<0.000000e+00> : vector<16x512xf32>
    %497 = tpu.matmul %495, %496, %cst_153 {dimension_numbers = #tpu.dot_dimension_numbers<[1], [0], [0], [1], [0, 0, 1, 1], [], []>} : vector<16x128xbf16>, vector<128x512xbf16>, vector<16x512xf32> -> vector<16x512xf32>
    %498 = arith.addf %494, %497 : vector<16x512xf32>
    %499 = vector.broadcast %345 : vector<1x512xf32> to vector<16x512xf32>
    %500 = arith.addf %498, %499 : vector<16x512xf32>
    %501 = vector.extract_strided_slice %500 {offsets = [0, 0], sizes = [16, 128], strides = [1, 1]} : vector<16x512xf32> to vector<16x128xf32>
    %502 = arith.negf %501 : vector<16x128xf32>
    %503 = math.exp %502 : vector<16x128xf32>
    %cst_154 = arith.constant 1.000000e+00 : f32
    %504 = vector.broadcast %cst_154 : f32 to vector<16x128xf32>
    %505 = arith.addf %504, %503 : vector<16x128xf32>
    %506 = arith.divf %504, %505 : vector<16x128xf32>
    %507 = vector.extract_strided_slice %500 {offsets = [0, 128], sizes = [16, 128], strides = [1, 1]} : vector<16x512xf32> to vector<16x128xf32>
    %508 = arith.negf %507 : vector<16x128xf32>
    %509 = math.exp %508 : vector<16x128xf32>
    %cst_155 = arith.constant 1.000000e+00 : f32
    %510 = vector.broadcast %cst_155 : f32 to vector<16x128xf32>
    %511 = arith.addf %510, %509 : vector<16x128xf32>
    %512 = arith.divf %510, %511 : vector<16x128xf32>
    %513 = vector.extract_strided_slice %500 {offsets = [0, 256], sizes = [16, 128], strides = [1, 1]} : vector<16x512xf32> to vector<16x128xf32>
    %514 = math.tanh %513 : vector<16x128xf32>
    %515 = vector.extract_strided_slice %500 {offsets = [0, 384], sizes = [16, 128], strides = [1, 1]} : vector<16x512xf32> to vector<16x128xf32>
    %516 = arith.negf %515 : vector<16x128xf32>
    %517 = math.exp %516 : vector<16x128xf32>
    %cst_156 = arith.constant 1.000000e+00 : f32
    %518 = vector.broadcast %cst_156 : f32 to vector<16x128xf32>
    %519 = arith.addf %518, %517 : vector<16x128xf32>
    %520 = arith.divf %518, %519 : vector<16x128xf32>
    %521 = arith.mulf %512, %487 : vector<16x128xf32>
    %522 = arith.mulf %506, %514 : vector<16x128xf32>
    %523 = arith.addf %521, %522 : vector<16x128xf32>
    %524 = math.tanh %523 : vector<16x128xf32>
    %525 = arith.mulf %520, %524 : vector<16x128xf32>
    %c5_i32_157 = arith.constant 5 : i32
    %c16_i32_158 = arith.constant 16 : i32
    %526 = arith.muli %c5_i32_157, %c16_i32_158 : i32
    %527 = tpu.assume_multiple %526, 16 : i32
    %528 = arith.index_cast %527 : i32 to index
    %c0_159 = arith.constant 0 : index
    %529 = vector.load %arg14[%528, %c0_159] : memref<128x512xbf16, #tpu.memory_space<vmem>>, vector<16x512xbf16>
    %530 = arith.extf %529 : vector<16x512xbf16> to vector<16x512xf32>
    %531 = arith.truncf %525 : vector<16x128xf32> to vector<16x128xbf16>
    %c0_160 = arith.constant 0 : index
    %c0_161 = arith.constant 0 : index
    %532 = vector.load %arg7[%c0_160, %c0_161] : memref<128x512xbf16, #tpu.memory_space<vmem>>, vector<128x512xbf16>
    %cst_162 = arith.constant dense<0.000000e+00> : vector<16x512xf32>
    %533 = tpu.matmul %531, %532, %cst_162 {dimension_numbers = #tpu.dot_dimension_numbers<[1], [0], [0], [1], [0, 0, 1, 1], [], []>} : vector<16x128xbf16>, vector<128x512xbf16>, vector<16x512xf32> -> vector<16x512xf32>
    %534 = arith.addf %530, %533 : vector<16x512xf32>
    %535 = vector.broadcast %345 : vector<1x512xf32> to vector<16x512xf32>
    %536 = arith.addf %534, %535 : vector<16x512xf32>
    %537 = vector.extract_strided_slice %536 {offsets = [0, 0], sizes = [16, 128], strides = [1, 1]} : vector<16x512xf32> to vector<16x128xf32>
    %538 = arith.negf %537 : vector<16x128xf32>
    %539 = math.exp %538 : vector<16x128xf32>
    %cst_163 = arith.constant 1.000000e+00 : f32
    %540 = vector.broadcast %cst_163 : f32 to vector<16x128xf32>
    %541 = arith.addf %540, %539 : vector<16x128xf32>
    %542 = arith.divf %540, %541 : vector<16x128xf32>
    %543 = vector.extract_strided_slice %536 {offsets = [0, 128], sizes = [16, 128], strides = [1, 1]} : vector<16x512xf32> to vector<16x128xf32>
    %544 = arith.negf %543 : vector<16x128xf32>
    %545 = math.exp %544 : vector<16x128xf32>
    %cst_164 = arith.constant 1.000000e+00 : f32
    %546 = vector.broadcast %cst_164 : f32 to vector<16x128xf32>
    %547 = arith.addf %546, %545 : vector<16x128xf32>
    %548 = arith.divf %546, %547 : vector<16x128xf32>
    %549 = vector.extract_strided_slice %536 {offsets = [0, 256], sizes = [16, 128], strides = [1, 1]} : vector<16x512xf32> to vector<16x128xf32>
    %550 = math.tanh %549 : vector<16x128xf32>
    %551 = vector.extract_strided_slice %536 {offsets = [0, 384], sizes = [16, 128], strides = [1, 1]} : vector<16x512xf32> to vector<16x128xf32>
    %552 = arith.negf %551 : vector<16x128xf32>
    %553 = math.exp %552 : vector<16x128xf32>
    %cst_165 = arith.constant 1.000000e+00 : f32
    %554 = vector.broadcast %cst_165 : f32 to vector<16x128xf32>
    %555 = arith.addf %554, %553 : vector<16x128xf32>
    %556 = arith.divf %554, %555 : vector<16x128xf32>
    %557 = arith.mulf %548, %523 : vector<16x128xf32>
    %558 = arith.mulf %542, %550 : vector<16x128xf32>
    %559 = arith.addf %557, %558 : vector<16x128xf32>
    %560 = math.tanh %559 : vector<16x128xf32>
    %561 = arith.mulf %556, %560 : vector<16x128xf32>
    %c6_i32_166 = arith.constant 6 : i32
    %c16_i32_167 = arith.constant 16 : i32
    %562 = arith.muli %c6_i32_166, %c16_i32_167 : i32
    %563 = tpu.assume_multiple %562, 16 : i32
    %564 = arith.index_cast %563 : i32 to index
    %c0_168 = arith.constant 0 : index
    %565 = vector.load %arg14[%564, %c0_168] : memref<128x512xbf16, #tpu.memory_space<vmem>>, vector<16x512xbf16>
    %566 = arith.extf %565 : vector<16x512xbf16> to vector<16x512xf32>
    %567 = arith.truncf %561 : vector<16x128xf32> to vector<16x128xbf16>
    %c0_169 = arith.constant 0 : index
    %c0_170 = arith.constant 0 : index
    %568 = vector.load %arg7[%c0_169, %c0_170] : memref<128x512xbf16, #tpu.memory_space<vmem>>, vector<128x512xbf16>
    %cst_171 = arith.constant dense<0.000000e+00> : vector<16x512xf32>
    %569 = tpu.matmul %567, %568, %cst_171 {dimension_numbers = #tpu.dot_dimension_numbers<[1], [0], [0], [1], [0, 0, 1, 1], [], []>} : vector<16x128xbf16>, vector<128x512xbf16>, vector<16x512xf32> -> vector<16x512xf32>
    %570 = arith.addf %566, %569 : vector<16x512xf32>
    %571 = vector.broadcast %345 : vector<1x512xf32> to vector<16x512xf32>
    %572 = arith.addf %570, %571 : vector<16x512xf32>
    %573 = vector.extract_strided_slice %572 {offsets = [0, 0], sizes = [16, 128], strides = [1, 1]} : vector<16x512xf32> to vector<16x128xf32>
    %574 = arith.negf %573 : vector<16x128xf32>
    %575 = math.exp %574 : vector<16x128xf32>
    %cst_172 = arith.constant 1.000000e+00 : f32
    %576 = vector.broadcast %cst_172 : f32 to vector<16x128xf32>
    %577 = arith.addf %576, %575 : vector<16x128xf32>
    %578 = arith.divf %576, %577 : vector<16x128xf32>
    %579 = vector.extract_strided_slice %572 {offsets = [0, 128], sizes = [16, 128], strides = [1, 1]} : vector<16x512xf32> to vector<16x128xf32>
    %580 = arith.negf %579 : vector<16x128xf32>
    %581 = math.exp %580 : vector<16x128xf32>
    %cst_173 = arith.constant 1.000000e+00 : f32
    %582 = vector.broadcast %cst_173 : f32 to vector<16x128xf32>
    %583 = arith.addf %582, %581 : vector<16x128xf32>
    %584 = arith.divf %582, %583 : vector<16x128xf32>
    %585 = vector.extract_strided_slice %572 {offsets = [0, 256], sizes = [16, 128], strides = [1, 1]} : vector<16x512xf32> to vector<16x128xf32>
    %586 = math.tanh %585 : vector<16x128xf32>
    %587 = vector.extract_strided_slice %572 {offsets = [0, 384], sizes = [16, 128], strides = [1, 1]} : vector<16x512xf32> to vector<16x128xf32>
    %588 = arith.negf %587 : vector<16x128xf32>
    %589 = math.exp %588 : vector<16x128xf32>
    %cst_174 = arith.constant 1.000000e+00 : f32
    %590 = vector.broadcast %cst_174 : f32 to vector<16x128xf32>
    %591 = arith.addf %590, %589 : vector<16x128xf32>
    %592 = arith.divf %590, %591 : vector<16x128xf32>
    %593 = arith.mulf %584, %559 : vector<16x128xf32>
    %594 = arith.mulf %578, %586 : vector<16x128xf32>
    %595 = arith.addf %593, %594 : vector<16x128xf32>
    %596 = math.tanh %595 : vector<16x128xf32>
    %597 = arith.mulf %592, %596 : vector<16x128xf32>
    %c7_i32_175 = arith.constant 7 : i32
    %c16_i32_176 = arith.constant 16 : i32
    %598 = arith.muli %c7_i32_175, %c16_i32_176 : i32
    %599 = tpu.assume_multiple %598, 16 : i32
    %600 = arith.index_cast %599 : i32 to index
    %c0_177 = arith.constant 0 : index
    %601 = vector.load %arg14[%600, %c0_177] : memref<128x512xbf16, #tpu.memory_space<vmem>>, vector<16x512xbf16>
    %602 = arith.extf %601 : vector<16x512xbf16> to vector<16x512xf32>
    %603 = arith.truncf %597 : vector<16x128xf32> to vector<16x128xbf16>
    %c0_178 = arith.constant 0 : index
    %c0_179 = arith.constant 0 : index
    %604 = vector.load %arg7[%c0_178, %c0_179] : memref<128x512xbf16, #tpu.memory_space<vmem>>, vector<128x512xbf16>
    %cst_180 = arith.constant dense<0.000000e+00> : vector<16x512xf32>
    %605 = tpu.matmul %603, %604, %cst_180 {dimension_numbers = #tpu.dot_dimension_numbers<[1], [0], [0], [1], [0, 0, 1, 1], [], []>} : vector<16x128xbf16>, vector<128x512xbf16>, vector<16x512xf32> -> vector<16x512xf32>
    %606 = arith.addf %602, %605 : vector<16x512xf32>
    %607 = vector.broadcast %345 : vector<1x512xf32> to vector<16x512xf32>
    %608 = arith.addf %606, %607 : vector<16x512xf32>
    %609 = vector.extract_strided_slice %608 {offsets = [0, 0], sizes = [16, 128], strides = [1, 1]} : vector<16x512xf32> to vector<16x128xf32>
    %610 = arith.negf %609 : vector<16x128xf32>
    %611 = math.exp %610 : vector<16x128xf32>
    %cst_181 = arith.constant 1.000000e+00 : f32
    %612 = vector.broadcast %cst_181 : f32 to vector<16x128xf32>
    %613 = arith.addf %612, %611 : vector<16x128xf32>
    %614 = arith.divf %612, %613 : vector<16x128xf32>
    %615 = vector.extract_strided_slice %608 {offsets = [0, 128], sizes = [16, 128], strides = [1, 1]} : vector<16x512xf32> to vector<16x128xf32>
    %616 = arith.negf %615 : vector<16x128xf32>
    %617 = math.exp %616 : vector<16x128xf32>
    %cst_182 = arith.constant 1.000000e+00 : f32
    %618 = vector.broadcast %cst_182 : f32 to vector<16x128xf32>
    %619 = arith.addf %618, %617 : vector<16x128xf32>
    %620 = arith.divf %618, %619 : vector<16x128xf32>
    %621 = vector.extract_strided_slice %608 {offsets = [0, 256], sizes = [16, 128], strides = [1, 1]} : vector<16x512xf32> to vector<16x128xf32>
    %622 = math.tanh %621 : vector<16x128xf32>
    %623 = vector.extract_strided_slice %608 {offsets = [0, 384], sizes = [16, 128], strides = [1, 1]} : vector<16x512xf32> to vector<16x128xf32>
    %624 = arith.negf %623 : vector<16x128xf32>
    %625 = math.exp %624 : vector<16x128xf32>
    %cst_183 = arith.constant 1.000000e+00 : f32
    %626 = vector.broadcast %cst_183 : f32 to vector<16x128xf32>
    %627 = arith.addf %626, %625 : vector<16x128xf32>
    %628 = arith.divf %626, %627 : vector<16x128xf32>
    %629 = arith.mulf %620, %595 : vector<16x128xf32>
    %630 = arith.mulf %614, %622 : vector<16x128xf32>
    %631 = arith.addf %629, %630 : vector<16x128xf32>
    %632 = math.tanh %631 : vector<16x128xf32>
    %633 = arith.mulf %628, %632 : vector<16x128xf32>
    %c8_i32_184 = arith.constant 8 : i32
    %c1_185 = arith.constant 1 : index
    %c0_186 = arith.constant 0 : index
    %c0_187 = arith.constant 0 : index
    %634 = vector.load %arg12[%c1_185, %c0_186, %c0_187] : memref<2x16x128xf32, #tpu.memory_space<vmem>>, vector<1x16x128xf32>
    %635 = vector.shape_cast %634 : vector<1x16x128xf32> to vector<16x128xf32>
    %636 = vector.shape_cast %633 : vector<16x128xf32> to vector<1x16x128xf32>
    tpu.vector_store %arg12[%c1_185, %c0_186, %c0_187], %636 {strides = array<i32>} : memref<2x16x128xf32, #tpu.memory_space<vmem>>, vector<1x16x128xf32>,
    %c1_188 = arith.constant 1 : index
    %c0_189 = arith.constant 0 : index
    %c0_190 = arith.constant 0 : index
    %637 = vector.load %arg13[%c1_188, %c0_189, %c0_190] : memref<2x16x128xf32, #tpu.memory_space<vmem>>, vector<1x16x128xf32>
    %638 = vector.shape_cast %637 : vector<1x16x128xf32> to vector<16x128xf32>
    %639 = vector.shape_cast %631 : vector<16x128xf32> to vector<1x16x128xf32>
    tpu.vector_store %arg13[%c1_188, %c0_189, %c0_190], %639 {strides = array<i32>} : memref<2x16x128xf32, #tpu.memory_space<vmem>>, vector<1x16x128xf32>,
    %640 = arith.truncf %633 : vector<16x128xf32> to vector<16x128xbf16>
    %c0_191 = arith.constant 0 : index
    %c0_192 = arith.constant 0 : index
    %641 = vector.load %arg9[%c0_191, %c0_192] : memref<128x128xbf16, #tpu.memory_space<vmem>>, vector<128x128xbf16>
    %cst_193 = arith.constant dense<0.000000e+00> : vector<16x128xf32>
    %642 = tpu.matmul %640, %641, %cst_193 {dimension_numbers = #tpu.dot_dimension_numbers<[1], [0], [0], [1], [0, 0, 1, 1], [], []>} : vector<16x128xbf16>, vector<128x128xbf16>, vector<16x128xf32> -> vector<16x128xf32>
    %c0_194 = arith.constant 0 : index
    %c0_195 = arith.constant 0 : index
    %643 = vector.load %arg10[%c0_194, %c0_195] : memref<1x128xf32, #tpu.memory_space<vmem>>, vector<1x128xf32>
    %644 = vector.broadcast %643 : vector<1x128xf32> to vector<16x128xf32>
    %645 = arith.addf %642, %644 : vector<16x128xf32>
    %c0_196 = arith.constant 0 : index
    %c0_197 = arith.constant 0 : index
    %646 = vector.load %arg11[%c0_196, %c0_197] : memref<16x128xf32, #tpu.memory_space<vmem>>, vector<16x128xf32>
    tpu.vector_store %arg11[%c0_196, %c0_197], %645 {strides = array<i32>} : memref<16x128xf32, #tpu.memory_space<vmem>>, vector<16x128xf32>,
    return
  }
}

</mosaic_0001>

<llo_original>
// kernel: tpu_custom_call.1
$region0: #{tpu_custom_call.1}
  #allocation0 [shape = 'u32[]', space=smem, size = 0x4, offset = 0x4, fixed_abs, tag = 'smem constant byte address 0x4 - core index']
  #allocation1 [shape = 'u32[144,128]{1,0:T(1,128)}', space=vmem, size = 0x12000, scoped, tag = 'internal scratch']
  #allocation2 [shape = 'bf16[128,512]{1,0:T(8,128)(2,1)}', space=vmem, size = 0x20000, scoped, tag = 'scratch operand']
  #allocation3 [shape = 'bf16[128,128]{1,0:T(8,128)(2,1)}', space=vmem, size = 0x8000, scoped, tag = 'scratch operand']
  %s0 = inlined_call_operand.hbm [shape: bf16[128,128], index: 0, kind: input, shape index: {}]
  %s1 = inlined_call_operand.hbm [shape: f32[2,16,128], index: 1, kind: input, shape index: {}]
  %s2 = inlined_call_operand.hbm [shape: f32[2,16,128], index: 2, kind: input, shape index: {}]
  %s3 = inlined_call_operand.hbm [shape: bf16[128,512], index: 3, kind: input, shape index: {}]
  %s4 = inlined_call_operand.hbm [shape: bf16[128,512], index: 4, kind: input, shape index: {}]
  %s5 = inlined_call_operand.vmem [shape: f32[1,512], index: 5, kind: input, shape index: {}]
  %s6 = inlined_call_operand.hbm [shape: bf16[128,512], index: 6, kind: input, shape index: {}]
  %s7 = inlined_call_operand.hbm [shape: bf16[128,512], index: 7, kind: input, shape index: {}]
  %s8 = inlined_call_operand.vmem [shape: f32[1,512], index: 8, kind: input, shape index: {}]
  %s9 = inlined_call_operand.hbm [shape: bf16[128,128], index: 9, kind: input, shape index: {}]
  %s10 = inlined_call_operand.vmem [shape: f32[1,128], index: 10, kind: input, shape index: {}]
  %s11 = inlined_call_operand.hbm [shape: f32[16,128], index: 11, kind: output, shape index: {0}]
  %s12 = inlined_call_operand.hbm [shape: f32[2,16,128], index: 12, kind: output, shape index: {1}]
  %s13 = inlined_call_operand.hbm [shape: f32[2,16,128], index: 13, kind: output, shape index: {2}]
  %14 = xla_tuple %s11, %s12, %s13
  %s15 = sld [smem:[#allocation0]]
  $region102: #{tpu_custom_call.1} parent=0
    _
  %s17 = ssub.s32 1, %s15
  %s18 = scalar_select 0, %s17, %s15
  $region1: #{tpu_custom_call.1} parent=0
    #allocation4 [shape = 'u8[32768]{0}', space=vmem, size = 0x8000, scoped, tag = 'input window, operand 0, single buffered']
    #allocation5 [shape = 's32[1]{0}', space=sflag, size = 0x4, scoped, tag = 'scoped memory for tpu_custom_call.1']
    #allocation6 [shape = 's32[1]{0}', space=sflag, size = 0x4, scoped, tag = 'scoped memory for tpu_custom_call.1']
    #allocation7 [shape = 'u8[16384]{0}', space=vmem, size = 0x4000, scoped, tag = 'input window, operand 1, single buffered']
    #allocation8 [shape = 's32[1]{0}', space=sflag, size = 0x4, scoped, tag = 'scoped memory for tpu_custom_call.1']
    #allocation9 [shape = 'u8[16384]{0}', space=vmem, size = 0x4000, scoped, tag = 'input window, operand 2, single buffered']
    #allocation10 [shape = 'u8[131072]{0}', space=vmem, size = 0x20000, scoped, tag = 'input window, operand 3, single buffered']
    #allocation11 [shape = 's32[1]{0}', space=sflag, size = 0x4, scoped, tag = 'scoped memory for tpu_custom_call.1']
    #allocation12 [shape = 'u8[131072]{0}', space=vmem, size = 0x20000, scoped, tag = 'input window, operand 4, single buffered']
    #allocation13 [shape = 'u8[131072]{0}', space=vmem, size = 0x20000, scoped, tag = 'input window, operand 6, single buffered']
    #allocation14 [shape = 's32[1]{0}', space=sflag, size = 0x4, scoped, tag = 'scoped memory for tpu_custom_call.1']
    #allocation15 [shape = 'u8[131072]{0}', space=vmem, size = 0x20000, scoped, tag = 'input window, operand 7, single buffered']
    #allocation16 [shape = 'u8[32768]{0}', space=vmem, size = 0x8000, scoped, tag = 'input window, operand 9, single buffered']
    #allocation17 [shape = 's32[1]{0}', space=sflag, size = 0x4, scoped, tag = 'scoped memory for tpu_custom_call.1']
    #allocation18 [shape = 'u8[8192]{0}', space=vmem, size = 0x2000, scoped, tag = 'output window, operand 0, single buffered']
    #allocation19 [shape = 'u8[16384]{0}', space=vmem, size = 0x4000, scoped, tag = 'output window, operand 1, single buffered']
    #allocation20 [shape = 's32[1]{0}', space=sflag, size = 0x4, scoped, tag = 'scoped memory for tpu_custom_call.1']
    #allocation21 [shape = 'u8[16384]{0}', space=vmem, size = 0x4000, scoped, tag = 'output window, operand 2, single buffered']
    %19 = vsyncpa [#allocation5], 0
    %20 = vsyncpa [#allocation8], 0
    %21 = vsyncpa [#allocation11], 0
    %22 = vsyncpa [#allocation14], 0
    %23 = vsyncpa [#allocation17], 0
    %24 = vsyncpa [#allocation6], 0
    %25 = vsyncpa [#allocation20], 0
    // Predicated region
    $region2: #{tpu_custom_call.1} parent=1 // pred_check
      _
    $region3: #{tpu_custom_call.1} parent=1 // pred_check_branch
      %27 = sbr.rel (0) target = $region5
    $region4: #{tpu_custom_call.1} parent=1 // pred_region
      %s29 = ssub.s32 1024, 1024
      %30 = vsyncadd [#allocation5], %s29
      %s31 = sshll.u32 [#allocation4], 4
      %s32 = int_to_ptr.vmem [resolvable:$true] %s31
      %37 = dma.hbm_to_vmem [thread:$0]  %s0, 1024, %s32, [#allocation5], 64, 64, 4
    $region5: #{tpu_custom_call.1} parent=1 // pred_fallthru
      _
    // Predicated region
    $region6: #{tpu_custom_call.1} parent=1 // pred_check
      _
    $region7: #{tpu_custom_call.1} parent=1 // pred_check_branch
      %39 = sbr.rel (0) target = $region9
    $region8: #{tpu_custom_call.1} parent=1 // pred_region
      %s41 = ssub.s32 512, 512
      %42 = vsyncadd [#allocation8], %s41
      %s43 = sshll.u32 [#allocation7], 4
      %s44 = int_to_ptr.vmem [resolvable:$true] %s43
      %49 = dma.hbm_to_vmem [thread:$0]  %s1, 512, %s44, [#allocation8], 128, 128, 8
    $region9: #{tpu_custom_call.1} parent=1 // pred_fallthru
      _
    // Predicated region
    $region10: #{tpu_custom_call.1} parent=1 // pred_check
      _
    $region11: #{tpu_custom_call.1} parent=1 // pred_check_branch
      %51 = sbr.rel (0) target = $region13
    $region12: #{tpu_custom_call.1} parent=1 // pred_region
      %s53 = ssub.s32 512, 512
      %54 = vsyncadd [#allocation8], %s53
      %s55 = sshll.u32 [#allocation9], 4
      %s56 = int_to_ptr.vmem [resolvable:$true] %s55
      %61 = dma.hbm_to_vmem [thread:$0]  %s2, 512, %s56, [#allocation8], 128, 128, 8
    $region13: #{tpu_custom_call.1} parent=1 // pred_fallthru
      _
    // Predicated region
    $region14: #{tpu_custom_call.1} parent=1 // pred_check
      _
    $region15: #{tpu_custom_call.1} parent=1 // pred_check_branch
      %63 = sbr.rel (0) target = $region17
    $region16: #{tpu_custom_call.1} parent=1 // pred_region
      %s65 = ssub.s32 4096, 4096
      %66 = vsyncadd [#allocation11], %s65
      %s67 = sshll.u32 [#allocation10], 4
      %s68 = int_to_ptr.vmem [resolvable:$true] %s67
      %73 = dma.hbm_to_vmem [thread:$0]  %s3, 4096, %s68, [#allocation11], 256, 256, 16
    $region17: #{tpu_custom_call.1} parent=1 // pred_fallthru
      _
    // Predicated region
    $region18: #{tpu_custom_call.1} parent=1 // pred_check
      _
    $region19: #{tpu_custom_call.1} parent=1 // pred_check_branch
      %75 = sbr.rel (0) target = $region21
    $region20: #{tpu_custom_call.1} parent=1 // pred_region
      %s77 = ssub.s32 4096, 4096
      %78 = vsyncadd [#allocation11], %s77
      %s79 = sshll.u32 [#allocation12], 4
      %s80 = int_to_ptr.vmem [resolvable:$true] %s79
      %85 = dma.hbm_to_vmem [thread:$0]  %s4, 4096, %s80, [#allocation11], 256, 256, 16
    $region21: #{tpu_custom_call.1} parent=1 // pred_fallthru
      _
    // Predicated region
    $region22: #{tpu_custom_call.1} parent=1 // pred_check
      _
    $region23: #{tpu_custom_call.1} parent=1 // pred_check_branch
      %87 = sbr.rel (0) target = $region25
    $region24: #{tpu_custom_call.1} parent=1 // pred_region
      _
    $region25: #{tpu_custom_call.1} parent=1 // pred_fallthru
      _
    // Predicated region
    $region26: #{tpu_custom_call.1} parent=1 // pred_check
      _
    $region27: #{tpu_custom_call.1} parent=1 // pred_check_branch
      %89 = sbr.rel (0) target = $region29
    $region28: #{tpu_custom_call.1} parent=1 // pred_region
      %s91 = ssub.s32 4096, 4096
      %92 = vsyncadd [#allocation14], %s91
      %s93 = sshll.u32 [#allocation13], 4
      %s94 = int_to_ptr.vmem [resolvable:$true] %s93
      %99 = dma.hbm_to_vmem [thread:$0]  %s6, 4096, %s94, [#allocation14], 256, 256, 16
    $region29: #{tpu_custom_call.1} parent=1 // pred_fallthru
      _
    // Predicated region
    $region30: #{tpu_custom_call.1} parent=1 // pred_check
      _
    $region31: #{tpu_custom_call.1} parent=1 // pred_check_branch
      %101 = sbr.rel (0) target = $region33
    $region32: #{tpu_custom_call.1} parent=1 // pred_region
      %s103 = ssub.s32 4096, 4096
      %104 = vsyncadd [#allocation14], %s103
      %s105 = sshll.u32 [#allocation15], 4
      %s106 = int_to_ptr.vmem [resolvable:$true] %s105
      %111 = dma.hbm_to_vmem [thread:$0]  %s7, 4096, %s106, [#allocation14], 256, 256, 16
    $region33: #{tpu_custom_call.1} parent=1 // pred_fallthru
      _
    // Predicated region
    $region34: #{tpu_custom_call.1} parent=1 // pred_check
      _
    $region35: #{tpu_custom_call.1} parent=1 // pred_check_branch
      %113 = sbr.rel (0) target = $region37
    $region36: #{tpu_custom_call.1} parent=1 // pred_region
      _
    $region37: #{tpu_custom_call.1} parent=1 // pred_fallthru
      _
    // Predicated region
    $region38: #{tpu_custom_call.1} parent=1 // pred_check
      _
    $region39: #{tpu_custom_call.1} parent=1 // pred_check_branch
      %115 = sbr.rel (0) target = $region41
    $region40: #{tpu_custom_call.1} parent=1 // pred_region
      %s117 = ssub.s32 1024, 1024
      %118 = vsyncadd [#allocation17], %s117
      %s119 = sshll.u32 [#allocation16], 4
      %s120 = int_to_ptr.vmem [resolvable:$true] %s119
      %125 = dma.hbm_to_vmem [thread:$0]  %s9, 1024, %s120, [#allocation17], 64, 64, 4
    $region41: #{tpu_custom_call.1} parent=1 // pred_fallthru
      _
    // Predicated region
    $region42: #{tpu_custom_call.1} parent=1 // pred_check
      _
    $region43: #{tpu_custom_call.1} parent=1 // pred_check_branch
      %127 = sbr.rel (0) target = $region45
    $region44: #{tpu_custom_call.1} parent=1 // pred_region
      _
    $region45: #{tpu_custom_call.1} parent=1 // pred_fallthru
      _
    // Predicated region
    $region46: #{tpu_custom_call.1} parent=1 // pred_check
      _
    $region47: #{tpu_custom_call.1} parent=1 // pred_check_branch
      %129 = sbr.rel (0) target = $region49
    $region48: #{tpu_custom_call.1} parent=1 // pred_region
      %130 = dma.done [#allocation5], 1024
    $region49: #{tpu_custom_call.1} parent=1 // pred_fallthru
      _
    // Predicated region
    $region50: #{tpu_custom_call.1} parent=1 // pred_check
      _
    $region51: #{tpu_custom_call.1} parent=1 // pred_check_branch
      %132 = sbr.rel (0) target = $region53
    $region52: #{tpu_custom_call.1} parent=1 // pred_region
      %133 = dma.done [#allocation8], 512
    $region53: #{tpu_custom_call.1} parent=1 // pred_fallthru
      _
    // Predicated region
    $region54: #{tpu_custom_call.1} parent=1 // pred_check
      _
    $region55: #{tpu_custom_call.1} parent=1 // pred_check_branch
      %135 = sbr.rel (0) target = $region57
    $region56: #{tpu_custom_call.1} parent=1 // pred_region
      %136 = dma.done [#allocation8], 512
    $region57: #{tpu_custom_call.1} parent=1 // pred_fallthru
      _
    // Predicated region
    $region58: #{tpu_custom_call.1} parent=1 // pred_check
      _
    $region59: #{tpu_custom_call.1} parent=1 // pred_check_branch
      %138 = sbr.rel (0) target = $region61
    $region60: #{tpu_custom_call.1} parent=1 // pred_region
      %139 = dma.done [#allocation11], 4096
    $region61: #{tpu_custom_call.1} parent=1 // pred_fallthru
      _
    // Predicated region
    $region62: #{tpu_custom_call.1} parent=1 // pred_check
      _
    $region63: #{tpu_custom_call.1} parent=1 // pred_check_branch
      %141 = sbr.rel (0) target = $region65
    $region64: #{tpu_custom_call.1} parent=1 // pred_region
      %142 = dma.done [#allocation11], 4096
    $region65: #{tpu_custom_call.1} parent=1 // pred_fallthru
      _
    // Predicated region
    $region66: #{tpu_custom_call.1} parent=1 // pred_check
      _
    $region67: #{tpu_custom_call.1} parent=1 // pred_check_branch
      %144 = sbr.rel (0) target = $region69
    $region68: #{tpu_custom_call.1} parent=1 // pred_region
      %145 = dma.done [#allocation14], 4096
    $region69: #{tpu_custom_call.1} parent=1 // pred_fallthru
      _
    // Predicated region
    $region70: #{tpu_custom_call.1} parent=1 // pred_check
      _
    $region71: #{tpu_custom_call.1} parent=1 // pred_check_branch
      %147 = sbr.rel (0) target = $region73
    $region72: #{tpu_custom_call.1} parent=1 // pred_region
      %148 = dma.done [#allocation14], 4096
    $region73: #{tpu_custom_call.1} parent=1 // pred_fallthru
      _
    // Predicated region
    $region74: #{tpu_custom_call.1} parent=1 // pred_check
      _
    $region75: #{tpu_custom_call.1} parent=1 // pred_check_branch
      %150 = sbr.rel (0) target = $region77
    $region76: #{tpu_custom_call.1} parent=1 // pred_region
      %151 = dma.done [#allocation17], 1024
    $region77: #{tpu_custom_call.1} parent=1 // pred_fallthru
      _
    %v153 = vld [vmem:[#allocation7] sm:$0xff]
    %v154 = vld [vmem:[#allocation7 + $0x8] sm:$0xff]
    %v155 = vld [vmem:[#allocation9] sm:$0xff]
    %v156 = vld [vmem:[#allocation9 + $0x8] sm:$0xff]
    %v157 = vld [vmem:[#allocation4] sm:$0xf]
    %v158 = vld [vmem:[#allocation4 + $0x4] sm:$0xf]
    %v159 = vld [vmem:[#allocation4 + $0x8] sm:$0xf]
    %v160 = vld [vmem:[#allocation4 + $0xc] sm:$0xf]
    %v161 = vld [vmem:[#allocation4 + $0x10] sm:$0xf]
    %v162 = vld [vmem:[#allocation4 + $0x14] sm:$0xf]
    %v163 = vld [vmem:[#allocation4 + $0x18] sm:$0xf]
    %v164 = vld [vmem:[#allocation4 + $0x1c] sm:$0xf]
    %v165 = vld [vmem:[#allocation4 + $0x20] sm:$0xf]
    %v166 = vld [vmem:[#allocation4 + $0x24] sm:$0xf]
    %v167 = vld [vmem:[#allocation4 + $0x28] sm:$0xf]
    %v168 = vld [vmem:[#allocation4 + $0x2c] sm:$0xf]
    %v169 = vld [vmem:[#allocation4 + $0x30] sm:$0xf]
    %v170 = vld [vmem:[#allocation4 + $0x34] sm:$0xf]
    %v171 = vld [vmem:[#allocation4 + $0x38] sm:$0xf]
    %v172 = vld [vmem:[#allocation4 + $0x3c] sm:$0xf]
    %v173 = vld [vmem:[#allocation10] sm:$0xff]
    %v174 = vld [vmem:[#allocation10 + $0x8] sm:$0xff]
    %v175 = vld [vmem:[#allocation10 + $0x10] sm:$0xff]
    %v176 = vld [vmem:[#allocation10 + $0x18] sm:$0xff]
    %v177 = vld [vmem:[#allocation10 + $0x20] sm:$0xff]
    %v178 = vld [vmem:[#allocation10 + $0x28] sm:$0xff]
    %v179 = vld [vmem:[#allocation10 + $0x30] sm:$0xff]
    %v180 = vld [vmem:[#allocation10 + $0x38] sm:$0xff]
    %v181 = vld [vmem:[#allocation10 + $0x40] sm:$0xff]
    %v182 = vld [vmem:[#allocation10 + $0x48] sm:$0xff]
    %v183 = vld [vmem:[#allocation10 + $0x50] sm:$0xff]
    %v184 = vld [vmem:[#allocation10 + $0x58] sm:$0xff]
    %v185 = vld [vmem:[#allocation10 + $0x60] sm:$0xff]
    %v186 = vld [vmem:[#allocation10 + $0x68] sm:$0xff]
    %v187 = vld [vmem:[#allocation10 + $0x70] sm:$0xff]
    %v188 = vld [vmem:[#allocation10 + $0x78] sm:$0xff]
    %v189 = vld [vmem:[#allocation10 + $0x80] sm:$0xff]
    %v190 = vld [vmem:[#allocation10 + $0x88] sm:$0xff]
    %v191 = vld [vmem:[#allocation10 + $0x90] sm:$0xff]
    %v192 = vld [vmem:[#allocation10 + $0x98] sm:$0xff]
    %v193 = vld [vmem:[#allocation10 + $0xa0] sm:$0xff]
    %v194 = vld [vmem:[#allocation10 + $0xa8] sm:$0xff]
    %v195 = vld [vmem:[#allocation10 + $0xb0] sm:$0xff]
    %v196 = vld [vmem:[#allocation10 + $0xb8] sm:$0xff]
    %v197 = vld [vmem:[#allocation10 + $0xc0] sm:$0xff]
    %v198 = vld [vmem:[#allocation10 + $0xc8] sm:$0xff]
    %v199 = vld [vmem:[#allocation10 + $0xd0] sm:$0xff]
    %v200 = vld [vmem:[#allocation10 + $0xd8] sm:$0xff]
    %v201 = vld [vmem:[#allocation10 + $0xe0] sm:$0xff]
    %v202 = vld [vmem:[#allocation10 + $0xe8] sm:$0xff]
    %v203 = vld [vmem:[#allocation10 + $0xf0] sm:$0xff]
    %v204 = vld [vmem:[#allocation10 + $0xf8] sm:$0xff]
    %v221 = vunpack.c.l.b16 %v157
    %v222 = vunpack.c.l.b16 %v158
    %v223 = vunpack.c.l.b16 %v159
    %v224 = vunpack.c.l.b16 %v160
    %v225 = vunpack.c.l.b16 %v161
    %v226 = vunpack.c.l.b16 %v162
    %v227 = vunpack.c.l.b16 %v163
    %v228 = vunpack.c.l.b16 %v164
    %v229 = vunpack.c.l.b16 %v165
    %v230 = vunpack.c.l.b16 %v166
    %v231 = vunpack.c.l.b16 %v167
    %v232 = vunpack.c.l.b16 %v168
    %v233 = vunpack.c.l.b16 %v169
    %v234 = vunpack.c.l.b16 %v170
    %v235 = vunpack.c.l.b16 %v171
    %v236 = vunpack.c.l.b16 %v172
    %v237 = vpack.c.b16 %v222, %v221
    %v238 = vpack.c.b16 %v224, %v223
    %v239 = vpack.c.b16 %v226, %v225
    %v240 = vpack.c.b16 %v228, %v227
    %v241 = vpack.c.b16 %v230, %v229
    %v242 = vpack.c.b16 %v232, %v231
    %v243 = vpack.c.b16 %v234, %v233
    %v244 = vpack.c.b16 %v236, %v235
    %v285 = vunpack.c.l.b16 %v173
    %v286 = vunpack.c.h.b16 %v173
    %v287 = vunpack.c.l.b16 %v174
    %v288 = vunpack.c.h.b16 %v174
    %v289 = vunpack.c.l.b16 %v175
    %v290 = vunpack.c.h.b16 %v175
    %v291 = vunpack.c.l.b16 %v176
    %v292 = vunpack.c.h.b16 %v176
    %v293 = vunpack.c.l.b16 %v177
    %v294 = vunpack.c.h.b16 %v177
    %v295 = vunpack.c.l.b16 %v178
    %v296 = vunpack.c.h.b16 %v178
    %v297 = vunpack.c.l.b16 %v179
    %v298 = vunpack.c.h.b16 %v179
    %v299 = vunpack.c.l.b16 %v180
    %v300 = vunpack.c.h.b16 %v180
    %v301 = vunpack.c.l.b16 %v181
    %v302 = vunpack.c.h.b16 %v181
    %v303 = vunpack.c.l.b16 %v182
    %v304 = vunpack.c.h.b16 %v182
    %v305 = vunpack.c.l.b16 %v183
    %v306 = vunpack.c.h.b16 %v183
    %v307 = vunpack.c.l.b16 %v184
    %v308 = vunpack.c.h.b16 %v184
    %v309 = vunpack.c.l.b16 %v185
    %v310 = vunpack.c.h.b16 %v185
    %v311 = vunpack.c.l.b16 %v186
    %v312 = vunpack.c.h.b16 %v186
    %v313 = vunpack.c.l.b16 %v187
    %v314 = vunpack.c.h.b16 %v187
    %v315 = vunpack.c.l.b16 %v188
    %v316 = vunpack.c.h.b16 %v188
    %v317 = vunpack.c.l.b16 %v189
    %v318 = vunpack.c.h.b16 %v189
    %v319 = vunpack.c.l.b16 %v190
    %v320 = vunpack.c.h.b16 %v190
    %v321 = vunpack.c.l.b16 %v191
    %v322 = vunpack.c.h.b16 %v191
    %v323 = vunpack.c.l.b16 %v192
    %v324 = vunpack.c.h.b16 %v192
    %v325 = vunpack.c.l.b16 %v193
    %v326 = vunpack.c.h.b16 %v193
    %v327 = vunpack.c.l.b16 %v194
    %v328 = vunpack.c.h.b16 %v194
    %v329 = vunpack.c.l.b16 %v195
    %v330 = vunpack.c.h.b16 %v195
    %v331 = vunpack.c.l.b16 %v196
    %v332 = vunpack.c.h.b16 %v196
    %v333 = vunpack.c.l.b16 %v197
    %v334 = vunpack.c.h.b16 %v197
    %v335 = vunpack.c.l.b16 %v198
    %v336 = vunpack.c.h.b16 %v198
    %v337 = vunpack.c.l.b16 %v199
    %v338 = vunpack.c.h.b16 %v199
    %v339 = vunpack.c.l.b16 %v200
    %v340 = vunpack.c.h.b16 %v200
    %v341 = vunpack.c.l.b16 %v201
    %v342 = vunpack.c.h.b16 %v201
    %v343 = vunpack.c.l.b16 %v202
    %v344 = vunpack.c.h.b16 %v202
    %v345 = vunpack.c.l.b16 %v203
    %v346 = vunpack.c.h.b16 %v203
    %v347 = vunpack.c.l.b16 %v204
    %v348 = vunpack.c.h.b16 %v204
    %v349 = vpack.c.b16 %v289, %v285
    %v350 = vpack.c.b16 %v290, %v286
    %v351 = vpack.c.b16 %v291, %v287
    %v352 = vpack.c.b16 %v292, %v288
    %v353 = vpack.c.b16 %v297, %v293
    %v354 = vpack.c.b16 %v298, %v294
    %v355 = vpack.c.b16 %v299, %v295
    %v356 = vpack.c.b16 %v300, %v296
    %v357 = vpack.c.b16 %v305, %v301
    %v358 = vpack.c.b16 %v306, %v302
    %v359 = vpack.c.b16 %v307, %v303
    %v360 = vpack.c.b16 %v308, %v304
    %v361 = vpack.c.b16 %v313, %v309
    %v362 = vpack.c.b16 %v314, %v310
    %v363 = vpack.c.b16 %v315, %v311
    %v364 = vpack.c.b16 %v316, %v312
    %v365 = vpack.c.b16 %v321, %v317
    %v366 = vpack.c.b16 %v322, %v318
    %v367 = vpack.c.b16 %v323, %v319
    %v368 = vpack.c.b16 %v324, %v320
    %v369 = vpack.c.b16 %v329, %v325
    %v370 = vpack.c.b16 %v330, %v326
    %v371 = vpack.c.b16 %v331, %v327
    %v372 = vpack.c.b16 %v332, %v328
    %v373 = vpack.c.b16 %v337, %v333
    %v374 = vpack.c.b16 %v338, %v334
    %v375 = vpack.c.b16 %v339, %v335
    %v376 = vpack.c.b16 %v340, %v336
    %v377 = vpack.c.b16 %v345, %v341
    %v378 = vpack.c.b16 %v346, %v342
    %v379 = vpack.c.b16 %v347, %v343
    %v380 = vpack.c.b16 %v348, %v344
    %413 = vmatprep.subr.bf16.mxu0 %v378
    %414 = vmatpush1.bf16.msra.mxu0 %v377
    %415 = vmatprep.subr.bf16.mxu0 %v374
    %416 = vmatpush1.bf16.msra.mxu0 %v373
    %417 = vmatprep.subr.bf16.mxu0 %v370
    %418 = vmatpush1.bf16.msra.mxu0 %v369
    %419 = vmatprep.subr.bf16.mxu0 %v366
    %420 = vmatpush1.bf16.msra.mxu0 %v365
    %421 = vmatprep.subr.bf16.mxu0 %v362
    %422 = vmatpush1.bf16.msra.mxu0 %v361
    %423 = vmatprep.subr.bf16.mxu0 %v358
    %424 = vmatpush1.bf16.msra.mxu0 %v357
    %425 = vmatprep.subr.bf16.mxu0 %v354
    %426 = vmatpush1.bf16.msra.mxu0 %v353
    %427 = vmatprep.subr.bf16.mxu0 %v350
    %428 = vmatpush1.bf16.msra.mxu0 %v349
    %429 = vmatprep.subr.bf16.mxu0 0
    %430 = vmatpush2.bf16.msra.mxu0 0
    %431 = vmatprep.subr.bf16.mxu0 0
    %432 = vmatpush2.bf16.msra.mxu0 0
    %433 = vmatprep.subr.bf16.mxu0 0
    %434 = vmatpush2.bf16.msra.mxu0 0
    %435 = vmatprep.subr.bf16.mxu0 0
    %436 = vmatpush2.bf16.msra.mxu0 0
    %437 = vmatprep.subr.bf16.mxu0 0
    %438 = vmatpush2.bf16.msra.mxu0 0
    %439 = vmatprep.subr.bf16.mxu0 0
    %440 = vmatpush2.bf16.msra.mxu0 0
    %441 = vmatprep.subr.bf16.mxu0 0
    %442 = vmatpush2.bf16.msra.mxu0 0
    %443 = vmatprep.subr.bf16.mxu0 0
    %444 = vmatpush2.bf16.msra.mxu0 0
    %445 = vmatprep.mubr.bf16.mxu0 0
    %446 = vmatmul.mubr.bf16.gmra.mxu0 %v237
    %v447 = vpop.f32.mrf.mxu0
    %v448 = vadd.f32 0.0, %v447
    %v449 = vpop.f32.mrf.mxu0
    %v450 = vadd.f32 0.0, %v449
    %v451 = vpop.f32.mrf.mxu0
    %v452 = vadd.f32 0.0, %v451
    %v453 = vpop.f32.mrf.mxu0
    %v454 = vadd.f32 0.0, %v453
    %455 = vmatprep.mubr.bf16.mxu0 0
    %456 = vmatmul.mubr.bf16.gmra.mxu0 %v238
    %v457 = vpop.f32.mrf.mxu0
    %v458 = vadd.f32 0.0, %v457
    %v459 = vpop.f32.mrf.mxu0
    %v460 = vadd.f32 0.0, %v459
    %v461 = vpop.f32.mrf.mxu0
    %v462 = vadd.f32 0.0, %v461
    %v463 = vpop.f32.mrf.mxu0
    %v464 = vadd.f32 0.0, %v463
    %465 = vmatprep.mubr.bf16.mxu0 0
    %466 = vmatmul.mubr.bf16.gmra.mxu0 %v239
    %v467 = vpop.f32.mrf.mxu0
    %v468 = vadd.f32 0.0, %v467
    %v469 = vpop.f32.mrf.mxu0
    %v470 = vadd.f32 0.0, %v469
    %v471 = vpop.f32.mrf.mxu0
    %v472 = vadd.f32 0.0, %v471
    %v473 = vpop.f32.mrf.mxu0
    %v474 = vadd.f32 0.0, %v473
    %475 = vmatprep.mubr.bf16.mxu0 0
    %476 = vmatmul.mubr.bf16.gmra.mxu0 %v240
    %v477 = vpop.f32.mrf.mxu0
    %v478 = vadd.f32 0.0, %v477
    %v479 = vpop.f32.mrf.mxu0
    %v480 = vadd.f32 0.0, %v479
    %v481 = vpop.f32.mrf.mxu0
    %v482 = vadd.f32 0.0, %v481
    %v483 = vpop.f32.mrf.mxu0
    %v484 = vadd.f32 0.0, %v483
    %485 = vmatprep.mubr.bf16.mxu0 0
    %486 = vmatmul.mubr.bf16.gmra.mxu0 %v241
    %v487 = vpop.f32.mrf.mxu0
    %v488 = vadd.f32 0.0, %v487
    %v489 = vpop.f32.mrf.mxu0
    %v490 = vadd.f32 0.0, %v489
    %v491 = vpop.f32.mrf.mxu0
    %v492 = vadd.f32 0.0, %v491
    %v493 = vpop.f32.mrf.mxu0
    %v494 = vadd.f32 0.0, %v493
    %495 = vmatprep.mubr.bf16.mxu0 0
    %496 = vmatmul.mubr.bf16.gmra.mxu0 %v242
    %v497 = vpop.f32.mrf.mxu0
    %v498 = vadd.f32 0.0, %v497
    %v499 = vpop.f32.mrf.mxu0
    %v500 = vadd.f32 0.0, %v499
    %v501 = vpop.f32.mrf.mxu0
    %v502 = vadd.f32 0.0, %v501
    %v503 = vpop.f32.mrf.mxu0
    %v504 = vadd.f32 0.0, %v503
    %505 = vmatprep.mubr.bf16.mxu0 0
    %506 = vmatmul.mubr.bf16.gmra.mxu0 %v243
    %v507 = vpop.f32.mrf.mxu0
    %v508 = vadd.f32 0.0, %v507
    %v509 = vpop.f32.mrf.mxu0
    %v510 = vadd.f32 0.0, %v509
    %v511 = vpop.f32.mrf.mxu0
    %v512 = vadd.f32 0.0, %v511
    %v513 = vpop.f32.mrf.mxu0
    %v514 = vadd.f32 0.0, %v513
    %515 = vmatprep.mubr.bf16.mxu0 0
    %516 = vmatmul.mubr.bf16.gmra.mxu0 %v244
    %v517 = vpop.f32.mrf.mxu0
    %v518 = vadd.f32 0.0, %v517
    %v519 = vpop.f32.mrf.mxu0
    %v520 = vadd.f32 0.0, %v519
    %v521 = vpop.f32.mrf.mxu0
    %v522 = vadd.f32 0.0, %v521
    %v523 = vpop.f32.mrf.mxu0
    %v524 = vadd.f32 0.0, %v523
    %525 = vdwg.mxu0
    %526 = vmatprep.subr.bf16.mxu0 %v380
    %527 = vmatpush1.bf16.msra.mxu0 %v379
    %528 = vmatprep.subr.bf16.mxu0 %v376
    %529 = vmatpush1.bf16.msra.mxu0 %v375
    %530 = vmatprep.subr.bf16.mxu0 %v372
    %531 = vmatpush1.bf16.msra.mxu0 %v371
    %532 = vmatprep.subr.bf16.mxu0 %v368
    %533 = vmatpush1.bf16.msra.mxu0 %v367
    %534 = vmatprep.subr.bf16.mxu0 %v364
    %535 = vmatpush1.bf16.msra.mxu0 %v363
    %536 = vmatprep.subr.bf16.mxu0 %v360
    %537 = vmatpush1.bf16.msra.mxu0 %v359
    %538 = vmatprep.subr.bf16.mxu0 %v356
    %539 = vmatpush1.bf16.msra.mxu0 %v355
    %540 = vmatprep.subr.bf16.mxu0 %v352
    %541 = vmatpush1.bf16.msra.mxu0 %v351
    %542 = vmatprep.subr.bf16.mxu0 0
    %543 = vmatpush2.bf16.msra.mxu0 0
    %544 = vmatprep.subr.bf16.mxu0 0
    %545 = vmatpush2.bf16.msra.mxu0 0
    %546 = vmatprep.subr.bf16.mxu0 0
    %547 = vmatpush2.bf16.msra.mxu0 0
    %548 = vmatprep.subr.bf16.mxu0 0
    %549 = vmatpush2.bf16.msra.mxu0 0
    %550 = vmatprep.subr.bf16.mxu0 0
    %551 = vmatpush2.bf16.msra.mxu0 0
    %552 = vmatprep.subr.bf16.mxu0 0
    %553 = vmatpush2.bf16.msra.mxu0 0
    %554 = vmatprep.subr.bf16.mxu0 0
    %555 = vmatpush2.bf16.msra.mxu0 0
    %556 = vmatprep.subr.bf16.mxu0 0
    %557 = vmatpush2.bf16.msra.mxu0 0
    %558 = vmatprep.mubr.bf16.mxu0 0
    %559 = vmatmul.mubr.bf16.gmra.mxu0 %v237
    %v560 = vpop.f32.mrf.mxu0
    %v561 = vadd.f32 0.0, %v560
    %v562 = vpop.f32.mrf.mxu0
    %v563 = vadd.f32 0.0, %v562
    %v564 = vpop.f32.mrf.mxu0
    %v565 = vadd.f32 0.0, %v564
    %v566 = vpop.f32.mrf.mxu0
    %v567 = vadd.f32 0.0, %v566
    %568 = vmatprep.mubr.bf16.mxu0 0
    %569 = vmatmul.mubr.bf16.gmra.mxu0 %v238
    %v570 = vpop.f32.mrf.mxu0
    %v571 = vadd.f32 0.0, %v570
    %v572 = vpop.f32.mrf.mxu0
    %v573 = vadd.f32 0.0, %v572
    %v574 = vpop.f32.mrf.mxu0
    %v575 = vadd.f32 0.0, %v574
    %v576 = vpop.f32.mrf.mxu0
    %v577 = vadd.f32 0.0, %v576
    %578 = vmatprep.mubr.bf16.mxu0 0
    %579 = vmatmul.mubr.bf16.gmra.mxu0 %v239
    %v580 = vpop.f32.mrf.mxu0
    %v581 = vadd.f32 0.0, %v580
    %v582 = vpop.f32.mrf.mxu0
    %v583 = vadd.f32 0.0, %v582
    %v584 = vpop.f32.mrf.mxu0
    %v585 = vadd.f32 0.0, %v584
    %v586 = vpop.f32.mrf.mxu0
    %v587 = vadd.f32 0.0, %v586
    %588 = vmatprep.mubr.bf16.mxu0 0
    %589 = vmatmul.mubr.bf16.gmra.mxu0 %v240
    %v590 = vpop.f32.mrf.mxu0
    %v591 = vadd.f32 0.0, %v590
    %v592 = vpop.f32.mrf.mxu0
    %v593 = vadd.f32 0.0, %v592
    %v594 = vpop.f32.mrf.mxu0
    %v595 = vadd.f32 0.0, %v594
    %v596 = vpop.f32.mrf.mxu0
    %v597 = vadd.f32 0.0, %v596
    %598 = vmatprep.mubr.bf16.mxu0 0
    %599 = vmatmul.mubr.bf16.gmra.mxu0 %v241
    %v600 = vpop.f32.mrf.mxu0
    %v601 = vadd.f32 0.0, %v600
    %v602 = vpop.f32.mrf.mxu0
    %v603 = vadd.f32 0.0, %v602
    %v604 = vpop.f32.mrf.mxu0
    %v605 = vadd.f32 0.0, %v604
    %v606 = vpop.f32.mrf.mxu0
    %v607 = vadd.f32 0.0, %v606
    %608 = vmatprep.mubr.bf16.mxu0 0
    %609 = vmatmul.mubr.bf16.gmra.mxu0 %v242
    %v610 = vpop.f32.mrf.mxu0
    %v611 = vadd.f32 0.0, %v610
    %v612 = vpop.f32.mrf.mxu0
    %v613 = vadd.f32 0.0, %v612
    %v614 = vpop.f32.mrf.mxu0
    %v615 = vadd.f32 0.0, %v614
    %v616 = vpop.f32.mrf.mxu0
    %v617 = vadd.f32 0.0, %v616
    %618 = vmatprep.mubr.bf16.mxu0 0
    %619 = vmatmul.mubr.bf16.gmra.mxu0 %v243
    %v620 = vpop.f32.mrf.mxu0
    %v621 = vadd.f32 0.0, %v620
    %v622 = vpop.f32.mrf.mxu0
    %v623 = vadd.f32 0.0, %v622
    %v624 = vpop.f32.mrf.mxu0
    %v625 = vadd.f32 0.0, %v624
    %v626 = vpop.f32.mrf.mxu0
    %v627 = vadd.f32 0.0, %v626
    %628 = vmatprep.mubr.bf16.mxu0 0
    %629 = vmatmul.mubr.bf16.gmra.mxu0 %v244
    %v630 = vpop.f32.mrf.mxu0
    %v631 = vadd.f32 0.0, %v630
    %v632 = vpop.f32.mrf.mxu0
    %v633 = vadd.f32 0.0, %v632
    %v634 = vpop.f32.mrf.mxu0
    %v635 = vadd.f32 0.0, %v634
    %v636 = vpop.f32.mrf.mxu0
    %v637 = vadd.f32 0.0, %v636
    %638 = vdwg.mxu0
    %v639 = vpack.c.bf16 %v452, %v448
    %v640 = vpack.c.bf16 %v454, %v450
    %v641 = vpack.c.bf16 %v565, %v561
    %v642 = vpack.c.bf16 %v567, %v563
    %v643 = vpack.c.bf16 %v462, %v458
    %v644 = vpack.c.bf16 %v464, %v460
    %v645 = vpack.c.bf16 %v575, %v571
    %v646 = vpack.c.bf16 %v577, %v573
    %v647 = vpack.c.bf16 %v472, %v468
    %v648 = vpack.c.bf16 %v474, %v470
    %v649 = vpack.c.bf16 %v585, %v581
    %v650 = vpack.c.bf16 %v587, %v583
    %v651 = vpack.c.bf16 %v482, %v478
    %v652 = vpack.c.bf16 %v484, %v480
    %v653 = vpack.c.bf16 %v595, %v591
    %v654 = vpack.c.bf16 %v597, %v593
    %v655 = vpack.c.bf16 %v492, %v488
    %v656 = vpack.c.bf16 %v494, %v490
    %v657 = vpack.c.bf16 %v605, %v601
    %v658 = vpack.c.bf16 %v607, %v603
    %v659 = vpack.c.bf16 %v502, %v498
    %v660 = vpack.c.bf16 %v504, %v500
    %v661 = vpack.c.bf16 %v615, %v611
    %v662 = vpack.c.bf16 %v617, %v613
    %v663 = vpack.c.bf16 %v512, %v508
    %v664 = vpack.c.bf16 %v514, %v510
    %v665 = vpack.c.bf16 %v625, %v621
    %v666 = vpack.c.bf16 %v627, %v623
    %v667 = vpack.c.bf16 %v522, %v518
    %v668 = vpack.c.bf16 %v524, %v520
    %v669 = vpack.c.bf16 %v635, %v631
    %v670 = vpack.c.bf16 %v637, %v633
    %v703 = vunpack.c.l.b16 %v639
    %v704 = vunpack.c.l.b16 %v640
    %v705 = vunpack.c.l.b16 %v641
    %v706 = vunpack.c.l.b16 %v642
    %v707 = vunpack.c.h.b16 %v639
    %v708 = vunpack.c.h.b16 %v640
    %v709 = vunpack.c.h.b16 %v641
    %v710 = vunpack.c.h.b16 %v642
    %v711 = vunpack.c.l.b16 %v643
    %v712 = vunpack.c.l.b16 %v644
    %v713 = vunpack.c.l.b16 %v645
    %v714 = vunpack.c.l.b16 %v646
    %v715 = vunpack.c.h.b16 %v643
    %v716 = vunpack.c.h.b16 %v644
    %v717 = vunpack.c.h.b16 %v645
    %v718 = vunpack.c.h.b16 %v646
    %v719 = vunpack.c.l.b16 %v647
    %v720 = vunpack.c.l.b16 %v648
    %v721 = vunpack.c.l.b16 %v649
    %v722 = vunpack.c.l.b16 %v650
    %v723 = vunpack.c.h.b16 %v647
    %v724 = vunpack.c.h.b16 %v648
    %v725 = vunpack.c.h.b16 %v649
    %v726 = vunpack.c.h.b16 %v650
    %v727 = vunpack.c.l.b16 %v651
    %v728 = vunpack.c.l.b16 %v652
    %v729 = vunpack.c.l.b16 %v653
    %v730 = vunpack.c.l.b16 %v654
    %v731 = vunpack.c.h.b16 %v651
    %v732 = vunpack.c.h.b16 %v652
    %v733 = vunpack.c.h.b16 %v653
    %v734 = vunpack.c.h.b16 %v654
    %v735 = vunpack.c.l.b16 %v655
    %v736 = vunpack.c.l.b16 %v656
    %v737 = vunpack.c.l.b16 %v657
    %v738 = vunpack.c.l.b16 %v658
    %v739 = vunpack.c.h.b16 %v655
    %v740 = vunpack.c.h.b16 %v656
    %v741 = vunpack.c.h.b16 %v657
    %v742 = vunpack.c.h.b16 %v658
    %v743 = vunpack.c.l.b16 %v659
    %v744 = vunpack.c.l.b16 %v660
    %v745 = vunpack.c.l.b16 %v661
    %v746 = vunpack.c.l.b16 %v662
    %v747 = vunpack.c.h.b16 %v659
    %v748 = vunpack.c.h.b16 %v660
    %v749 = vunpack.c.h.b16 %v661
    %v750 = vunpack.c.h.b16 %v662
    %v751 = vunpack.c.l.b16 %v663
    %v752 = vunpack.c.l.b16 %v664
    %v753 = vunpack.c.l.b16 %v665
    %v754 = vunpack.c.l.b16 %v666
    %v755 = vunpack.c.h.b16 %v663
    %v756 = vunpack.c.h.b16 %v664
    %v757 = vunpack.c.h.b16 %v665
    %v758 = vunpack.c.h.b16 %v666
    %v759 = vunpack.c.l.b16 %v667
    %v760 = vunpack.c.l.b16 %v668
    %v761 = vunpack.c.l.b16 %v669
    %v762 = vunpack.c.l.b16 %v670
    %v763 = vunpack.c.h.b16 %v667
    %v764 = vunpack.c.h.b16 %v668
    %v765 = vunpack.c.h.b16 %v669
    %v766 = vunpack.c.h.b16 %v670
    %v767 = vpack.c.b16 %v704, %v703
    %v768 = vpack.c.b16 %v706, %v705
    %v769 = vpack.c.b16 %v708, %v707
    %v770 = vpack.c.b16 %v710, %v709
    %v771 = vpack.c.b16 %v712, %v711
    %v772 = vpack.c.b16 %v714, %v713
    %v773 = vpack.c.b16 %v716, %v715
    %v774 = vpack.c.b16 %v718, %v717
    %v775 = vpack.c.b16 %v720, %v719
    %v776 = vpack.c.b16 %v722, %v721
    %v777 = vpack.c.b16 %v724, %v723
    %v778 = vpack.c.b16 %v726, %v725
    %v779 = vpack.c.b16 %v728, %v727
    %v780 = vpack.c.b16 %v730, %v729
    %v781 = vpack.c.b16 %v732, %v731
    %v782 = vpack.c.b16 %v734, %v733
    %v783 = vpack.c.b16 %v736, %v735
    %v784 = vpack.c.b16 %v738, %v737
    %v785 = vpack.c.b16 %v740, %v739
    %v786 = vpack.c.b16 %v742, %v741
    %v787 = vpack.c.b16 %v744, %v743
    %v788 = vpack.c.b16 %v746, %v745
    %v789 = vpack.c.b16 %v748, %v747
    %v790 = vpack.c.b16 %v750, %v749
    %v791 = vpack.c.b16 %v752, %v751
    %v792 = vpack.c.b16 %v754, %v753
    %v793 = vpack.c.b16 %v756, %v755
    %v794 = vpack.c.b16 %v758, %v757
    %v795 = vpack.c.b16 %v760, %v759
    %v796 = vpack.c.b16 %v762, %v761
    %v797 = vpack.c.b16 %v764, %v763
    %v798 = vpack.c.b16 %v766, %v765
    %831 = vst [vmem:[#allocation2] sm:$0xff] %v767
    %832 = vst [vmem:[#allocation2 + $0x8] sm:$0xff] %v768
    %833 = vst [vmem:[#allocation2 + $0x10] sm:$0xff] %v769
    %834 = vst [vmem:[#allocation2 + $0x18] sm:$0xff] %v770
    %835 = vst [vmem:[#allocation2 + $0x20] sm:$0xff] %v771
    %836 = vst [vmem:[#allocation2 + $0x28] sm:$0xff] %v772
    %837 = vst [vmem:[#allocation2 + $0x30] sm:$0xff] %v773
    %838 = vst [vmem:[#allocation2 + $0x38] sm:$0xff] %v774
    %839 = vst [vmem:[#allocation2 + $0x40] sm:$0xff] %v775
    %840 = vst [vmem:[#allocation2 + $0x48] sm:$0xff] %v776
    %841 = vst [vmem:[#allocation2 + $0x50] sm:$0xff] %v777
    %842 = vst [vmem:[#allocation2 + $0x58] sm:$0xff] %v778
    %843 = vst [vmem:[#allocation2 + $0x60] sm:$0xff] %v779
    %844 = vst [vmem:[#allocation2 + $0x68] sm:$0xff] %v780
    %845 = vst [vmem:[#allocation2 + $0x70] sm:$0xff] %v781
    %846 = vst [vmem:[#allocation2 + $0x78] sm:$0xff] %v782
    %847 = vst [vmem:[#allocation2 + $0x80] sm:$0xff] %v783
    %848 = vst [vmem:[#allocation2 + $0x88] sm:$0xff] %v784
    %849 = vst [vmem:[#allocation2 + $0x90] sm:$0xff] %v785
    %850 = vst [vmem:[#allocation2 + $0x98] sm:$0xff] %v786
    %851 = vst [vmem:[#allocation2 + $0xa0] sm:$0xff] %v787
    %852 = vst [vmem:[#allocation2 + $0xa8] sm:$0xff] %v788
    %853 = vst [vmem:[#allocation2 + $0xb0] sm:$0xff] %v789
    %854 = vst [vmem:[#allocation2 + $0xb8] sm:$0xff] %v790
    %855 = vst [vmem:[#allocation2 + $0xc0] sm:$0xff] %v791
    %856 = vst [vmem:[#allocation2 + $0xc8] sm:$0xff] %v792
    %857 = vst [vmem:[#allocation2 + $0xd0] sm:$0xff] %v793
    %858 = vst [vmem:[#allocation2 + $0xd8] sm:$0xff] %v794
    %859 = vst [vmem:[#allocation2 + $0xe0] sm:$0xff] %v795
    %860 = vst [vmem:[#allocation2 + $0xe8] sm:$0xff] %v796
    %861 = vst [vmem:[#allocation2 + $0xf0] sm:$0xff] %v797
    %862 = vst [vmem:[#allocation2 + $0xf8] sm:$0xff] %v798
    %v863 = vld [vmem:[%s5] sm:$0xf]
    %s864 = smul.u32 0, 4
    %s865 = smul.addr %s864, 4
    %s866 = scalar_lea.vmem [#allocation2], %s865
    %v867 = vld [vmem:[%s866] sm:$0xff]
    %v868 = vld [vmem:[%s866 + $0x8] sm:$0xff]
    %v869 = vld [vmem:[%s866 + $0x10] sm:$0xff]
    %v870 = vld [vmem:[%s866 + $0x18] sm:$0xff]
    %v871 = vunpack.c.l.bf16 %v867
    %v872 = vunpack.c.h.bf16 %v867
    %v873 = vunpack.c.l.bf16 %v868
    %v874 = vunpack.c.h.bf16 %v868
    %v875 = vunpack.c.l.bf16 %v869
    %v876 = vunpack.c.h.bf16 %v869
    %v877 = vunpack.c.l.bf16 %v870
    %v878 = vunpack.c.h.bf16 %v870
    %v879 = vpack.c.bf16 %v154, %v153
    %v880 = vld [vmem:[#allocation12] sm:$0xff]
    %v881 = vld [vmem:[#allocation12 + $0x8] sm:$0xff]
    %v882 = vld [vmem:[#allocation12 + $0x10] sm:$0xff]
    %v883 = vld [vmem:[#allocation12 + $0x18] sm:$0xff]
    %v884 = vld [vmem:[#allocation12 + $0x20] sm:$0xff]
    %v885 = vld [vmem:[#allocation12 + $0x28] sm:$0xff]
    %v886 = vld [vmem:[#allocation12 + $0x30] sm:$0xff]
    %v887 = vld [vmem:[#allocation12 + $0x38] sm:$0xff]
    %v888 = vld [vmem:[#allocation12 + $0x40] sm:$0xff]
    %v889 = vld [vmem:[#allocation12 + $0x48] sm:$0xff]
    %v890 = vld [vmem:[#allocation12 + $0x50] sm:$0xff]
    %v891 = vld [vmem:[#allocation12 + $0x58] sm:$0xff]
    %v892 = vld [vmem:[#allocation12 + $0x60] sm:$0xff]
    %v893 = vld [vmem:[#allocation12 + $0x68] sm:$0xff]
    %v894 = vld [vmem:[#allocation12 + $0x70] sm:$0xff]
    %v895 = vld [vmem:[#allocation12 + $0x78] sm:$0xff]
    %v896 = vld [vmem:[#allocation12 + $0x80] sm:$0xff]
    %v897 = vld [vmem:[#allocation12 + $0x88] sm:$0xff]
    %v898 = vld [vmem:[#allocation12 + $0x90] sm:$0xff]
    %v899 = vld [vmem:[#allocation12 + $0x98] sm:$0xff]
    %v900 = vld [vmem:[#allocation12 + $0xa0] sm:$0xff]
    %v901 = vld [vmem:[#allocation12 + $0xa8] sm:$0xff]
    %v902 = vld [vmem:[#allocation12 + $0xb0] sm:$0xff]
    %v903 = vld [vmem:[#allocation12 + $0xb8] sm:$0xff]
    %v904 = vld [vmem:[#allocation12 + $0xc0] sm:$0xff]
    %v905 = vld [vmem:[#allocation12 + $0xc8] sm:$0xff]
    %v906 = vld [vmem:[#allocation12 + $0xd0] sm:$0xff]
    %v907 = vld [vmem:[#allocation12 + $0xd8] sm:$0xff]
    %v908 = vld [vmem:[#allocation12 + $0xe0] sm:$0xff]
    %v909 = vld [vmem:[#allocation12 + $0xe8] sm:$0xff]
    %v910 = vld [vmem:[#allocation12 + $0xf0] sm:$0xff]
    %v911 = vld [vmem:[#allocation12 + $0xf8] sm:$0xff]
    %v944 = vunpack.c.l.b16 %v880
    %v945 = vunpack.c.h.b16 %v880
    %v946 = vunpack.c.l.b16 %v881
    %v947 = vunpack.c.h.b16 %v881
    %v948 = vunpack.c.l.b16 %v882
    %v949 = vunpack.c.h.b16 %v882
    %v950 = vunpack.c.l.b16 %v883
    %v951 = vunpack.c.h.b16 %v883
    %v952 = vunpack.c.l.b16 %v884
    %v953 = vunpack.c.h.b16 %v884
    %v954 = vunpack.c.l.b16 %v885
    %v955 = vunpack.c.h.b16 %v885
    %v956 = vunpack.c.l.b16 %v886
    %v957 = vunpack.c.h.b16 %v886
    %v958 = vunpack.c.l.b16 %v887
    %v959 = vunpack.c.h.b16 %v887
    %v960 = vunpack.c.l.b16 %v888
    %v961 = vunpack.c.h.b16 %v888
    %v962 = vunpack.c.l.b16 %v889
    %v963 = vunpack.c.h.b16 %v889
    %v964 = vunpack.c.l.b16 %v890
    %v965 = vunpack.c.h.b16 %v890
    %v966 = vunpack.c.l.b16 %v891
    %v967 = vunpack.c.h.b16 %v891
    %v968 = vunpack.c.l.b16 %v892
    %v969 = vunpack.c.h.b16 %v892
    %v970 = vunpack.c.l.b16 %v893
    %v971 = vunpack.c.h.b16 %v893
    %v972 = vunpack.c.l.b16 %v894
    %v973 = vunpack.c.h.b16 %v894
    %v974 = vunpack.c.l.b16 %v895
    %v975 = vunpack.c.h.b16 %v895
    %v976 = vunpack.c.l.b16 %v896
    %v977 = vunpack.c.h.b16 %v896
    %v978 = vunpack.c.l.b16 %v897
    %v979 = vunpack.c.h.b16 %v897
    %v980 = vunpack.c.l.b16 %v898
    %v981 = vunpack.c.h.b16 %v898
    %v982 = vunpack.c.l.b16 %v899
    %v983 = vunpack.c.h.b16 %v899
    %v984 = vunpack.c.l.b16 %v900
    %v985 = vunpack.c.h.b16 %v900
    %v986 = vunpack.c.l.b16 %v901
    %v987 = vunpack.c.h.b16 %v901
    %v988 = vunpack.c.l.b16 %v902
    %v989 = vunpack.c.h.b16 %v902
    %v990 = vunpack.c.l.b16 %v903
    %v991 = vunpack.c.h.b16 %v903
    %v992 = vunpack.c.l.b16 %v904
    %v993 = vunpack.c.h.b16 %v904
    %v994 = vunpack.c.l.b16 %v905
    %v995 = vunpack.c.h.b16 %v905
    %v996 = vunpack.c.l.b16 %v906
    %v997 = vunpack.c.h.b16 %v906
    %v998 = vunpack.c.l.b16 %v907
    %v999 = vunpack.c.h.b16 %v907
    %v1000 = vunpack.c.l.b16 %v908
    %v1001 = vunpack.c.h.b16 %v908
    %v1002 = vunpack.c.l.b16 %v909
    %v1003 = vunpack.c.h.b16 %v909
    %v1004 = vunpack.c.l.b16 %v910
    %v1005 = vunpack.c.h.b16 %v910
    %v1006 = vunpack.c.l.b16 %v911
    %v1007 = vunpack.c.h.b16 %v911
    %v1008 = vpack.c.b16 %v948, %v944
    %v1009 = vpack.c.b16 %v949, %v945
    %v1010 = vpack.c.b16 %v950, %v946
    %v1011 = vpack.c.b16 %v951, %v947
    %v1012 = vpack.c.b16 %v956, %v952
    %v1013 = vpack.c.b16 %v957, %v953
    %v1014 = vpack.c.b16 %v958, %v954
    %v1015 = vpack.c.b16 %v959, %v955
    %v1016 = vpack.c.b16 %v964, %v960
    %v1017 = vpack.c.b16 %v965, %v961
    %v1018 = vpack.c.b16 %v966, %v962
    %v1019 = vpack.c.b16 %v967, %v963
    %v1020 = vpack.c.b16 %v972, %v968
    %v1021 = vpack.c.b16 %v973, %v969
    %v1022 = vpack.c.b16 %v974, %v970
    %v1023 = vpack.c.b16 %v975, %v971
    %v1024 = vpack.c.b16 %v980, %v976
    %v1025 = vpack.c.b16 %v981, %v977
    %v1026 = vpack.c.b16 %v982, %v978
    %v1027 = vpack.c.b16 %v983, %v979
    %v1028 = vpack.c.b16 %v988, %v984
    %v1029 = vpack.c.b16 %v989, %v985
    %v1030 = vpack.c.b16 %v990, %v986
    %v1031 = vpack.c.b16 %v991, %v987
    %v1032 = vpack.c.b16 %v996, %v992
    %v1033 = vpack.c.b16 %v997, %v993
    %v1034 = vpack.c.b16 %v998, %v994
    %v1035 = vpack.c.b16 %v999, %v995
    %v1036 = vpack.c.b16 %v1004, %v1000
    %v1037 = vpack.c.b16 %v1005, %v1001
    %v1038 = vpack.c.b16 %v1006, %v1002
    %v1039 = vpack.c.b16 %v1007, %v1003
    %1072 = vmatprep.subr.bf16.mxu0 %v1037
    %1073 = vmatpush1.bf16.msra.mxu0 %v1036
    %1074 = vmatprep.subr.bf16.mxu0 %v1033
    %1075 = vmatpush1.bf16.msra.mxu0 %v1032
    %1076 = vmatprep.subr.bf16.mxu0 %v1029
    %1077 = vmatpush1.bf16.msra.mxu0 %v1028
    %1078 = vmatprep.subr.bf16.mxu0 %v1025
    %1079 = vmatpush1.bf16.msra.mxu0 %v1024
    %1080 = vmatprep.subr.bf16.mxu0 %v1021
    %1081 = vmatpush1.bf16.msra.mxu0 %v1020
    %1082 = vmatprep.subr.bf16.mxu0 %v1017
    %1083 = vmatpush1.bf16.msra.mxu0 %v1016
    %1084 = vmatprep.subr.bf16.mxu0 %v1013
    %1085 = vmatpush1.bf16.msra.mxu0 %v1012
    %1086 = vmatprep.subr.bf16.mxu0 %v1009
    %1087 = vmatpush1.bf16.msra.mxu0 %v1008
    %1088 = vmatprep.subr.bf16.mxu0 0
    %1089 = vmatpush2.bf16.msra.mxu0 0
    %1090 = vmatprep.subr.bf16.mxu0 0
    %1091 = vmatpush2.bf16.msra.mxu0 0
    %1092 = vmatprep.subr.bf16.mxu0 0
    %1093 = vmatpush2.bf16.msra.mxu0 0
    %1094 = vmatprep.subr.bf16.mxu0 0
    %1095 = vmatpush2.bf16.msra.mxu0 0
    %1096 = vmatprep.subr.bf16.mxu0 0
    %1097 = vmatpush2.bf16.msra.mxu0 0
    %1098 = vmatprep.subr.bf16.mxu0 0
    %1099 = vmatpush2.bf16.msra.mxu0 0
    %1100 = vmatprep.subr.bf16.mxu0 0
    %1101 = vmatpush2.bf16.msra.mxu0 0
    %1102 = vmatprep.subr.bf16.mxu0 0
    %1103 = vmatpush2.bf16.msra.mxu0 0
    %1104 = vmatprep.mubr.bf16.mxu0 0
    %1105 = vmatmul.mubr.bf16.gmra.mxu0 %v879
    %v1106 = vpop.f32.mrf.mxu0
    %v1107 = vadd.f32 0.0, %v1106
    %v1108 = vpop.f32.mrf.mxu0
    %v1109 = vadd.f32 0.0, %v1108
    %v1110 = vpop.f32.mrf.mxu0
    %v1111 = vadd.f32 0.0, %v1110
    %v1112 = vpop.f32.mrf.mxu0
    %v1113 = vadd.f32 0.0, %v1112
    %1114 = vdwg.mxu0
    %1115 = vmatprep.subr.bf16.mxu0 %v1039
    %1116 = vmatpush1.bf16.msra.mxu0 %v1038
    %1117 = vmatprep.subr.bf16.mxu0 %v1035
    %1118 = vmatpush1.bf16.msra.mxu0 %v1034
    %1119 = vmatprep.subr.bf16.mxu0 %v1031
    %1120 = vmatpush1.bf16.msra.mxu0 %v1030
    %1121 = vmatprep.subr.bf16.mxu0 %v1027
    %1122 = vmatpush1.bf16.msra.mxu0 %v1026
    %1123 = vmatprep.subr.bf16.mxu0 %v1023
    %1124 = vmatpush1.bf16.msra.mxu0 %v1022
    %1125 = vmatprep.subr.bf16.mxu0 %v1019
    %1126 = vmatpush1.bf16.msra.mxu0 %v1018
    %1127 = vmatprep.subr.bf16.mxu0 %v1015
    %1128 = vmatpush1.bf16.msra.mxu0 %v1014
    %1129 = vmatprep.subr.bf16.mxu0 %v1011
    %1130 = vmatpush1.bf16.msra.mxu0 %v1010
    %1131 = vmatprep.subr.bf16.mxu0 0
    %1132 = vmatpush2.bf16.msra.mxu0 0
    %1133 = vmatprep.subr.bf16.mxu0 0
    %1134 = vmatpush2.bf16.msra.mxu0 0
    %1135 = vmatprep.subr.bf16.mxu0 0
    %1136 = vmatpush2.bf16.msra.mxu0 0
    %1137 = vmatprep.subr.bf16.mxu0 0
    %1138 = vmatpush2.bf16.msra.mxu0 0
    %1139 = vmatprep.subr.bf16.mxu0 0
    %1140 = vmatpush2.bf16.msra.mxu0 0
    %1141 = vmatprep.subr.bf16.mxu0 0
    %1142 = vmatpush2.bf16.msra.mxu0 0
    %1143 = vmatprep.subr.bf16.mxu0 0
    %1144 = vmatpush2.bf16.msra.mxu0 0
    %1145 = vmatprep.subr.bf16.mxu0 0
    %1146 = vmatpush2.bf16.msra.mxu0 0
    %1147 = vmatprep.mubr.bf16.mxu0 0
    %1148 = vmatmul.mubr.bf16.gmra.mxu0 %v879
    %v1149 = vpop.f32.mrf.mxu0
    %v1150 = vadd.f32 0.0, %v1149
    %v1151 = vpop.f32.mrf.mxu0
    %v1152 = vadd.f32 0.0, %v1151
    %v1153 = vpop.f32.mrf.mxu0
    %v1154 = vadd.f32 0.0, %v1153
    %v1155 = vpop.f32.mrf.mxu0
    %v1156 = vadd.f32 0.0, %v1155
    %1157 = vdwg.mxu0
    %v1158 = vadd.f32 %v871, %v1107
    %v1159 = vadd.f32 %v872, %v1109
    %v1160 = vadd.f32 %v873, %v1150
    %v1161 = vadd.f32 %v874, %v1152
    %v1162 = vadd.f32 %v875, %v1111
    %v1163 = vadd.f32 %v876, %v1113
    %v1164 = vadd.f32 %v877, %v1154
    %v1165 = vadd.f32 %v878, %v1156
    %v1167 = vlaneseq
    %v1168 = vshrl.u32 %v1167, 7
    %v1169 = vsub.s32 0, %v1168
    %v1170 = vrot.slane %v863, %v1169
    %v1171 = vlaneseq
    %v1172 = vshrl.u32 %v1171, 7
    %v1173 = vsub.s32 1, %v1172
    %v1174 = vrot.slane %v863, %v1173
    %v1175 = vlaneseq
    %v1176 = vshrl.u32 %v1175, 7
    %v1177 = vsub.s32 2, %v1176
    %v1178 = vrot.slane %v863, %v1177
    %v1179 = vlaneseq
    %v1180 = vshrl.u32 %v1179, 7
    %v1181 = vsub.s32 3, %v1180
    %v1182 = vrot.slane %v863, %v1181
    %v1187 = vadd.f32 %v1158, %v1170
    %v1188 = vadd.f32 %v1159, %v1174
    %v1189 = vadd.f32 %v1160, %v1178
    %v1190 = vadd.f32 %v1161, %v1182
    %v1191 = vadd.f32 %v1162, %v1170
    %v1192 = vadd.f32 %v1163, %v1174
    %v1193 = vadd.f32 %v1164, %v1178
    %v1194 = vadd.f32 %v1165, %v1182
    %v1195 = vxor.u32 %v1187, 2147483648
    %v1196 = vxor.u32 %v1191, 2147483648
    %v1197 = vmul.f32 %v1195, 1.442695
    %v1198 = vpow.pop %v1197
    %v1199 = vmul.f32 %v1196, 1.442695
    %v1200 = vpow.pop %v1199
    %v1201 = vadd.f32 %v1198, 1.0
    %v1202 = vadd.f32 %v1200, 1.0
    %v1203 = vrcp.pop %v1201
    %v1204 = vmul.f32 1.0, %v1203
    %v1205 = vrcp.pop %v1202
    %v1206 = vmul.f32 1.0, %v1205
    %v1207 = vxor.u32 %v1188, 2147483648
    %v1208 = vxor.u32 %v1192, 2147483648
    %v1209 = vmul.f32 %v1207, 1.442695
    %v1210 = vpow.pop %v1209
    %v1211 = vmul.f32 %v1208, 1.442695
    %v1212 = vpow.pop %v1211
    %v1213 = vadd.f32 %v1210, 1.0
    %v1214 = vadd.f32 %v1212, 1.0
    %v1215 = vrcp.pop %v1213
    %v1216 = vmul.f32 1.0, %v1215
    %v1217 = vrcp.pop %v1214
    %v1218 = vmul.f32 1.0, %v1217
    %v1219 = vtanh.pop %v1189
    %v1220 = vtanh.pop %v1193
    %v1221 = vxor.u32 %v1190, 2147483648
    %v1222 = vxor.u32 %v1194, 2147483648
    %v1223 = vmul.f32 %v1221, 1.442695
    %v1224 = vpow.pop %v1223
    %v1225 = vmul.f32 %v1222, 1.442695
    %v1226 = vpow.pop %v1225
    %v1227 = vadd.f32 %v1224, 1.0
    %v1228 = vadd.f32 %v1226, 1.0
    %v1229 = vrcp.pop %v1227
    %v1230 = vmul.f32 1.0, %v1229
    %v1231 = vrcp.pop %v1228
    %v1232 = vmul.f32 1.0, %v1231
    %v1233 = vmul.f32 %v1216, %v155
    %v1234 = vmul.f32 %v1218, %v156
    %v1235 = vmul.f32 %v1204, %v1219
    %v1236 = vmul.f32 %v1206, %v1220
    %v1237 = vadd.f32 %v1233, %v1235
    %v1238 = vadd.f32 %v1234, %v1236
    %v1239 = vtanh.pop %v1237
    %v1240 = vtanh.pop %v1238
    %v1241 = vmul.f32 %v1230, %v1239
    %v1242 = vmul.f32 %v1232, %v1240
    %v1243 = vpack.c.bf16 %v1242, %v1241
    %v1245 = vunpack.c.l.b16 %v1243
    %v1246 = vunpack.c.h.b16 %v1243
    %v1247 = vpack.c.b16 %v1245, %v1245
    %v1248 = vpack.c.b16 %v1246, %v1246
    %1251 = vst [vmem:[#allocation3] sm:$0xf] %v1247
    %1252 = vst [vmem:[#allocation3 + $0x4] sm:$0xf] %v1248
    %s1253 = smul.u32 2, 4
    %s1254 = smul.addr %s1253, 4
    %s1255 = scalar_lea.vmem [#allocation2], %s1254
    %v1256 = vld [vmem:[%s1255] sm:$0xff]
    %v1257 = vld [vmem:[%s1255 + $0x8] sm:$0xff]
    %v1258 = vld [vmem:[%s1255 + $0x10] sm:$0xff]
    %v1259 = vld [vmem:[%s1255 + $0x18] sm:$0xff]
    %v1260 = vunpack.c.l.bf16 %v1256
    %v1261 = vunpack.c.h.bf16 %v1256
    %v1262 = vunpack.c.l.bf16 %v1257
    %v1263 = vunpack.c.h.bf16 %v1257
    %v1264 = vunpack.c.l.bf16 %v1258
    %v1265 = vunpack.c.h.bf16 %v1258
    %v1266 = vunpack.c.l.bf16 %v1259
    %v1267 = vunpack.c.h.bf16 %v1259
    %v1268 = vld [vmem:[#allocation12] sm:$0xff]
    %v1269 = vld [vmem:[#allocation12 + $0x8] sm:$0xff]
    %v1270 = vld [vmem:[#allocation12 + $0x10] sm:$0xff]
    %v1271 = vld [vmem:[#allocation12 + $0x18] sm:$0xff]
    %v1272 = vld [vmem:[#allocation12 + $0x20] sm:$0xff]
    %v1273 = vld [vmem:[#allocation12 + $0x28] sm:$0xff]
    %v1274 = vld [vmem:[#allocation12 + $0x30] sm:$0xff]
    %v1275 = vld [vmem:[#allocation12 + $0x38] sm:$0xff]
    %v1276 = vld [vmem:[#allocation12 + $0x40] sm:$0xff]
    %v1277 = vld [vmem:[#allocation12 + $0x48] sm:$0xff]
    %v1278 = vld [vmem:[#allocation12 + $0x50] sm:$0xff]
    %v1279 = vld [vmem:[#allocation12 + $0x58] sm:$0xff]
    %v1280 = vld [vmem:[#allocation12 + $0x60] sm:$0xff]
    %v1281 = vld [vmem:[#allocation12 + $0x68] sm:$0xff]
    %v1282 = vld [vmem:[#allocation12 + $0x70] sm:$0xff]
    %v1283 = vld [vmem:[#allocation12 + $0x78] sm:$0xff]
    %v1284 = vld [vmem:[#allocation12 + $0x80] sm:$0xff]
    %v1285 = vld [vmem:[#allocation12 + $0x88] sm:$0xff]
    %v1286 = vld [vmem:[#allocation12 + $0x90] sm:$0xff]
    %v1287 = vld [vmem:[#allocation12 + $0x98] sm:$0xff]
    %v1288 = vld [vmem:[#allocation12 + $0xa0] sm:$0xff]
    %v1289 = vld [vmem:[#allocation12 + $0xa8] sm:$0xff]
    %v1290 = vld [vmem:[#allocation12 + $0xb0] sm:$0xff]
    %v1291 = vld [vmem:[#allocation12 + $0xb8] sm:$0xff]
    %v1292 = vld [vmem:[#allocation12 + $0xc0] sm:$0xff]
    %v1293 = vld [vmem:[#allocation12 + $0xc8] sm:$0xff]
    %v1294 = vld [vmem:[#allocation12 + $0xd0] sm:$0xff]
    %v1295 = vld [vmem:[#allocation12 + $0xd8] sm:$0xff]
    %v1296 = vld [vmem:[#allocation12 + $0xe0] sm:$0xff]
    %v1297 = vld [vmem:[#allocation12 + $0xe8] sm:$0xff]
    %v1298 = vld [vmem:[#allocation12 + $0xf0] sm:$0xff]
    %v1299 = vld [vmem:[#allocation12 + $0xf8] sm:$0xff]
    %v1332 = vunpack.c.l.b16 %v1268
    %v1333 = vunpack.c.h.b16 %v1268
    %v1334 = vunpack.c.l.b16 %v1269
    %v1335 = vunpack.c.h.b16 %v1269
    %v1336 = vunpack.c.l.b16 %v1270
    %v1337 = vunpack.c.h.b16 %v1270
    %v1338 = vunpack.c.l.b16 %v1271
    %v1339 = vunpack.c.h.b16 %v1271
    %v1340 = vunpack.c.l.b16 %v1272
    %v1341 = vunpack.c.h.b16 %v1272
    %v1342 = vunpack.c.l.b16 %v1273
    %v1343 = vunpack.c.h.b16 %v1273
    %v1344 = vunpack.c.l.b16 %v1274
    %v1345 = vunpack.c.h.b16 %v1274
    %v1346 = vunpack.c.l.b16 %v1275
    %v1347 = vunpack.c.h.b16 %v1275
    %v1348 = vunpack.c.l.b16 %v1276
    %v1349 = vunpack.c.h.b16 %v1276
    %v1350 = vunpack.c.l.b16 %v1277
    %v1351 = vunpack.c.h.b16 %v1277
    %v1352 = vunpack.c.l.b16 %v1278
    %v1353 = vunpack.c.h.b16 %v1278
    %v1354 = vunpack.c.l.b16 %v1279
    %v1355 = vunpack.c.h.b16 %v1279
    %v1356 = vunpack.c.l.b16 %v1280
    %v1357 = vunpack.c.h.b16 %v1280
    %v1358 = vunpack.c.l.b16 %v1281
    %v1359 = vunpack.c.h.b16 %v1281
    %v1360 = vunpack.c.l.b16 %v1282
    %v1361 = vunpack.c.h.b16 %v1282
    %v1362 = vunpack.c.l.b16 %v1283
    %v1363 = vunpack.c.h.b16 %v1283
    %v1364 = vunpack.c.l.b16 %v1284
    %v1365 = vunpack.c.h.b16 %v1284
    %v1366 = vunpack.c.l.b16 %v1285
    %v1367 = vunpack.c.h.b16 %v1285
    %v1368 = vunpack.c.l.b16 %v1286
    %v1369 = vunpack.c.h.b16 %v1286
    %v1370 = vunpack.c.l.b16 %v1287
    %v1371 = vunpack.c.h.b16 %v1287
    %v1372 = vunpack.c.l.b16 %v1288
    %v1373 = vunpack.c.h.b16 %v1288
    %v1374 = vunpack.c.l.b16 %v1289
    %v1375 = vunpack.c.h.b16 %v1289
    %v1376 = vunpack.c.l.b16 %v1290
    %v1377 = vunpack.c.h.b16 %v1290
    %v1378 = vunpack.c.l.b16 %v1291
    %v1379 = vunpack.c.h.b16 %v1291
    %v1380 = vunpack.c.l.b16 %v1292
    %v1381 = vunpack.c.h.b16 %v1292
    %v1382 = vunpack.c.l.b16 %v1293
    %v1383 = vunpack.c.h.b16 %v1293
    %v1384 = vunpack.c.l.b16 %v1294
    %v1385 = vunpack.c.h.b16 %v1294
    %v1386 = vunpack.c.l.b16 %v1295
    %v1387 = vunpack.c.h.b16 %v1295
    %v1388 = vunpack.c.l.b16 %v1296
    %v1389 = vunpack.c.h.b16 %v1296
    %v1390 = vunpack.c.l.b16 %v1297
    %v1391 = vunpack.c.h.b16 %v1297
    %v1392 = vunpack.c.l.b16 %v1298
    %v1393 = vunpack.c.h.b16 %v1298
    %v1394 = vunpack.c.l.b16 %v1299
    %v1395 = vunpack.c.h.b16 %v1299
    %v1396 = vpack.c.b16 %v1336, %v1332
    %v1397 = vpack.c.b16 %v1337, %v1333
    %v1398 = vpack.c.b16 %v1338, %v1334
    %v1399 = vpack.c.b16 %v1339, %v1335
    %v1400 = vpack.c.b16 %v1344, %v1340
    %v1401 = vpack.c.b16 %v1345, %v1341
    %v1402 = vpack.c.b16 %v1346, %v1342
    %v1403 = vpack.c.b16 %v1347, %v1343
    %v1404 = vpack.c.b16 %v1352, %v1348
    %v1405 = vpack.c.b16 %v1353, %v1349
    %v1406 = vpack.c.b16 %v1354, %v1350
    %v1407 = vpack.c.b16 %v1355, %v1351
    %v1408 = vpack.c.b16 %v1360, %v1356
    %v1409 = vpack.c.b16 %v1361, %v1357
    %v1410 = vpack.c.b16 %v1362, %v1358
    %v1411 = vpack.c.b16 %v1363, %v1359
    %v1412 = vpack.c.b16 %v1368, %v1364
    %v1413 = vpack.c.b16 %v1369, %v1365
    %v1414 = vpack.c.b16 %v1370, %v1366
    %v1415 = vpack.c.b16 %v1371, %v1367
    %v1416 = vpack.c.b16 %v1376, %v1372
    %v1417 = vpack.c.b16 %v1377, %v1373
    %v1418 = vpack.c.b16 %v1378, %v1374
    %v1419 = vpack.c.b16 %v1379, %v1375
    %v1420 = vpack.c.b16 %v1384, %v1380
    %v1421 = vpack.c.b16 %v1385, %v1381
    %v1422 = vpack.c.b16 %v1386, %v1382
    %v1423 = vpack.c.b16 %v1387, %v1383
    %v1424 = vpack.c.b16 %v1392, %v1388
    %v1425 = vpack.c.b16 %v1393, %v1389
    %v1426 = vpack.c.b16 %v1394, %v1390
    %v1427 = vpack.c.b16 %v1395, %v1391
    %1460 = vmatprep.subr.bf16.mxu0 %v1425
    %1461 = vmatpush1.bf16.msra.mxu0 %v1424
    %1462 = vmatprep.subr.bf16.mxu0 %v1421
    %1463 = vmatpush1.bf16.msra.mxu0 %v1420
    %1464 = vmatprep.subr.bf16.mxu0 %v1417
    %1465 = vmatpush1.bf16.msra.mxu0 %v1416
    %1466 = vmatprep.subr.bf16.mxu0 %v1413
    %1467 = vmatpush1.bf16.msra.mxu0 %v1412
    %1468 = vmatprep.subr.bf16.mxu0 %v1409
    %1469 = vmatpush1.bf16.msra.mxu0 %v1408
    %1470 = vmatprep.subr.bf16.mxu0 %v1405
    %1471 = vmatpush1.bf16.msra.mxu0 %v1404
    %1472 = vmatprep.subr.bf16.mxu0 %v1401
    %1473 = vmatpush1.bf16.msra.mxu0 %v1400
    %1474 = vmatprep.subr.bf16.mxu0 %v1397
    %1475 = vmatpush1.bf16.msra.mxu0 %v1396
    %1476 = vmatprep.subr.bf16.mxu0 0
    %1477 = vmatpush2.bf16.msra.mxu0 0
    %1478 = vmatprep.subr.bf16.mxu0 0
    %1479 = vmatpush2.bf16.msra.mxu0 0
    %1480 = vmatprep.subr.bf16.mxu0 0
    %1481 = vmatpush2.bf16.msra.mxu0 0
    %1482 = vmatprep.subr.bf16.mxu0 0
    %1483 = vmatpush2.bf16.msra.mxu0 0
    %1484 = vmatprep.subr.bf16.mxu0 0
    %1485 = vmatpush2.bf16.msra.mxu0 0
    %1486 = vmatprep.subr.bf16.mxu0 0
    %1487 = vmatpush2.bf16.msra.mxu0 0
    %1488 = vmatprep.subr.bf16.mxu0 0
    %1489 = vmatpush2.bf16.msra.mxu0 0
    %1490 = vmatprep.subr.bf16.mxu0 0
    %1491 = vmatpush2.bf16.msra.mxu0 0
    %1492 = vmatprep.mubr.bf16.mxu0 0
    %1493 = vmatmul.mubr.bf16.gmra.mxu0 %v1243
    %v1494 = vpop.f32.mrf.mxu0
    %v1495 = vadd.f32 0.0, %v1494
    %v1496 = vpop.f32.mrf.mxu0
    %v1497 = vadd.f32 0.0, %v1496
    %v1498 = vpop.f32.mrf.mxu0
    %v1499 = vadd.f32 0.0, %v1498
    %v1500 = vpop.f32.mrf.mxu0
    %v1501 = vadd.f32 0.0, %v1500
    %1502 = vdwg.mxu0
    %1503 = vmatprep.subr.bf16.mxu0 %v1427
    %1504 = vmatpush1.bf16.msra.mxu0 %v1426
    %1505 = vmatprep.subr.bf16.mxu0 %v1423
    %1506 = vmatpush1.bf16.msra.mxu0 %v1422
    %1507 = vmatprep.subr.bf16.mxu0 %v1419
    %1508 = vmatpush1.bf16.msra.mxu0 %v1418
    %1509 = vmatprep.subr.bf16.mxu0 %v1415
    %1510 = vmatpush1.bf16.msra.mxu0 %v1414
    %1511 = vmatprep.subr.bf16.mxu0 %v1411
    %1512 = vmatpush1.bf16.msra.mxu0 %v1410
    %1513 = vmatprep.subr.bf16.mxu0 %v1407
    %1514 = vmatpush1.bf16.msra.mxu0 %v1406
    %1515 = vmatprep.subr.bf16.mxu0 %v1403
    %1516 = vmatpush1.bf16.msra.mxu0 %v1402
    %1517 = vmatprep.subr.bf16.mxu0 %v1399
    %1518 = vmatpush1.bf16.msra.mxu0 %v1398
    %1519 = vmatprep.subr.bf16.mxu0 0
    %1520 = vmatpush2.bf16.msra.mxu0 0
    %1521 = vmatprep.subr.bf16.mxu0 0
    %1522 = vmatpush2.bf16.msra.mxu0 0
    %1523 = vmatprep.subr.bf16.mxu0 0
    %1524 = vmatpush2.bf16.msra.mxu0 0
    %1525 = vmatprep.subr.bf16.mxu0 0
    %1526 = vmatpush2.bf16.msra.mxu0 0
    %1527 = vmatprep.subr.bf16.mxu0 0
    %1528 = vmatpush2.bf16.msra.mxu0 0
    %1529 = vmatprep.subr.bf16.mxu0 0
    %1530 = vmatpush2.bf16.msra.mxu0 0
    %1531 = vmatprep.subr.bf16.mxu0 0
    %1532 = vmatpush2.bf16.msra.mxu0 0
    %1533 = vmatprep.subr.bf16.mxu0 0
    %1534 = vmatpush2.bf16.msra.mxu0 0
    %1535 = vmatprep.mubr.bf16.mxu0 0
    %1536 = vmatmul.mubr.bf16.gmra.mxu0 %v1243
    %v1537 = vpop.f32.mrf.mxu0
    %v1538 = vadd.f32 0.0, %v1537
    %v1539 = vpop.f32.mrf.mxu0
    %v1540 = vadd.f32 0.0, %v1539
    %v1541 = vpop.f32.mrf.mxu0
    %v1542 = vadd.f32 0.0, %v1541
    %v1543 = vpop.f32.mrf.mxu0
    %v1544 = vadd.f32 0.0, %v1543
    %1545 = vdwg.mxu0
    %v1546 = vadd.f32 %v1260, %v1495
    %v1547 = vadd.f32 %v1261, %v1497
    %v1548 = vadd.f32 %v1262, %v1538
    %v1549 = vadd.f32 %v1263, %v1540
    %v1550 = vadd.f32 %v1264, %v1499
    %v1551 = vadd.f32 %v1265, %v1501
    %v1552 = vadd.f32 %v1266, %v1542
    %v1553 = vadd.f32 %v1267, %v1544
    %v1554 = vadd.f32 %v1546, %v1170
    %v1555 = vadd.f32 %v1547, %v1174
    %v1556 = vadd.f32 %v1548, %v1178
    %v1557 = vadd.f32 %v1549, %v1182
    %v1558 = vadd.f32 %v1550, %v1170
    %v1559 = vadd.f32 %v1551, %v1174
    %v1560 = vadd.f32 %v1552, %v1178
    %v1561 = vadd.f32 %v1553, %v1182
    %v1562 = vxor.u32 %v1554, 2147483648
    %v1563 = vxor.u32 %v1558, 2147483648
    %v1564 = vmul.f32 %v1562, 1.442695
    %v1565 = vpow.pop %v1564
    %v1566 = vmul.f32 %v1563, 1.442695
    %v1567 = vpow.pop %v1566
    %v1568 = vadd.f32 %v1565, 1.0
    %v1569 = vadd.f32 %v1567, 1.0
    %v1570 = vrcp.pop %v1568
    %v1571 = vmul.f32 1.0, %v1570
    %v1572 = vrcp.pop %v1569
    %v1573 = vmul.f32 1.0, %v1572
    %v1574 = vxor.u32 %v1555, 2147483648
    %v1575 = vxor.u32 %v1559, 2147483648
    %v1576 = vmul.f32 %v1574, 1.442695
    %v1577 = vpow.pop %v1576
    %v1578 = vmul.f32 %v1575, 1.442695
    %v1579 = vpow.pop %v1578
    %v1580 = vadd.f32 %v1577, 1.0
    %v1581 = vadd.f32 %v1579, 1.0
    %v1582 = vrcp.pop %v1580
    %v1583 = vmul.f32 1.0, %v1582
    %v1584 = vrcp.pop %v1581
    %v1585 = vmul.f32 1.0, %v1584
    %v1586 = vtanh.pop %v1556
    %v1587 = vtanh.pop %v1560
    %v1588 = vxor.u32 %v1557, 2147483648
    %v1589 = vxor.u32 %v1561, 2147483648
    %v1590 = vmul.f32 %v1588, 1.442695
    %v1591 = vpow.pop %v1590
    %v1592 = vmul.f32 %v1589, 1.442695
    %v1593 = vpow.pop %v1592
    %v1594 = vadd.f32 %v1591, 1.0
    %v1595 = vadd.f32 %v1593, 1.0
    %v1596 = vrcp.pop %v1594
    %v1597 = vmul.f32 1.0, %v1596
    %v1598 = vrcp.pop %v1595
    %v1599 = vmul.f32 1.0, %v1598
    %v1600 = vmul.f32 %v1583, %v1237
    %v1601 = vmul.f32 %v1585, %v1238
    %v1602 = vmul.f32 %v1571, %v1586
    %v1603 = vmul.f32 %v1573, %v1587
    %v1604 = vadd.f32 %v1600, %v1602
    %v1605 = vadd.f32 %v1601, %v1603
    %v1606 = vtanh.pop %v1604
    %v1607 = vtanh.pop %v1605
    %v1608 = vmul.f32 %v1597, %v1606
    %v1609 = vmul.f32 %v1599, %v1607
    %v1610 = vpack.c.bf16 %v1609, %v1608
    %v1612 = vunpack.c.l.b16 %v1610
    %v1613 = vunpack.c.h.b16 %v1610
    %v1614 = vpack.c.b16 %v1612, %v1612
    %v1615 = vpack.c.b16 %v1613, %v1613
    %s1618 = scalar_lea.vmem [#allocation3], 8
    %1619 = vst [vmem:[%s1618] sm:$0xf] %v1614
    %1620 = vst [vmem:[%s1618 + $0x4] sm:$0xf] %v1615
    %s1621 = smul.u32 4, 4
    %s1622 = smul.addr %s1621, 4
    %s1623 = scalar_lea.vmem [#allocation2], %s1622
    %v1624 = vld [vmem:[%s1623] sm:$0xff]
    %v1625 = vld [vmem:[%s1623 + $0x8] sm:$0xff]
    %v1626 = vld [vmem:[%s1623 + $0x10] sm:$0xff]
    %v1627 = vld [vmem:[%s1623 + $0x18] sm:$0xff]
    %v1628 = vunpack.c.l.bf16 %v1624
    %v1629 = vunpack.c.h.bf16 %v1624
    %v1630 = vunpack.c.l.bf16 %v1625
    %v1631 = vunpack.c.h.bf16 %v1625
    %v1632 = vunpack.c.l.bf16 %v1626
    %v1633 = vunpack.c.h.bf16 %v1626
    %v1634 = vunpack.c.l.bf16 %v1627
    %v1635 = vunpack.c.h.bf16 %v1627
    %v1636 = vld [vmem:[#allocation12] sm:$0xff]
    %v1637 = vld [vmem:[#allocation12 + $0x8] sm:$0xff]
    %v1638 = vld [vmem:[#allocation12 + $0x10] sm:$0xff]
    %v1639 = vld [vmem:[#allocation12 + $0x18] sm:$0xff]
    %v1640 = vld [vmem:[#allocation12 + $0x20] sm:$0xff]
    %v1641 = vld [vmem:[#allocation12 + $0x28] sm:$0xff]
    %v1642 = vld [vmem:[#allocation12 + $0x30] sm:$0xff]
    %v1643 = vld [vmem:[#allocation12 + $0x38] sm:$0xff]
    %v1644 = vld [vmem:[#allocation12 + $0x40] sm:$0xff]
    %v1645 = vld [vmem:[#allocation12 + $0x48] sm:$0xff]
    %v1646 = vld [vmem:[#allocation12 + $0x50] sm:$0xff]
    %v1647 = vld [vmem:[#allocation12 + $0x58] sm:$0xff]
    %v1648 = vld [vmem:[#allocation12 + $0x60] sm:$0xff]
    %v1649 = vld [vmem:[#allocation12 + $0x68] sm:$0xff]
    %v1650 = vld [vmem:[#allocation12 + $0x70] sm:$0xff]
    %v1651 = vld [vmem:[#allocation12 + $0x78] sm:$0xff]
    %v1652 = vld [vmem:[#allocation12 + $0x80] sm:$0xff]
    %v1653 = vld [vmem:[#allocation12 + $0x88] sm:$0xff]
    %v1654 = vld [vmem:[#allocation12 + $0x90] sm:$0xff]
    %v1655 = vld [vmem:[#allocation12 + $0x98] sm:$0xff]
    %v1656 = vld [vmem:[#allocation12 + $0xa0] sm:$0xff]
    %v1657 = vld [vmem:[#allocation12 + $0xa8] sm:$0xff]
    %v1658 = vld [vmem:[#allocation12 + $0xb0] sm:$0xff]
    %v1659 = vld [vmem:[#allocation12 + $0xb8] sm:$0xff]
    %v1660 = vld [vmem:[#allocation12 + $0xc0] sm:$0xff]
    %v1661 = vld [vmem:[#allocation12 + $0xc8] sm:$0xff]
    %v1662 = vld [vmem:[#allocation12 + $0xd0] sm:$0xff]
    %v1663 = vld [vmem:[#allocation12 + $0xd8] sm:$0xff]
    %v1664 = vld [vmem:[#allocation12 + $0xe0] sm:$0xff]
    %v1665 = vld [vmem:[#allocation12 + $0xe8] sm:$0xff]
    %v1666 = vld [vmem:[#allocation12 + $0xf0] sm:$0xff]
    %v1667 = vld [vmem:[#allocation12 + $0xf8] sm:$0xff]
    %v1700 = vunpack.c.l.b16 %v1636
    %v1701 = vunpack.c.h.b16 %v1636
    %v1702 = vunpack.c.l.b16 %v1637
    %v1703 = vunpack.c.h.b16 %v1637
    %v1704 = vunpack.c.l.b16 %v1638
    %v1705 = vunpack.c.h.b16 %v1638
    %v1706 = vunpack.c.l.b16 %v1639
    %v1707 = vunpack.c.h.b16 %v1639
    %v1708 = vunpack.c.l.b16 %v1640
    %v1709 = vunpack.c.h.b16 %v1640
    %v1710 = vunpack.c.l.b16 %v1641
    %v1711 = vunpack.c.h.b16 %v1641
    %v1712 = vunpack.c.l.b16 %v1642
    %v1713 = vunpack.c.h.b16 %v1642
    %v1714 = vunpack.c.l.b16 %v1643
    %v1715 = vunpack.c.h.b16 %v1643
    %v1716 = vunpack.c.l.b16 %v1644
    %v1717 = vunpack.c.h.b16 %v1644
    %v1718 = vunpack.c.l.b16 %v1645
    %v1719 = vunpack.c.h.b16 %v1645
    %v1720 = vunpack.c.l.b16 %v1646
    %v1721 = vunpack.c.h.b16 %v1646
    %v1722 = vunpack.c.l.b16 %v1647
    %v1723 = vunpack.c.h.b16 %v1647
    %v1724 = vunpack.c.l.b16 %v1648
    %v1725 = vunpack.c.h.b16 %v1648
    %v1726 = vunpack.c.l.b16 %v1649
    %v1727 = vunpack.c.h.b16 %v1649
    %v1728 = vunpack.c.l.b16 %v1650
    %v1729 = vunpack.c.h.b16 %v1650
    %v1730 = vunpack.c.l.b16 %v1651
    %v1731 = vunpack.c.h.b16 %v1651
    %v1732 = vunpack.c.l.b16 %v1652
    %v1733 = vunpack.c.h.b16 %v1652
    %v1734 = vunpack.c.l.b16 %v1653
    %v1735 = vunpack.c.h.b16 %v1653
    %v1736 = vunpack.c.l.b16 %v1654
    %v1737 = vunpack.c.h.b16 %v1654
    %v1738 = vunpack.c.l.b16 %v1655
    %v1739 = vunpack.c.h.b16 %v1655
    %v1740 = vunpack.c.l.b16 %v1656
    %v1741 = vunpack.c.h.b16 %v1656
    %v1742 = vunpack.c.l.b16 %v1657
    %v1743 = vunpack.c.h.b16 %v1657
    %v1744 = vunpack.c.l.b16 %v1658
    %v1745 = vunpack.c.h.b16 %v1658
    %v1746 = vunpack.c.l.b16 %v1659
    %v1747 = vunpack.c.h.b16 %v1659
    %v1748 = vunpack.c.l.b16 %v1660
    %v1749 = vunpack.c.h.b16 %v1660
    %v1750 = vunpack.c.l.b16 %v1661
    %v1751 = vunpack.c.h.b16 %v1661
    %v1752 = vunpack.c.l.b16 %v1662
    %v1753 = vunpack.c.h.b16 %v1662
    %v1754 = vunpack.c.l.b16 %v1663
    %v1755 = vunpack.c.h.b16 %v1663
    %v1756 = vunpack.c.l.b16 %v1664
    %v1757 = vunpack.c.h.b16 %v1664
    %v1758 = vunpack.c.l.b16 %v1665
    %v1759 = vunpack.c.h.b16 %v1665
    %v1760 = vunpack.c.l.b16 %v1666
    %v1761 = vunpack.c.h.b16 %v1666
    %v1762 = vunpack.c.l.b16 %v1667
    %v1763 = vunpack.c.h.b16 %v1667
    %v1764 = vpack.c.b16 %v1704, %v1700
    %v1765 = vpack.c.b16 %v1705, %v1701
    %v1766 = vpack.c.b16 %v1706, %v1702
    %v1767 = vpack.c.b16 %v1707, %v1703
    %v1768 = vpack.c.b16 %v1712, %v1708
    %v1769 = vpack.c.b16 %v1713, %v1709
    %v1770 = vpack.c.b16 %v1714, %v1710
    %v1771 = vpack.c.b16 %v1715, %v1711
    %v1772 = vpack.c.b16 %v1720, %v1716
    %v1773 = vpack.c.b16 %v1721, %v1717
    %v1774 = vpack.c.b16 %v1722, %v1718
    %v1775 = vpack.c.b16 %v1723, %v1719
    %v1776 = vpack.c.b16 %v1728, %v1724
    %v1777 = vpack.c.b16 %v1729, %v1725
    %v1778 = vpack.c.b16 %v1730, %v1726
    %v1779 = vpack.c.b16 %v1731, %v1727
    %v1780 = vpack.c.b16 %v1736, %v1732
    %v1781 = vpack.c.b16 %v1737, %v1733
    %v1782 = vpack.c.b16 %v1738, %v1734
    %v1783 = vpack.c.b16 %v1739, %v1735
    %v1784 = vpack.c.b16 %v1744, %v1740
    %v1785 = vpack.c.b16 %v1745, %v1741
    %v1786 = vpack.c.b16 %v1746, %v1742
    %v1787 = vpack.c.b16 %v1747, %v1743
    %v1788 = vpack.c.b16 %v1752, %v1748
    %v1789 = vpack.c.b16 %v1753, %v1749
    %v1790 = vpack.c.b16 %v1754, %v1750
    %v1791 = vpack.c.b16 %v1755, %v1751
    %v1792 = vpack.c.b16 %v1760, %v1756
    %v1793 = vpack.c.b16 %v1761, %v1757
    %v1794 = vpack.c.b16 %v1762, %v1758
    %v1795 = vpack.c.b16 %v1763, %v1759
    %1828 = vmatprep.subr.bf16.mxu0 %v1793
    %1829 = vmatpush1.bf16.msra.mxu0 %v1792
    %1830 = vmatprep.subr.bf16.mxu0 %v1789
    %1831 = vmatpush1.bf16.msra.mxu0 %v1788
    %1832 = vmatprep.subr.bf16.mxu0 %v1785
    %1833 = vmatpush1.bf16.msra.mxu0 %v1784
    %1834 = vmatprep.subr.bf16.mxu0 %v1781
    %1835 = vmatpush1.bf16.msra.mxu0 %v1780
    %1836 = vmatprep.subr.bf16.mxu0 %v1777
    %1837 = vmatpush1.bf16.msra.mxu0 %v1776
    %1838 = vmatprep.subr.bf16.mxu0 %v1773
    %1839 = vmatpush1.bf16.msra.mxu0 %v1772
    %1840 = vmatprep.subr.bf16.mxu0 %v1769
    %1841 = vmatpush1.bf16.msra.mxu0 %v1768
    %1842 = vmatprep.subr.bf16.mxu0 %v1765
    %1843 = vmatpush1.bf16.msra.mxu0 %v1764
    %1844 = vmatprep.subr.bf16.mxu0 0
    %1845 = vmatpush2.bf16.msra.mxu0 0
    %1846 = vmatprep.subr.bf16.mxu0 0
    %1847 = vmatpush2.bf16.msra.mxu0 0
    %1848 = vmatprep.subr.bf16.mxu0 0
    %1849 = vmatpush2.bf16.msra.mxu0 0
    %1850 = vmatprep.subr.bf16.mxu0 0
    %1851 = vmatpush2.bf16.msra.mxu0 0
    %1852 = vmatprep.subr.bf16.mxu0 0
    %1853 = vmatpush2.bf16.msra.mxu0 0
    %1854 = vmatprep.subr.bf16.mxu0 0
    %1855 = vmatpush2.bf16.msra.mxu0 0
    %1856 = vmatprep.subr.bf16.mxu0 0
    %1857 = vmatpush2.bf16.msra.mxu0 0
    %1858 = vmatprep.subr.bf16.mxu0 0
    %1859 = vmatpush2.bf16.msra.mxu0 0
    %1860 = vmatprep.mubr.bf16.mxu0 0
    %1861 = vmatmul.mubr.bf16.gmra.mxu0 %v1610
    %v1862 = vpop.f32.mrf.mxu0
    %v1863 = vadd.f32 0.0, %v1862
    %v1864 = vpop.f32.mrf.mxu0
    %v1865 = vadd.f32 0.0, %v1864
    %v1866 = vpop.f32.mrf.mxu0
    %v1867 = vadd.f32 0.0, %v1866
    %v1868 = vpop.f32.mrf.mxu0
    %v1869 = vadd.f32 0.0, %v1868
    %1870 = vdwg.mxu0
    %1871 = vmatprep.subr.bf16.mxu0 %v1795
    %1872 = vmatpush1.bf16.msra.mxu0 %v1794
    %1873 = vmatprep.subr.bf16.mxu0 %v1791
    %1874 = vmatpush1.bf16.msra.mxu0 %v1790
    %1875 = vmatprep.subr.bf16.mxu0 %v1787
    %1876 = vmatpush1.bf16.msra.mxu0 %v1786
    %1877 = vmatprep.subr.bf16.mxu0 %v1783
    %1878 = vmatpush1.bf16.msra.mxu0 %v1782
    %1879 = vmatprep.subr.bf16.mxu0 %v1779
    %1880 = vmatpush1.bf16.msra.mxu0 %v1778
    %1881 = vmatprep.subr.bf16.mxu0 %v1775
    %1882 = vmatpush1.bf16.msra.mxu0 %v1774
    %1883 = vmatprep.subr.bf16.mxu0 %v1771
    %1884 = vmatpush1.bf16.msra.mxu0 %v1770
    %1885 = vmatprep.subr.bf16.mxu0 %v1767
    %1886 = vmatpush1.bf16.msra.mxu0 %v1766
    %1887 = vmatprep.subr.bf16.mxu0 0
    %1888 = vmatpush2.bf16.msra.mxu0 0
    %1889 = vmatprep.subr.bf16.mxu0 0
    %1890 = vmatpush2.bf16.msra.mxu0 0
    %1891 = vmatprep.subr.bf16.mxu0 0
    %1892 = vmatpush2.bf16.msra.mxu0 0
    %1893 = vmatprep.subr.bf16.mxu0 0
    %1894 = vmatpush2.bf16.msra.mxu0 0
    %1895 = vmatprep.subr.bf16.mxu0 0
    %1896 = vmatpush2.bf16.msra.mxu0 0
    %1897 = vmatprep.subr.bf16.mxu0 0
    %1898 = vmatpush2.bf16.msra.mxu0 0
    %1899 = vmatprep.subr.bf16.mxu0 0
    %1900 = vmatpush2.bf16.msra.mxu0 0
    %1901 = vmatprep.subr.bf16.mxu0 0
    %1902 = vmatpush2.bf16.msra.mxu0 0
    %1903 = vmatprep.mubr.bf16.mxu0 0
    %1904 = vmatmul.mubr.bf16.gmra.mxu0 %v1610
    %v1905 = vpop.f32.mrf.mxu0
    %v1906 = vadd.f32 0.0, %v1905
    %v1907 = vpop.f32.mrf.mxu0
    %v1908 = vadd.f32 0.0, %v1907
    %v1909 = vpop.f32.mrf.mxu0
    %v1910 = vadd.f32 0.0, %v1909
    %v1911 = vpop.f32.mrf.mxu0
    %v1912 = vadd.f32 0.0, %v1911
    %1913 = vdwg.mxu0
    %v1914 = vadd.f32 %v1628, %v1863
    %v1915 = vadd.f32 %v1629, %v1865
    %v1916 = vadd.f32 %v1630, %v1906
    %v1917 = vadd.f32 %v1631, %v1908
    %v1918 = vadd.f32 %v1632, %v1867
    %v1919 = vadd.f32 %v1633, %v1869
    %v1920 = vadd.f32 %v1634, %v1910
    %v1921 = vadd.f32 %v1635, %v1912
    %v1922 = vadd.f32 %v1914, %v1170
    %v1923 = vadd.f32 %v1915, %v1174
    %v1924 = vadd.f32 %v1916, %v1178
    %v1925 = vadd.f32 %v1917, %v1182
    %v1926 = vadd.f32 %v1918, %v1170
    %v1927 = vadd.f32 %v1919, %v1174
    %v1928 = vadd.f32 %v1920, %v1178
    %v1929 = vadd.f32 %v1921, %v1182
    %v1930 = vxor.u32 %v1922, 2147483648
    %v1931 = vxor.u32 %v1926, 2147483648
    %v1932 = vmul.f32 %v1930, 1.442695
    %v1933 = vpow.pop %v1932
    %v1934 = vmul.f32 %v1931, 1.442695
    %v1935 = vpow.pop %v1934
    %v1936 = vadd.f32 %v1933, 1.0
    %v1937 = vadd.f32 %v1935, 1.0
    %v1938 = vrcp.pop %v1936
    %v1939 = vmul.f32 1.0, %v1938
    %v1940 = vrcp.pop %v1937
    %v1941 = vmul.f32 1.0, %v1940
    %v1942 = vxor.u32 %v1923, 2147483648
    %v1943 = vxor.u32 %v1927, 2147483648
    %v1944 = vmul.f32 %v1942, 1.442695
    %v1945 = vpow.pop %v1944
    %v1946 = vmul.f32 %v1943, 1.442695
    %v1947 = vpow.pop %v1946
    %v1948 = vadd.f32 %v1945, 1.0
    %v1949 = vadd.f32 %v1947, 1.0
    %v1950 = vrcp.pop %v1948
    %v1951 = vmul.f32 1.0, %v1950
    %v1952 = vrcp.pop %v1949
    %v1953 = vmul.f32 1.0, %v1952
    %v1954 = vtanh.pop %v1924
    %v1955 = vtanh.pop %v1928
    %v1956 = vxor.u32 %v1925, 2147483648
    %v1957 = vxor.u32 %v1929, 2147483648
    %v1958 = vmul.f32 %v1956, 1.442695
    %v1959 = vpow.pop %v1958
    %v1960 = vmul.f32 %v1957, 1.442695
    %v1961 = vpow.pop %v1960
    %v1962 = vadd.f32 %v1959, 1.0
    %v1963 = vadd.f32 %v1961, 1.0
    %v1964 = vrcp.pop %v1962
    %v1965 = vmul.f32 1.0, %v1964
    %v1966 = vrcp.pop %v1963
    %v1967 = vmul.f32 1.0, %v1966
    %v1968 = vmul.f32 %v1951, %v1604
    %v1969 = vmul.f32 %v1953, %v1605
    %v1970 = vmul.f32 %v1939, %v1954
    %v1971 = vmul.f32 %v1941, %v1955
    %v1972 = vadd.f32 %v1968, %v1970
    %v1973 = vadd.f32 %v1969, %v1971
    %v1974 = vtanh.pop %v1972
    %v1975 = vtanh.pop %v1973
    %v1976 = vmul.f32 %v1965, %v1974
    %v1977 = vmul.f32 %v1967, %v1975
    %v1978 = vpack.c.bf16 %v1977, %v1976
    %v1980 = vunpack.c.l.b16 %v1978
    %v1981 = vunpack.c.h.b16 %v1978
    %v1982 = vpack.c.b16 %v1980, %v1980
    %v1983 = vpack.c.b16 %v1981, %v1981
    %s1986 = scalar_lea.vmem [#allocation3], 16
    %1987 = vst [vmem:[%s1986] sm:$0xf] %v1982
    %1988 = vst [vmem:[%s1986 + $0x4] sm:$0xf] %v1983
    %s1989 = smul.u32 6, 4
    %s1990 = smul.addr %s1989, 4
    %s1991 = scalar_lea.vmem [#allocation2], %s1990
    %v1992 = vld [vmem:[%s1991] sm:$0xff]
    %v1993 = vld [vmem:[%s1991 + $0x8] sm:$0xff]
    %v1994 = vld [vmem:[%s1991 + $0x10] sm:$0xff]
    %v1995 = vld [vmem:[%s1991 + $0x18] sm:$0xff]
    %v1996 = vunpack.c.l.bf16 %v1992
    %v1997 = vunpack.c.h.bf16 %v1992
    %v1998 = vunpack.c.l.bf16 %v1993
    %v1999 = vunpack.c.h.bf16 %v1993
    %v2000 = vunpack.c.l.bf16 %v1994
    %v2001 = vunpack.c.h.bf16 %v1994
    %v2002 = vunpack.c.l.bf16 %v1995
    %v2003 = vunpack.c.h.bf16 %v1995
    %v2004 = vld [vmem:[#allocation12] sm:$0xff]
    %v2005 = vld [vmem:[#allocation12 + $0x8] sm:$0xff]
    %v2006 = vld [vmem:[#allocation12 + $0x10] sm:$0xff]
    %v2007 = vld [vmem:[#allocation12 + $0x18] sm:$0xff]
    %v2008 = vld [vmem:[#allocation12 + $0x20] sm:$0xff]
    %v2009 = vld [vmem:[#allocation12 + $0x28] sm:$0xff]
    %v2010 = vld [vmem:[#allocation12 + $0x30] sm:$0xff]
    %v2011 = vld [vmem:[#allocation12 + $0x38] sm:$0xff]
    %v2012 = vld [vmem:[#allocation12 + $0x40] sm:$0xff]
    %v2013 = vld [vmem:[#allocation12 + $0x48] sm:$0xff]
    %v2014 = vld [vmem:[#allocation12 + $0x50] sm:$0xff]
    %v2015 = vld [vmem:[#allocation12 + $0x58] sm:$0xff]
    %v2016 = vld [vmem:[#allocation12 + $0x60] sm:$0xff]
    %v2017 = vld [vmem:[#allocation12 + $0x68] sm:$0xff]
    %v2018 = vld [vmem:[#allocation12 + $0x70] sm:$0xff]
    %v2019 = vld [vmem:[#allocation12 + $0x78] sm:$0xff]
    %v2020 = vld [vmem:[#allocation12 + $0x80] sm:$0xff]
    %v2021 = vld [vmem:[#allocation12 + $0x88] sm:$0xff]
    %v2022 = vld [vmem:[#allocation12 + $0x90] sm:$0xff]
    %v2023 = vld [vmem:[#allocation12 + $0x98] sm:$0xff]
    %v2024 = vld [vmem:[#allocation12 + $0xa0] sm:$0xff]
    %v2025 = vld [vmem:[#allocation12 + $0xa8] sm:$0xff]
    %v2026 = vld [vmem:[#allocation12 + $0xb0] sm:$0xff]
    %v2027 = vld [vmem:[#allocation12 + $0xb8] sm:$0xff]
    %v2028 = vld [vmem:[#allocation12 + $0xc0] sm:$0xff]
    %v2029 = vld [vmem:[#allocation12 + $0xc8] sm:$0xff]
    %v2030 = vld [vmem:[#allocation12 + $0xd0] sm:$0xff]
    %v2031 = vld [vmem:[#allocation12 + $0xd8] sm:$0xff]
    %v2032 = vld [vmem:[#allocation12 + $0xe0] sm:$0xff]
    %v2033 = vld [vmem:[#allocation12 + $0xe8] sm:$0xff]
    %v2034 = vld [vmem:[#allocation12 + $0xf0] sm:$0xff]
    %v2035 = vld [vmem:[#allocation12 + $0xf8] sm:$0xff]
    %v2068 = vunpack.c.l.b16 %v2004
    %v2069 = vunpack.c.h.b16 %v2004
    %v2070 = vunpack.c.l.b16 %v2005
    %v2071 = vunpack.c.h.b16 %v2005
    %v2072 = vunpack.c.l.b16 %v2006
    %v2073 = vunpack.c.h.b16 %v2006
    %v2074 = vunpack.c.l.b16 %v2007
    %v2075 = vunpack.c.h.b16 %v2007
    %v2076 = vunpack.c.l.b16 %v2008
    %v2077 = vunpack.c.h.b16 %v2008
    %v2078 = vunpack.c.l.b16 %v2009
    %v2079 = vunpack.c.h.b16 %v2009
    %v2080 = vunpack.c.l.b16 %v2010
    %v2081 = vunpack.c.h.b16 %v2010
    %v2082 = vunpack.c.l.b16 %v2011
    %v2083 = vunpack.c.h.b16 %v2011
    %v2084 = vunpack.c.l.b16 %v2012
    %v2085 = vunpack.c.h.b16 %v2012
    %v2086 = vunpack.c.l.b16 %v2013
    %v2087 = vunpack.c.h.b16 %v2013
    %v2088 = vunpack.c.l.b16 %v2014
    %v2089 = vunpack.c.h.b16 %v2014
    %v2090 = vunpack.c.l.b16 %v2015
    %v2091 = vunpack.c.h.b16 %v2015
    %v2092 = vunpack.c.l.b16 %v2016
    %v2093 = vunpack.c.h.b16 %v2016
    %v2094 = vunpack.c.l.b16 %v2017
    %v2095 = vunpack.c.h.b16 %v2017
    %v2096 = vunpack.c.l.b16 %v2018
    %v2097 = vunpack.c.h.b16 %v2018
    %v2098 = vunpack.c.l.b16 %v2019
    %v2099 = vunpack.c.h.b16 %v2019
    %v2100 = vunpack.c.l.b16 %v2020
    %v2101 = vunpack.c.h.b16 %v2020
    %v2102 = vunpack.c.l.b16 %v2021
    %v2103 = vunpack.c.h.b16 %v2021
    %v2104 = vunpack.c.l.b16 %v2022
    %v2105 = vunpack.c.h.b16 %v2022
    %v2106 = vunpack.c.l.b16 %v2023
    %v2107 = vunpack.c.h.b16 %v2023
    %v2108 = vunpack.c.l.b16 %v2024
    %v2109 = vunpack.c.h.b16 %v2024
    %v2110 = vunpack.c.l.b16 %v2025
    %v2111 = vunpack.c.h.b16 %v2025
    %v2112 = vunpack.c.l.b16 %v2026
    %v2113 = vunpack.c.h.b16 %v2026
    %v2114 = vunpack.c.l.b16 %v2027
    %v2115 = vunpack.c.h.b16 %v2027
    %v2116 = vunpack.c.l.b16 %v2028
    %v2117 = vunpack.c.h.b16 %v2028
    %v2118 = vunpack.c.l.b16 %v2029
    %v2119 = vunpack.c.h.b16 %v2029
    %v2120 = vunpack.c.l.b16 %v2030
    %v2121 = vunpack.c.h.b16 %v2030
    %v2122 = vunpack.c.l.b16 %v2031
    %v2123 = vunpack.c.h.b16 %v2031
    %v2124 = vunpack.c.l.b16 %v2032
    %v2125 = vunpack.c.h.b16 %v2032
    %v2126 = vunpack.c.l.b16 %v2033
    %v2127 = vunpack.c.h.b16 %v2033
    %v2128 = vunpack.c.l.b16 %v2034
    %v2129 = vunpack.c.h.b16 %v2034
    %v2130 = vunpack.c.l.b16 %v2035
    %v2131 = vunpack.c.h.b16 %v2035
    %v2132 = vpack.c.b16 %v2072, %v2068
    %v2133 = vpack.c.b16 %v2073, %v2069
    %v2134 = vpack.c.b16 %v2074, %v2070
    %v2135 = vpack.c.b16 %v2075, %v2071
    %v2136 = vpack.c.b16 %v2080, %v2076
    %v2137 = vpack.c.b16 %v2081, %v2077
    %v2138 = vpack.c.b16 %v2082, %v2078
    %v2139 = vpack.c.b16 %v2083, %v2079
    %v2140 = vpack.c.b16 %v2088, %v2084
    %v2141 = vpack.c.b16 %v2089, %v2085
    %v2142 = vpack.c.b16 %v2090, %v2086
    %v2143 = vpack.c.b16 %v2091, %v2087
    %v2144 = vpack.c.b16 %v2096, %v2092
    %v2145 = vpack.c.b16 %v2097, %v2093
    %v2146 = vpack.c.b16 %v2098, %v2094
    %v2147 = vpack.c.b16 %v2099, %v2095
    %v2148 = vpack.c.b16 %v2104, %v2100
    %v2149 = vpack.c.b16 %v2105, %v2101
    %v2150 = vpack.c.b16 %v2106, %v2102
    %v2151 = vpack.c.b16 %v2107, %v2103
    %v2152 = vpack.c.b16 %v2112, %v2108
    %v2153 = vpack.c.b16 %v2113, %v2109
    %v2154 = vpack.c.b16 %v2114, %v2110
    %v2155 = vpack.c.b16 %v2115, %v2111
    %v2156 = vpack.c.b16 %v2120, %v2116
    %v2157 = vpack.c.b16 %v2121, %v2117
    %v2158 = vpack.c.b16 %v2122, %v2118
    %v2159 = vpack.c.b16 %v2123, %v2119
    %v2160 = vpack.c.b16 %v2128, %v2124
    %v2161 = vpack.c.b16 %v2129, %v2125
    %v2162 = vpack.c.b16 %v2130, %v2126
    %v2163 = vpack.c.b16 %v2131, %v2127
    %2196 = vmatprep.subr.bf16.mxu0 %v2161
    %2197 = vmatpush1.bf16.msra.mxu0 %v2160
    %2198 = vmatprep.subr.bf16.mxu0 %v2157
    %2199 = vmatpush1.bf16.msra.mxu0 %v2156
    %2200 = vmatprep.subr.bf16.mxu0 %v2153
    %2201 = vmatpush1.bf16.msra.mxu0 %v2152
    %2202 = vmatprep.subr.bf16.mxu0 %v2149
    %2203 = vmatpush1.bf16.msra.mxu0 %v2148
    %2204 = vmatprep.subr.bf16.mxu0 %v2145
    %2205 = vmatpush1.bf16.msra.mxu0 %v2144
    %2206 = vmatprep.subr.bf16.mxu0 %v2141
    %2207 = vmatpush1.bf16.msra.mxu0 %v2140
    %2208 = vmatprep.subr.bf16.mxu0 %v2137
    %2209 = vmatpush1.bf16.msra.mxu0 %v2136
    %2210 = vmatprep.subr.bf16.mxu0 %v2133
    %2211 = vmatpush1.bf16.msra.mxu0 %v2132
    %2212 = vmatprep.subr.bf16.mxu0 0
    %2213 = vmatpush2.bf16.msra.mxu0 0
    %2214 = vmatprep.subr.bf16.mxu0 0
    %2215 = vmatpush2.bf16.msra.mxu0 0
    %2216 = vmatprep.subr.bf16.mxu0 0
    %2217 = vmatpush2.bf16.msra.mxu0 0
    %2218 = vmatprep.subr.bf16.mxu0 0
    %2219 = vmatpush2.bf16.msra.mxu0 0
    %2220 = vmatprep.subr.bf16.mxu0 0
    %2221 = vmatpush2.bf16.msra.mxu0 0
    %2222 = vmatprep.subr.bf16.mxu0 0
    %2223 = vmatpush2.bf16.msra.mxu0 0
    %2224 = vmatprep.subr.bf16.mxu0 0
    %2225 = vmatpush2.bf16.msra.mxu0 0
    %2226 = vmatprep.subr.bf16.mxu0 0
    %2227 = vmatpush2.bf16.msra.mxu0 0
    %2228 = vmatprep.mubr.bf16.mxu0 0
    %2229 = vmatmul.mubr.bf16.gmra.mxu0 %v1978
    %v2230 = vpop.f32.mrf.mxu0
    %v2231 = vadd.f32 0.0, %v2230
    %v2232 = vpop.f32.mrf.mxu0
    %v2233 = vadd.f32 0.0, %v2232
    %v2234 = vpop.f32.mrf.mxu0
    %v2235 = vadd.f32 0.0, %v2234
    %v2236 = vpop.f32.mrf.mxu0
    %v2237 = vadd.f32 0.0, %v2236
    %2238 = vdwg.mxu0
    %2239 = vmatprep.subr.bf16.mxu0 %v2163
    %2240 = vmatpush1.bf16.msra.mxu0 %v2162
    %2241 = vmatprep.subr.bf16.mxu0 %v2159
    %2242 = vmatpush1.bf16.msra.mxu0 %v2158
    %2243 = vmatprep.subr.bf16.mxu0 %v2155
    %2244 = vmatpush1.bf16.msra.mxu0 %v2154
    %2245 = vmatprep.subr.bf16.mxu0 %v2151
    %2246 = vmatpush1.bf16.msra.mxu0 %v2150
    %2247 = vmatprep.subr.bf16.mxu0 %v2147
    %2248 = vmatpush1.bf16.msra.mxu0 %v2146
    %2249 = vmatprep.subr.bf16.mxu0 %v2143
    %2250 = vmatpush1.bf16.msra.mxu0 %v2142
    %2251 = vmatprep.subr.bf16.mxu0 %v2139
    %2252 = vmatpush1.bf16.msra.mxu0 %v2138
    %2253 = vmatprep.subr.bf16.mxu0 %v2135
    %2254 = vmatpush1.bf16.msra.mxu0 %v2134
    %2255 = vmatprep.subr.bf16.mxu0 0
    %2256 = vmatpush2.bf16.msra.mxu0 0
    %2257 = vmatprep.subr.bf16.mxu0 0
    %2258 = vmatpush2.bf16.msra.mxu0 0
    %2259 = vmatprep.subr.bf16.mxu0 0
    %2260 = vmatpush2.bf16.msra.mxu0 0
    %2261 = vmatprep.subr.bf16.mxu0 0
    %2262 = vmatpush2.bf16.msra.mxu0 0
    %2263 = vmatprep.subr.bf16.mxu0 0
    %2264 = vmatpush2.bf16.msra.mxu0 0
    %2265 = vmatprep.subr.bf16.mxu0 0
    %2266 = vmatpush2.bf16.msra.mxu0 0
    %2267 = vmatprep.subr.bf16.mxu0 0
    %2268 = vmatpush2.bf16.msra.mxu0 0
    %2269 = vmatprep.subr.bf16.mxu0 0
    %2270 = vmatpush2.bf16.msra.mxu0 0
    %2271 = vmatprep.mubr.bf16.mxu0 0
    %2272 = vmatmul.mubr.bf16.gmra.mxu0 %v1978
    %v2273 = vpop.f32.mrf.mxu0
    %v2274 = vadd.f32 0.0, %v2273
    %v2275 = vpop.f32.mrf.mxu0
    %v2276 = vadd.f32 0.0, %v2275
    %v2277 = vpop.f32.mrf.mxu0
    %v2278 = vadd.f32 0.0, %v2277
    %v2279 = vpop.f32.mrf.mxu0
    %v2280 = vadd.f32 0.0, %v2279
    %2281 = vdwg.mxu0
    %v2282 = vadd.f32 %v1996, %v2231
    %v2283 = vadd.f32 %v1997, %v2233
    %v2284 = vadd.f32 %v1998, %v2274
    %v2285 = vadd.f32 %v1999, %v2276
    %v2286 = vadd.f32 %v2000, %v2235
    %v2287 = vadd.f32 %v2001, %v2237
    %v2288 = vadd.f32 %v2002, %v2278
    %v2289 = vadd.f32 %v2003, %v2280
    %v2290 = vadd.f32 %v2282, %v1170
    %v2291 = vadd.f32 %v2283, %v1174
    %v2292 = vadd.f32 %v2284, %v1178
    %v2293 = vadd.f32 %v2285, %v1182
    %v2294 = vadd.f32 %v2286, %v1170
    %v2295 = vadd.f32 %v2287, %v1174
    %v2296 = vadd.f32 %v2288, %v1178
    %v2297 = vadd.f32 %v2289, %v1182
    %v2298 = vxor.u32 %v2290, 2147483648
    %v2299 = vxor.u32 %v2294, 2147483648
    %v2300 = vmul.f32 %v2298, 1.442695
    %v2301 = vpow.pop %v2300
    %v2302 = vmul.f32 %v2299, 1.442695
    %v2303 = vpow.pop %v2302
    %v2304 = vadd.f32 %v2301, 1.0
    %v2305 = vadd.f32 %v2303, 1.0
    %v2306 = vrcp.pop %v2304
    %v2307 = vmul.f32 1.0, %v2306
    %v2308 = vrcp.pop %v2305
    %v2309 = vmul.f32 1.0, %v2308
    %v2310 = vxor.u32 %v2291, 2147483648
    %v2311 = vxor.u32 %v2295, 2147483648
    %v2312 = vmul.f32 %v2310, 1.442695
    %v2313 = vpow.pop %v2312
    %v2314 = vmul.f32 %v2311, 1.442695
    %v2315 = vpow.pop %v2314
    %v2316 = vadd.f32 %v2313, 1.0
    %v2317 = vadd.f32 %v2315, 1.0
    %v2318 = vrcp.pop %v2316
    %v2319 = vmul.f32 1.0, %v2318
    %v2320 = vrcp.pop %v2317
    %v2321 = vmul.f32 1.0, %v2320
    %v2322 = vtanh.pop %v2292
    %v2323 = vtanh.pop %v2296
    %v2324 = vxor.u32 %v2293, 2147483648
    %v2325 = vxor.u32 %v2297, 2147483648
    %v2326 = vmul.f32 %v2324, 1.442695
    %v2327 = vpow.pop %v2326
    %v2328 = vmul.f32 %v2325, 1.442695
    %v2329 = vpow.pop %v2328
    %v2330 = vadd.f32 %v2327, 1.0
    %v2331 = vadd.f32 %v2329, 1.0
    %v2332 = vrcp.pop %v2330
    %v2333 = vmul.f32 1.0, %v2332
    %v2334 = vrcp.pop %v2331
    %v2335 = vmul.f32 1.0, %v2334
    %v2336 = vmul.f32 %v2319, %v1972
    %v2337 = vmul.f32 %v2321, %v1973
    %v2338 = vmul.f32 %v2307, %v2322
    %v2339 = vmul.f32 %v2309, %v2323
    %v2340 = vadd.f32 %v2336, %v2338
    %v2341 = vadd.f32 %v2337, %v2339
    %v2342 = vtanh.pop %v2340
    %v2343 = vtanh.pop %v2341
    %v2344 = vmul.f32 %v2333, %v2342
    %v2345 = vmul.f32 %v2335, %v2343
    %v2346 = vpack.c.bf16 %v2345, %v2344
    %v2348 = vunpack.c.l.b16 %v2346
    %v2349 = vunpack.c.h.b16 %v2346
    %v2350 = vpack.c.b16 %v2348, %v2348
    %v2351 = vpack.c.b16 %v2349, %v2349
    %s2354 = scalar_lea.vmem [#allocation3], 24
    %2355 = vst [vmem:[%s2354] sm:$0xf] %v2350
    %2356 = vst [vmem:[%s2354 + $0x4] sm:$0xf] %v2351
    %s2357 = smul.u32 8, 4
    %s2358 = smul.addr %s2357, 4
    %s2359 = scalar_lea.vmem [#allocation2], %s2358
    %v2360 = vld [vmem:[%s2359] sm:$0xff]
    %v2361 = vld [vmem:[%s2359 + $0x8] sm:$0xff]
    %v2362 = vld [vmem:[%s2359 + $0x10] sm:$0xff]
    %v2363 = vld [vmem:[%s2359 + $0x18] sm:$0xff]
    %v2364 = vunpack.c.l.bf16 %v2360
    %v2365 = vunpack.c.h.bf16 %v2360
    %v2366 = vunpack.c.l.bf16 %v2361
    %v2367 = vunpack.c.h.bf16 %v2361
    %v2368 = vunpack.c.l.bf16 %v2362
    %v2369 = vunpack.c.h.bf16 %v2362
    %v2370 = vunpack.c.l.bf16 %v2363
    %v2371 = vunpack.c.h.bf16 %v2363
    %v2372 = vld [vmem:[#allocation12] sm:$0xff]
    %v2373 = vld [vmem:[#allocation12 + $0x8] sm:$0xff]
    %v2374 = vld [vmem:[#allocation12 + $0x10] sm:$0xff]
    %v2375 = vld [vmem:[#allocation12 + $0x18] sm:$0xff]
    %v2376 = vld [vmem:[#allocation12 + $0x20] sm:$0xff]
    %v2377 = vld [vmem:[#allocation12 + $0x28] sm:$0xff]
    %v2378 = vld [vmem:[#allocation12 + $0x30] sm:$0xff]
    %v2379 = vld [vmem:[#allocation12 + $0x38] sm:$0xff]
    %v2380 = vld [vmem:[#allocation12 + $0x40] sm:$0xff]
    %v2381 = vld [vmem:[#allocation12 + $0x48] sm:$0xff]
    %v2382 = vld [vmem:[#allocation12 + $0x50] sm:$0xff]
    %v2383 = vld [vmem:[#allocation12 + $0x58] sm:$0xff]
    %v2384 = vld [vmem:[#allocation12 + $0x60] sm:$0xff]
    %v2385 = vld [vmem:[#allocation12 + $0x68] sm:$0xff]
    %v2386 = vld [vmem:[#allocation12 + $0x70] sm:$0xff]
    %v2387 = vld [vmem:[#allocation12 + $0x78] sm:$0xff]
    %v2388 = vld [vmem:[#allocation12 + $0x80] sm:$0xff]
    %v2389 = vld [vmem:[#allocation12 + $0x88] sm:$0xff]
    %v2390 = vld [vmem:[#allocation12 + $0x90] sm:$0xff]
    %v2391 = vld [vmem:[#allocation12 + $0x98] sm:$0xff]
    %v2392 = vld [vmem:[#allocation12 + $0xa0] sm:$0xff]
    %v2393 = vld [vmem:[#allocation12 + $0xa8] sm:$0xff]
    %v2394 = vld [vmem:[#allocation12 + $0xb0] sm:$0xff]
    %v2395 = vld [vmem:[#allocation12 + $0xb8] sm:$0xff]
    %v2396 = vld [vmem:[#allocation12 + $0xc0] sm:$0xff]
    %v2397 = vld [vmem:[#allocation12 + $0xc8] sm:$0xff]
    %v2398 = vld [vmem:[#allocation12 + $0xd0] sm:$0xff]
    %v2399 = vld [vmem:[#allocation12 + $0xd8] sm:$0xff]
    %v2400 = vld [vmem:[#allocation12 + $0xe0] sm:$0xff]
    %v2401 = vld [vmem:[#allocation12 + $0xe8] sm:$0xff]
    %v2402 = vld [vmem:[#allocation12 + $0xf0] sm:$0xff]
    %v2403 = vld [vmem:[#allocation12 + $0xf8] sm:$0xff]
    %v2436 = vunpack.c.l.b16 %v2372
    %v2437 = vunpack.c.h.b16 %v2372
    %v2438 = vunpack.c.l.b16 %v2373
    %v2439 = vunpack.c.h.b16 %v2373
    %v2440 = vunpack.c.l.b16 %v2374
    %v2441 = vunpack.c.h.b16 %v2374
    %v2442 = vunpack.c.l.b16 %v2375
    %v2443 = vunpack.c.h.b16 %v2375
    %v2444 = vunpack.c.l.b16 %v2376
    %v2445 = vunpack.c.h.b16 %v2376
    %v2446 = vunpack.c.l.b16 %v2377
    %v2447 = vunpack.c.h.b16 %v2377
    %v2448 = vunpack.c.l.b16 %v2378
    %v2449 = vunpack.c.h.b16 %v2378
    %v2450 = vunpack.c.l.b16 %v2379
    %v2451 = vunpack.c.h.b16 %v2379
    %v2452 = vunpack.c.l.b16 %v2380
    %v2453 = vunpack.c.h.b16 %v2380
    %v2454 = vunpack.c.l.b16 %v2381
    %v2455 = vunpack.c.h.b16 %v2381
    %v2456 = vunpack.c.l.b16 %v2382
    %v2457 = vunpack.c.h.b16 %v2382
    %v2458 = vunpack.c.l.b16 %v2383
    %v2459 = vunpack.c.h.b16 %v2383
    %v2460 = vunpack.c.l.b16 %v2384
    %v2461 = vunpack.c.h.b16 %v2384
    %v2462 = vunpack.c.l.b16 %v2385
    %v2463 = vunpack.c.h.b16 %v2385
    %v2464 = vunpack.c.l.b16 %v2386
    %v2465 = vunpack.c.h.b16 %v2386
    %v2466 = vunpack.c.l.b16 %v2387
    %v2467 = vunpack.c.h.b16 %v2387
    %v2468 = vunpack.c.l.b16 %v2388
    %v2469 = vunpack.c.h.b16 %v2388
    %v2470 = vunpack.c.l.b16 %v2389
    %v2471 = vunpack.c.h.b16 %v2389
    %v2472 = vunpack.c.l.b16 %v2390
    %v2473 = vunpack.c.h.b16 %v2390
    %v2474 = vunpack.c.l.b16 %v2391
    %v2475 = vunpack.c.h.b16 %v2391
    %v2476 = vunpack.c.l.b16 %v2392
    %v2477 = vunpack.c.h.b16 %v2392
    %v2478 = vunpack.c.l.b16 %v2393
    %v2479 = vunpack.c.h.b16 %v2393
    %v2480 = vunpack.c.l.b16 %v2394
    %v2481 = vunpack.c.h.b16 %v2394
    %v2482 = vunpack.c.l.b16 %v2395
    %v2483 = vunpack.c.h.b16 %v2395
    %v2484 = vunpack.c.l.b16 %v2396
    %v2485 = vunpack.c.h.b16 %v2396
    %v2486 = vunpack.c.l.b16 %v2397
    %v2487 = vunpack.c.h.b16 %v2397
    %v2488 = vunpack.c.l.b16 %v2398
    %v2489 = vunpack.c.h.b16 %v2398
    %v2490 = vunpack.c.l.b16 %v2399
    %v2491 = vunpack.c.h.b16 %v2399
    %v2492 = vunpack.c.l.b16 %v2400
    %v2493 = vunpack.c.h.b16 %v2400
    %v2494 = vunpack.c.l.b16 %v2401
    %v2495 = vunpack.c.h.b16 %v2401
    %v2496 = vunpack.c.l.b16 %v2402
    %v2497 = vunpack.c.h.b16 %v2402
    %v2498 = vunpack.c.l.b16 %v2403
    %v2499 = vunpack.c.h.b16 %v2403
    %v2500 = vpack.c.b16 %v2440, %v2436
    %v2501 = vpack.c.b16 %v2441, %v2437
    %v2502 = vpack.c.b16 %v2442, %v2438
    %v2503 = vpack.c.b16 %v2443, %v2439
    %v2504 = vpack.c.b16 %v2448, %v2444
    %v2505 = vpack.c.b16 %v2449, %v2445
    %v2506 = vpack.c.b16 %v2450, %v2446
    %v2507 = vpack.c.b16 %v2451, %v2447
    %v2508 = vpack.c.b16 %v2456, %v2452
    %v2509 = vpack.c.b16 %v2457, %v2453
    %v2510 = vpack.c.b16 %v2458, %v2454
    %v2511 = vpack.c.b16 %v2459, %v2455
    %v2512 = vpack.c.b16 %v2464, %v2460
    %v2513 = vpack.c.b16 %v2465, %v2461
    %v2514 = vpack.c.b16 %v2466, %v2462
    %v2515 = vpack.c.b16 %v2467, %v2463
    %v2516 = vpack.c.b16 %v2472, %v2468
    %v2517 = vpack.c.b16 %v2473, %v2469
    %v2518 = vpack.c.b16 %v2474, %v2470
    %v2519 = vpack.c.b16 %v2475, %v2471
    %v2520 = vpack.c.b16 %v2480, %v2476
    %v2521 = vpack.c.b16 %v2481, %v2477
    %v2522 = vpack.c.b16 %v2482, %v2478
    %v2523 = vpack.c.b16 %v2483, %v2479
    %v2524 = vpack.c.b16 %v2488, %v2484
    %v2525 = vpack.c.b16 %v2489, %v2485
    %v2526 = vpack.c.b16 %v2490, %v2486
    %v2527 = vpack.c.b16 %v2491, %v2487
    %v2528 = vpack.c.b16 %v2496, %v2492
    %v2529 = vpack.c.b16 %v2497, %v2493
    %v2530 = vpack.c.b16 %v2498, %v2494
    %v2531 = vpack.c.b16 %v2499, %v2495
    %2564 = vmatprep.subr.bf16.mxu0 %v2529
    %2565 = vmatpush1.bf16.msra.mxu0 %v2528
    %2566 = vmatprep.subr.bf16.mxu0 %v2525
    %2567 = vmatpush1.bf16.msra.mxu0 %v2524
    %2568 = vmatprep.subr.bf16.mxu0 %v2521
    %2569 = vmatpush1.bf16.msra.mxu0 %v2520
    %2570 = vmatprep.subr.bf16.mxu0 %v2517
    %2571 = vmatpush1.bf16.msra.mxu0 %v2516
    %2572 = vmatprep.subr.bf16.mxu0 %v2513
    %2573 = vmatpush1.bf16.msra.mxu0 %v2512
    %2574 = vmatprep.subr.bf16.mxu0 %v2509
    %2575 = vmatpush1.bf16.msra.mxu0 %v2508
    %2576 = vmatprep.subr.bf16.mxu0 %v2505
    %2577 = vmatpush1.bf16.msra.mxu0 %v2504
    %2578 = vmatprep.subr.bf16.mxu0 %v2501
    %2579 = vmatpush1.bf16.msra.mxu0 %v2500
    %2580 = vmatprep.subr.bf16.mxu0 0
    %2581 = vmatpush2.bf16.msra.mxu0 0
    %2582 = vmatprep.subr.bf16.mxu0 0
    %2583 = vmatpush2.bf16.msra.mxu0 0
    %2584 = vmatprep.subr.bf16.mxu0 0
    %2585 = vmatpush2.bf16.msra.mxu0 0
    %2586 = vmatprep.subr.bf16.mxu0 0
    %2587 = vmatpush2.bf16.msra.mxu0 0
    %2588 = vmatprep.subr.bf16.mxu0 0
    %2589 = vmatpush2.bf16.msra.mxu0 0
    %2590 = vmatprep.subr.bf16.mxu0 0
    %2591 = vmatpush2.bf16.msra.mxu0 0
    %2592 = vmatprep.subr.bf16.mxu0 0
    %2593 = vmatpush2.bf16.msra.mxu0 0
    %2594 = vmatprep.subr.bf16.mxu0 0
    %2595 = vmatpush2.bf16.msra.mxu0 0
    %2596 = vmatprep.mubr.bf16.mxu0 0
    %2597 = vmatmul.mubr.bf16.gmra.mxu0 %v2346
    %v2598 = vpop.f32.mrf.mxu0
    %v2599 = vadd.f32 0.0, %v2598
    %v2600 = vpop.f32.mrf.mxu0
    %v2601 = vadd.f32 0.0, %v2600
    %v2602 = vpop.f32.mrf.mxu0
    %v2603 = vadd.f32 0.0, %v2602
    %v2604 = vpop.f32.mrf.mxu0
    %v2605 = vadd.f32 0.0, %v2604
    %2606 = vdwg.mxu0
    %2607 = vmatprep.subr.bf16.mxu0 %v2531
    %2608 = vmatpush1.bf16.msra.mxu0 %v2530
    %2609 = vmatprep.subr.bf16.mxu0 %v2527
    %2610 = vmatpush1.bf16.msra.mxu0 %v2526
    %2611 = vmatprep.subr.bf16.mxu0 %v2523
    %2612 = vmatpush1.bf16.msra.mxu0 %v2522
    %2613 = vmatprep.subr.bf16.mxu0 %v2519
    %2614 = vmatpush1.bf16.msra.mxu0 %v2518
    %2615 = vmatprep.subr.bf16.mxu0 %v2515
    %2616 = vmatpush1.bf16.msra.mxu0 %v2514
    %2617 = vmatprep.subr.bf16.mxu0 %v2511
    %2618 = vmatpush1.bf16.msra.mxu0 %v2510
    %2619 = vmatprep.subr.bf16.mxu0 %v2507
    %2620 = vmatpush1.bf16.msra.mxu0 %v2506
    %2621 = vmatprep.subr.bf16.mxu0 %v2503
    %2622 = vmatpush1.bf16.msra.mxu0 %v2502
    %2623 = vmatprep.subr.bf16.mxu0 0
    %2624 = vmatpush2.bf16.msra.mxu0 0
    %2625 = vmatprep.subr.bf16.mxu0 0
    %2626 = vmatpush2.bf16.msra.mxu0 0
    %2627 = vmatprep.subr.bf16.mxu0 0
    %2628 = vmatpush2.bf16.msra.mxu0 0
    %2629 = vmatprep.subr.bf16.mxu0 0
    %2630 = vmatpush2.bf16.msra.mxu0 0
    %2631 = vmatprep.subr.bf16.mxu0 0
    %2632 = vmatpush2.bf16.msra.mxu0 0
    %2633 = vmatprep.subr.bf16.mxu0 0
    %2634 = vmatpush2.bf16.msra.mxu0 0
    %2635 = vmatprep.subr.bf16.mxu0 0
    %2636 = vmatpush2.bf16.msra.mxu0 0
    %2637 = vmatprep.subr.bf16.mxu0 0
    %2638 = vmatpush2.bf16.msra.mxu0 0
    %2639 = vmatprep.mubr.bf16.mxu0 0
    %2640 = vmatmul.mubr.bf16.gmra.mxu0 %v2346
    %v2641 = vpop.f32.mrf.mxu0
    %v2642 = vadd.f32 0.0, %v2641
    %v2643 = vpop.f32.mrf.mxu0
    %v2644 = vadd.f32 0.0, %v2643
    %v2645 = vpop.f32.mrf.mxu0
    %v2646 = vadd.f32 0.0, %v2645
    %v2647 = vpop.f32.mrf.mxu0
    %v2648 = vadd.f32 0.0, %v2647
    %2649 = vdwg.mxu0
    %v2650 = vadd.f32 %v2364, %v2599
    %v2651 = vadd.f32 %v2365, %v2601
    %v2652 = vadd.f32 %v2366, %v2642
    %v2653 = vadd.f32 %v2367, %v2644
    %v2654 = vadd.f32 %v2368, %v2603
    %v2655 = vadd.f32 %v2369, %v2605
    %v2656 = vadd.f32 %v2370, %v2646
    %v2657 = vadd.f32 %v2371, %v2648
    %v2658 = vadd.f32 %v2650, %v1170
    %v2659 = vadd.f32 %v2651, %v1174
    %v2660 = vadd.f32 %v2652, %v1178
    %v2661 = vadd.f32 %v2653, %v1182
    %v2662 = vadd.f32 %v2654, %v1170
    %v2663 = vadd.f32 %v2655, %v1174
    %v2664 = vadd.f32 %v2656, %v1178
    %v2665 = vadd.f32 %v2657, %v1182
    %v2666 = vxor.u32 %v2658, 2147483648
    %v2667 = vxor.u32 %v2662, 2147483648
    %v2668 = vmul.f32 %v2666, 1.442695
    %v2669 = vpow.pop %v2668
    %v2670 = vmul.f32 %v2667, 1.442695
    %v2671 = vpow.pop %v2670
    %v2672 = vadd.f32 %v2669, 1.0
    %v2673 = vadd.f32 %v2671, 1.0
    %v2674 = vrcp.pop %v2672
    %v2675 = vmul.f32 1.0, %v2674
    %v2676 = vrcp.pop %v2673
    %v2677 = vmul.f32 1.0, %v2676
    %v2678 = vxor.u32 %v2659, 2147483648
    %v2679 = vxor.u32 %v2663, 2147483648
    %v2680 = vmul.f32 %v2678, 1.442695
    %v2681 = vpow.pop %v2680
    %v2682 = vmul.f32 %v2679, 1.442695
    %v2683 = vpow.pop %v2682
    %v2684 = vadd.f32 %v2681, 1.0
    %v2685 = vadd.f32 %v2683, 1.0
    %v2686 = vrcp.pop %v2684
    %v2687 = vmul.f32 1.0, %v2686
    %v2688 = vrcp.pop %v2685
    %v2689 = vmul.f32 1.0, %v2688
    %v2690 = vtanh.pop %v2660
    %v2691 = vtanh.pop %v2664
    %v2692 = vxor.u32 %v2661, 2147483648
    %v2693 = vxor.u32 %v2665, 2147483648
    %v2694 = vmul.f32 %v2692, 1.442695
    %v2695 = vpow.pop %v2694
    %v2696 = vmul.f32 %v2693, 1.442695
    %v2697 = vpow.pop %v2696
    %v2698 = vadd.f32 %v2695, 1.0
    %v2699 = vadd.f32 %v2697, 1.0
    %v2700 = vrcp.pop %v2698
    %v2701 = vmul.f32 1.0, %v2700
    %v2702 = vrcp.pop %v2699
    %v2703 = vmul.f32 1.0, %v2702
    %v2704 = vmul.f32 %v2687, %v2340
    %v2705 = vmul.f32 %v2689, %v2341
    %v2706 = vmul.f32 %v2675, %v2690
    %v2707 = vmul.f32 %v2677, %v2691
    %v2708 = vadd.f32 %v2704, %v2706
    %v2709 = vadd.f32 %v2705, %v2707
    %v2710 = vtanh.pop %v2708
    %v2711 = vtanh.pop %v2709
    %v2712 = vmul.f32 %v2701, %v2710
    %v2713 = vmul.f32 %v2703, %v2711
    %v2714 = vpack.c.bf16 %v2713, %v2712
    %v2716 = vunpack.c.l.b16 %v2714
    %v2717 = vunpack.c.h.b16 %v2714
    %v2718 = vpack.c.b16 %v2716, %v2716
    %v2719 = vpack.c.b16 %v2717, %v2717
    %s2722 = scalar_lea.vmem [#allocation3], 32
    %2723 = vst [vmem:[%s2722] sm:$0xf] %v2718
    %2724 = vst [vmem:[%s2722 + $0x4] sm:$0xf] %v2719
    %s2725 = smul.u32 10, 4
    %s2726 = smul.addr %s2725, 4
    %s2727 = scalar_lea.vmem [#allocation2], %s2726
    %v2728 = vld [vmem:[%s2727] sm:$0xff]
    %v2729 = vld [vmem:[%s2727 + $0x8] sm:$0xff]
    %v2730 = vld [vmem:[%s2727 + $0x10] sm:$0xff]
    %v2731 = vld [vmem:[%s2727 + $0x18] sm:$0xff]
    %v2732 = vunpack.c.l.bf16 %v2728
    %v2733 = vunpack.c.h.bf16 %v2728
    %v2734 = vunpack.c.l.bf16 %v2729
    %v2735 = vunpack.c.h.bf16 %v2729
    %v2736 = vunpack.c.l.bf16 %v2730
    %v2737 = vunpack.c.h.bf16 %v2730
    %v2738 = vunpack.c.l.bf16 %v2731
    %v2739 = vunpack.c.h.bf16 %v2731
    %v2740 = vld [vmem:[#allocation12] sm:$0xff]
    %v2741 = vld [vmem:[#allocation12 + $0x8] sm:$0xff]
    %v2742 = vld [vmem:[#allocation12 + $0x10] sm:$0xff]
    %v2743 = vld [vmem:[#allocation12 + $0x18] sm:$0xff]
    %v2744 = vld [vmem:[#allocation12 + $0x20] sm:$0xff]
    %v2745 = vld [vmem:[#allocation12 + $0x28] sm:$0xff]
    %v2746 = vld [vmem:[#allocation12 + $0x30] sm:$0xff]
    %v2747 = vld [vmem:[#allocation12 + $0x38] sm:$0xff]
    %v2748 = vld [vmem:[#allocation12 + $0x40] sm:$0xff]
    %v2749 = vld [vmem:[#allocation12 + $0x48] sm:$0xff]
    %v2750 = vld [vmem:[#allocation12 + $0x50] sm:$0xff]
    %v2751 = vld [vmem:[#allocation12 + $0x58] sm:$0xff]
    %v2752 = vld [vmem:[#allocation12 + $0x60] sm:$0xff]
    %v2753 = vld [vmem:[#allocation12 + $0x68] sm:$0xff]
    %v2754 = vld [vmem:[#allocation12 + $0x70] sm:$0xff]
    %v2755 = vld [vmem:[#allocation12 + $0x78] sm:$0xff]
    %v2756 = vld [vmem:[#allocation12 + $0x80] sm:$0xff]
    %v2757 = vld [vmem:[#allocation12 + $0x88] sm:$0xff]
    %v2758 = vld [vmem:[#allocation12 + $0x90] sm:$0xff]
    %v2759 = vld [vmem:[#allocation12 + $0x98] sm:$0xff]
    %v2760 = vld [vmem:[#allocation12 + $0xa0] sm:$0xff]
    %v2761 = vld [vmem:[#allocation12 + $0xa8] sm:$0xff]
    %v2762 = vld [vmem:[#allocation12 + $0xb0] sm:$0xff]
    %v2763 = vld [vmem:[#allocation12 + $0xb8] sm:$0xff]
    %v2764 = vld [vmem:[#allocation12 + $0xc0] sm:$0xff]
    %v2765 = vld [vmem:[#allocation12 + $0xc8] sm:$0xff]
    %v2766 = vld [vmem:[#allocation12 + $0xd0] sm:$0xff]
    %v2767 = vld [vmem:[#allocation12 + $0xd8] sm:$0xff]
    %v2768 = vld [vmem:[#allocation12 + $0xe0] sm:$0xff]
    %v2769 = vld [vmem:[#allocation12 + $0xe8] sm:$0xff]
    %v2770 = vld [vmem:[#allocation12 + $0xf0] sm:$0xff]
    %v2771 = vld [vmem:[#allocation12 + $0xf8] sm:$0xff]
    %v2804 = vunpack.c.l.b16 %v2740
    %v2805 = vunpack.c.h.b16 %v2740
    %v2806 = vunpack.c.l.b16 %v2741
    %v2807 = vunpack.c.h.b16 %v2741
    %v2808 = vunpack.c.l.b16 %v2742
    %v2809 = vunpack.c.h.b16 %v2742
    %v2810 = vunpack.c.l.b16 %v2743
    %v2811 = vunpack.c.h.b16 %v2743
    %v2812 = vunpack.c.l.b16 %v2744
    %v2813 = vunpack.c.h.b16 %v2744
    %v2814 = vunpack.c.l.b16 %v2745
    %v2815 = vunpack.c.h.b16 %v2745
    %v2816 = vunpack.c.l.b16 %v2746
    %v2817 = vunpack.c.h.b16 %v2746
    %v2818 = vunpack.c.l.b16 %v2747
    %v2819 = vunpack.c.h.b16 %v2747
    %v2820 = vunpack.c.l.b16 %v2748
    %v2821 = vunpack.c.h.b16 %v2748
    %v2822 = vunpack.c.l.b16 %v2749
    %v2823 = vunpack.c.h.b16 %v2749
    %v2824 = vunpack.c.l.b16 %v2750
    %v2825 = vunpack.c.h.b16 %v2750
    %v2826 = vunpack.c.l.b16 %v2751
    %v2827 = vunpack.c.h.b16 %v2751
    %v2828 = vunpack.c.l.b16 %v2752
    %v2829 = vunpack.c.h.b16 %v2752
    %v2830 = vunpack.c.l.b16 %v2753
    %v2831 = vunpack.c.h.b16 %v2753
    %v2832 = vunpack.c.l.b16 %v2754
    %v2833 = vunpack.c.h.b16 %v2754
    %v2834 = vunpack.c.l.b16 %v2755
    %v2835 = vunpack.c.h.b16 %v2755
    %v2836 = vunpack.c.l.b16 %v2756
    %v2837 = vunpack.c.h.b16 %v2756
    %v2838 = vunpack.c.l.b16 %v2757
    %v2839 = vunpack.c.h.b16 %v2757
    %v2840 = vunpack.c.l.b16 %v2758
    %v2841 = vunpack.c.h.b16 %v2758
    %v2842 = vunpack.c.l.b16 %v2759
    %v2843 = vunpack.c.h.b16 %v2759
    %v2844 = vunpack.c.l.b16 %v2760
    %v2845 = vunpack.c.h.b16 %v2760
    %v2846 = vunpack.c.l.b16 %v2761
    %v2847 = vunpack.c.h.b16 %v2761
    %v2848 = vunpack.c.l.b16 %v2762
    %v2849 = vunpack.c.h.b16 %v2762
    %v2850 = vunpack.c.l.b16 %v2763
    %v2851 = vunpack.c.h.b16 %v2763
    %v2852 = vunpack.c.l.b16 %v2764
    %v2853 = vunpack.c.h.b16 %v2764
    %v2854 = vunpack.c.l.b16 %v2765
    %v2855 = vunpack.c.h.b16 %v2765
    %v2856 = vunpack.c.l.b16 %v2766
    %v2857 = vunpack.c.h.b16 %v2766
    %v2858 = vunpack.c.l.b16 %v2767
    %v2859 = vunpack.c.h.b16 %v2767
    %v2860 = vunpack.c.l.b16 %v2768
    %v2861 = vunpack.c.h.b16 %v2768
    %v2862 = vunpack.c.l.b16 %v2769
    %v2863 = vunpack.c.h.b16 %v2769
    %v2864 = vunpack.c.l.b16 %v2770
    %v2865 = vunpack.c.h.b16 %v2770
    %v2866 = vunpack.c.l.b16 %v2771
    %v2867 = vunpack.c.h.b16 %v2771
    %v2868 = vpack.c.b16 %v2808, %v2804
    %v2869 = vpack.c.b16 %v2809, %v2805
    %v2870 = vpack.c.b16 %v2810, %v2806
    %v2871 = vpack.c.b16 %v2811, %v2807
    %v2872 = vpack.c.b16 %v2816, %v2812
    %v2873 = vpack.c.b16 %v2817, %v2813
    %v2874 = vpack.c.b16 %v2818, %v2814
    %v2875 = vpack.c.b16 %v2819, %v2815
    %v2876 = vpack.c.b16 %v2824, %v2820
    %v2877 = vpack.c.b16 %v2825, %v2821
    %v2878 = vpack.c.b16 %v2826, %v2822
    %v2879 = vpack.c.b16 %v2827, %v2823
    %v2880 = vpack.c.b16 %v2832, %v2828
    %v2881 = vpack.c.b16 %v2833, %v2829
    %v2882 = vpack.c.b16 %v2834, %v2830
    %v2883 = vpack.c.b16 %v2835, %v2831
    %v2884 = vpack.c.b16 %v2840, %v2836
    %v2885 = vpack.c.b16 %v2841, %v2837
    %v2886 = vpack.c.b16 %v2842, %v2838
    %v2887 = vpack.c.b16 %v2843, %v2839
    %v2888 = vpack.c.b16 %v2848, %v2844
    %v2889 = vpack.c.b16 %v2849, %v2845
    %v2890 = vpack.c.b16 %v2850, %v2846
    %v2891 = vpack.c.b16 %v2851, %v2847
    %v2892 = vpack.c.b16 %v2856, %v2852
    %v2893 = vpack.c.b16 %v2857, %v2853
    %v2894 = vpack.c.b16 %v2858, %v2854
    %v2895 = vpack.c.b16 %v2859, %v2855
    %v2896 = vpack.c.b16 %v2864, %v2860
    %v2897 = vpack.c.b16 %v2865, %v2861
    %v2898 = vpack.c.b16 %v2866, %v2862
    %v2899 = vpack.c.b16 %v2867, %v2863
    %2932 = vmatprep.subr.bf16.mxu0 %v2897
    %2933 = vmatpush1.bf16.msra.mxu0 %v2896
    %2934 = vmatprep.subr.bf16.mxu0 %v2893
    %2935 = vmatpush1.bf16.msra.mxu0 %v2892
    %2936 = vmatprep.subr.bf16.mxu0 %v2889
    %2937 = vmatpush1.bf16.msra.mxu0 %v2888
    %2938 = vmatprep.subr.bf16.mxu0 %v2885
    %2939 = vmatpush1.bf16.msra.mxu0 %v2884
    %2940 = vmatprep.subr.bf16.mxu0 %v2881
    %2941 = vmatpush1.bf16.msra.mxu0 %v2880
    %2942 = vmatprep.subr.bf16.mxu0 %v2877
    %2943 = vmatpush1.bf16.msra.mxu0 %v2876
    %2944 = vmatprep.subr.bf16.mxu0 %v2873
    %2945 = vmatpush1.bf16.msra.mxu0 %v2872
    %2946 = vmatprep.subr.bf16.mxu0 %v2869
    %2947 = vmatpush1.bf16.msra.mxu0 %v2868
    %2948 = vmatprep.subr.bf16.mxu0 0
    %2949 = vmatpush2.bf16.msra.mxu0 0
    %2950 = vmatprep.subr.bf16.mxu0 0
    %2951 = vmatpush2.bf16.msra.mxu0 0
    %2952 = vmatprep.subr.bf16.mxu0 0
    %2953 = vmatpush2.bf16.msra.mxu0 0
    %2954 = vmatprep.subr.bf16.mxu0 0
    %2955 = vmatpush2.bf16.msra.mxu0 0
    %2956 = vmatprep.subr.bf16.mxu0 0
    %2957 = vmatpush2.bf16.msra.mxu0 0
    %2958 = vmatprep.subr.bf16.mxu0 0
    %2959 = vmatpush2.bf16.msra.mxu0 0
    %2960 = vmatprep.subr.bf16.mxu0 0
    %2961 = vmatpush2.bf16.msra.mxu0 0
    %2962 = vmatprep.subr.bf16.mxu0 0
    %2963 = vmatpush2.bf16.msra.mxu0 0
    %2964 = vmatprep.mubr.bf16.mxu0 0
    %2965 = vmatmul.mubr.bf16.gmra.mxu0 %v2714
    %v2966 = vpop.f32.mrf.mxu0
    %v2967 = vadd.f32 0.0, %v2966
    %v2968 = vpop.f32.mrf.mxu0
    %v2969 = vadd.f32 0.0, %v2968
    %v2970 = vpop.f32.mrf.mxu0
    %v2971 = vadd.f32 0.0, %v2970
    %v2972 = vpop.f32.mrf.mxu0
    %v2973 = vadd.f32 0.0, %v2972
    %2974 = vdwg.mxu0
    %2975 = vmatprep.subr.bf16.mxu0 %v2899
    %2976 = vmatpush1.bf16.msra.mxu0 %v2898
    %2977 = vmatprep.subr.bf16.mxu0 %v2895
    %2978 = vmatpush1.bf16.msra.mxu0 %v2894
    %2979 = vmatprep.subr.bf16.mxu0 %v2891
    %2980 = vmatpush1.bf16.msra.mxu0 %v2890
    %2981 = vmatprep.subr.bf16.mxu0 %v2887
    %2982 = vmatpush1.bf16.msra.mxu0 %v2886
    %2983 = vmatprep.subr.bf16.mxu0 %v2883
    %2984 = vmatpush1.bf16.msra.mxu0 %v2882
    %2985 = vmatprep.subr.bf16.mxu0 %v2879
    %2986 = vmatpush1.bf16.msra.mxu0 %v2878
    %2987 = vmatprep.subr.bf16.mxu0 %v2875
    %2988 = vmatpush1.bf16.msra.mxu0 %v2874
    %2989 = vmatprep.subr.bf16.mxu0 %v2871
    %2990 = vmatpush1.bf16.msra.mxu0 %v2870
    %2991 = vmatprep.subr.bf16.mxu0 0
    %2992 = vmatpush2.bf16.msra.mxu0 0
    %2993 = vmatprep.subr.bf16.mxu0 0
    %2994 = vmatpush2.bf16.msra.mxu0 0
    %2995 = vmatprep.subr.bf16.mxu0 0
    %2996 = vmatpush2.bf16.msra.mxu0 0
    %2997 = vmatprep.subr.bf16.mxu0 0
    %2998 = vmatpush2.bf16.msra.mxu0 0
    %2999 = vmatprep.subr.bf16.mxu0 0
    %3000 = vmatpush2.bf16.msra.mxu0 0
    %3001 = vmatprep.subr.bf16.mxu0 0
    %3002 = vmatpush2.bf16.msra.mxu0 0
    %3003 = vmatprep.subr.bf16.mxu0 0
    %3004 = vmatpush2.bf16.msra.mxu0 0
    %3005 = vmatprep.subr.bf16.mxu0 0
    %3006 = vmatpush2.bf16.msra.mxu0 0
    %3007 = vmatprep.mubr.bf16.mxu0 0
    %3008 = vmatmul.mubr.bf16.gmra.mxu0 %v2714
    %v3009 = vpop.f32.mrf.mxu0
    %v3010 = vadd.f32 0.0, %v3009
    %v3011 = vpop.f32.mrf.mxu0
    %v3012 = vadd.f32 0.0, %v3011
    %v3013 = vpop.f32.mrf.mxu0
    %v3014 = vadd.f32 0.0, %v3013
    %v3015 = vpop.f32.mrf.mxu0
    %v3016 = vadd.f32 0.0, %v3015
    %3017 = vdwg.mxu0
    %v3018 = vadd.f32 %v2732, %v2967
    %v3019 = vadd.f32 %v2733, %v2969
    %v3020 = vadd.f32 %v2734, %v3010
    %v3021 = vadd.f32 %v2735, %v3012
    %v3022 = vadd.f32 %v2736, %v2971
    %v3023 = vadd.f32 %v2737, %v2973
    %v3024 = vadd.f32 %v2738, %v3014
    %v3025 = vadd.f32 %v2739, %v3016
    %v3026 = vadd.f32 %v3018, %v1170
    %v3027 = vadd.f32 %v3019, %v1174
    %v3028 = vadd.f32 %v3020, %v1178
    %v3029 = vadd.f32 %v3021, %v1182
    %v3030 = vadd.f32 %v3022, %v1170
    %v3031 = vadd.f32 %v3023, %v1174
    %v3032 = vadd.f32 %v3024, %v1178
    %v3033 = vadd.f32 %v3025, %v1182
    %v3034 = vxor.u32 %v3026, 2147483648
    %v3035 = vxor.u32 %v3030, 2147483648
    %v3036 = vmul.f32 %v3034, 1.442695
    %v3037 = vpow.pop %v3036
    %v3038 = vmul.f32 %v3035, 1.442695
    %v3039 = vpow.pop %v3038
    %v3040 = vadd.f32 %v3037, 1.0
    %v3041 = vadd.f32 %v3039, 1.0
    %v3042 = vrcp.pop %v3040
    %v3043 = vmul.f32 1.0, %v3042
    %v3044 = vrcp.pop %v3041
    %v3045 = vmul.f32 1.0, %v3044
    %v3046 = vxor.u32 %v3027, 2147483648
    %v3047 = vxor.u32 %v3031, 2147483648
    %v3048 = vmul.f32 %v3046, 1.442695
    %v3049 = vpow.pop %v3048
    %v3050 = vmul.f32 %v3047, 1.442695
    %v3051 = vpow.pop %v3050
    %v3052 = vadd.f32 %v3049, 1.0
    %v3053 = vadd.f32 %v3051, 1.0
    %v3054 = vrcp.pop %v3052
    %v3055 = vmul.f32 1.0, %v3054
    %v3056 = vrcp.pop %v3053
    %v3057 = vmul.f32 1.0, %v3056
    %v3058 = vtanh.pop %v3028
    %v3059 = vtanh.pop %v3032
    %v3060 = vxor.u32 %v3029, 2147483648
    %v3061 = vxor.u32 %v3033, 2147483648
    %v3062 = vmul.f32 %v3060, 1.442695
    %v3063 = vpow.pop %v3062
    %v3064 = vmul.f32 %v3061, 1.442695
    %v3065 = vpow.pop %v3064
    %v3066 = vadd.f32 %v3063, 1.0
    %v3067 = vadd.f32 %v3065, 1.0
    %v3068 = vrcp.pop %v3066
    %v3069 = vmul.f32 1.0, %v3068
    %v3070 = vrcp.pop %v3067
    %v3071 = vmul.f32 1.0, %v3070
    %v3072 = vmul.f32 %v3055, %v2708
    %v3073 = vmul.f32 %v3057, %v2709
    %v3074 = vmul.f32 %v3043, %v3058
    %v3075 = vmul.f32 %v3045, %v3059
    %v3076 = vadd.f32 %v3072, %v3074
    %v3077 = vadd.f32 %v3073, %v3075
    %v3078 = vtanh.pop %v3076
    %v3079 = vtanh.pop %v3077
    %v3080 = vmul.f32 %v3069, %v3078
    %v3081 = vmul.f32 %v3071, %v3079
    %v3082 = vpack.c.bf16 %v3081, %v3080
    %v3084 = vunpack.c.l.b16 %v3082
    %v3085 = vunpack.c.h.b16 %v3082
    %v3086 = vpack.c.b16 %v3084, %v3084
    %v3087 = vpack.c.b16 %v3085, %v3085
    %s3090 = scalar_lea.vmem [#allocation3], 40
    %3091 = vst [vmem:[%s3090] sm:$0xf] %v3086
    %3092 = vst [vmem:[%s3090 + $0x4] sm:$0xf] %v3087
    %s3093 = smul.u32 12, 4
    %s3094 = smul.addr %s3093, 4
    %s3095 = scalar_lea.vmem [#allocation2], %s3094
    %v3096 = vld [vmem:[%s3095] sm:$0xff]
    %v3097 = vld [vmem:[%s3095 + $0x8] sm:$0xff]
    %v3098 = vld [vmem:[%s3095 + $0x10] sm:$0xff]
    %v3099 = vld [vmem:[%s3095 + $0x18] sm:$0xff]
    %v3100 = vunpack.c.l.bf16 %v3096
    %v3101 = vunpack.c.h.bf16 %v3096
    %v3102 = vunpack.c.l.bf16 %v3097
    %v3103 = vunpack.c.h.bf16 %v3097
    %v3104 = vunpack.c.l.bf16 %v3098
    %v3105 = vunpack.c.h.bf16 %v3098
    %v3106 = vunpack.c.l.bf16 %v3099
    %v3107 = vunpack.c.h.bf16 %v3099
    %v3108 = vld [vmem:[#allocation12] sm:$0xff]
    %v3109 = vld [vmem:[#allocation12 + $0x8] sm:$0xff]
    %v3110 = vld [vmem:[#allocation12 + $0x10] sm:$0xff]
    %v3111 = vld [vmem:[#allocation12 + $0x18] sm:$0xff]
    %v3112 = vld [vmem:[#allocation12 + $0x20] sm:$0xff]
    %v3113 = vld [vmem:[#allocation12 + $0x28] sm:$0xff]
    %v3114 = vld [vmem:[#allocation12 + $0x30] sm:$0xff]
    %v3115 = vld [vmem:[#allocation12 + $0x38] sm:$0xff]
    %v3116 = vld [vmem:[#allocation12 + $0x40] sm:$0xff]
    %v3117 = vld [vmem:[#allocation12 + $0x48] sm:$0xff]
    %v3118 = vld [vmem:[#allocation12 + $0x50] sm:$0xff]
    %v3119 = vld [vmem:[#allocation12 + $0x58] sm:$0xff]
    %v3120 = vld [vmem:[#allocation12 + $0x60] sm:$0xff]
    %v3121 = vld [vmem:[#allocation12 + $0x68] sm:$0xff]
    %v3122 = vld [vmem:[#allocation12 + $0x70] sm:$0xff]
    %v3123 = vld [vmem:[#allocation12 + $0x78] sm:$0xff]
    %v3124 = vld [vmem:[#allocation12 + $0x80] sm:$0xff]
    %v3125 = vld [vmem:[#allocation12 + $0x88] sm:$0xff]
    %v3126 = vld [vmem:[#allocation12 + $0x90] sm:$0xff]
    %v3127 = vld [vmem:[#allocation12 + $0x98] sm:$0xff]
    %v3128 = vld [vmem:[#allocation12 + $0xa0] sm:$0xff]
    %v3129 = vld [vmem:[#allocation12 + $0xa8] sm:$0xff]
    %v3130 = vld [vmem:[#allocation12 + $0xb0] sm:$0xff]
    %v3131 = vld [vmem:[#allocation12 + $0xb8] sm:$0xff]
    %v3132 = vld [vmem:[#allocation12 + $0xc0] sm:$0xff]
    %v3133 = vld [vmem:[#allocation12 + $0xc8] sm:$0xff]
    %v3134 = vld [vmem:[#allocation12 + $0xd0] sm:$0xff]
    %v3135 = vld [vmem:[#allocation12 + $0xd8] sm:$0xff]
    %v3136 = vld [vmem:[#allocation12 + $0xe0] sm:$0xff]
    %v3137 = vld [vmem:[#allocation12 + $0xe8] sm:$0xff]
    %v3138 = vld [vmem:[#allocation12 + $0xf0] sm:$0xff]
    %v3139 = vld [vmem:[#allocation12 + $0xf8] sm:$0xff]
    %v3172 = vunpack.c.l.b16 %v3108
    %v3173 = vunpack.c.h.b16 %v3108
    %v3174 = vunpack.c.l.b16 %v3109
    %v3175 = vunpack.c.h.b16 %v3109
    %v3176 = vunpack.c.l.b16 %v3110
    %v3177 = vunpack.c.h.b16 %v3110
    %v3178 = vunpack.c.l.b16 %v3111
    %v3179 = vunpack.c.h.b16 %v3111
    %v3180 = vunpack.c.l.b16 %v3112
    %v3181 = vunpack.c.h.b16 %v3112
    %v3182 = vunpack.c.l.b16 %v3113
    %v3183 = vunpack.c.h.b16 %v3113
    %v3184 = vunpack.c.l.b16 %v3114
    %v3185 = vunpack.c.h.b16 %v3114
    %v3186 = vunpack.c.l.b16 %v3115
    %v3187 = vunpack.c.h.b16 %v3115
    %v3188 = vunpack.c.l.b16 %v3116
    %v3189 = vunpack.c.h.b16 %v3116
    %v3190 = vunpack.c.l.b16 %v3117
    %v3191 = vunpack.c.h.b16 %v3117
    %v3192 = vunpack.c.l.b16 %v3118
    %v3193 = vunpack.c.h.b16 %v3118
    %v3194 = vunpack.c.l.b16 %v3119
    %v3195 = vunpack.c.h.b16 %v3119
    %v3196 = vunpack.c.l.b16 %v3120
    %v3197 = vunpack.c.h.b16 %v3120
    %v3198 = vunpack.c.l.b16 %v3121
    %v3199 = vunpack.c.h.b16 %v3121
    %v3200 = vunpack.c.l.b16 %v3122
    %v3201 = vunpack.c.h.b16 %v3122
    %v3202 = vunpack.c.l.b16 %v3123
    %v3203 = vunpack.c.h.b16 %v3123
    %v3204 = vunpack.c.l.b16 %v3124
    %v3205 = vunpack.c.h.b16 %v3124
    %v3206 = vunpack.c.l.b16 %v3125
    %v3207 = vunpack.c.h.b16 %v3125
    %v3208 = vunpack.c.l.b16 %v3126
    %v3209 = vunpack.c.h.b16 %v3126
    %v3210 = vunpack.c.l.b16 %v3127
    %v3211 = vunpack.c.h.b16 %v3127
    %v3212 = vunpack.c.l.b16 %v3128
    %v3213 = vunpack.c.h.b16 %v3128
    %v3214 = vunpack.c.l.b16 %v3129
    %v3215 = vunpack.c.h.b16 %v3129
    %v3216 = vunpack.c.l.b16 %v3130
    %v3217 = vunpack.c.h.b16 %v3130
    %v3218 = vunpack.c.l.b16 %v3131
    %v3219 = vunpack.c.h.b16 %v3131
    %v3220 = vunpack.c.l.b16 %v3132
    %v3221 = vunpack.c.h.b16 %v3132
    %v3222 = vunpack.c.l.b16 %v3133
    %v3223 = vunpack.c.h.b16 %v3133
    %v3224 = vunpack.c.l.b16 %v3134
    %v3225 = vunpack.c.h.b16 %v3134
    %v3226 = vunpack.c.l.b16 %v3135
    %v3227 = vunpack.c.h.b16 %v3135
    %v3228 = vunpack.c.l.b16 %v3136
    %v3229 = vunpack.c.h.b16 %v3136
    %v3230 = vunpack.c.l.b16 %v3137
    %v3231 = vunpack.c.h.b16 %v3137
    %v3232 = vunpack.c.l.b16 %v3138
    %v3233 = vunpack.c.h.b16 %v3138
    %v3234 = vunpack.c.l.b16 %v3139
    %v3235 = vunpack.c.h.b16 %v3139
    %v3236 = vpack.c.b16 %v3176, %v3172
    %v3237 = vpack.c.b16 %v3177, %v3173
    %v3238 = vpack.c.b16 %v3178, %v3174
    %v3239 = vpack.c.b16 %v3179, %v3175
    %v3240 = vpack.c.b16 %v3184, %v3180
    %v3241 = vpack.c.b16 %v3185, %v3181
    %v3242 = vpack.c.b16 %v3186, %v3182
    %v3243 = vpack.c.b16 %v3187, %v3183
    %v3244 = vpack.c.b16 %v3192, %v3188
    %v3245 = vpack.c.b16 %v3193, %v3189
    %v3246 = vpack.c.b16 %v3194, %v3190
    %v3247 = vpack.c.b16 %v3195, %v3191
    %v3248 = vpack.c.b16 %v3200, %v3196
    %v3249 = vpack.c.b16 %v3201, %v3197
    %v3250 = vpack.c.b16 %v3202, %v3198
    %v3251 = vpack.c.b16 %v3203, %v3199
    %v3252 = vpack.c.b16 %v3208, %v3204
    %v3253 = vpack.c.b16 %v3209, %v3205
    %v3254 = vpack.c.b16 %v3210, %v3206
    %v3255 = vpack.c.b16 %v3211, %v3207
    %v3256 = vpack.c.b16 %v3216, %v3212
    %v3257 = vpack.c.b16 %v3217, %v3213
    %v3258 = vpack.c.b16 %v3218, %v3214
    %v3259 = vpack.c.b16 %v3219, %v3215
    %v3260 = vpack.c.b16 %v3224, %v3220
    %v3261 = vpack.c.b16 %v3225, %v3221
    %v3262 = vpack.c.b16 %v3226, %v3222
    %v3263 = vpack.c.b16 %v3227, %v3223
    %v3264 = vpack.c.b16 %v3232, %v3228
    %v3265 = vpack.c.b16 %v3233, %v3229
    %v3266 = vpack.c.b16 %v3234, %v3230
    %v3267 = vpack.c.b16 %v3235, %v3231
    %3300 = vmatprep.subr.bf16.mxu0 %v3265
    %3301 = vmatpush1.bf16.msra.mxu0 %v3264
    %3302 = vmatprep.subr.bf16.mxu0 %v3261
    %3303 = vmatpush1.bf16.msra.mxu0 %v3260
    %3304 = vmatprep.subr.bf16.mxu0 %v3257
    %3305 = vmatpush1.bf16.msra.mxu0 %v3256
    %3306 = vmatprep.subr.bf16.mxu0 %v3253
    %3307 = vmatpush1.bf16.msra.mxu0 %v3252
    %3308 = vmatprep.subr.bf16.mxu0 %v3249
    %3309 = vmatpush1.bf16.msra.mxu0 %v3248
    %3310 = vmatprep.subr.bf16.mxu0 %v3245
    %3311 = vmatpush1.bf16.msra.mxu0 %v3244
    %3312 = vmatprep.subr.bf16.mxu0 %v3241
    %3313 = vmatpush1.bf16.msra.mxu0 %v3240
    %3314 = vmatprep.subr.bf16.mxu0 %v3237
    %3315 = vmatpush1.bf16.msra.mxu0 %v3236
    %3316 = vmatprep.subr.bf16.mxu0 0
    %3317 = vmatpush2.bf16.msra.mxu0 0
    %3318 = vmatprep.subr.bf16.mxu0 0
    %3319 = vmatpush2.bf16.msra.mxu0 0
    %3320 = vmatprep.subr.bf16.mxu0 0
    %3321 = vmatpush2.bf16.msra.mxu0 0
    %3322 = vmatprep.subr.bf16.mxu0 0
    %3323 = vmatpush2.bf16.msra.mxu0 0
    %3324 = vmatprep.subr.bf16.mxu0 0
    %3325 = vmatpush2.bf16.msra.mxu0 0
    %3326 = vmatprep.subr.bf16.mxu0 0
    %3327 = vmatpush2.bf16.msra.mxu0 0
    %3328 = vmatprep.subr.bf16.mxu0 0
    %3329 = vmatpush2.bf16.msra.mxu0 0
    %3330 = vmatprep.subr.bf16.mxu0 0
    %3331 = vmatpush2.bf16.msra.mxu0 0
    %3332 = vmatprep.mubr.bf16.mxu0 0
    %3333 = vmatmul.mubr.bf16.gmra.mxu0 %v3082
    %v3334 = vpop.f32.mrf.mxu0
    %v3335 = vadd.f32 0.0, %v3334
    %v3336 = vpop.f32.mrf.mxu0
    %v3337 = vadd.f32 0.0, %v3336
    %v3338 = vpop.f32.mrf.mxu0
    %v3339 = vadd.f32 0.0, %v3338
    %v3340 = vpop.f32.mrf.mxu0
    %v3341 = vadd.f32 0.0, %v3340
    %3342 = vdwg.mxu0
    %3343 = vmatprep.subr.bf16.mxu0 %v3267
    %3344 = vmatpush1.bf16.msra.mxu0 %v3266
    %3345 = vmatprep.subr.bf16.mxu0 %v3263
    %3346 = vmatpush1.bf16.msra.mxu0 %v3262
    %3347 = vmatprep.subr.bf16.mxu0 %v3259
    %3348 = vmatpush1.bf16.msra.mxu0 %v3258
    %3349 = vmatprep.subr.bf16.mxu0 %v3255
    %3350 = vmatpush1.bf16.msra.mxu0 %v3254
    %3351 = vmatprep.subr.bf16.mxu0 %v3251
    %3352 = vmatpush1.bf16.msra.mxu0 %v3250
    %3353 = vmatprep.subr.bf16.mxu0 %v3247
    %3354 = vmatpush1.bf16.msra.mxu0 %v3246
    %3355 = vmatprep.subr.bf16.mxu0 %v3243
    %3356 = vmatpush1.bf16.msra.mxu0 %v3242
    %3357 = vmatprep.subr.bf16.mxu0 %v3239
    %3358 = vmatpush1.bf16.msra.mxu0 %v3238
    %3359 = vmatprep.subr.bf16.mxu0 0
    %3360 = vmatpush2.bf16.msra.mxu0 0
    %3361 = vmatprep.subr.bf16.mxu0 0
    %3362 = vmatpush2.bf16.msra.mxu0 0
    %3363 = vmatprep.subr.bf16.mxu0 0
    %3364 = vmatpush2.bf16.msra.mxu0 0
    %3365 = vmatprep.subr.bf16.mxu0 0
    %3366 = vmatpush2.bf16.msra.mxu0 0
    %3367 = vmatprep.subr.bf16.mxu0 0
    %3368 = vmatpush2.bf16.msra.mxu0 0
    %3369 = vmatprep.subr.bf16.mxu0 0
    %3370 = vmatpush2.bf16.msra.mxu0 0
    %3371 = vmatprep.subr.bf16.mxu0 0
    %3372 = vmatpush2.bf16.msra.mxu0 0
    %3373 = vmatprep.subr.bf16.mxu0 0
    %3374 = vmatpush2.bf16.msra.mxu0 0
    %3375 = vmatprep.mubr.bf16.mxu0 0
    %3376 = vmatmul.mubr.bf16.gmra.mxu0 %v3082
    %v3377 = vpop.f32.mrf.mxu0
    %v3378 = vadd.f32 0.0, %v3377
    %v3379 = vpop.f32.mrf.mxu0
    %v3380 = vadd.f32 0.0, %v3379
    %v3381 = vpop.f32.mrf.mxu0
    %v3382 = vadd.f32 0.0, %v3381
    %v3383 = vpop.f32.mrf.mxu0
    %v3384 = vadd.f32 0.0, %v3383
    %3385 = vdwg.mxu0
    %v3386 = vadd.f32 %v3100, %v3335
    %v3387 = vadd.f32 %v3101, %v3337
    %v3388 = vadd.f32 %v3102, %v3378
    %v3389 = vadd.f32 %v3103, %v3380
    %v3390 = vadd.f32 %v3104, %v3339
    %v3391 = vadd.f32 %v3105, %v3341
    %v3392 = vadd.f32 %v3106, %v3382
    %v3393 = vadd.f32 %v3107, %v3384
    %v3394 = vadd.f32 %v3386, %v1170
    %v3395 = vadd.f32 %v3387, %v1174
    %v3396 = vadd.f32 %v3388, %v1178
    %v3397 = vadd.f32 %v3389, %v1182
    %v3398 = vadd.f32 %v3390, %v1170
    %v3399 = vadd.f32 %v3391, %v1174
    %v3400 = vadd.f32 %v3392, %v1178
    %v3401 = vadd.f32 %v3393, %v1182
    %v3402 = vxor.u32 %v3394, 2147483648
    %v3403 = vxor.u32 %v3398, 2147483648
    %v3404 = vmul.f32 %v3402, 1.442695
    %v3405 = vpow.pop %v3404
    %v3406 = vmul.f32 %v3403, 1.442695
    %v3407 = vpow.pop %v3406
    %v3408 = vadd.f32 %v3405, 1.0
    %v3409 = vadd.f32 %v3407, 1.0
    %v3410 = vrcp.pop %v3408
    %v3411 = vmul.f32 1.0, %v3410
    %v3412 = vrcp.pop %v3409
    %v3413 = vmul.f32 1.0, %v3412
    %v3414 = vxor.u32 %v3395, 2147483648
    %v3415 = vxor.u32 %v3399, 2147483648
    %v3416 = vmul.f32 %v3414, 1.442695
    %v3417 = vpow.pop %v3416
    %v3418 = vmul.f32 %v3415, 1.442695
    %v3419 = vpow.pop %v3418
    %v3420 = vadd.f32 %v3417, 1.0
    %v3421 = vadd.f32 %v3419, 1.0
    %v3422 = vrcp.pop %v3420
    %v3423 = vmul.f32 1.0, %v3422
    %v3424 = vrcp.pop %v3421
    %v3425 = vmul.f32 1.0, %v3424
    %v3426 = vtanh.pop %v3396
    %v3427 = vtanh.pop %v3400
    %v3428 = vxor.u32 %v3397, 2147483648
    %v3429 = vxor.u32 %v3401, 2147483648
    %v3430 = vmul.f32 %v3428, 1.442695
    %v3431 = vpow.pop %v3430
    %v3432 = vmul.f32 %v3429, 1.442695
    %v3433 = vpow.pop %v3432
    %v3434 = vadd.f32 %v3431, 1.0
    %v3435 = vadd.f32 %v3433, 1.0
    %v3436 = vrcp.pop %v3434
    %v3437 = vmul.f32 1.0, %v3436
    %v3438 = vrcp.pop %v3435
    %v3439 = vmul.f32 1.0, %v3438
    %v3440 = vmul.f32 %v3423, %v3076
    %v3441 = vmul.f32 %v3425, %v3077
    %v3442 = vmul.f32 %v3411, %v3426
    %v3443 = vmul.f32 %v3413, %v3427
    %v3444 = vadd.f32 %v3440, %v3442
    %v3445 = vadd.f32 %v3441, %v3443
    %v3446 = vtanh.pop %v3444
    %v3447 = vtanh.pop %v3445
    %v3448 = vmul.f32 %v3437, %v3446
    %v3449 = vmul.f32 %v3439, %v3447
    %v3450 = vpack.c.bf16 %v3449, %v3448
    %v3452 = vunpack.c.l.b16 %v3450
    %v3453 = vunpack.c.h.b16 %v3450
    %v3454 = vpack.c.b16 %v3452, %v3452
    %v3455 = vpack.c.b16 %v3453, %v3453
    %s3458 = scalar_lea.vmem [#allocation3], 48
    %3459 = vst [vmem:[%s3458] sm:$0xf] %v3454
    %3460 = vst [vmem:[%s3458 + $0x4] sm:$0xf] %v3455
    %s3461 = smul.u32 14, 4
    %s3462 = smul.addr %s3461, 4
    %s3463 = scalar_lea.vmem [#allocation2], %s3462
    %v3464 = vld [vmem:[%s3463] sm:$0xff]
    %v3465 = vld [vmem:[%s3463 + $0x8] sm:$0xff]
    %v3466 = vld [vmem:[%s3463 + $0x10] sm:$0xff]
    %v3467 = vld [vmem:[%s3463 + $0x18] sm:$0xff]
    %v3468 = vunpack.c.l.bf16 %v3464
    %v3469 = vunpack.c.h.bf16 %v3464
    %v3470 = vunpack.c.l.bf16 %v3465
    %v3471 = vunpack.c.h.bf16 %v3465
    %v3472 = vunpack.c.l.bf16 %v3466
    %v3473 = vunpack.c.h.bf16 %v3466
    %v3474 = vunpack.c.l.bf16 %v3467
    %v3475 = vunpack.c.h.bf16 %v3467
    %v3476 = vld [vmem:[#allocation12] sm:$0xff]
    %v3477 = vld [vmem:[#allocation12 + $0x8] sm:$0xff]
    %v3478 = vld [vmem:[#allocation12 + $0x10] sm:$0xff]
    %v3479 = vld [vmem:[#allocation12 + $0x18] sm:$0xff]
    %v3480 = vld [vmem:[#allocation12 + $0x20] sm:$0xff]
    %v3481 = vld [vmem:[#allocation12 + $0x28] sm:$0xff]
    %v3482 = vld [vmem:[#allocation12 + $0x30] sm:$0xff]
    %v3483 = vld [vmem:[#allocation12 + $0x38] sm:$0xff]
    %v3484 = vld [vmem:[#allocation12 + $0x40] sm:$0xff]
    %v3485 = vld [vmem:[#allocation12 + $0x48] sm:$0xff]
    %v3486 = vld [vmem:[#allocation12 + $0x50] sm:$0xff]
    %v3487 = vld [vmem:[#allocation12 + $0x58] sm:$0xff]
    %v3488 = vld [vmem:[#allocation12 + $0x60] sm:$0xff]
    %v3489 = vld [vmem:[#allocation12 + $0x68] sm:$0xff]
    %v3490 = vld [vmem:[#allocation12 + $0x70] sm:$0xff]
    %v3491 = vld [vmem:[#allocation12 + $0x78] sm:$0xff]
    %v3492 = vld [vmem:[#allocation12 + $0x80] sm:$0xff]
    %v3493 = vld [vmem:[#allocation12 + $0x88] sm:$0xff]
    %v3494 = vld [vmem:[#allocation12 + $0x90] sm:$0xff]
    %v3495 = vld [vmem:[#allocation12 + $0x98] sm:$0xff]
    %v3496 = vld [vmem:[#allocation12 + $0xa0] sm:$0xff]
    %v3497 = vld [vmem:[#allocation12 + $0xa8] sm:$0xff]
    %v3498 = vld [vmem:[#allocation12 + $0xb0] sm:$0xff]
    %v3499 = vld [vmem:[#allocation12 + $0xb8] sm:$0xff]
    %v3500 = vld [vmem:[#allocation12 + $0xc0] sm:$0xff]
    %v3501 = vld [vmem:[#allocation12 + $0xc8] sm:$0xff]
    %v3502 = vld [vmem:[#allocation12 + $0xd0] sm:$0xff]
    %v3503 = vld [vmem:[#allocation12 + $0xd8] sm:$0xff]
    %v3504 = vld [vmem:[#allocation12 + $0xe0] sm:$0xff]
    %v3505 = vld [vmem:[#allocation12 + $0xe8] sm:$0xff]
    %v3506 = vld [vmem:[#allocation12 + $0xf0] sm:$0xff]
    %v3507 = vld [vmem:[#allocation12 + $0xf8] sm:$0xff]
    %v3540 = vunpack.c.l.b16 %v3476
    %v3541 = vunpack.c.h.b16 %v3476
    %v3542 = vunpack.c.l.b16 %v3477
    %v3543 = vunpack.c.h.b16 %v3477
    %v3544 = vunpack.c.l.b16 %v3478
    %v3545 = vunpack.c.h.b16 %v3478
    %v3546 = vunpack.c.l.b16 %v3479
    %v3547 = vunpack.c.h.b16 %v3479
    %v3548 = vunpack.c.l.b16 %v3480
    %v3549 = vunpack.c.h.b16 %v3480
    %v3550 = vunpack.c.l.b16 %v3481
    %v3551 = vunpack.c.h.b16 %v3481
    %v3552 = vunpack.c.l.b16 %v3482
    %v3553 = vunpack.c.h.b16 %v3482
    %v3554 = vunpack.c.l.b16 %v3483
    %v3555 = vunpack.c.h.b16 %v3483
    %v3556 = vunpack.c.l.b16 %v3484
    %v3557 = vunpack.c.h.b16 %v3484
    %v3558 = vunpack.c.l.b16 %v3485
    %v3559 = vunpack.c.h.b16 %v3485
    %v3560 = vunpack.c.l.b16 %v3486
    %v3561 = vunpack.c.h.b16 %v3486
    %v3562 = vunpack.c.l.b16 %v3487
    %v3563 = vunpack.c.h.b16 %v3487
    %v3564 = vunpack.c.l.b16 %v3488
    %v3565 = vunpack.c.h.b16 %v3488
    %v3566 = vunpack.c.l.b16 %v3489
    %v3567 = vunpack.c.h.b16 %v3489
    %v3568 = vunpack.c.l.b16 %v3490
    %v3569 = vunpack.c.h.b16 %v3490
    %v3570 = vunpack.c.l.b16 %v3491
    %v3571 = vunpack.c.h.b16 %v3491
    %v3572 = vunpack.c.l.b16 %v3492
    %v3573 = vunpack.c.h.b16 %v3492
    %v3574 = vunpack.c.l.b16 %v3493
    %v3575 = vunpack.c.h.b16 %v3493
    %v3576 = vunpack.c.l.b16 %v3494
    %v3577 = vunpack.c.h.b16 %v3494
    %v3578 = vunpack.c.l.b16 %v3495
    %v3579 = vunpack.c.h.b16 %v3495
    %v3580 = vunpack.c.l.b16 %v3496
    %v3581 = vunpack.c.h.b16 %v3496
    %v3582 = vunpack.c.l.b16 %v3497
    %v3583 = vunpack.c.h.b16 %v3497
    %v3584 = vunpack.c.l.b16 %v3498
    %v3585 = vunpack.c.h.b16 %v3498
    %v3586 = vunpack.c.l.b16 %v3499
    %v3587 = vunpack.c.h.b16 %v3499
    %v3588 = vunpack.c.l.b16 %v3500
    %v3589 = vunpack.c.h.b16 %v3500
    %v3590 = vunpack.c.l.b16 %v3501
    %v3591 = vunpack.c.h.b16 %v3501
    %v3592 = vunpack.c.l.b16 %v3502
    %v3593 = vunpack.c.h.b16 %v3502
    %v3594 = vunpack.c.l.b16 %v3503
    %v3595 = vunpack.c.h.b16 %v3503
    %v3596 = vunpack.c.l.b16 %v3504
    %v3597 = vunpack.c.h.b16 %v3504
    %v3598 = vunpack.c.l.b16 %v3505
    %v3599 = vunpack.c.h.b16 %v3505
    %v3600 = vunpack.c.l.b16 %v3506
    %v3601 = vunpack.c.h.b16 %v3506
    %v3602 = vunpack.c.l.b16 %v3507
    %v3603 = vunpack.c.h.b16 %v3507
    %v3604 = vpack.c.b16 %v3544, %v3540
    %v3605 = vpack.c.b16 %v3545, %v3541
    %v3606 = vpack.c.b16 %v3546, %v3542
    %v3607 = vpack.c.b16 %v3547, %v3543
    %v3608 = vpack.c.b16 %v3552, %v3548
    %v3609 = vpack.c.b16 %v3553, %v3549
    %v3610 = vpack.c.b16 %v3554, %v3550
    %v3611 = vpack.c.b16 %v3555, %v3551
    %v3612 = vpack.c.b16 %v3560, %v3556
    %v3613 = vpack.c.b16 %v3561, %v3557
    %v3614 = vpack.c.b16 %v3562, %v3558
    %v3615 = vpack.c.b16 %v3563, %v3559
    %v3616 = vpack.c.b16 %v3568, %v3564
    %v3617 = vpack.c.b16 %v3569, %v3565
    %v3618 = vpack.c.b16 %v3570, %v3566
    %v3619 = vpack.c.b16 %v3571, %v3567
    %v3620 = vpack.c.b16 %v3576, %v3572
    %v3621 = vpack.c.b16 %v3577, %v3573
    %v3622 = vpack.c.b16 %v3578, %v3574
    %v3623 = vpack.c.b16 %v3579, %v3575
    %v3624 = vpack.c.b16 %v3584, %v3580
    %v3625 = vpack.c.b16 %v3585, %v3581
    %v3626 = vpack.c.b16 %v3586, %v3582
    %v3627 = vpack.c.b16 %v3587, %v3583
    %v3628 = vpack.c.b16 %v3592, %v3588
    %v3629 = vpack.c.b16 %v3593, %v3589
    %v3630 = vpack.c.b16 %v3594, %v3590
    %v3631 = vpack.c.b16 %v3595, %v3591
    %v3632 = vpack.c.b16 %v3600, %v3596
    %v3633 = vpack.c.b16 %v3601, %v3597
    %v3634 = vpack.c.b16 %v3602, %v3598
    %v3635 = vpack.c.b16 %v3603, %v3599
    %3668 = vmatprep.subr.bf16.mxu0 %v3633
    %3669 = vmatpush1.bf16.msra.mxu0 %v3632
    %3670 = vmatprep.subr.bf16.mxu0 %v3629
    %3671 = vmatpush1.bf16.msra.mxu0 %v3628
    %3672 = vmatprep.subr.bf16.mxu0 %v3625
    %3673 = vmatpush1.bf16.msra.mxu0 %v3624
    %3674 = vmatprep.subr.bf16.mxu0 %v3621
    %3675 = vmatpush1.bf16.msra.mxu0 %v3620
    %3676 = vmatprep.subr.bf16.mxu0 %v3617
    %3677 = vmatpush1.bf16.msra.mxu0 %v3616
    %3678 = vmatprep.subr.bf16.mxu0 %v3613
    %3679 = vmatpush1.bf16.msra.mxu0 %v3612
    %3680 = vmatprep.subr.bf16.mxu0 %v3609
    %3681 = vmatpush1.bf16.msra.mxu0 %v3608
    %3682 = vmatprep.subr.bf16.mxu0 %v3605
    %3683 = vmatpush1.bf16.msra.mxu0 %v3604
    %3684 = vmatprep.subr.bf16.mxu0 0
    %3685 = vmatpush2.bf16.msra.mxu0 0
    %3686 = vmatprep.subr.bf16.mxu0 0
    %3687 = vmatpush2.bf16.msra.mxu0 0
    %3688 = vmatprep.subr.bf16.mxu0 0
    %3689 = vmatpush2.bf16.msra.mxu0 0
    %3690 = vmatprep.subr.bf16.mxu0 0
    %3691 = vmatpush2.bf16.msra.mxu0 0
    %3692 = vmatprep.subr.bf16.mxu0 0
    %3693 = vmatpush2.bf16.msra.mxu0 0
    %3694 = vmatprep.subr.bf16.mxu0 0
    %3695 = vmatpush2.bf16.msra.mxu0 0
    %3696 = vmatprep.subr.bf16.mxu0 0
    %3697 = vmatpush2.bf16.msra.mxu0 0
    %3698 = vmatprep.subr.bf16.mxu0 0
    %3699 = vmatpush2.bf16.msra.mxu0 0
    %3700 = vmatprep.mubr.bf16.mxu0 0
    %3701 = vmatmul.mubr.bf16.gmra.mxu0 %v3450
    %v3702 = vpop.f32.mrf.mxu0
    %v3703 = vadd.f32 0.0, %v3702
    %v3704 = vpop.f32.mrf.mxu0
    %v3705 = vadd.f32 0.0, %v3704
    %v3706 = vpop.f32.mrf.mxu0
    %v3707 = vadd.f32 0.0, %v3706
    %v3708 = vpop.f32.mrf.mxu0
    %v3709 = vadd.f32 0.0, %v3708
    %3710 = vdwg.mxu0
    %3711 = vmatprep.subr.bf16.mxu0 %v3635
    %3712 = vmatpush1.bf16.msra.mxu0 %v3634
    %3713 = vmatprep.subr.bf16.mxu0 %v3631
    %3714 = vmatpush1.bf16.msra.mxu0 %v3630
    %3715 = vmatprep.subr.bf16.mxu0 %v3627
    %3716 = vmatpush1.bf16.msra.mxu0 %v3626
    %3717 = vmatprep.subr.bf16.mxu0 %v3623
    %3718 = vmatpush1.bf16.msra.mxu0 %v3622
    %3719 = vmatprep.subr.bf16.mxu0 %v3619
    %3720 = vmatpush1.bf16.msra.mxu0 %v3618
    %3721 = vmatprep.subr.bf16.mxu0 %v3615
    %3722 = vmatpush1.bf16.msra.mxu0 %v3614
    %3723 = vmatprep.subr.bf16.mxu0 %v3611
    %3724 = vmatpush1.bf16.msra.mxu0 %v3610
    %3725 = vmatprep.subr.bf16.mxu0 %v3607
    %3726 = vmatpush1.bf16.msra.mxu0 %v3606
    %3727 = vmatprep.subr.bf16.mxu0 0
    %3728 = vmatpush2.bf16.msra.mxu0 0
    %3729 = vmatprep.subr.bf16.mxu0 0
    %3730 = vmatpush2.bf16.msra.mxu0 0
    %3731 = vmatprep.subr.bf16.mxu0 0
    %3732 = vmatpush2.bf16.msra.mxu0 0
    %3733 = vmatprep.subr.bf16.mxu0 0
    %3734 = vmatpush2.bf16.msra.mxu0 0
    %3735 = vmatprep.subr.bf16.mxu0 0
    %3736 = vmatpush2.bf16.msra.mxu0 0
    %3737 = vmatprep.subr.bf16.mxu0 0
    %3738 = vmatpush2.bf16.msra.mxu0 0
    %3739 = vmatprep.subr.bf16.mxu0 0
    %3740 = vmatpush2.bf16.msra.mxu0 0
    %3741 = vmatprep.subr.bf16.mxu0 0
    %3742 = vmatpush2.bf16.msra.mxu0 0
    %3743 = vmatprep.mubr.bf16.mxu0 0
    %3744 = vmatmul.mubr.bf16.gmra.mxu0 %v3450
    %v3745 = vpop.f32.mrf.mxu0
    %v3746 = vadd.f32 0.0, %v3745
    %v3747 = vpop.f32.mrf.mxu0
    %v3748 = vadd.f32 0.0, %v3747
    %v3749 = vpop.f32.mrf.mxu0
    %v3750 = vadd.f32 0.0, %v3749
    %v3751 = vpop.f32.mrf.mxu0
    %v3752 = vadd.f32 0.0, %v3751
    %3753 = vdwg.mxu0
    %v3754 = vadd.f32 %v3468, %v3703
    %v3755 = vadd.f32 %v3469, %v3705
    %v3756 = vadd.f32 %v3470, %v3746
    %v3757 = vadd.f32 %v3471, %v3748
    %v3758 = vadd.f32 %v3472, %v3707
    %v3759 = vadd.f32 %v3473, %v3709
    %v3760 = vadd.f32 %v3474, %v3750
    %v3761 = vadd.f32 %v3475, %v3752
    %v3762 = vadd.f32 %v3754, %v1170
    %v3763 = vadd.f32 %v3755, %v1174
    %v3764 = vadd.f32 %v3756, %v1178
    %v3765 = vadd.f32 %v3757, %v1182
    %v3766 = vadd.f32 %v3758, %v1170
    %v3767 = vadd.f32 %v3759, %v1174
    %v3768 = vadd.f32 %v3760, %v1178
    %v3769 = vadd.f32 %v3761, %v1182
    %v3770 = vxor.u32 %v3762, 2147483648
    %v3771 = vxor.u32 %v3766, 2147483648
    %v3772 = vmul.f32 %v3770, 1.442695
    %v3773 = vpow.pop %v3772
    %v3774 = vmul.f32 %v3771, 1.442695
    %v3775 = vpow.pop %v3774
    %v3776 = vadd.f32 %v3773, 1.0
    %v3777 = vadd.f32 %v3775, 1.0
    %v3778 = vrcp.pop %v3776
    %v3779 = vmul.f32 1.0, %v3778
    %v3780 = vrcp.pop %v3777
    %v3781 = vmul.f32 1.0, %v3780
    %v3782 = vxor.u32 %v3763, 2147483648
    %v3783 = vxor.u32 %v3767, 2147483648
    %v3784 = vmul.f32 %v3782, 1.442695
    %v3785 = vpow.pop %v3784
    %v3786 = vmul.f32 %v3783, 1.442695
    %v3787 = vpow.pop %v3786
    %v3788 = vadd.f32 %v3785, 1.0
    %v3789 = vadd.f32 %v3787, 1.0
    %v3790 = vrcp.pop %v3788
    %v3791 = vmul.f32 1.0, %v3790
    %v3792 = vrcp.pop %v3789
    %v3793 = vmul.f32 1.0, %v3792
    %v3794 = vtanh.pop %v3764
    %v3795 = vtanh.pop %v3768
    %v3796 = vxor.u32 %v3765, 2147483648
    %v3797 = vxor.u32 %v3769, 2147483648
    %v3798 = vmul.f32 %v3796, 1.442695
    %v3799 = vpow.pop %v3798
    %v3800 = vmul.f32 %v3797, 1.442695
    %v3801 = vpow.pop %v3800
    %v3802 = vadd.f32 %v3799, 1.0
    %v3803 = vadd.f32 %v3801, 1.0
    %v3804 = vrcp.pop %v3802
    %v3805 = vmul.f32 1.0, %v3804
    %v3806 = vrcp.pop %v3803
    %v3807 = vmul.f32 1.0, %v3806
    %v3808 = vmul.f32 %v3791, %v3444
    %v3809 = vmul.f32 %v3793, %v3445
    %v3810 = vmul.f32 %v3779, %v3794
    %v3811 = vmul.f32 %v3781, %v3795
    %v3812 = vadd.f32 %v3808, %v3810
    %v3813 = vadd.f32 %v3809, %v3811
    %v3814 = vtanh.pop %v3812
    %v3815 = vtanh.pop %v3813
    %v3816 = vmul.f32 %v3805, %v3814
    %v3817 = vmul.f32 %v3807, %v3815
    %v3818 = vpack.c.bf16 %v3817, %v3816
    %v3820 = vunpack.c.l.b16 %v3818
    %v3821 = vunpack.c.h.b16 %v3818
    %v3822 = vpack.c.b16 %v3820, %v3820
    %v3823 = vpack.c.b16 %v3821, %v3821
    %s3826 = scalar_lea.vmem [#allocation3], 56
    %3827 = vst [vmem:[%s3826] sm:$0xf] %v3822
    %3828 = vst [vmem:[%s3826 + $0x4] sm:$0xf] %v3823
    %3829 = vst [vmem:[#allocation19] sm:$0xff] %v3816
    %3830 = vst [vmem:[#allocation19 + $0x8] sm:$0xff] %v3817
    %3831 = vst [vmem:[#allocation21] sm:$0xff] %v3812
    %3832 = vst [vmem:[#allocation21 + $0x8] sm:$0xff] %v3813
    %s3833 = scalar_lea.vmem [#allocation7], 16
    %v3834 = vld [vmem:[%s3833] sm:$0xff]
    %v3835 = vld [vmem:[%s3833 + $0x8] sm:$0xff]
    %s3836 = scalar_lea.vmem [#allocation9], 16
    %v3837 = vld [vmem:[%s3836] sm:$0xff]
    %v3838 = vld [vmem:[%s3836 + $0x8] sm:$0xff]
    %v3839 = vld [vmem:[#allocation3] sm:$0xf]
    %v3840 = vld [vmem:[#allocation3 + $0x4] sm:$0xf]
    %v3841 = vld [vmem:[#allocation3 + $0x8] sm:$0xf]
    %v3842 = vld [vmem:[#allocation3 + $0xc] sm:$0xf]
    %v3843 = vld [vmem:[#allocation3 + $0x10] sm:$0xf]
    %v3844 = vld [vmem:[#allocation3 + $0x14] sm:$0xf]
    %v3845 = vld [vmem:[#allocation3 + $0x18] sm:$0xf]
    %v3846 = vld [vmem:[#allocation3 + $0x1c] sm:$0xf]
    %v3847 = vld [vmem:[#allocation3 + $0x20] sm:$0xf]
    %v3848 = vld [vmem:[#allocation3 + $0x24] sm:$0xf]
    %v3849 = vld [vmem:[#allocation3 + $0x28] sm:$0xf]
    %v3850 = vld [vmem:[#allocation3 + $0x2c] sm:$0xf]
    %v3851 = vld [vmem:[#allocation3 + $0x30] sm:$0xf]
    %v3852 = vld [vmem:[#allocation3 + $0x34] sm:$0xf]
    %v3853 = vld [vmem:[#allocation3 + $0x38] sm:$0xf]
    %v3854 = vld [vmem:[#allocation3 + $0x3c] sm:$0xf]
    %v3855 = vld [vmem:[#allocation13] sm:$0xff]
    %v3856 = vld [vmem:[#allocation13 + $0x8] sm:$0xff]
    %v3857 = vld [vmem:[#allocation13 + $0x10] sm:$0xff]
    %v3858 = vld [vmem:[#allocation13 + $0x18] sm:$0xff]
    %v3859 = vld [vmem:[#allocation13 + $0x20] sm:$0xff]
    %v3860 = vld [vmem:[#allocation13 + $0x28] sm:$0xff]
    %v3861 = vld [vmem:[#allocation13 + $0x30] sm:$0xff]
    %v3862 = vld [vmem:[#allocation13 + $0x38] sm:$0xff]
    %v3863 = vld [vmem:[#allocation13 + $0x40] sm:$0xff]
    %v3864 = vld [vmem:[#allocation13 + $0x48] sm:$0xff]
    %v3865 = vld [vmem:[#allocation13 + $0x50] sm:$0xff]
    %v3866 = vld [vmem:[#allocation13 + $0x58] sm:$0xff]
    %v3867 = vld [vmem:[#allocation13 + $0x60] sm:$0xff]
    %v3868 = vld [vmem:[#allocation13 + $0x68] sm:$0xff]
    %v3869 = vld [vmem:[#allocation13 + $0x70] sm:$0xff]
    %v3870 = vld [vmem:[#allocation13 + $0x78] sm:$0xff]
    %v3871 = vld [vmem:[#allocation13 + $0x80] sm:$0xff]
    %v3872 = vld [vmem:[#allocation13 + $0x88] sm:$0xff]
    %v3873 = vld [vmem:[#allocation13 + $0x90] sm:$0xff]
    %v3874 = vld [vmem:[#allocation13 + $0x98] sm:$0xff]
    %v3875 = vld [vmem:[#allocation13 + $0xa0] sm:$0xff]
    %v3876 = vld [vmem:[#allocation13 + $0xa8] sm:$0xff]
    %v3877 = vld [vmem:[#allocation13 + $0xb0] sm:$0xff]
    %v3878 = vld [vmem:[#allocation13 + $0xb8] sm:$0xff]
    %v3879 = vld [vmem:[#allocation13 + $0xc0] sm:$0xff]
    %v3880 = vld [vmem:[#allocation13 + $0xc8] sm:$0xff]
    %v3881 = vld [vmem:[#allocation13 + $0xd0] sm:$0xff]
    %v3882 = vld [vmem:[#allocation13 + $0xd8] sm:$0xff]
    %v3883 = vld [vmem:[#allocation13 + $0xe0] sm:$0xff]
    %v3884 = vld [vmem:[#allocation13 + $0xe8] sm:$0xff]
    %v3885 = vld [vmem:[#allocation13 + $0xf0] sm:$0xff]
    %v3886 = vld [vmem:[#allocation13 + $0xf8] sm:$0xff]
    %v3903 = vunpack.c.l.b16 %v3839
    %v3904 = vunpack.c.l.b16 %v3840
    %v3905 = vunpack.c.l.b16 %v3841
    %v3906 = vunpack.c.l.b16 %v3842
    %v3907 = vunpack.c.l.b16 %v3843
    %v3908 = vunpack.c.l.b16 %v3844
    %v3909 = vunpack.c.l.b16 %v3845
    %v3910 = vunpack.c.l.b16 %v3846
    %v3911 = vunpack.c.l.b16 %v3847
    %v3912 = vunpack.c.l.b16 %v3848
    %v3913 = vunpack.c.l.b16 %v3849
    %v3914 = vunpack.c.l.b16 %v3850
    %v3915 = vunpack.c.l.b16 %v3851
    %v3916 = vunpack.c.l.b16 %v3852
    %v3917 = vunpack.c.l.b16 %v3853
    %v3918 = vunpack.c.l.b16 %v3854
    %v3919 = vpack.c.b16 %v3904, %v3903
    %v3920 = vpack.c.b16 %v3906, %v3905
    %v3921 = vpack.c.b16 %v3908, %v3907
    %v3922 = vpack.c.b16 %v3910, %v3909
    %v3923 = vpack.c.b16 %v3912, %v3911
    %v3924 = vpack.c.b16 %v3914, %v3913
    %v3925 = vpack.c.b16 %v3916, %v3915
    %v3926 = vpack.c.b16 %v3918, %v3917
    %v3967 = vunpack.c.l.b16 %v3855
    %v3968 = vunpack.c.h.b16 %v3855
    %v3969 = vunpack.c.l.b16 %v3856
    %v3970 = vunpack.c.h.b16 %v3856
    %v3971 = vunpack.c.l.b16 %v3857
    %v3972 = vunpack.c.h.b16 %v3857
    %v3973 = vunpack.c.l.b16 %v3858
    %v3974 = vunpack.c.h.b16 %v3858
    %v3975 = vunpack.c.l.b16 %v3859
    %v3976 = vunpack.c.h.b16 %v3859
    %v3977 = vunpack.c.l.b16 %v3860
    %v3978 = vunpack.c.h.b16 %v3860
    %v3979 = vunpack.c.l.b16 %v3861
    %v3980 = vunpack.c.h.b16 %v3861
    %v3981 = vunpack.c.l.b16 %v3862
    %v3982 = vunpack.c.h.b16 %v3862
    %v3983 = vunpack.c.l.b16 %v3863
    %v3984 = vunpack.c.h.b16 %v3863
    %v3985 = vunpack.c.l.b16 %v3864
    %v3986 = vunpack.c.h.b16 %v3864
    %v3987 = vunpack.c.l.b16 %v3865
    %v3988 = vunpack.c.h.b16 %v3865
    %v3989 = vunpack.c.l.b16 %v3866
    %v3990 = vunpack.c.h.b16 %v3866
    %v3991 = vunpack.c.l.b16 %v3867
    %v3992 = vunpack.c.h.b16 %v3867
    %v3993 = vunpack.c.l.b16 %v3868
    %v3994 = vunpack.c.h.b16 %v3868
    %v3995 = vunpack.c.l.b16 %v3869
    %v3996 = vunpack.c.h.b16 %v3869
    %v3997 = vunpack.c.l.b16 %v3870
    %v3998 = vunpack.c.h.b16 %v3870
    %v3999 = vunpack.c.l.b16 %v3871
    %v4000 = vunpack.c.h.b16 %v3871
    %v4001 = vunpack.c.l.b16 %v3872
    %v4002 = vunpack.c.h.b16 %v3872
    %v4003 = vunpack.c.l.b16 %v3873
    %v4004 = vunpack.c.h.b16 %v3873
    %v4005 = vunpack.c.l.b16 %v3874
    %v4006 = vunpack.c.h.b16 %v3874
    %v4007 = vunpack.c.l.b16 %v3875
    %v4008 = vunpack.c.h.b16 %v3875
    %v4009 = vunpack.c.l.b16 %v3876
    %v4010 = vunpack.c.h.b16 %v3876
    %v4011 = vunpack.c.l.b16 %v3877
    %v4012 = vunpack.c.h.b16 %v3877
    %v4013 = vunpack.c.l.b16 %v3878
    %v4014 = vunpack.c.h.b16 %v3878
    %v4015 = vunpack.c.l.b16 %v3879
    %v4016 = vunpack.c.h.b16 %v3879
    %v4017 = vunpack.c.l.b16 %v3880
    %v4018 = vunpack.c.h.b16 %v3880
    %v4019 = vunpack.c.l.b16 %v3881
    %v4020 = vunpack.c.h.b16 %v3881
    %v4021 = vunpack.c.l.b16 %v3882
    %v4022 = vunpack.c.h.b16 %v3882
    %v4023 = vunpack.c.l.b16 %v3883
    %v4024 = vunpack.c.h.b16 %v3883
    %v4025 = vunpack.c.l.b16 %v3884
    %v4026 = vunpack.c.h.b16 %v3884
    %v4027 = vunpack.c.l.b16 %v3885
    %v4028 = vunpack.c.h.b16 %v3885
    %v4029 = vunpack.c.l.b16 %v3886
    %v4030 = vunpack.c.h.b16 %v3886
    %v4031 = vpack.c.b16 %v3971, %v3967
    %v4032 = vpack.c.b16 %v3972, %v3968
    %v4033 = vpack.c.b16 %v3973, %v3969
    %v4034 = vpack.c.b16 %v3974, %v3970
    %v4035 = vpack.c.b16 %v3979, %v3975
    %v4036 = vpack.c.b16 %v3980, %v3976
    %v4037 = vpack.c.b16 %v3981, %v3977
    %v4038 = vpack.c.b16 %v3982, %v3978
    %v4039 = vpack.c.b16 %v3987, %v3983
    %v4040 = vpack.c.b16 %v3988, %v3984
    %v4041 = vpack.c.b16 %v3989, %v3985
    %v4042 = vpack.c.b16 %v3990, %v3986
    %v4043 = vpack.c.b16 %v3995, %v3991
    %v4044 = vpack.c.b16 %v3996, %v3992
    %v4045 = vpack.c.b16 %v3997, %v3993
    %v4046 = vpack.c.b16 %v3998, %v3994
    %v4047 = vpack.c.b16 %v4003, %v3999
    %v4048 = vpack.c.b16 %v4004, %v4000
    %v4049 = vpack.c.b16 %v4005, %v4001
    %v4050 = vpack.c.b16 %v4006, %v4002
    %v4051 = vpack.c.b16 %v4011, %v4007
    %v4052 = vpack.c.b16 %v4012, %v4008
    %v4053 = vpack.c.b16 %v4013, %v4009
    %v4054 = vpack.c.b16 %v4014, %v4010
    %v4055 = vpack.c.b16 %v4019, %v4015
    %v4056 = vpack.c.b16 %v4020, %v4016
    %v4057 = vpack.c.b16 %v4021, %v4017
    %v4058 = vpack.c.b16 %v4022, %v4018
    %v4059 = vpack.c.b16 %v4027, %v4023
    %v4060 = vpack.c.b16 %v4028, %v4024
    %v4061 = vpack.c.b16 %v4029, %v4025
    %v4062 = vpack.c.b16 %v4030, %v4026
    %4095 = vmatprep.subr.bf16.mxu0 %v4060
    %4096 = vmatpush1.bf16.msra.mxu0 %v4059
    %4097 = vmatprep.subr.bf16.mxu0 %v4056
    %4098 = vmatpush1.bf16.msra.mxu0 %v4055
    %4099 = vmatprep.subr.bf16.mxu0 %v4052
    %4100 = vmatpush1.bf16.msra.mxu0 %v4051
    %4101 = vmatprep.subr.bf16.mxu0 %v4048
    %4102 = vmatpush1.bf16.msra.mxu0 %v4047
    %4103 = vmatprep.subr.bf16.mxu0 %v4044
    %4104 = vmatpush1.bf16.msra.mxu0 %v4043
    %4105 = vmatprep.subr.bf16.mxu0 %v4040
    %4106 = vmatpush1.bf16.msra.mxu0 %v4039
    %4107 = vmatprep.subr.bf16.mxu0 %v4036
    %4108 = vmatpush1.bf16.msra.mxu0 %v4035
    %4109 = vmatprep.subr.bf16.mxu0 %v4032
    %4110 = vmatpush1.bf16.msra.mxu0 %v4031
    %4111 = vmatprep.subr.bf16.mxu0 0
    %4112 = vmatpush2.bf16.msra.mxu0 0
    %4113 = vmatprep.subr.bf16.mxu0 0
    %4114 = vmatpush2.bf16.msra.mxu0 0
    %4115 = vmatprep.subr.bf16.mxu0 0
    %4116 = vmatpush2.bf16.msra.mxu0 0
    %4117 = vmatprep.subr.bf16.mxu0 0
    %4118 = vmatpush2.bf16.msra.mxu0 0
    %4119 = vmatprep.subr.bf16.mxu0 0
    %4120 = vmatpush2.bf16.msra.mxu0 0
    %4121 = vmatprep.subr.bf16.mxu0 0
    %4122 = vmatpush2.bf16.msra.mxu0 0
    %4123 = vmatprep.subr.bf16.mxu0 0
    %4124 = vmatpush2.bf16.msra.mxu0 0
    %4125 = vmatprep.subr.bf16.mxu0 0
    %4126 = vmatpush2.bf16.msra.mxu0 0
    %4127 = vmatprep.mubr.bf16.mxu0 0
    %4128 = vmatmul.mubr.bf16.gmra.mxu0 %v3919
    %v4129 = vpop.f32.mrf.mxu0
    %v4130 = vadd.f32 0.0, %v4129
    %v4131 = vpop.f32.mrf.mxu0
    %v4132 = vadd.f32 0.0, %v4131
    %v4133 = vpop.f32.mrf.mxu0
    %v4134 = vadd.f32 0.0, %v4133
    %v4135 = vpop.f32.mrf.mxu0
    %v4136 = vadd.f32 0.0, %v4135
    %4137 = vmatprep.mubr.bf16.mxu0 0
    %4138 = vmatmul.mubr.bf16.gmra.mxu0 %v3920
    %v4139 = vpop.f32.mrf.mxu0
    %v4140 = vadd.f32 0.0, %v4139
    %v4141 = vpop.f32.mrf.mxu0
    %v4142 = vadd.f32 0.0, %v4141
    %v4143 = vpop.f32.mrf.mxu0
    %v4144 = vadd.f32 0.0, %v4143
    %v4145 = vpop.f32.mrf.mxu0
    %v4146 = vadd.f32 0.0, %v4145
    %4147 = vmatprep.mubr.bf16.mxu0 0
    %4148 = vmatmul.mubr.bf16.gmra.mxu0 %v3921
    %v4149 = vpop.f32.mrf.mxu0
    %v4150 = vadd.f32 0.0, %v4149
    %v4151 = vpop.f32.mrf.mxu0
    %v4152 = vadd.f32 0.0, %v4151
    %v4153 = vpop.f32.mrf.mxu0
    %v4154 = vadd.f32 0.0, %v4153
    %v4155 = vpop.f32.mrf.mxu0
    %v4156 = vadd.f32 0.0, %v4155
    %4157 = vmatprep.mubr.bf16.mxu0 0
    %4158 = vmatmul.mubr.bf16.gmra.mxu0 %v3922
    %v4159 = vpop.f32.mrf.mxu0
    %v4160 = vadd.f32 0.0, %v4159
    %v4161 = vpop.f32.mrf.mxu0
    %v4162 = vadd.f32 0.0, %v4161
    %v4163 = vpop.f32.mrf.mxu0
    %v4164 = vadd.f32 0.0, %v4163
    %v4165 = vpop.f32.mrf.mxu0
    %v4166 = vadd.f32 0.0, %v4165
    %4167 = vmatprep.mubr.bf16.mxu0 0
    %4168 = vmatmul.mubr.bf16.gmra.mxu0 %v3923
    %v4169 = vpop.f32.mrf.mxu0
    %v4170 = vadd.f32 0.0, %v4169
    %v4171 = vpop.f32.mrf.mxu0
    %v4172 = vadd.f32 0.0, %v4171
    %v4173 = vpop.f32.mrf.mxu0
    %v4174 = vadd.f32 0.0, %v4173
    %v4175 = vpop.f32.mrf.mxu0
    %v4176 = vadd.f32 0.0, %v4175
    %4177 = vmatprep.mubr.bf16.mxu0 0
    %4178 = vmatmul.mubr.bf16.gmra.mxu0 %v3924
    %v4179 = vpop.f32.mrf.mxu0
    %v4180 = vadd.f32 0.0, %v4179
    %v4181 = vpop.f32.mrf.mxu0
    %v4182 = vadd.f32 0.0, %v4181
    %v4183 = vpop.f32.mrf.mxu0
    %v4184 = vadd.f32 0.0, %v4183
    %v4185 = vpop.f32.mrf.mxu0
    %v4186 = vadd.f32 0.0, %v4185
    %4187 = vmatprep.mubr.bf16.mxu0 0
    %4188 = vmatmul.mubr.bf16.gmra.mxu0 %v3925
    %v4189 = vpop.f32.mrf.mxu0
    %v4190 = vadd.f32 0.0, %v4189
    %v4191 = vpop.f32.mrf.mxu0
    %v4192 = vadd.f32 0.0, %v4191
    %v4193 = vpop.f32.mrf.mxu0
    %v4194 = vadd.f32 0.0, %v4193
    %v4195 = vpop.f32.mrf.mxu0
    %v4196 = vadd.f32 0.0, %v4195
    %4197 = vmatprep.mubr.bf16.mxu0 0
    %4198 = vmatmul.mubr.bf16.gmra.mxu0 %v3926
    %v4199 = vpop.f32.mrf.mxu0
    %v4200 = vadd.f32 0.0, %v4199
    %v4201 = vpop.f32.mrf.mxu0
    %v4202 = vadd.f32 0.0, %v4201
    %v4203 = vpop.f32.mrf.mxu0
    %v4204 = vadd.f32 0.0, %v4203
    %v4205 = vpop.f32.mrf.mxu0
    %v4206 = vadd.f32 0.0, %v4205
    %4207 = vdwg.mxu0
    %4208 = vmatprep.subr.bf16.mxu0 %v4062
    %4209 = vmatpush1.bf16.msra.mxu0 %v4061
    %4210 = vmatprep.subr.bf16.mxu0 %v4058
    %4211 = vmatpush1.bf16.msra.mxu0 %v4057
    %4212 = vmatprep.subr.bf16.mxu0 %v4054
    %4213 = vmatpush1.bf16.msra.mxu0 %v4053
    %4214 = vmatprep.subr.bf16.mxu0 %v4050
    %4215 = vmatpush1.bf16.msra.mxu0 %v4049
    %4216 = vmatprep.subr.bf16.mxu0 %v4046
    %4217 = vmatpush1.bf16.msra.mxu0 %v4045
    %4218 = vmatprep.subr.bf16.mxu0 %v4042
    %4219 = vmatpush1.bf16.msra.mxu0 %v4041
    %4220 = vmatprep.subr.bf16.mxu0 %v4038
    %4221 = vmatpush1.bf16.msra.mxu0 %v4037
    %4222 = vmatprep.subr.bf16.mxu0 %v4034
    %4223 = vmatpush1.bf16.msra.mxu0 %v4033
    %4224 = vmatprep.subr.bf16.mxu0 0
    %4225 = vmatpush2.bf16.msra.mxu0 0
    %4226 = vmatprep.subr.bf16.mxu0 0
    %4227 = vmatpush2.bf16.msra.mxu0 0
    %4228 = vmatprep.subr.bf16.mxu0 0
    %4229 = vmatpush2.bf16.msra.mxu0 0
    %4230 = vmatprep.subr.bf16.mxu0 0
    %4231 = vmatpush2.bf16.msra.mxu0 0
    %4232 = vmatprep.subr.bf16.mxu0 0
    %4233 = vmatpush2.bf16.msra.mxu0 0
    %4234 = vmatprep.subr.bf16.mxu0 0
    %4235 = vmatpush2.bf16.msra.mxu0 0
    %4236 = vmatprep.subr.bf16.mxu0 0
    %4237 = vmatpush2.bf16.msra.mxu0 0
    %4238 = vmatprep.subr.bf16.mxu0 0
    %4239 = vmatpush2.bf16.msra.mxu0 0
    %4240 = vmatprep.mubr.bf16.mxu0 0
    %4241 = vmatmul.mubr.bf16.gmra.mxu0 %v3919
    %v4242 = vpop.f32.mrf.mxu0
    %v4243 = vadd.f32 0.0, %v4242
    %v4244 = vpop.f32.mrf.mxu0
    %v4245 = vadd.f32 0.0, %v4244
    %v4246 = vpop.f32.mrf.mxu0
    %v4247 = vadd.f32 0.0, %v4246
    %v4248 = vpop.f32.mrf.mxu0
    %v4249 = vadd.f32 0.0, %v4248
    %4250 = vmatprep.mubr.bf16.mxu0 0
    %4251 = vmatmul.mubr.bf16.gmra.mxu0 %v3920
    %v4252 = vpop.f32.mrf.mxu0
    %v4253 = vadd.f32 0.0, %v4252
    %v4254 = vpop.f32.mrf.mxu0
    %v4255 = vadd.f32 0.0, %v4254
    %v4256 = vpop.f32.mrf.mxu0
    %v4257 = vadd.f32 0.0, %v4256
    %v4258 = vpop.f32.mrf.mxu0
    %v4259 = vadd.f32 0.0, %v4258
    %4260 = vmatprep.mubr.bf16.mxu0 0
    %4261 = vmatmul.mubr.bf16.gmra.mxu0 %v3921
    %v4262 = vpop.f32.mrf.mxu0
    %v4263 = vadd.f32 0.0, %v4262
    %v4264 = vpop.f32.mrf.mxu0
    %v4265 = vadd.f32 0.0, %v4264
    %v4266 = vpop.f32.mrf.mxu0
    %v4267 = vadd.f32 0.0, %v4266
    %v4268 = vpop.f32.mrf.mxu0
    %v4269 = vadd.f32 0.0, %v4268
    %4270 = vmatprep.mubr.bf16.mxu0 0
    %4271 = vmatmul.mubr.bf16.gmra.mxu0 %v3922
    %v4272 = vpop.f32.mrf.mxu0
    %v4273 = vadd.f32 0.0, %v4272
    %v4274 = vpop.f32.mrf.mxu0
    %v4275 = vadd.f32 0.0, %v4274
    %v4276 = vpop.f32.mrf.mxu0
    %v4277 = vadd.f32 0.0, %v4276
    %v4278 = vpop.f32.mrf.mxu0
    %v4279 = vadd.f32 0.0, %v4278
    %4280 = vmatprep.mubr.bf16.mxu0 0
    %4281 = vmatmul.mubr.bf16.gmra.mxu0 %v3923
    %v4282 = vpop.f32.mrf.mxu0
    %v4283 = vadd.f32 0.0, %v4282
    %v4284 = vpop.f32.mrf.mxu0
    %v4285 = vadd.f32 0.0, %v4284
    %v4286 = vpop.f32.mrf.mxu0
    %v4287 = vadd.f32 0.0, %v4286
    %v4288 = vpop.f32.mrf.mxu0
    %v4289 = vadd.f32 0.0, %v4288
    %4290 = vmatprep.mubr.bf16.mxu0 0
    %4291 = vmatmul.mubr.bf16.gmra.mxu0 %v3924
    %v4292 = vpop.f32.mrf.mxu0
    %v4293 = vadd.f32 0.0, %v4292
    %v4294 = vpop.f32.mrf.mxu0
    %v4295 = vadd.f32 0.0, %v4294
    %v4296 = vpop.f32.mrf.mxu0
    %v4297 = vadd.f32 0.0, %v4296
    %v4298 = vpop.f32.mrf.mxu0
    %v4299 = vadd.f32 0.0, %v4298
    %4300 = vmatprep.mubr.bf16.mxu0 0
    %4301 = vmatmul.mubr.bf16.gmra.mxu0 %v3925
    %v4302 = vpop.f32.mrf.mxu0
    %v4303 = vadd.f32 0.0, %v4302
    %v4304 = vpop.f32.mrf.mxu0
    %v4305 = vadd.f32 0.0, %v4304
    %v4306 = vpop.f32.mrf.mxu0
    %v4307 = vadd.f32 0.0, %v4306
    %v4308 = vpop.f32.mrf.mxu0
    %v4309 = vadd.f32 0.0, %v4308
    %4310 = vmatprep.mubr.bf16.mxu0 0
    %4311 = vmatmul.mubr.bf16.gmra.mxu0 %v3926
    %v4312 = vpop.f32.mrf.mxu0
    %v4313 = vadd.f32 0.0, %v4312
    %v4314 = vpop.f32.mrf.mxu0
    %v4315 = vadd.f32 0.0, %v4314
    %v4316 = vpop.f32.mrf.mxu0
    %v4317 = vadd.f32 0.0, %v4316
    %v4318 = vpop.f32.mrf.mxu0
    %v4319 = vadd.f32 0.0, %v4318
    %4320 = vdwg.mxu0
    %v4321 = vpack.c.bf16 %v4134, %v4130
    %v4322 = vpack.c.bf16 %v4136, %v4132
    %v4323 = vpack.c.bf16 %v4247, %v4243
    %v4324 = vpack.c.bf16 %v4249, %v4245
    %v4325 = vpack.c.bf16 %v4144, %v4140
    %v4326 = vpack.c.bf16 %v4146, %v4142
    %v4327 = vpack.c.bf16 %v4257, %v4253
    %v4328 = vpack.c.bf16 %v4259, %v4255
    %v4329 = vpack.c.bf16 %v4154, %v4150
    %v4330 = vpack.c.bf16 %v4156, %v4152
    %v4331 = vpack.c.bf16 %v4267, %v4263
    %v4332 = vpack.c.bf16 %v4269, %v4265
    %v4333 = vpack.c.bf16 %v4164, %v4160
    %v4334 = vpack.c.bf16 %v4166, %v4162
    %v4335 = vpack.c.bf16 %v4277, %v4273
    %v4336 = vpack.c.bf16 %v4279, %v4275
    %v4337 = vpack.c.bf16 %v4174, %v4170
    %v4338 = vpack.c.bf16 %v4176, %v4172
    %v4339 = vpack.c.bf16 %v4287, %v4283
    %v4340 = vpack.c.bf16 %v4289, %v4285
    %v4341 = vpack.c.bf16 %v4184, %v4180
    %v4342 = vpack.c.bf16 %v4186, %v4182
    %v4343 = vpack.c.bf16 %v4297, %v4293
    %v4344 = vpack.c.bf16 %v4299, %v4295
    %v4345 = vpack.c.bf16 %v4194, %v4190
    %v4346 = vpack.c.bf16 %v4196, %v4192
    %v4347 = vpack.c.bf16 %v4307, %v4303
    %v4348 = vpack.c.bf16 %v4309, %v4305
    %v4349 = vpack.c.bf16 %v4204, %v4200
    %v4350 = vpack.c.bf16 %v4206, %v4202
    %v4351 = vpack.c.bf16 %v4317, %v4313
    %v4352 = vpack.c.bf16 %v4319, %v4315
    %v4385 = vunpack.c.l.b16 %v4321
    %v4386 = vunpack.c.l.b16 %v4322
    %v4387 = vunpack.c.l.b16 %v4323
    %v4388 = vunpack.c.l.b16 %v4324
    %v4389 = vunpack.c.h.b16 %v4321
    %v4390 = vunpack.c.h.b16 %v4322
    %v4391 = vunpack.c.h.b16 %v4323
    %v4392 = vunpack.c.h.b16 %v4324
    %v4393 = vunpack.c.l.b16 %v4325
    %v4394 = vunpack.c.l.b16 %v4326
    %v4395 = vunpack.c.l.b16 %v4327
    %v4396 = vunpack.c.l.b16 %v4328
    %v4397 = vunpack.c.h.b16 %v4325
    %v4398 = vunpack.c.h.b16 %v4326
    %v4399 = vunpack.c.h.b16 %v4327
    %v4400 = vunpack.c.h.b16 %v4328
    %v4401 = vunpack.c.l.b16 %v4329
    %v4402 = vunpack.c.l.b16 %v4330
    %v4403 = vunpack.c.l.b16 %v4331
    %v4404 = vunpack.c.l.b16 %v4332
    %v4405 = vunpack.c.h.b16 %v4329
    %v4406 = vunpack.c.h.b16 %v4330
    %v4407 = vunpack.c.h.b16 %v4331
    %v4408 = vunpack.c.h.b16 %v4332
    %v4409 = vunpack.c.l.b16 %v4333
    %v4410 = vunpack.c.l.b16 %v4334
    %v4411 = vunpack.c.l.b16 %v4335
    %v4412 = vunpack.c.l.b16 %v4336
    %v4413 = vunpack.c.h.b16 %v4333
    %v4414 = vunpack.c.h.b16 %v4334
    %v4415 = vunpack.c.h.b16 %v4335
    %v4416 = vunpack.c.h.b16 %v4336
    %v4417 = vunpack.c.l.b16 %v4337
    %v4418 = vunpack.c.l.b16 %v4338
    %v4419 = vunpack.c.l.b16 %v4339
    %v4420 = vunpack.c.l.b16 %v4340
    %v4421 = vunpack.c.h.b16 %v4337
    %v4422 = vunpack.c.h.b16 %v4338
    %v4423 = vunpack.c.h.b16 %v4339
    %v4424 = vunpack.c.h.b16 %v4340
    %v4425 = vunpack.c.l.b16 %v4341
    %v4426 = vunpack.c.l.b16 %v4342
    %v4427 = vunpack.c.l.b16 %v4343
    %v4428 = vunpack.c.l.b16 %v4344
    %v4429 = vunpack.c.h.b16 %v4341
    %v4430 = vunpack.c.h.b16 %v4342
    %v4431 = vunpack.c.h.b16 %v4343
    %v4432 = vunpack.c.h.b16 %v4344
    %v4433 = vunpack.c.l.b16 %v4345
    %v4434 = vunpack.c.l.b16 %v4346
    %v4435 = vunpack.c.l.b16 %v4347
    %v4436 = vunpack.c.l.b16 %v4348
    %v4437 = vunpack.c.h.b16 %v4345
    %v4438 = vunpack.c.h.b16 %v4346
    %v4439 = vunpack.c.h.b16 %v4347
    %v4440 = vunpack.c.h.b16 %v4348
    %v4441 = vunpack.c.l.b16 %v4349
    %v4442 = vunpack.c.l.b16 %v4350
    %v4443 = vunpack.c.l.b16 %v4351
    %v4444 = vunpack.c.l.b16 %v4352
    %v4445 = vunpack.c.h.b16 %v4349
    %v4446 = vunpack.c.h.b16 %v4350
    %v4447 = vunpack.c.h.b16 %v4351
    %v4448 = vunpack.c.h.b16 %v4352
    %v4449 = vpack.c.b16 %v4386, %v4385
    %v4450 = vpack.c.b16 %v4388, %v4387
    %v4451 = vpack.c.b16 %v4390, %v4389
    %v4452 = vpack.c.b16 %v4392, %v4391
    %v4453 = vpack.c.b16 %v4394, %v4393
    %v4454 = vpack.c.b16 %v4396, %v4395
    %v4455 = vpack.c.b16 %v4398, %v4397
    %v4456 = vpack.c.b16 %v4400, %v4399
    %v4457 = vpack.c.b16 %v4402, %v4401
    %v4458 = vpack.c.b16 %v4404, %v4403
    %v4459 = vpack.c.b16 %v4406, %v4405
    %v4460 = vpack.c.b16 %v4408, %v4407
    %v4461 = vpack.c.b16 %v4410, %v4409
    %v4462 = vpack.c.b16 %v4412, %v4411
    %v4463 = vpack.c.b16 %v4414, %v4413
    %v4464 = vpack.c.b16 %v4416, %v4415
    %v4465 = vpack.c.b16 %v4418, %v4417
    %v4466 = vpack.c.b16 %v4420, %v4419
    %v4467 = vpack.c.b16 %v4422, %v4421
    %v4468 = vpack.c.b16 %v4424, %v4423
    %v4469 = vpack.c.b16 %v4426, %v4425
    %v4470 = vpack.c.b16 %v4428, %v4427
    %v4471 = vpack.c.b16 %v4430, %v4429
    %v4472 = vpack.c.b16 %v4432, %v4431
    %v4473 = vpack.c.b16 %v4434, %v4433
    %v4474 = vpack.c.b16 %v4436, %v4435
    %v4475 = vpack.c.b16 %v4438, %v4437
    %v4476 = vpack.c.b16 %v4440, %v4439
    %v4477 = vpack.c.b16 %v4442, %v4441
    %v4478 = vpack.c.b16 %v4444, %v4443
    %v4479 = vpack.c.b16 %v4446, %v4445
    %v4480 = vpack.c.b16 %v4448, %v4447
    %4513 = vst [vmem:[#allocation2] sm:$0xff] %v4449
    %4514 = vst [vmem:[#allocation2 + $0x8] sm:$0xff] %v4450
    %4515 = vst [vmem:[#allocation2 + $0x10] sm:$0xff] %v4451
    %4516 = vst [vmem:[#allocation2 + $0x18] sm:$0xff] %v4452
    %4517 = vst [vmem:[#allocation2 + $0x20] sm:$0xff] %v4453
    %4518 = vst [vmem:[#allocation2 + $0x28] sm:$0xff] %v4454
    %4519 = vst [vmem:[#allocation2 + $0x30] sm:$0xff] %v4455
    %4520 = vst [vmem:[#allocation2 + $0x38] sm:$0xff] %v4456
    %4521 = vst [vmem:[#allocation2 + $0x40] sm:$0xff] %v4457
    %4522 = vst [vmem:[#allocation2 + $0x48] sm:$0xff] %v4458
    %4523 = vst [vmem:[#allocation2 + $0x50] sm:$0xff] %v4459
    %4524 = vst [vmem:[#allocation2 + $0x58] sm:$0xff] %v4460
    %4525 = vst [vmem:[#allocation2 + $0x60] sm:$0xff] %v4461
    %4526 = vst [vmem:[#allocation2 + $0x68] sm:$0xff] %v4462
    %4527 = vst [vmem:[#allocation2 + $0x70] sm:$0xff] %v4463
    %4528 = vst [vmem:[#allocation2 + $0x78] sm:$0xff] %v4464
    %4529 = vst [vmem:[#allocation2 + $0x80] sm:$0xff] %v4465
    %4530 = vst [vmem:[#allocation2 + $0x88] sm:$0xff] %v4466
    %4531 = vst [vmem:[#allocation2 + $0x90] sm:$0xff] %v4467
    %4532 = vst [vmem:[#allocation2 + $0x98] sm:$0xff] %v4468
    %4533 = vst [vmem:[#allocation2 + $0xa0] sm:$0xff] %v4469
    %4534 = vst [vmem:[#allocation2 + $0xa8] sm:$0xff] %v4470
    %4535 = vst [vmem:[#allocation2 + $0xb0] sm:$0xff] %v4471
    %4536 = vst [vmem:[#allocation2 + $0xb8] sm:$0xff] %v4472
    %4537 = vst [vmem:[#allocation2 + $0xc0] sm:$0xff] %v4473
    %4538 = vst [vmem:[#allocation2 + $0xc8] sm:$0xff] %v4474
    %4539 = vst [vmem:[#allocation2 + $0xd0] sm:$0xff] %v4475
    %4540 = vst [vmem:[#allocation2 + $0xd8] sm:$0xff] %v4476
    %4541 = vst [vmem:[#allocation2 + $0xe0] sm:$0xff] %v4477
    %4542 = vst [vmem:[#allocation2 + $0xe8] sm:$0xff] %v4478
    %4543 = vst [vmem:[#allocation2 + $0xf0] sm:$0xff] %v4479
    %4544 = vst [vmem:[#allocation2 + $0xf8] sm:$0xff] %v4480
    %v4545 = vld [vmem:[%s8] sm:$0xf]
    %v4546 = vld [vmem:[%s866] sm:$0xff]
    %v4547 = vld [vmem:[%s866 + $0x8] sm:$0xff]
    %v4548 = vld [vmem:[%s866 + $0x10] sm:$0xff]
    %v4549 = vld [vmem:[%s866 + $0x18] sm:$0xff]
    %v4550 = vunpack.c.l.bf16 %v4546
    %v4551 = vunpack.c.h.bf16 %v4546
    %v4552 = vunpack.c.l.bf16 %v4547
    %v4553 = vunpack.c.h.bf16 %v4547
    %v4554 = vunpack.c.l.bf16 %v4548
    %v4555 = vunpack.c.h.bf16 %v4548
    %v4556 = vunpack.c.l.bf16 %v4549
    %v4557 = vunpack.c.h.bf16 %v4549
    %v4558 = vpack.c.bf16 %v3835, %v3834
    %v4559 = vld [vmem:[#allocation15] sm:$0xff]
    %v4560 = vld [vmem:[#allocation15 + $0x8] sm:$0xff]
    %v4561 = vld [vmem:[#allocation15 + $0x10] sm:$0xff]
    %v4562 = vld [vmem:[#allocation15 + $0x18] sm:$0xff]
    %v4563 = vld [vmem:[#allocation15 + $0x20] sm:$0xff]
    %v4564 = vld [vmem:[#allocation15 + $0x28] sm:$0xff]
    %v4565 = vld [vmem:[#allocation15 + $0x30] sm:$0xff]
    %v4566 = vld [vmem:[#allocation15 + $0x38] sm:$0xff]
    %v4567 = vld [vmem:[#allocation15 + $0x40] sm:$0xff]
    %v4568 = vld [vmem:[#allocation15 + $0x48] sm:$0xff]
    %v4569 = vld [vmem:[#allocation15 + $0x50] sm:$0xff]
    %v4570 = vld [vmem:[#allocation15 + $0x58] sm:$0xff]
    %v4571 = vld [vmem:[#allocation15 + $0x60] sm:$0xff]
    %v4572 = vld [vmem:[#allocation15 + $0x68] sm:$0xff]
    %v4573 = vld [vmem:[#allocation15 + $0x70] sm:$0xff]
    %v4574 = vld [vmem:[#allocation15 + $0x78] sm:$0xff]
    %v4575 = vld [vmem:[#allocation15 + $0x80] sm:$0xff]
    %v4576 = vld [vmem:[#allocation15 + $0x88] sm:$0xff]
    %v4577 = vld [vmem:[#allocation15 + $0x90] sm:$0xff]
    %v4578 = vld [vmem:[#allocation15 + $0x98] sm:$0xff]
    %v4579 = vld [vmem:[#allocation15 + $0xa0] sm:$0xff]
    %v4580 = vld [vmem:[#allocation15 + $0xa8] sm:$0xff]
    %v4581 = vld [vmem:[#allocation15 + $0xb0] sm:$0xff]
    %v4582 = vld [vmem:[#allocation15 + $0xb8] sm:$0xff]
    %v4583 = vld [vmem:[#allocation15 + $0xc0] sm:$0xff]
    %v4584 = vld [vmem:[#allocation15 + $0xc8] sm:$0xff]
    %v4585 = vld [vmem:[#allocation15 + $0xd0] sm:$0xff]
    %v4586 = vld [vmem:[#allocation15 + $0xd8] sm:$0xff]
    %v4587 = vld [vmem:[#allocation15 + $0xe0] sm:$0xff]
    %v4588 = vld [vmem:[#allocation15 + $0xe8] sm:$0xff]
    %v4589 = vld [vmem:[#allocation15 + $0xf0] sm:$0xff]
    %v4590 = vld [vmem:[#allocation15 + $0xf8] sm:$0xff]
    %v4623 = vunpack.c.l.b16 %v4559
    %v4624 = vunpack.c.h.b16 %v4559
    %v4625 = vunpack.c.l.b16 %v4560
    %v4626 = vunpack.c.h.b16 %v4560
    %v4627 = vunpack.c.l.b16 %v4561
    %v4628 = vunpack.c.h.b16 %v4561
    %v4629 = vunpack.c.l.b16 %v4562
    %v4630 = vunpack.c.h.b16 %v4562
    %v4631 = vunpack.c.l.b16 %v4563
    %v4632 = vunpack.c.h.b16 %v4563
    %v4633 = vunpack.c.l.b16 %v4564
    %v4634 = vunpack.c.h.b16 %v4564
    %v4635 = vunpack.c.l.b16 %v4565
    %v4636 = vunpack.c.h.b16 %v4565
    %v4637 = vunpack.c.l.b16 %v4566
    %v4638 = vunpack.c.h.b16 %v4566
    %v4639 = vunpack.c.l.b16 %v4567
    %v4640 = vunpack.c.h.b16 %v4567
    %v4641 = vunpack.c.l.b16 %v4568
    %v4642 = vunpack.c.h.b16 %v4568
    %v4643 = vunpack.c.l.b16 %v4569
    %v4644 = vunpack.c.h.b16 %v4569
    %v4645 = vunpack.c.l.b16 %v4570
    %v4646 = vunpack.c.h.b16 %v4570
    %v4647 = vunpack.c.l.b16 %v4571
    %v4648 = vunpack.c.h.b16 %v4571
    %v4649 = vunpack.c.l.b16 %v4572
    %v4650 = vunpack.c.h.b16 %v4572
    %v4651 = vunpack.c.l.b16 %v4573
    %v4652 = vunpack.c.h.b16 %v4573
    %v4653 = vunpack.c.l.b16 %v4574
    %v4654 = vunpack.c.h.b16 %v4574
    %v4655 = vunpack.c.l.b16 %v4575
    %v4656 = vunpack.c.h.b16 %v4575
    %v4657 = vunpack.c.l.b16 %v4576
    %v4658 = vunpack.c.h.b16 %v4576
    %v4659 = vunpack.c.l.b16 %v4577
    %v4660 = vunpack.c.h.b16 %v4577
    %v4661 = vunpack.c.l.b16 %v4578
    %v4662 = vunpack.c.h.b16 %v4578
    %v4663 = vunpack.c.l.b16 %v4579
    %v4664 = vunpack.c.h.b16 %v4579
    %v4665 = vunpack.c.l.b16 %v4580
    %v4666 = vunpack.c.h.b16 %v4580
    %v4667 = vunpack.c.l.b16 %v4581
    %v4668 = vunpack.c.h.b16 %v4581
    %v4669 = vunpack.c.l.b16 %v4582
    %v4670 = vunpack.c.h.b16 %v4582
    %v4671 = vunpack.c.l.b16 %v4583
    %v4672 = vunpack.c.h.b16 %v4583
    %v4673 = vunpack.c.l.b16 %v4584
    %v4674 = vunpack.c.h.b16 %v4584
    %v4675 = vunpack.c.l.b16 %v4585
    %v4676 = vunpack.c.h.b16 %v4585
    %v4677 = vunpack.c.l.b16 %v4586
    %v4678 = vunpack.c.h.b16 %v4586
    %v4679 = vunpack.c.l.b16 %v4587
    %v4680 = vunpack.c.h.b16 %v4587
    %v4681 = vunpack.c.l.b16 %v4588
    %v4682 = vunpack.c.h.b16 %v4588
    %v4683 = vunpack.c.l.b16 %v4589
    %v4684 = vunpack.c.h.b16 %v4589
    %v4685 = vunpack.c.l.b16 %v4590
    %v4686 = vunpack.c.h.b16 %v4590
    %v4687 = vpack.c.b16 %v4627, %v4623
    %v4688 = vpack.c.b16 %v4628, %v4624
    %v4689 = vpack.c.b16 %v4629, %v4625
    %v4690 = vpack.c.b16 %v4630, %v4626
    %v4691 = vpack.c.b16 %v4635, %v4631
    %v4692 = vpack.c.b16 %v4636, %v4632
    %v4693 = vpack.c.b16 %v4637, %v4633
    %v4694 = vpack.c.b16 %v4638, %v4634
    %v4695 = vpack.c.b16 %v4643, %v4639
    %v4696 = vpack.c.b16 %v4644, %v4640
    %v4697 = vpack.c.b16 %v4645, %v4641
    %v4698 = vpack.c.b16 %v4646, %v4642
    %v4699 = vpack.c.b16 %v4651, %v4647
    %v4700 = vpack.c.b16 %v4652, %v4648
    %v4701 = vpack.c.b16 %v4653, %v4649
    %v4702 = vpack.c.b16 %v4654, %v4650
    %v4703 = vpack.c.b16 %v4659, %v4655
    %v4704 = vpack.c.b16 %v4660, %v4656
    %v4705 = vpack.c.b16 %v4661, %v4657
    %v4706 = vpack.c.b16 %v4662, %v4658
    %v4707 = vpack.c.b16 %v4667, %v4663
    %v4708 = vpack.c.b16 %v4668, %v4664
    %v4709 = vpack.c.b16 %v4669, %v4665
    %v4710 = vpack.c.b16 %v4670, %v4666
    %v4711 = vpack.c.b16 %v4675, %v4671
    %v4712 = vpack.c.b16 %v4676, %v4672
    %v4713 = vpack.c.b16 %v4677, %v4673
    %v4714 = vpack.c.b16 %v4678, %v4674
    %v4715 = vpack.c.b16 %v4683, %v4679
    %v4716 = vpack.c.b16 %v4684, %v4680
    %v4717 = vpack.c.b16 %v4685, %v4681
    %v4718 = vpack.c.b16 %v4686, %v4682
    %4751 = vmatprep.subr.bf16.mxu0 %v4716
    %4752 = vmatpush1.bf16.msra.mxu0 %v4715
    %4753 = vmatprep.subr.bf16.mxu0 %v4712
    %4754 = vmatpush1.bf16.msra.mxu0 %v4711
    %4755 = vmatprep.subr.bf16.mxu0 %v4708
    %4756 = vmatpush1.bf16.msra.mxu0 %v4707
    %4757 = vmatprep.subr.bf16.mxu0 %v4704
    %4758 = vmatpush1.bf16.msra.mxu0 %v4703
    %4759 = vmatprep.subr.bf16.mxu0 %v4700
    %4760 = vmatpush1.bf16.msra.mxu0 %v4699
    %4761 = vmatprep.subr.bf16.mxu0 %v4696
    %4762 = vmatpush1.bf16.msra.mxu0 %v4695
    %4763 = vmatprep.subr.bf16.mxu0 %v4692
    %4764 = vmatpush1.bf16.msra.mxu0 %v4691
    %4765 = vmatprep.subr.bf16.mxu0 %v4688
    %4766 = vmatpush1.bf16.msra.mxu0 %v4687
    %4767 = vmatprep.subr.bf16.mxu0 0
    %4768 = vmatpush2.bf16.msra.mxu0 0
    %4769 = vmatprep.subr.bf16.mxu0 0
    %4770 = vmatpush2.bf16.msra.mxu0 0
    %4771 = vmatprep.subr.bf16.mxu0 0
    %4772 = vmatpush2.bf16.msra.mxu0 0
    %4773 = vmatprep.subr.bf16.mxu0 0
    %4774 = vmatpush2.bf16.msra.mxu0 0
    %4775 = vmatprep.subr.bf16.mxu0 0
    %4776 = vmatpush2.bf16.msra.mxu0 0
    %4777 = vmatprep.subr.bf16.mxu0 0
    %4778 = vmatpush2.bf16.msra.mxu0 0
    %4779 = vmatprep.subr.bf16.mxu0 0
    %4780 = vmatpush2.bf16.msra.mxu0 0
    %4781 = vmatprep.subr.bf16.mxu0 0
    %4782 = vmatpush2.bf16.msra.mxu0 0
    %4783 = vmatprep.mubr.bf16.mxu0 0
    %4784 = vmatmul.mubr.bf16.gmra.mxu0 %v4558
    %v4785 = vpop.f32.mrf.mxu0
    %v4786 = vadd.f32 0.0, %v4785
    %v4787 = vpop.f32.mrf.mxu0
    %v4788 = vadd.f32 0.0, %v4787
    %v4789 = vpop.f32.mrf.mxu0
    %v4790 = vadd.f32 0.0, %v4789
    %v4791 = vpop.f32.mrf.mxu0
    %v4792 = vadd.f32 0.0, %v4791
    %4793 = vdwg.mxu0
    %4794 = vmatprep.subr.bf16.mxu0 %v4718
    %4795 = vmatpush1.bf16.msra.mxu0 %v4717
    %4796 = vmatprep.subr.bf16.mxu0 %v4714
    %4797 = vmatpush1.bf16.msra.mxu0 %v4713
    %4798 = vmatprep.subr.bf16.mxu0 %v4710
    %4799 = vmatpush1.bf16.msra.mxu0 %v4709
    %4800 = vmatprep.subr.bf16.mxu0 %v4706
    %4801 = vmatpush1.bf16.msra.mxu0 %v4705
    %4802 = vmatprep.subr.bf16.mxu0 %v4702
    %4803 = vmatpush1.bf16.msra.mxu0 %v4701
    %4804 = vmatprep.subr.bf16.mxu0 %v4698
    %4805 = vmatpush1.bf16.msra.mxu0 %v4697
    %4806 = vmatprep.subr.bf16.mxu0 %v4694
    %4807 = vmatpush1.bf16.msra.mxu0 %v4693
    %4808 = vmatprep.subr.bf16.mxu0 %v4690
    %4809 = vmatpush1.bf16.msra.mxu0 %v4689
    %4810 = vmatprep.subr.bf16.mxu0 0
    %4811 = vmatpush2.bf16.msra.mxu0 0
    %4812 = vmatprep.subr.bf16.mxu0 0
    %4813 = vmatpush2.bf16.msra.mxu0 0
    %4814 = vmatprep.subr.bf16.mxu0 0
    %4815 = vmatpush2.bf16.msra.mxu0 0
    %4816 = vmatprep.subr.bf16.mxu0 0
    %4817 = vmatpush2.bf16.msra.mxu0 0
    %4818 = vmatprep.subr.bf16.mxu0 0
    %4819 = vmatpush2.bf16.msra.mxu0 0
    %4820 = vmatprep.subr.bf16.mxu0 0
    %4821 = vmatpush2.bf16.msra.mxu0 0
    %4822 = vmatprep.subr.bf16.mxu0 0
    %4823 = vmatpush2.bf16.msra.mxu0 0
    %4824 = vmatprep.subr.bf16.mxu0 0
    %4825 = vmatpush2.bf16.msra.mxu0 0
    %4826 = vmatprep.mubr.bf16.mxu0 0
    %4827 = vmatmul.mubr.bf16.gmra.mxu0 %v4558
    %v4828 = vpop.f32.mrf.mxu0
    %v4829 = vadd.f32 0.0, %v4828
    %v4830 = vpop.f32.mrf.mxu0
    %v4831 = vadd.f32 0.0, %v4830
    %v4832 = vpop.f32.mrf.mxu0
    %v4833 = vadd.f32 0.0, %v4832
    %v4834 = vpop.f32.mrf.mxu0
    %v4835 = vadd.f32 0.0, %v4834
    %4836 = vdwg.mxu0
    %v4837 = vadd.f32 %v4550, %v4786
    %v4838 = vadd.f32 %v4551, %v4788
    %v4839 = vadd.f32 %v4552, %v4829
    %v4840 = vadd.f32 %v4553, %v4831
    %v4841 = vadd.f32 %v4554, %v4790
    %v4842 = vadd.f32 %v4555, %v4792
    %v4843 = vadd.f32 %v4556, %v4833
    %v4844 = vadd.f32 %v4557, %v4835
    %v4846 = vlaneseq
    %v4847 = vshrl.u32 %v4846, 7
    %v4848 = vsub.s32 0, %v4847
    %v4849 = vrot.slane %v4545, %v4848
    %v4850 = vlaneseq
    %v4851 = vshrl.u32 %v4850, 7
    %v4852 = vsub.s32 1, %v4851
    %v4853 = vrot.slane %v4545, %v4852
    %v4854 = vlaneseq
    %v4855 = vshrl.u32 %v4854, 7
    %v4856 = vsub.s32 2, %v4855
    %v4857 = vrot.slane %v4545, %v4856
    %v4858 = vlaneseq
    %v4859 = vshrl.u32 %v4858, 7
    %v4860 = vsub.s32 3, %v4859
    %v4861 = vrot.slane %v4545, %v4860
    %v4866 = vadd.f32 %v4837, %v4849
    %v4867 = vadd.f32 %v4838, %v4853
    %v4868 = vadd.f32 %v4839, %v4857
    %v4869 = vadd.f32 %v4840, %v4861
    %v4870 = vadd.f32 %v4841, %v4849
    %v4871 = vadd.f32 %v4842, %v4853
    %v4872 = vadd.f32 %v4843, %v4857
    %v4873 = vadd.f32 %v4844, %v4861
    %v4874 = vxor.u32 %v4866, 2147483648
    %v4875 = vxor.u32 %v4870, 2147483648
    %v4876 = vmul.f32 %v4874, 1.442695
    %v4877 = vpow.pop %v4876
    %v4878 = vmul.f32 %v4875, 1.442695
    %v4879 = vpow.pop %v4878
    %v4880 = vadd.f32 %v4877, 1.0
    %v4881 = vadd.f32 %v4879, 1.0
    %v4882 = vrcp.pop %v4880
    %v4883 = vmul.f32 1.0, %v4882
    %v4884 = vrcp.pop %v4881
    %v4885 = vmul.f32 1.0, %v4884
    %v4886 = vxor.u32 %v4867, 2147483648
    %v4887 = vxor.u32 %v4871, 2147483648
    %v4888 = vmul.f32 %v4886, 1.442695
    %v4889 = vpow.pop %v4888
    %v4890 = vmul.f32 %v4887, 1.442695
    %v4891 = vpow.pop %v4890
    %v4892 = vadd.f32 %v4889, 1.0
    %v4893 = vadd.f32 %v4891, 1.0
    %v4894 = vrcp.pop %v4892
    %v4895 = vmul.f32 1.0, %v4894
    %v4896 = vrcp.pop %v4893
    %v4897 = vmul.f32 1.0, %v4896
    %v4898 = vtanh.pop %v4868
    %v4899 = vtanh.pop %v4872
    %v4900 = vxor.u32 %v4869, 2147483648
    %v4901 = vxor.u32 %v4873, 2147483648
    %v4902 = vmul.f32 %v4900, 1.442695
    %v4903 = vpow.pop %v4902
    %v4904 = vmul.f32 %v4901, 1.442695
    %v4905 = vpow.pop %v4904
    %v4906 = vadd.f32 %v4903, 1.0
    %v4907 = vadd.f32 %v4905, 1.0
    %v4908 = vrcp.pop %v4906
    %v4909 = vmul.f32 1.0, %v4908
    %v4910 = vrcp.pop %v4907
    %v4911 = vmul.f32 1.0, %v4910
    %v4912 = vmul.f32 %v4895, %v3837
    %v4913 = vmul.f32 %v4897, %v3838
    %v4914 = vmul.f32 %v4883, %v4898
    %v4915 = vmul.f32 %v4885, %v4899
    %v4916 = vadd.f32 %v4912, %v4914
    %v4917 = vadd.f32 %v4913, %v4915
    %v4918 = vtanh.pop %v4916
    %v4919 = vtanh.pop %v4917
    %v4920 = vmul.f32 %v4909, %v4918
    %v4921 = vmul.f32 %v4911, %v4919
    %v4922 = vld [vmem:[%s1255] sm:$0xff]
    %v4923 = vld [vmem:[%s1255 + $0x8] sm:$0xff]
    %v4924 = vld [vmem:[%s1255 + $0x10] sm:$0xff]
    %v4925 = vld [vmem:[%s1255 + $0x18] sm:$0xff]
    %v4926 = vunpack.c.l.bf16 %v4922
    %v4927 = vunpack.c.h.bf16 %v4922
    %v4928 = vunpack.c.l.bf16 %v4923
    %v4929 = vunpack.c.h.bf16 %v4923
    %v4930 = vunpack.c.l.bf16 %v4924
    %v4931 = vunpack.c.h.bf16 %v4924
    %v4932 = vunpack.c.l.bf16 %v4925
    %v4933 = vunpack.c.h.bf16 %v4925
    %v4934 = vpack.c.bf16 %v4921, %v4920
    %4935 = vmatprep.subr.bf16.mxu0 %v4716
    %4936 = vmatpush1.bf16.msra.mxu0 %v4715
    %4937 = vmatprep.subr.bf16.mxu0 %v4712
    %4938 = vmatpush1.bf16.msra.mxu0 %v4711
    %4939 = vmatprep.subr.bf16.mxu0 %v4708
    %4940 = vmatpush1.bf16.msra.mxu0 %v4707
    %4941 = vmatprep.subr.bf16.mxu0 %v4704
    %4942 = vmatpush1.bf16.msra.mxu0 %v4703
    %4943 = vmatprep.subr.bf16.mxu0 %v4700
    %4944 = vmatpush1.bf16.msra.mxu0 %v4699
    %4945 = vmatprep.subr.bf16.mxu0 %v4696
    %4946 = vmatpush1.bf16.msra.mxu0 %v4695
    %4947 = vmatprep.subr.bf16.mxu0 %v4692
    %4948 = vmatpush1.bf16.msra.mxu0 %v4691
    %4949 = vmatprep.subr.bf16.mxu0 %v4688
    %4950 = vmatpush1.bf16.msra.mxu0 %v4687
    %4951 = vmatprep.subr.bf16.mxu0 0
    %4952 = vmatpush2.bf16.msra.mxu0 0
    %4953 = vmatprep.subr.bf16.mxu0 0
    %4954 = vmatpush2.bf16.msra.mxu0 0
    %4955 = vmatprep.subr.bf16.mxu0 0
    %4956 = vmatpush2.bf16.msra.mxu0 0
    %4957 = vmatprep.subr.bf16.mxu0 0
    %4958 = vmatpush2.bf16.msra.mxu0 0
    %4959 = vmatprep.subr.bf16.mxu0 0
    %4960 = vmatpush2.bf16.msra.mxu0 0
    %4961 = vmatprep.subr.bf16.mxu0 0
    %4962 = vmatpush2.bf16.msra.mxu0 0
    %4963 = vmatprep.subr.bf16.mxu0 0
    %4964 = vmatpush2.bf16.msra.mxu0 0
    %4965 = vmatprep.subr.bf16.mxu0 0
    %4966 = vmatpush2.bf16.msra.mxu0 0
    %4967 = vmatprep.mubr.bf16.mxu0 0
    %4968 = vmatmul.mubr.bf16.gmra.mxu0 %v4934
    %v4969 = vpop.f32.mrf.mxu0
    %v4970 = vadd.f32 0.0, %v4969
    %v4971 = vpop.f32.mrf.mxu0
    %v4972 = vadd.f32 0.0, %v4971
    %v4973 = vpop.f32.mrf.mxu0
    %v4974 = vadd.f32 0.0, %v4973
    %v4975 = vpop.f32.mrf.mxu0
    %v4976 = vadd.f32 0.0, %v4975
    %4977 = vdwg.mxu0
    %4978 = vmatprep.subr.bf16.mxu0 %v4718
    %4979 = vmatpush1.bf16.msra.mxu0 %v4717
    %4980 = vmatprep.subr.bf16.mxu0 %v4714
    %4981 = vmatpush1.bf16.msra.mxu0 %v4713
    %4982 = vmatprep.subr.bf16.mxu0 %v4710
    %4983 = vmatpush1.bf16.msra.mxu0 %v4709
    %4984 = vmatprep.subr.bf16.mxu0 %v4706
    %4985 = vmatpush1.bf16.msra.mxu0 %v4705
    %4986 = vmatprep.subr.bf16.mxu0 %v4702
    %4987 = vmatpush1.bf16.msra.mxu0 %v4701
    %4988 = vmatprep.subr.bf16.mxu0 %v4698
    %4989 = vmatpush1.bf16.msra.mxu0 %v4697
    %4990 = vmatprep.subr.bf16.mxu0 %v4694
    %4991 = vmatpush1.bf16.msra.mxu0 %v4693
    %4992 = vmatprep.subr.bf16.mxu0 %v4690
    %4993 = vmatpush1.bf16.msra.mxu0 %v4689
    %4994 = vmatprep.subr.bf16.mxu0 0
    %4995 = vmatpush2.bf16.msra.mxu0 0
    %4996 = vmatprep.subr.bf16.mxu0 0
    %4997 = vmatpush2.bf16.msra.mxu0 0
    %4998 = vmatprep.subr.bf16.mxu0 0
    %4999 = vmatpush2.bf16.msra.mxu0 0
    %5000 = vmatprep.subr.bf16.mxu0 0
    %5001 = vmatpush2.bf16.msra.mxu0 0
    %5002 = vmatprep.subr.bf16.mxu0 0
    %5003 = vmatpush2.bf16.msra.mxu0 0
    %5004 = vmatprep.subr.bf16.mxu0 0
    %5005 = vmatpush2.bf16.msra.mxu0 0
    %5006 = vmatprep.subr.bf16.mxu0 0
    %5007 = vmatpush2.bf16.msra.mxu0 0
    %5008 = vmatprep.subr.bf16.mxu0 0
    %5009 = vmatpush2.bf16.msra.mxu0 0
    %5010 = vmatprep.mubr.bf16.mxu0 0
    %5011 = vmatmul.mubr.bf16.gmra.mxu0 %v4934
    %v5012 = vpop.f32.mrf.mxu0
    %v5013 = vadd.f32 0.0, %v5012
    %v5014 = vpop.f32.mrf.mxu0
    %v5015 = vadd.f32 0.0, %v5014
    %v5016 = vpop.f32.mrf.mxu0
    %v5017 = vadd.f32 0.0, %v5016
    %v5018 = vpop.f32.mrf.mxu0
    %v5019 = vadd.f32 0.0, %v5018
    %5020 = vdwg.mxu0
    %v5021 = vadd.f32 %v4926, %v4970
    %v5022 = vadd.f32 %v4927, %v4972
    %v5023 = vadd.f32 %v4928, %v5013
    %v5024 = vadd.f32 %v4929, %v5015
    %v5025 = vadd.f32 %v4930, %v4974
    %v5026 = vadd.f32 %v4931, %v4976
    %v5027 = vadd.f32 %v4932, %v5017
    %v5028 = vadd.f32 %v4933, %v5019
    %v5029 = vadd.f32 %v5021, %v4849
    %v5030 = vadd.f32 %v5022, %v4853
    %v5031 = vadd.f32 %v5023, %v4857
    %v5032 = vadd.f32 %v5024, %v4861
    %v5033 = vadd.f32 %v5025, %v4849
    %v5034 = vadd.f32 %v5026, %v4853
    %v5035 = vadd.f32 %v5027, %v4857
    %v5036 = vadd.f32 %v5028, %v4861
    %v5037 = vxor.u32 %v5029, 2147483648
    %v5038 = vxor.u32 %v5033, 2147483648
    %v5039 = vmul.f32 %v5037, 1.442695
    %v5040 = vpow.pop %v5039
    %v5041 = vmul.f32 %v5038, 1.442695
    %v5042 = vpow.pop %v5041
    %v5043 = vadd.f32 %v5040, 1.0
    %v5044 = vadd.f32 %v5042, 1.0
    %v5045 = vrcp.pop %v5043
    %v5046 = vmul.f32 1.0, %v5045
    %v5047 = vrcp.pop %v5044
    %v5048 = vmul.f32 1.0, %v5047
    %v5049 = vxor.u32 %v5030, 2147483648
    %v5050 = vxor.u32 %v5034, 2147483648
    %v5051 = vmul.f32 %v5049, 1.442695
    %v5052 = vpow.pop %v5051
    %v5053 = vmul.f32 %v5050, 1.442695
    %v5054 = vpow.pop %v5053
    %v5055 = vadd.f32 %v5052, 1.0
    %v5056 = vadd.f32 %v5054, 1.0
    %v5057 = vrcp.pop %v5055
    %v5058 = vmul.f32 1.0, %v5057
    %v5059 = vrcp.pop %v5056
    %v5060 = vmul.f32 1.0, %v5059
    %v5061 = vtanh.pop %v5031
    %v5062 = vtanh.pop %v5035
    %v5063 = vxor.u32 %v5032, 2147483648
    %v5064 = vxor.u32 %v5036, 2147483648
    %v5065 = vmul.f32 %v5063, 1.442695
    %v5066 = vpow.pop %v5065
    %v5067 = vmul.f32 %v5064, 1.442695
    %v5068 = vpow.pop %v5067
    %v5069 = vadd.f32 %v5066, 1.0
    %v5070 = vadd.f32 %v5068, 1.0
    %v5071 = vrcp.pop %v5069
    %v5072 = vmul.f32 1.0, %v5071
    %v5073 = vrcp.pop %v5070
    %v5074 = vmul.f32 1.0, %v5073
    %v5075 = vmul.f32 %v5058, %v4916
    %v5076 = vmul.f32 %v5060, %v4917
    %v5077 = vmul.f32 %v5046, %v5061
    %v5078 = vmul.f32 %v5048, %v5062
    %v5079 = vadd.f32 %v5075, %v5077
    %v5080 = vadd.f32 %v5076, %v5078
    %v5081 = vtanh.pop %v5079
    %v5082 = vtanh.pop %v5080
    %v5083 = vmul.f32 %v5072, %v5081
    %v5084 = vmul.f32 %v5074, %v5082
    %v5085 = vld [vmem:[%s1623] sm:$0xff]
    %v5086 = vld [vmem:[%s1623 + $0x8] sm:$0xff]
    %v5087 = vld [vmem:[%s1623 + $0x10] sm:$0xff]
    %v5088 = vld [vmem:[%s1623 + $0x18] sm:$0xff]
    %v5089 = vunpack.c.l.bf16 %v5085
    %v5090 = vunpack.c.h.bf16 %v5085
    %v5091 = vunpack.c.l.bf16 %v5086
    %v5092 = vunpack.c.h.bf16 %v5086
    %v5093 = vunpack.c.l.bf16 %v5087
    %v5094 = vunpack.c.h.bf16 %v5087
    %v5095 = vunpack.c.l.bf16 %v5088
    %v5096 = vunpack.c.h.bf16 %v5088
    %v5097 = vpack.c.bf16 %v5084, %v5083
    %5098 = vmatprep.subr.bf16.mxu0 %v4716
    %5099 = vmatpush1.bf16.msra.mxu0 %v4715
    %5100 = vmatprep.subr.bf16.mxu0 %v4712
    %5101 = vmatpush1.bf16.msra.mxu0 %v4711
    %5102 = vmatprep.subr.bf16.mxu0 %v4708
    %5103 = vmatpush1.bf16.msra.mxu0 %v4707
    %5104 = vmatprep.subr.bf16.mxu0 %v4704
    %5105 = vmatpush1.bf16.msra.mxu0 %v4703
    %5106 = vmatprep.subr.bf16.mxu0 %v4700
    %5107 = vmatpush1.bf16.msra.mxu0 %v4699
    %5108 = vmatprep.subr.bf16.mxu0 %v4696
    %5109 = vmatpush1.bf16.msra.mxu0 %v4695
    %5110 = vmatprep.subr.bf16.mxu0 %v4692
    %5111 = vmatpush1.bf16.msra.mxu0 %v4691
    %5112 = vmatprep.subr.bf16.mxu0 %v4688
    %5113 = vmatpush1.bf16.msra.mxu0 %v4687
    %5114 = vmatprep.subr.bf16.mxu0 0
    %5115 = vmatpush2.bf16.msra.mxu0 0
    %5116 = vmatprep.subr.bf16.mxu0 0
    %5117 = vmatpush2.bf16.msra.mxu0 0
    %5118 = vmatprep.subr.bf16.mxu0 0
    %5119 = vmatpush2.bf16.msra.mxu0 0
    %5120 = vmatprep.subr.bf16.mxu0 0
    %5121 = vmatpush2.bf16.msra.mxu0 0
    %5122 = vmatprep.subr.bf16.mxu0 0
    %5123 = vmatpush2.bf16.msra.mxu0 0
    %5124 = vmatprep.subr.bf16.mxu0 0
    %5125 = vmatpush2.bf16.msra.mxu0 0
    %5126 = vmatprep.subr.bf16.mxu0 0
    %5127 = vmatpush2.bf16.msra.mxu0 0
    %5128 = vmatprep.subr.bf16.mxu0 0
    %5129 = vmatpush2.bf16.msra.mxu0 0
    %5130 = vmatprep.mubr.bf16.mxu0 0
    %5131 = vmatmul.mubr.bf16.gmra.mxu0 %v5097
    %v5132 = vpop.f32.mrf.mxu0
    %v5133 = vadd.f32 0.0, %v5132
    %v5134 = vpop.f32.mrf.mxu0
    %v5135 = vadd.f32 0.0, %v5134
    %v5136 = vpop.f32.mrf.mxu0
    %v5137 = vadd.f32 0.0, %v5136
    %v5138 = vpop.f32.mrf.mxu0
    %v5139 = vadd.f32 0.0, %v5138
    %5140 = vdwg.mxu0
    %5141 = vmatprep.subr.bf16.mxu0 %v4718
    %5142 = vmatpush1.bf16.msra.mxu0 %v4717
    %5143 = vmatprep.subr.bf16.mxu0 %v4714
    %5144 = vmatpush1.bf16.msra.mxu0 %v4713
    %5145 = vmatprep.subr.bf16.mxu0 %v4710
    %5146 = vmatpush1.bf16.msra.mxu0 %v4709
    %5147 = vmatprep.subr.bf16.mxu0 %v4706
    %5148 = vmatpush1.bf16.msra.mxu0 %v4705
    %5149 = vmatprep.subr.bf16.mxu0 %v4702
    %5150 = vmatpush1.bf16.msra.mxu0 %v4701
    %5151 = vmatprep.subr.bf16.mxu0 %v4698
    %5152 = vmatpush1.bf16.msra.mxu0 %v4697
    %5153 = vmatprep.subr.bf16.mxu0 %v4694
    %5154 = vmatpush1.bf16.msra.mxu0 %v4693
    %5155 = vmatprep.subr.bf16.mxu0 %v4690
    %5156 = vmatpush1.bf16.msra.mxu0 %v4689
    %5157 = vmatprep.subr.bf16.mxu0 0
    %5158 = vmatpush2.bf16.msra.mxu0 0
    %5159 = vmatprep.subr.bf16.mxu0 0
    %5160 = vmatpush2.bf16.msra.mxu0 0
    %5161 = vmatprep.subr.bf16.mxu0 0
    %5162 = vmatpush2.bf16.msra.mxu0 0
    %5163 = vmatprep.subr.bf16.mxu0 0
    %5164 = vmatpush2.bf16.msra.mxu0 0
    %5165 = vmatprep.subr.bf16.mxu0 0
    %5166 = vmatpush2.bf16.msra.mxu0 0
    %5167 = vmatprep.subr.bf16.mxu0 0
    %5168 = vmatpush2.bf16.msra.mxu0 0
    %5169 = vmatprep.subr.bf16.mxu0 0
    %5170 = vmatpush2.bf16.msra.mxu0 0
    %5171 = vmatprep.subr.bf16.mxu0 0
    %5172 = vmatpush2.bf16.msra.mxu0 0
    %5173 = vmatprep.mubr.bf16.mxu0 0
    %5174 = vmatmul.mubr.bf16.gmra.mxu0 %v5097
    %v5175 = vpop.f32.mrf.mxu0
    %v5176 = vadd.f32 0.0, %v5175
    %v5177 = vpop.f32.mrf.mxu0
    %v5178 = vadd.f32 0.0, %v5177
    %v5179 = vpop.f32.mrf.mxu0
    %v5180 = vadd.f32 0.0, %v5179
    %v5181 = vpop.f32.mrf.mxu0
    %v5182 = vadd.f32 0.0, %v5181
    %5183 = vdwg.mxu0
    %v5184 = vadd.f32 %v5089, %v5133
    %v5185 = vadd.f32 %v5090, %v5135
    %v5186 = vadd.f32 %v5091, %v5176
    %v5187 = vadd.f32 %v5092, %v5178
    %v5188 = vadd.f32 %v5093, %v5137
    %v5189 = vadd.f32 %v5094, %v5139
    %v5190 = vadd.f32 %v5095, %v5180
    %v5191 = vadd.f32 %v5096, %v5182
    %v5192 = vadd.f32 %v5184, %v4849
    %v5193 = vadd.f32 %v5185, %v4853
    %v5194 = vadd.f32 %v5186, %v4857
    %v5195 = vadd.f32 %v5187, %v4861
    %v5196 = vadd.f32 %v5188, %v4849
    %v5197 = vadd.f32 %v5189, %v4853
    %v5198 = vadd.f32 %v5190, %v4857
    %v5199 = vadd.f32 %v5191, %v4861
    %v5200 = vxor.u32 %v5192, 2147483648
    %v5201 = vxor.u32 %v5196, 2147483648
    %v5202 = vmul.f32 %v5200, 1.442695
    %v5203 = vpow.pop %v5202
    %v5204 = vmul.f32 %v5201, 1.442695
    %v5205 = vpow.pop %v5204
    %v5206 = vadd.f32 %v5203, 1.0
    %v5207 = vadd.f32 %v5205, 1.0
    %v5208 = vrcp.pop %v5206
    %v5209 = vmul.f32 1.0, %v5208
    %v5210 = vrcp.pop %v5207
    %v5211 = vmul.f32 1.0, %v5210
    %v5212 = vxor.u32 %v5193, 2147483648
    %v5213 = vxor.u32 %v5197, 2147483648
    %v5214 = vmul.f32 %v5212, 1.442695
    %v5215 = vpow.pop %v5214
    %v5216 = vmul.f32 %v5213, 1.442695
    %v5217 = vpow.pop %v5216
    %v5218 = vadd.f32 %v5215, 1.0
    %v5219 = vadd.f32 %v5217, 1.0
    %v5220 = vrcp.pop %v5218
    %v5221 = vmul.f32 1.0, %v5220
    %v5222 = vrcp.pop %v5219
    %v5223 = vmul.f32 1.0, %v5222
    %v5224 = vtanh.pop %v5194
    %v5225 = vtanh.pop %v5198
    %v5226 = vxor.u32 %v5195, 2147483648
    %v5227 = vxor.u32 %v5199, 2147483648
    %v5228 = vmul.f32 %v5226, 1.442695
    %v5229 = vpow.pop %v5228
    %v5230 = vmul.f32 %v5227, 1.442695
    %v5231 = vpow.pop %v5230
    %v5232 = vadd.f32 %v5229, 1.0
    %v5233 = vadd.f32 %v5231, 1.0
    %v5234 = vrcp.pop %v5232
    %v5235 = vmul.f32 1.0, %v5234
    %v5236 = vrcp.pop %v5233
    %v5237 = vmul.f32 1.0, %v5236
    %v5238 = vmul.f32 %v5221, %v5079
    %v5239 = vmul.f32 %v5223, %v5080
    %v5240 = vmul.f32 %v5209, %v5224
    %v5241 = vmul.f32 %v5211, %v5225
    %v5242 = vadd.f32 %v5238, %v5240
    %v5243 = vadd.f32 %v5239, %v5241
    %v5244 = vtanh.pop %v5242
    %v5245 = vtanh.pop %v5243
    %v5246 = vmul.f32 %v5235, %v5244
    %v5247 = vmul.f32 %v5237, %v5245
    %v5248 = vld [vmem:[%s1991] sm:$0xff]
    %v5249 = vld [vmem:[%s1991 + $0x8] sm:$0xff]
    %v5250 = vld [vmem:[%s1991 + $0x10] sm:$0xff]
    %v5251 = vld [vmem:[%s1991 + $0x18] sm:$0xff]
    %v5252 = vunpack.c.l.bf16 %v5248
    %v5253 = vunpack.c.h.bf16 %v5248
    %v5254 = vunpack.c.l.bf16 %v5249
    %v5255 = vunpack.c.h.bf16 %v5249
    %v5256 = vunpack.c.l.bf16 %v5250
    %v5257 = vunpack.c.h.bf16 %v5250
    %v5258 = vunpack.c.l.bf16 %v5251
    %v5259 = vunpack.c.h.bf16 %v5251
    %v5260 = vpack.c.bf16 %v5247, %v5246
    %5261 = vmatprep.subr.bf16.mxu0 %v4716
    %5262 = vmatpush1.bf16.msra.mxu0 %v4715
    %5263 = vmatprep.subr.bf16.mxu0 %v4712
    %5264 = vmatpush1.bf16.msra.mxu0 %v4711
    %5265 = vmatprep.subr.bf16.mxu0 %v4708
    %5266 = vmatpush1.bf16.msra.mxu0 %v4707
    %5267 = vmatprep.subr.bf16.mxu0 %v4704
    %5268 = vmatpush1.bf16.msra.mxu0 %v4703
    %5269 = vmatprep.subr.bf16.mxu0 %v4700
    %5270 = vmatpush1.bf16.msra.mxu0 %v4699
    %5271 = vmatprep.subr.bf16.mxu0 %v4696
    %5272 = vmatpush1.bf16.msra.mxu0 %v4695
    %5273 = vmatprep.subr.bf16.mxu0 %v4692
    %5274 = vmatpush1.bf16.msra.mxu0 %v4691
    %5275 = vmatprep.subr.bf16.mxu0 %v4688
    %5276 = vmatpush1.bf16.msra.mxu0 %v4687
    %5277 = vmatprep.subr.bf16.mxu0 0
    %5278 = vmatpush2.bf16.msra.mxu0 0
    %5279 = vmatprep.subr.bf16.mxu0 0
    %5280 = vmatpush2.bf16.msra.mxu0 0
    %5281 = vmatprep.subr.bf16.mxu0 0
    %5282 = vmatpush2.bf16.msra.mxu0 0
    %5283 = vmatprep.subr.bf16.mxu0 0
    %5284 = vmatpush2.bf16.msra.mxu0 0
    %5285 = vmatprep.subr.bf16.mxu0 0
    %5286 = vmatpush2.bf16.msra.mxu0 0
    %5287 = vmatprep.subr.bf16.mxu0 0
    %5288 = vmatpush2.bf16.msra.mxu0 0
    %5289 = vmatprep.subr.bf16.mxu0 0
    %5290 = vmatpush2.bf16.msra.mxu0 0
    %5291 = vmatprep.subr.bf16.mxu0 0
    %5292 = vmatpush2.bf16.msra.mxu0 0
    %5293 = vmatprep.mubr.bf16.mxu0 0
    %5294 = vmatmul.mubr.bf16.gmra.mxu0 %v5260
    %v5295 = vpop.f32.mrf.mxu0
    %v5296 = vadd.f32 0.0, %v5295
    %v5297 = vpop.f32.mrf.mxu0
    %v5298 = vadd.f32 0.0, %v5297
    %v5299 = vpop.f32.mrf.mxu0
    %v5300 = vadd.f32 0.0, %v5299
    %v5301 = vpop.f32.mrf.mxu0
    %v5302 = vadd.f32 0.0, %v5301
    %5303 = vdwg.mxu0
    %5304 = vmatprep.subr.bf16.mxu0 %v4718
    %5305 = vmatpush1.bf16.msra.mxu0 %v4717
    %5306 = vmatprep.subr.bf16.mxu0 %v4714
    %5307 = vmatpush1.bf16.msra.mxu0 %v4713
    %5308 = vmatprep.subr.bf16.mxu0 %v4710
    %5309 = vmatpush1.bf16.msra.mxu0 %v4709
    %5310 = vmatprep.subr.bf16.mxu0 %v4706
    %5311 = vmatpush1.bf16.msra.mxu0 %v4705
    %5312 = vmatprep.subr.bf16.mxu0 %v4702
    %5313 = vmatpush1.bf16.msra.mxu0 %v4701
    %5314 = vmatprep.subr.bf16.mxu0 %v4698
    %5315 = vmatpush1.bf16.msra.mxu0 %v4697
    %5316 = vmatprep.subr.bf16.mxu0 %v4694
    %5317 = vmatpush1.bf16.msra.mxu0 %v4693
    %5318 = vmatprep.subr.bf16.mxu0 %v4690
    %5319 = vmatpush1.bf16.msra.mxu0 %v4689
    %5320 = vmatprep.subr.bf16.mxu0 0
    %5321 = vmatpush2.bf16.msra.mxu0 0
    %5322 = vmatprep.subr.bf16.mxu0 0
    %5323 = vmatpush2.bf16.msra.mxu0 0
    %5324 = vmatprep.subr.bf16.mxu0 0
    %5325 = vmatpush2.bf16.msra.mxu0 0
    %5326 = vmatprep.subr.bf16.mxu0 0
    %5327 = vmatpush2.bf16.msra.mxu0 0
    %5328 = vmatprep.subr.bf16.mxu0 0
    %5329 = vmatpush2.bf16.msra.mxu0 0
    %5330 = vmatprep.subr.bf16.mxu0 0
    %5331 = vmatpush2.bf16.msra.mxu0 0
    %5332 = vmatprep.subr.bf16.mxu0 0
    %5333 = vmatpush2.bf16.msra.mxu0 0
    %5334 = vmatprep.subr.bf16.mxu0 0
    %5335 = vmatpush2.bf16.msra.mxu0 0
    %5336 = vmatprep.mubr.bf16.mxu0 0
    %5337 = vmatmul.mubr.bf16.gmra.mxu0 %v5260
    %v5338 = vpop.f32.mrf.mxu0
    %v5339 = vadd.f32 0.0, %v5338
    %v5340 = vpop.f32.mrf.mxu0
    %v5341 = vadd.f32 0.0, %v5340
    %v5342 = vpop.f32.mrf.mxu0
    %v5343 = vadd.f32 0.0, %v5342
    %v5344 = vpop.f32.mrf.mxu0
    %v5345 = vadd.f32 0.0, %v5344
    %5346 = vdwg.mxu0
    %v5347 = vadd.f32 %v5252, %v5296
    %v5348 = vadd.f32 %v5253, %v5298
    %v5349 = vadd.f32 %v5254, %v5339
    %v5350 = vadd.f32 %v5255, %v5341
    %v5351 = vadd.f32 %v5256, %v5300
    %v5352 = vadd.f32 %v5257, %v5302
    %v5353 = vadd.f32 %v5258, %v5343
    %v5354 = vadd.f32 %v5259, %v5345
    %v5355 = vadd.f32 %v5347, %v4849
    %v5356 = vadd.f32 %v5348, %v4853
    %v5357 = vadd.f32 %v5349, %v4857
    %v5358 = vadd.f32 %v5350, %v4861
    %v5359 = vadd.f32 %v5351, %v4849
    %v5360 = vadd.f32 %v5352, %v4853
    %v5361 = vadd.f32 %v5353, %v4857
    %v5362 = vadd.f32 %v5354, %v4861
    %v5363 = vxor.u32 %v5355, 2147483648
    %v5364 = vxor.u32 %v5359, 2147483648
    %v5365 = vmul.f32 %v5363, 1.442695
    %v5366 = vpow.pop %v5365
    %v5367 = vmul.f32 %v5364, 1.442695
    %v5368 = vpow.pop %v5367
    %v5369 = vadd.f32 %v5366, 1.0
    %v5370 = vadd.f32 %v5368, 1.0
    %v5371 = vrcp.pop %v5369
    %v5372 = vmul.f32 1.0, %v5371
    %v5373 = vrcp.pop %v5370
    %v5374 = vmul.f32 1.0, %v5373
    %v5375 = vxor.u32 %v5356, 2147483648
    %v5376 = vxor.u32 %v5360, 2147483648
    %v5377 = vmul.f32 %v5375, 1.442695
    %v5378 = vpow.pop %v5377
    %v5379 = vmul.f32 %v5376, 1.442695
    %v5380 = vpow.pop %v5379
    %v5381 = vadd.f32 %v5378, 1.0
    %v5382 = vadd.f32 %v5380, 1.0
    %v5383 = vrcp.pop %v5381
    %v5384 = vmul.f32 1.0, %v5383
    %v5385 = vrcp.pop %v5382
    %v5386 = vmul.f32 1.0, %v5385
    %v5387 = vtanh.pop %v5357
    %v5388 = vtanh.pop %v5361
    %v5389 = vxor.u32 %v5358, 2147483648
    %v5390 = vxor.u32 %v5362, 2147483648
    %v5391 = vmul.f32 %v5389, 1.442695
    %v5392 = vpow.pop %v5391
    %v5393 = vmul.f32 %v5390, 1.442695
    %v5394 = vpow.pop %v5393
    %v5395 = vadd.f32 %v5392, 1.0
    %v5396 = vadd.f32 %v5394, 1.0
    %v5397 = vrcp.pop %v5395
    %v5398 = vmul.f32 1.0, %v5397
    %v5399 = vrcp.pop %v5396
    %v5400 = vmul.f32 1.0, %v5399
    %v5401 = vmul.f32 %v5384, %v5242
    %v5402 = vmul.f32 %v5386, %v5243
    %v5403 = vmul.f32 %v5372, %v5387
    %v5404 = vmul.f32 %v5374, %v5388
    %v5405 = vadd.f32 %v5401, %v5403
    %v5406 = vadd.f32 %v5402, %v5404
    %v5407 = vtanh.pop %v5405
    %v5408 = vtanh.pop %v5406
    %v5409 = vmul.f32 %v5398, %v5407
    %v5410 = vmul.f32 %v5400, %v5408
    %v5411 = vld [vmem:[%s2359] sm:$0xff]
    %v5412 = vld [vmem:[%s2359 + $0x8] sm:$0xff]
    %v5413 = vld [vmem:[%s2359 + $0x10] sm:$0xff]
    %v5414 = vld [vmem:[%s2359 + $0x18] sm:$0xff]
    %v5415 = vunpack.c.l.bf16 %v5411
    %v5416 = vunpack.c.h.bf16 %v5411
    %v5417 = vunpack.c.l.bf16 %v5412
    %v5418 = vunpack.c.h.bf16 %v5412
    %v5419 = vunpack.c.l.bf16 %v5413
    %v5420 = vunpack.c.h.bf16 %v5413
    %v5421 = vunpack.c.l.bf16 %v5414
    %v5422 = vunpack.c.h.bf16 %v5414
    %v5423 = vpack.c.bf16 %v5410, %v5409
    %5424 = vmatprep.subr.bf16.mxu0 %v4716
    %5425 = vmatpush1.bf16.msra.mxu0 %v4715
    %5426 = vmatprep.subr.bf16.mxu0 %v4712
    %5427 = vmatpush1.bf16.msra.mxu0 %v4711
    %5428 = vmatprep.subr.bf16.mxu0 %v4708
    %5429 = vmatpush1.bf16.msra.mxu0 %v4707
    %5430 = vmatprep.subr.bf16.mxu0 %v4704
    %5431 = vmatpush1.bf16.msra.mxu0 %v4703
    %5432 = vmatprep.subr.bf16.mxu0 %v4700
    %5433 = vmatpush1.bf16.msra.mxu0 %v4699
    %5434 = vmatprep.subr.bf16.mxu0 %v4696
    %5435 = vmatpush1.bf16.msra.mxu0 %v4695
    %5436 = vmatprep.subr.bf16.mxu0 %v4692
    %5437 = vmatpush1.bf16.msra.mxu0 %v4691
    %5438 = vmatprep.subr.bf16.mxu0 %v4688
    %5439 = vmatpush1.bf16.msra.mxu0 %v4687
    %5440 = vmatprep.subr.bf16.mxu0 0
    %5441 = vmatpush2.bf16.msra.mxu0 0
    %5442 = vmatprep.subr.bf16.mxu0 0
    %5443 = vmatpush2.bf16.msra.mxu0 0
    %5444 = vmatprep.subr.bf16.mxu0 0
    %5445 = vmatpush2.bf16.msra.mxu0 0
    %5446 = vmatprep.subr.bf16.mxu0 0
    %5447 = vmatpush2.bf16.msra.mxu0 0
    %5448 = vmatprep.subr.bf16.mxu0 0
    %5449 = vmatpush2.bf16.msra.mxu0 0
    %5450 = vmatprep.subr.bf16.mxu0 0
    %5451 = vmatpush2.bf16.msra.mxu0 0
    %5452 = vmatprep.subr.bf16.mxu0 0
    %5453 = vmatpush2.bf16.msra.mxu0 0
    %5454 = vmatprep.subr.bf16.mxu0 0
    %5455 = vmatpush2.bf16.msra.mxu0 0
    %5456 = vmatprep.mubr.bf16.mxu0 0
    %5457 = vmatmul.mubr.bf16.gmra.mxu0 %v5423
    %v5458 = vpop.f32.mrf.mxu0
    %v5459 = vadd.f32 0.0, %v5458
    %v5460 = vpop.f32.mrf.mxu0
    %v5461 = vadd.f32 0.0, %v5460
    %v5462 = vpop.f32.mrf.mxu0
    %v5463 = vadd.f32 0.0, %v5462
    %v5464 = vpop.f32.mrf.mxu0
    %v5465 = vadd.f32 0.0, %v5464
    %5466 = vdwg.mxu0
    %5467 = vmatprep.subr.bf16.mxu0 %v4718
    %5468 = vmatpush1.bf16.msra.mxu0 %v4717
    %5469 = vmatprep.subr.bf16.mxu0 %v4714
    %5470 = vmatpush1.bf16.msra.mxu0 %v4713
    %5471 = vmatprep.subr.bf16.mxu0 %v4710
    %5472 = vmatpush1.bf16.msra.mxu0 %v4709
    %5473 = vmatprep.subr.bf16.mxu0 %v4706
    %5474 = vmatpush1.bf16.msra.mxu0 %v4705
    %5475 = vmatprep.subr.bf16.mxu0 %v4702
    %5476 = vmatpush1.bf16.msra.mxu0 %v4701
    %5477 = vmatprep.subr.bf16.mxu0 %v4698
    %5478 = vmatpush1.bf16.msra.mxu0 %v4697
    %5479 = vmatprep.subr.bf16.mxu0 %v4694
    %5480 = vmatpush1.bf16.msra.mxu0 %v4693
    %5481 = vmatprep.subr.bf16.mxu0 %v4690
    %5482 = vmatpush1.bf16.msra.mxu0 %v4689
    %5483 = vmatprep.subr.bf16.mxu0 0
    %5484 = vmatpush2.bf16.msra.mxu0 0
    %5485 = vmatprep.subr.bf16.mxu0 0
    %5486 = vmatpush2.bf16.msra.mxu0 0
    %5487 = vmatprep.subr.bf16.mxu0 0
    %5488 = vmatpush2.bf16.msra.mxu0 0
    %5489 = vmatprep.subr.bf16.mxu0 0
    %5490 = vmatpush2.bf16.msra.mxu0 0
    %5491 = vmatprep.subr.bf16.mxu0 0
    %5492 = vmatpush2.bf16.msra.mxu0 0
    %5493 = vmatprep.subr.bf16.mxu0 0
    %5494 = vmatpush2.bf16.msra.mxu0 0
    %5495 = vmatprep.subr.bf16.mxu0 0
    %5496 = vmatpush2.bf16.msra.mxu0 0
    %5497 = vmatprep.subr.bf16.mxu0 0
    %5498 = vmatpush2.bf16.msra.mxu0 0
    %5499 = vmatprep.mubr.bf16.mxu0 0
    %5500 = vmatmul.mubr.bf16.gmra.mxu0 %v5423
    %v5501 = vpop.f32.mrf.mxu0
    %v5502 = vadd.f32 0.0, %v5501
    %v5503 = vpop.f32.mrf.mxu0
    %v5504 = vadd.f32 0.0, %v5503
    %v5505 = vpop.f32.mrf.mxu0
    %v5506 = vadd.f32 0.0, %v5505
    %v5507 = vpop.f32.mrf.mxu0
    %v5508 = vadd.f32 0.0, %v5507
    %5509 = vdwg.mxu0
    %v5510 = vadd.f32 %v5415, %v5459
    %v5511 = vadd.f32 %v5416, %v5461
    %v5512 = vadd.f32 %v5417, %v5502
    %v5513 = vadd.f32 %v5418, %v5504
    %v5514 = vadd.f32 %v5419, %v5463
    %v5515 = vadd.f32 %v5420, %v5465
    %v5516 = vadd.f32 %v5421, %v5506
    %v5517 = vadd.f32 %v5422, %v5508
    %v5518 = vadd.f32 %v5510, %v4849
    %v5519 = vadd.f32 %v5511, %v4853
    %v5520 = vadd.f32 %v5512, %v4857
    %v5521 = vadd.f32 %v5513, %v4861
    %v5522 = vadd.f32 %v5514, %v4849
    %v5523 = vadd.f32 %v5515, %v4853
    %v5524 = vadd.f32 %v5516, %v4857
    %v5525 = vadd.f32 %v5517, %v4861
    %v5526 = vxor.u32 %v5518, 2147483648
    %v5527 = vxor.u32 %v5522, 2147483648
    %v5528 = vmul.f32 %v5526, 1.442695
    %v5529 = vpow.pop %v5528
    %v5530 = vmul.f32 %v5527, 1.442695
    %v5531 = vpow.pop %v5530
    %v5532 = vadd.f32 %v5529, 1.0
    %v5533 = vadd.f32 %v5531, 1.0
    %v5534 = vrcp.pop %v5532
    %v5535 = vmul.f32 1.0, %v5534
    %v5536 = vrcp.pop %v5533
    %v5537 = vmul.f32 1.0, %v5536
    %v5538 = vxor.u32 %v5519, 2147483648
    %v5539 = vxor.u32 %v5523, 2147483648
    %v5540 = vmul.f32 %v5538, 1.442695
    %v5541 = vpow.pop %v5540
    %v5542 = vmul.f32 %v5539, 1.442695
    %v5543 = vpow.pop %v5542
    %v5544 = vadd.f32 %v5541, 1.0
    %v5545 = vadd.f32 %v5543, 1.0
    %v5546 = vrcp.pop %v5544
    %v5547 = vmul.f32 1.0, %v5546
    %v5548 = vrcp.pop %v5545
    %v5549 = vmul.f32 1.0, %v5548
    %v5550 = vtanh.pop %v5520
    %v5551 = vtanh.pop %v5524
    %v5552 = vxor.u32 %v5521, 2147483648
    %v5553 = vxor.u32 %v5525, 2147483648
    %v5554 = vmul.f32 %v5552, 1.442695
    %v5555 = vpow.pop %v5554
    %v5556 = vmul.f32 %v5553, 1.442695
    %v5557 = vpow.pop %v5556
    %v5558 = vadd.f32 %v5555, 1.0
    %v5559 = vadd.f32 %v5557, 1.0
    %v5560 = vrcp.pop %v5558
    %v5561 = vmul.f32 1.0, %v5560
    %v5562 = vrcp.pop %v5559
    %v5563 = vmul.f32 1.0, %v5562
    %v5564 = vmul.f32 %v5547, %v5405
    %v5565 = vmul.f32 %v5549, %v5406
    %v5566 = vmul.f32 %v5535, %v5550
    %v5567 = vmul.f32 %v5537, %v5551
    %v5568 = vadd.f32 %v5564, %v5566
    %v5569 = vadd.f32 %v5565, %v5567
    %v5570 = vtanh.pop %v5568
    %v5571 = vtanh.pop %v5569
    %v5572 = vmul.f32 %v5561, %v5570
    %v5573 = vmul.f32 %v5563, %v5571
    %v5574 = vld [vmem:[%s2727] sm:$0xff]
    %v5575 = vld [vmem:[%s2727 + $0x8] sm:$0xff]
    %v5576 = vld [vmem:[%s2727 + $0x10] sm:$0xff]
    %v5577 = vld [vmem:[%s2727 + $0x18] sm:$0xff]
    %v5578 = vunpack.c.l.bf16 %v5574
    %v5579 = vunpack.c.h.bf16 %v5574
    %v5580 = vunpack.c.l.bf16 %v5575
    %v5581 = vunpack.c.h.bf16 %v5575
    %v5582 = vunpack.c.l.bf16 %v5576
    %v5583 = vunpack.c.h.bf16 %v5576
    %v5584 = vunpack.c.l.bf16 %v5577
    %v5585 = vunpack.c.h.bf16 %v5577
    %v5586 = vpack.c.bf16 %v5573, %v5572
    %5587 = vmatprep.subr.bf16.mxu0 %v4716
    %5588 = vmatpush1.bf16.msra.mxu0 %v4715
    %5589 = vmatprep.subr.bf16.mxu0 %v4712
    %5590 = vmatpush1.bf16.msra.mxu0 %v4711
    %5591 = vmatprep.subr.bf16.mxu0 %v4708
    %5592 = vmatpush1.bf16.msra.mxu0 %v4707
    %5593 = vmatprep.subr.bf16.mxu0 %v4704
    %5594 = vmatpush1.bf16.msra.mxu0 %v4703
    %5595 = vmatprep.subr.bf16.mxu0 %v4700
    %5596 = vmatpush1.bf16.msra.mxu0 %v4699
    %5597 = vmatprep.subr.bf16.mxu0 %v4696
    %5598 = vmatpush1.bf16.msra.mxu0 %v4695
    %5599 = vmatprep.subr.bf16.mxu0 %v4692
    %5600 = vmatpush1.bf16.msra.mxu0 %v4691
    %5601 = vmatprep.subr.bf16.mxu0 %v4688
    %5602 = vmatpush1.bf16.msra.mxu0 %v4687
    %5603 = vmatprep.subr.bf16.mxu0 0
    %5604 = vmatpush2.bf16.msra.mxu0 0
    %5605 = vmatprep.subr.bf16.mxu0 0
    %5606 = vmatpush2.bf16.msra.mxu0 0
    %5607 = vmatprep.subr.bf16.mxu0 0
    %5608 = vmatpush2.bf16.msra.mxu0 0
    %5609 = vmatprep.subr.bf16.mxu0 0
    %5610 = vmatpush2.bf16.msra.mxu0 0
    %5611 = vmatprep.subr.bf16.mxu0 0
    %5612 = vmatpush2.bf16.msra.mxu0 0
    %5613 = vmatprep.subr.bf16.mxu0 0
    %5614 = vmatpush2.bf16.msra.mxu0 0
    %5615 = vmatprep.subr.bf16.mxu0 0
    %5616 = vmatpush2.bf16.msra.mxu0 0
    %5617 = vmatprep.subr.bf16.mxu0 0
    %5618 = vmatpush2.bf16.msra.mxu0 0
    %5619 = vmatprep.mubr.bf16.mxu0 0
    %5620 = vmatmul.mubr.bf16.gmra.mxu0 %v5586
    %v5621 = vpop.f32.mrf.mxu0
    %v5622 = vadd.f32 0.0, %v5621
    %v5623 = vpop.f32.mrf.mxu0
    %v5624 = vadd.f32 0.0, %v5623
    %v5625 = vpop.f32.mrf.mxu0
    %v5626 = vadd.f32 0.0, %v5625
    %v5627 = vpop.f32.mrf.mxu0
    %v5628 = vadd.f32 0.0, %v5627
    %5629 = vdwg.mxu0
    %5630 = vmatprep.subr.bf16.mxu0 %v4718
    %5631 = vmatpush1.bf16.msra.mxu0 %v4717
    %5632 = vmatprep.subr.bf16.mxu0 %v4714
    %5633 = vmatpush1.bf16.msra.mxu0 %v4713
    %5634 = vmatprep.subr.bf16.mxu0 %v4710
    %5635 = vmatpush1.bf16.msra.mxu0 %v4709
    %5636 = vmatprep.subr.bf16.mxu0 %v4706
    %5637 = vmatpush1.bf16.msra.mxu0 %v4705
    %5638 = vmatprep.subr.bf16.mxu0 %v4702
    %5639 = vmatpush1.bf16.msra.mxu0 %v4701
    %5640 = vmatprep.subr.bf16.mxu0 %v4698
    %5641 = vmatpush1.bf16.msra.mxu0 %v4697
    %5642 = vmatprep.subr.bf16.mxu0 %v4694
    %5643 = vmatpush1.bf16.msra.mxu0 %v4693
    %5644 = vmatprep.subr.bf16.mxu0 %v4690
    %5645 = vmatpush1.bf16.msra.mxu0 %v4689
    %5646 = vmatprep.subr.bf16.mxu0 0
    %5647 = vmatpush2.bf16.msra.mxu0 0
    %5648 = vmatprep.subr.bf16.mxu0 0
    %5649 = vmatpush2.bf16.msra.mxu0 0
    %5650 = vmatprep.subr.bf16.mxu0 0
    %5651 = vmatpush2.bf16.msra.mxu0 0
    %5652 = vmatprep.subr.bf16.mxu0 0
    %5653 = vmatpush2.bf16.msra.mxu0 0
    %5654 = vmatprep.subr.bf16.mxu0 0
    %5655 = vmatpush2.bf16.msra.mxu0 0
    %5656 = vmatprep.subr.bf16.mxu0 0
    %5657 = vmatpush2.bf16.msra.mxu0 0
    %5658 = vmatprep.subr.bf16.mxu0 0
    %5659 = vmatpush2.bf16.msra.mxu0 0
    %5660 = vmatprep.subr.bf16.mxu0 0
    %5661 = vmatpush2.bf16.msra.mxu0 0
    %5662 = vmatprep.mubr.bf16.mxu0 0
    %5663 = vmatmul.mubr.bf16.gmra.mxu0 %v5586
    %v5664 = vpop.f32.mrf.mxu0
    %v5665 = vadd.f32 0.0, %v5664
    %v5666 = vpop.f32.mrf.mxu0
    %v5667 = vadd.f32 0.0, %v5666
    %v5668 = vpop.f32.mrf.mxu0
    %v5669 = vadd.f32 0.0, %v5668
    %v5670 = vpop.f32.mrf.mxu0
    %v5671 = vadd.f32 0.0, %v5670
    %5672 = vdwg.mxu0
    %v5673 = vadd.f32 %v5578, %v5622
    %v5674 = vadd.f32 %v5579, %v5624
    %v5675 = vadd.f32 %v5580, %v5665
    %v5676 = vadd.f32 %v5581, %v5667
    %v5677 = vadd.f32 %v5582, %v5626
    %v5678 = vadd.f32 %v5583, %v5628
    %v5679 = vadd.f32 %v5584, %v5669
    %v5680 = vadd.f32 %v5585, %v5671
    %v5681 = vadd.f32 %v5673, %v4849
    %v5682 = vadd.f32 %v5674, %v4853
    %v5683 = vadd.f32 %v5675, %v4857
    %v5684 = vadd.f32 %v5676, %v4861
    %v5685 = vadd.f32 %v5677, %v4849
    %v5686 = vadd.f32 %v5678, %v4853
    %v5687 = vadd.f32 %v5679, %v4857
    %v5688 = vadd.f32 %v5680, %v4861
    %v5689 = vxor.u32 %v5681, 2147483648
    %v5690 = vxor.u32 %v5685, 2147483648
    %v5691 = vmul.f32 %v5689, 1.442695
    %v5692 = vpow.pop %v5691
    %v5693 = vmul.f32 %v5690, 1.442695
    %v5694 = vpow.pop %v5693
    %v5695 = vadd.f32 %v5692, 1.0
    %v5696 = vadd.f32 %v5694, 1.0
    %v5697 = vrcp.pop %v5695
    %v5698 = vmul.f32 1.0, %v5697
    %v5699 = vrcp.pop %v5696
    %v5700 = vmul.f32 1.0, %v5699
    %v5701 = vxor.u32 %v5682, 2147483648
    %v5702 = vxor.u32 %v5686, 2147483648
    %v5703 = vmul.f32 %v5701, 1.442695
    %v5704 = vpow.pop %v5703
    %v5705 = vmul.f32 %v5702, 1.442695
    %v5706 = vpow.pop %v5705
    %v5707 = vadd.f32 %v5704, 1.0
    %v5708 = vadd.f32 %v5706, 1.0
    %v5709 = vrcp.pop %v5707
    %v5710 = vmul.f32 1.0, %v5709
    %v5711 = vrcp.pop %v5708
    %v5712 = vmul.f32 1.0, %v5711
    %v5713 = vtanh.pop %v5683
    %v5714 = vtanh.pop %v5687
    %v5715 = vxor.u32 %v5684, 2147483648
    %v5716 = vxor.u32 %v5688, 2147483648
    %v5717 = vmul.f32 %v5715, 1.442695
    %v5718 = vpow.pop %v5717
    %v5719 = vmul.f32 %v5716, 1.442695
    %v5720 = vpow.pop %v5719
    %v5721 = vadd.f32 %v5718, 1.0
    %v5722 = vadd.f32 %v5720, 1.0
    %v5723 = vrcp.pop %v5721
    %v5724 = vmul.f32 1.0, %v5723
    %v5725 = vrcp.pop %v5722
    %v5726 = vmul.f32 1.0, %v5725
    %v5727 = vmul.f32 %v5710, %v5568
    %v5728 = vmul.f32 %v5712, %v5569
    %v5729 = vmul.f32 %v5698, %v5713
    %v5730 = vmul.f32 %v5700, %v5714
    %v5731 = vadd.f32 %v5727, %v5729
    %v5732 = vadd.f32 %v5728, %v5730
    %v5733 = vtanh.pop %v5731
    %v5734 = vtanh.pop %v5732
    %v5735 = vmul.f32 %v5724, %v5733
    %v5736 = vmul.f32 %v5726, %v5734
    %v5737 = vld [vmem:[%s3095] sm:$0xff]
    %v5738 = vld [vmem:[%s3095 + $0x8] sm:$0xff]
    %v5739 = vld [vmem:[%s3095 + $0x10] sm:$0xff]
    %v5740 = vld [vmem:[%s3095 + $0x18] sm:$0xff]
    %v5741 = vunpack.c.l.bf16 %v5737
    %v5742 = vunpack.c.h.bf16 %v5737
    %v5743 = vunpack.c.l.bf16 %v5738
    %v5744 = vunpack.c.h.bf16 %v5738
    %v5745 = vunpack.c.l.bf16 %v5739
    %v5746 = vunpack.c.h.bf16 %v5739
    %v5747 = vunpack.c.l.bf16 %v5740
    %v5748 = vunpack.c.h.bf16 %v5740
    %v5749 = vpack.c.bf16 %v5736, %v5735
    %5750 = vmatprep.subr.bf16.mxu0 %v4716
    %5751 = vmatpush1.bf16.msra.mxu0 %v4715
    %5752 = vmatprep.subr.bf16.mxu0 %v4712
    %5753 = vmatpush1.bf16.msra.mxu0 %v4711
    %5754 = vmatprep.subr.bf16.mxu0 %v4708
    %5755 = vmatpush1.bf16.msra.mxu0 %v4707
    %5756 = vmatprep.subr.bf16.mxu0 %v4704
    %5757 = vmatpush1.bf16.msra.mxu0 %v4703
    %5758 = vmatprep.subr.bf16.mxu0 %v4700
    %5759 = vmatpush1.bf16.msra.mxu0 %v4699
    %5760 = vmatprep.subr.bf16.mxu0 %v4696
    %5761 = vmatpush1.bf16.msra.mxu0 %v4695
    %5762 = vmatprep.subr.bf16.mxu0 %v4692
    %5763 = vmatpush1.bf16.msra.mxu0 %v4691
    %5764 = vmatprep.subr.bf16.mxu0 %v4688
    %5765 = vmatpush1.bf16.msra.mxu0 %v4687
    %5766 = vmatprep.subr.bf16.mxu0 0
    %5767 = vmatpush2.bf16.msra.mxu0 0
    %5768 = vmatprep.subr.bf16.mxu0 0
    %5769 = vmatpush2.bf16.msra.mxu0 0
    %5770 = vmatprep.subr.bf16.mxu0 0
    %5771 = vmatpush2.bf16.msra.mxu0 0
    %5772 = vmatprep.subr.bf16.mxu0 0
    %5773 = vmatpush2.bf16.msra.mxu0 0
    %5774 = vmatprep.subr.bf16.mxu0 0
    %5775 = vmatpush2.bf16.msra.mxu0 0
    %5776 = vmatprep.subr.bf16.mxu0 0
    %5777 = vmatpush2.bf16.msra.mxu0 0
    %5778 = vmatprep.subr.bf16.mxu0 0
    %5779 = vmatpush2.bf16.msra.mxu0 0
    %5780 = vmatprep.subr.bf16.mxu0 0
    %5781 = vmatpush2.bf16.msra.mxu0 0
    %5782 = vmatprep.mubr.bf16.mxu0 0
    %5783 = vmatmul.mubr.bf16.gmra.mxu0 %v5749
    %v5784 = vpop.f32.mrf.mxu0
    %v5785 = vadd.f32 0.0, %v5784
    %v5786 = vpop.f32.mrf.mxu0
    %v5787 = vadd.f32 0.0, %v5786
    %v5788 = vpop.f32.mrf.mxu0
    %v5789 = vadd.f32 0.0, %v5788
    %v5790 = vpop.f32.mrf.mxu0
    %v5791 = vadd.f32 0.0, %v5790
    %5792 = vdwg.mxu0
    %5793 = vmatprep.subr.bf16.mxu0 %v4718
    %5794 = vmatpush1.bf16.msra.mxu0 %v4717
    %5795 = vmatprep.subr.bf16.mxu0 %v4714
    %5796 = vmatpush1.bf16.msra.mxu0 %v4713
    %5797 = vmatprep.subr.bf16.mxu0 %v4710
    %5798 = vmatpush1.bf16.msra.mxu0 %v4709
    %5799 = vmatprep.subr.bf16.mxu0 %v4706
    %5800 = vmatpush1.bf16.msra.mxu0 %v4705
    %5801 = vmatprep.subr.bf16.mxu0 %v4702
    %5802 = vmatpush1.bf16.msra.mxu0 %v4701
    %5803 = vmatprep.subr.bf16.mxu0 %v4698
    %5804 = vmatpush1.bf16.msra.mxu0 %v4697
    %5805 = vmatprep.subr.bf16.mxu0 %v4694
    %5806 = vmatpush1.bf16.msra.mxu0 %v4693
    %5807 = vmatprep.subr.bf16.mxu0 %v4690
    %5808 = vmatpush1.bf16.msra.mxu0 %v4689
    %5809 = vmatprep.subr.bf16.mxu0 0
    %5810 = vmatpush2.bf16.msra.mxu0 0
    %5811 = vmatprep.subr.bf16.mxu0 0
    %5812 = vmatpush2.bf16.msra.mxu0 0
    %5813 = vmatprep.subr.bf16.mxu0 0
    %5814 = vmatpush2.bf16.msra.mxu0 0
    %5815 = vmatprep.subr.bf16.mxu0 0
    %5816 = vmatpush2.bf16.msra.mxu0 0
    %5817 = vmatprep.subr.bf16.mxu0 0
    %5818 = vmatpush2.bf16.msra.mxu0 0
    %5819 = vmatprep.subr.bf16.mxu0 0
    %5820 = vmatpush2.bf16.msra.mxu0 0
    %5821 = vmatprep.subr.bf16.mxu0 0
    %5822 = vmatpush2.bf16.msra.mxu0 0
    %5823 = vmatprep.subr.bf16.mxu0 0
    %5824 = vmatpush2.bf16.msra.mxu0 0
    %5825 = vmatprep.mubr.bf16.mxu0 0
    %5826 = vmatmul.mubr.bf16.gmra.mxu0 %v5749
    %v5827 = vpop.f32.mrf.mxu0
    %v5828 = vadd.f32 0.0, %v5827
    %v5829 = vpop.f32.mrf.mxu0
    %v5830 = vadd.f32 0.0, %v5829
    %v5831 = vpop.f32.mrf.mxu0
    %v5832 = vadd.f32 0.0, %v5831
    %v5833 = vpop.f32.mrf.mxu0
    %v5834 = vadd.f32 0.0, %v5833
    %5835 = vdwg.mxu0
    %v5836 = vadd.f32 %v5741, %v5785
    %v5837 = vadd.f32 %v5742, %v5787
    %v5838 = vadd.f32 %v5743, %v5828
    %v5839 = vadd.f32 %v5744, %v5830
    %v5840 = vadd.f32 %v5745, %v5789
    %v5841 = vadd.f32 %v5746, %v5791
    %v5842 = vadd.f32 %v5747, %v5832
    %v5843 = vadd.f32 %v5748, %v5834
    %v5844 = vadd.f32 %v5836, %v4849
    %v5845 = vadd.f32 %v5837, %v4853
    %v5846 = vadd.f32 %v5838, %v4857
    %v5847 = vadd.f32 %v5839, %v4861
    %v5848 = vadd.f32 %v5840, %v4849
    %v5849 = vadd.f32 %v5841, %v4853
    %v5850 = vadd.f32 %v5842, %v4857
    %v5851 = vadd.f32 %v5843, %v4861
    %v5852 = vxor.u32 %v5844, 2147483648
    %v5853 = vxor.u32 %v5848, 2147483648
    %v5854 = vmul.f32 %v5852, 1.442695
    %v5855 = vpow.pop %v5854
    %v5856 = vmul.f32 %v5853, 1.442695
    %v5857 = vpow.pop %v5856
    %v5858 = vadd.f32 %v5855, 1.0
    %v5859 = vadd.f32 %v5857, 1.0
    %v5860 = vrcp.pop %v5858
    %v5861 = vmul.f32 1.0, %v5860
    %v5862 = vrcp.pop %v5859
    %v5863 = vmul.f32 1.0, %v5862
    %v5864 = vxor.u32 %v5845, 2147483648
    %v5865 = vxor.u32 %v5849, 2147483648
    %v5866 = vmul.f32 %v5864, 1.442695
    %v5867 = vpow.pop %v5866
    %v5868 = vmul.f32 %v5865, 1.442695
    %v5869 = vpow.pop %v5868
    %v5870 = vadd.f32 %v5867, 1.0
    %v5871 = vadd.f32 %v5869, 1.0
    %v5872 = vrcp.pop %v5870
    %v5873 = vmul.f32 1.0, %v5872
    %v5874 = vrcp.pop %v5871
    %v5875 = vmul.f32 1.0, %v5874
    %v5876 = vtanh.pop %v5846
    %v5877 = vtanh.pop %v5850
    %v5878 = vxor.u32 %v5847, 2147483648
    %v5879 = vxor.u32 %v5851, 2147483648
    %v5880 = vmul.f32 %v5878, 1.442695
    %v5881 = vpow.pop %v5880
    %v5882 = vmul.f32 %v5879, 1.442695
    %v5883 = vpow.pop %v5882
    %v5884 = vadd.f32 %v5881, 1.0
    %v5885 = vadd.f32 %v5883, 1.0
    %v5886 = vrcp.pop %v5884
    %v5887 = vmul.f32 1.0, %v5886
    %v5888 = vrcp.pop %v5885
    %v5889 = vmul.f32 1.0, %v5888
    %v5890 = vmul.f32 %v5873, %v5731
    %v5891 = vmul.f32 %v5875, %v5732
    %v5892 = vmul.f32 %v5861, %v5876
    %v5893 = vmul.f32 %v5863, %v5877
    %v5894 = vadd.f32 %v5890, %v5892
    %v5895 = vadd.f32 %v5891, %v5893
    %v5896 = vtanh.pop %v5894
    %v5897 = vtanh.pop %v5895
    %v5898 = vmul.f32 %v5887, %v5896
    %v5899 = vmul.f32 %v5889, %v5897
    %v5900 = vld [vmem:[%s3463] sm:$0xff]
    %v5901 = vld [vmem:[%s3463 + $0x8] sm:$0xff]
    %v5902 = vld [vmem:[%s3463 + $0x10] sm:$0xff]
    %v5903 = vld [vmem:[%s3463 + $0x18] sm:$0xff]
    %v5904 = vunpack.c.l.bf16 %v5900
    %v5905 = vunpack.c.h.bf16 %v5900
    %v5906 = vunpack.c.l.bf16 %v5901
    %v5907 = vunpack.c.h.bf16 %v5901
    %v5908 = vunpack.c.l.bf16 %v5902
    %v5909 = vunpack.c.h.bf16 %v5902
    %v5910 = vunpack.c.l.bf16 %v5903
    %v5911 = vunpack.c.h.bf16 %v5903
    %v5912 = vpack.c.bf16 %v5899, %v5898
    %5913 = vmatprep.subr.bf16.mxu0 %v4716
    %5914 = vmatpush1.bf16.msra.mxu0 %v4715
    %5915 = vmatprep.subr.bf16.mxu0 %v4712
    %5916 = vmatpush1.bf16.msra.mxu0 %v4711
    %5917 = vmatprep.subr.bf16.mxu0 %v4708
    %5918 = vmatpush1.bf16.msra.mxu0 %v4707
    %5919 = vmatprep.subr.bf16.mxu0 %v4704
    %5920 = vmatpush1.bf16.msra.mxu0 %v4703
    %5921 = vmatprep.subr.bf16.mxu0 %v4700
    %5922 = vmatpush1.bf16.msra.mxu0 %v4699
    %5923 = vmatprep.subr.bf16.mxu0 %v4696
    %5924 = vmatpush1.bf16.msra.mxu0 %v4695
    %5925 = vmatprep.subr.bf16.mxu0 %v4692
    %5926 = vmatpush1.bf16.msra.mxu0 %v4691
    %5927 = vmatprep.subr.bf16.mxu0 %v4688
    %5928 = vmatpush1.bf16.msra.mxu0 %v4687
    %5929 = vmatprep.subr.bf16.mxu0 0
    %5930 = vmatpush2.bf16.msra.mxu0 0
    %5931 = vmatprep.subr.bf16.mxu0 0
    %5932 = vmatpush2.bf16.msra.mxu0 0
    %5933 = vmatprep.subr.bf16.mxu0 0
    %5934 = vmatpush2.bf16.msra.mxu0 0
    %5935 = vmatprep.subr.bf16.mxu0 0
    %5936 = vmatpush2.bf16.msra.mxu0 0
    %5937 = vmatprep.subr.bf16.mxu0 0
    %5938 = vmatpush2.bf16.msra.mxu0 0
    %5939 = vmatprep.subr.bf16.mxu0 0
    %5940 = vmatpush2.bf16.msra.mxu0 0
    %5941 = vmatprep.subr.bf16.mxu0 0
    %5942 = vmatpush2.bf16.msra.mxu0 0
    %5943 = vmatprep.subr.bf16.mxu0 0
    %5944 = vmatpush2.bf16.msra.mxu0 0
    %5945 = vmatprep.mubr.bf16.mxu0 0
    %5946 = vmatmul.mubr.bf16.gmra.mxu0 %v5912
    %v5947 = vpop.f32.mrf.mxu0
    %v5948 = vadd.f32 0.0, %v5947
    %v5949 = vpop.f32.mrf.mxu0
    %v5950 = vadd.f32 0.0, %v5949
    %v5951 = vpop.f32.mrf.mxu0
    %v5952 = vadd.f32 0.0, %v5951
    %v5953 = vpop.f32.mrf.mxu0
    %v5954 = vadd.f32 0.0, %v5953
    %5955 = vdwg.mxu0
    %5956 = vmatprep.subr.bf16.mxu0 %v4718
    %5957 = vmatpush1.bf16.msra.mxu0 %v4717
    %5958 = vmatprep.subr.bf16.mxu0 %v4714
    %5959 = vmatpush1.bf16.msra.mxu0 %v4713
    %5960 = vmatprep.subr.bf16.mxu0 %v4710
    %5961 = vmatpush1.bf16.msra.mxu0 %v4709
    %5962 = vmatprep.subr.bf16.mxu0 %v4706
    %5963 = vmatpush1.bf16.msra.mxu0 %v4705
    %5964 = vmatprep.subr.bf16.mxu0 %v4702
    %5965 = vmatpush1.bf16.msra.mxu0 %v4701
    %5966 = vmatprep.subr.bf16.mxu0 %v4698
    %5967 = vmatpush1.bf16.msra.mxu0 %v4697
    %5968 = vmatprep.subr.bf16.mxu0 %v4694
    %5969 = vmatpush1.bf16.msra.mxu0 %v4693
    %5970 = vmatprep.subr.bf16.mxu0 %v4690
    %5971 = vmatpush1.bf16.msra.mxu0 %v4689
    %5972 = vmatprep.subr.bf16.mxu0 0
    %5973 = vmatpush2.bf16.msra.mxu0 0
    %5974 = vmatprep.subr.bf16.mxu0 0
    %5975 = vmatpush2.bf16.msra.mxu0 0
    %5976 = vmatprep.subr.bf16.mxu0 0
    %5977 = vmatpush2.bf16.msra.mxu0 0
    %5978 = vmatprep.subr.bf16.mxu0 0
    %5979 = vmatpush2.bf16.msra.mxu0 0
    %5980 = vmatprep.subr.bf16.mxu0 0
    %5981 = vmatpush2.bf16.msra.mxu0 0
    %5982 = vmatprep.subr.bf16.mxu0 0
    %5983 = vmatpush2.bf16.msra.mxu0 0
    %5984 = vmatprep.subr.bf16.mxu0 0
    %5985 = vmatpush2.bf16.msra.mxu0 0
    %5986 = vmatprep.subr.bf16.mxu0 0
    %5987 = vmatpush2.bf16.msra.mxu0 0
    %5988 = vmatprep.mubr.bf16.mxu0 0
    %5989 = vmatmul.mubr.bf16.gmra.mxu0 %v5912
    %v5990 = vpop.f32.mrf.mxu0
    %v5991 = vadd.f32 0.0, %v5990
    %v5992 = vpop.f32.mrf.mxu0
    %v5993 = vadd.f32 0.0, %v5992
    %v5994 = vpop.f32.mrf.mxu0
    %v5995 = vadd.f32 0.0, %v5994
    %v5996 = vpop.f32.mrf.mxu0
    %v5997 = vadd.f32 0.0, %v5996
    %5998 = vdwg.mxu0
    %v5999 = vadd.f32 %v5904, %v5948
    %v6000 = vadd.f32 %v5905, %v5950
    %v6001 = vadd.f32 %v5906, %v5991
    %v6002 = vadd.f32 %v5907, %v5993
    %v6003 = vadd.f32 %v5908, %v5952
    %v6004 = vadd.f32 %v5909, %v5954
    %v6005 = vadd.f32 %v5910, %v5995
    %v6006 = vadd.f32 %v5911, %v5997
    %v6007 = vadd.f32 %v5999, %v4849
    %v6008 = vadd.f32 %v6000, %v4853
    %v6009 = vadd.f32 %v6001, %v4857
    %v6010 = vadd.f32 %v6002, %v4861
    %v6011 = vadd.f32 %v6003, %v4849
    %v6012 = vadd.f32 %v6004, %v4853
    %v6013 = vadd.f32 %v6005, %v4857
    %v6014 = vadd.f32 %v6006, %v4861
    %v6015 = vxor.u32 %v6007, 2147483648
    %v6016 = vxor.u32 %v6011, 2147483648
    %v6017 = vmul.f32 %v6015, 1.442695
    %v6018 = vpow.pop %v6017
    %v6019 = vmul.f32 %v6016, 1.442695
    %v6020 = vpow.pop %v6019
    %v6021 = vadd.f32 %v6018, 1.0
    %v6022 = vadd.f32 %v6020, 1.0
    %v6023 = vrcp.pop %v6021
    %v6024 = vmul.f32 1.0, %v6023
    %v6025 = vrcp.pop %v6022
    %v6026 = vmul.f32 1.0, %v6025
    %v6027 = vxor.u32 %v6008, 2147483648
    %v6028 = vxor.u32 %v6012, 2147483648
    %v6029 = vmul.f32 %v6027, 1.442695
    %v6030 = vpow.pop %v6029
    %v6031 = vmul.f32 %v6028, 1.442695
    %v6032 = vpow.pop %v6031
    %v6033 = vadd.f32 %v6030, 1.0
    %v6034 = vadd.f32 %v6032, 1.0
    %v6035 = vrcp.pop %v6033
    %v6036 = vmul.f32 1.0, %v6035
    %v6037 = vrcp.pop %v6034
    %v6038 = vmul.f32 1.0, %v6037
    %v6039 = vtanh.pop %v6009
    %v6040 = vtanh.pop %v6013
    %v6041 = vxor.u32 %v6010, 2147483648
    %v6042 = vxor.u32 %v6014, 2147483648
    %v6043 = vmul.f32 %v6041, 1.442695
    %v6044 = vpow.pop %v6043
    %v6045 = vmul.f32 %v6042, 1.442695
    %v6046 = vpow.pop %v6045
    %v6047 = vadd.f32 %v6044, 1.0
    %v6048 = vadd.f32 %v6046, 1.0
    %v6049 = vrcp.pop %v6047
    %v6050 = vmul.f32 1.0, %v6049
    %v6051 = vrcp.pop %v6048
    %v6052 = vmul.f32 1.0, %v6051
    %v6053 = vmul.f32 %v6036, %v5894
    %v6054 = vmul.f32 %v6038, %v5895
    %v6055 = vmul.f32 %v6024, %v6039
    %v6056 = vmul.f32 %v6026, %v6040
    %v6057 = vadd.f32 %v6053, %v6055
    %v6058 = vadd.f32 %v6054, %v6056
    %v6059 = vtanh.pop %v6057
    %v6060 = vtanh.pop %v6058
    %v6061 = vmul.f32 %v6050, %v6059
    %v6062 = vmul.f32 %v6052, %v6060
    %s6063 = scalar_lea.vmem [#allocation19], 16
    %6064 = vst [vmem:[%s6063] sm:$0xff] %v6061
    %6065 = vst [vmem:[%s6063 + $0x8] sm:$0xff] %v6062
    %s6066 = scalar_lea.vmem [#allocation21], 16
    %6067 = vst [vmem:[%s6066] sm:$0xff] %v6057
    %6068 = vst [vmem:[%s6066 + $0x8] sm:$0xff] %v6058
    %v6069 = vpack.c.bf16 %v6062, %v6061
    %v6070 = vld [vmem:[#allocation16] sm:$0xf]
    %v6071 = vld [vmem:[#allocation16 + $0x4] sm:$0xf]
    %v6072 = vld [vmem:[#allocation16 + $0x8] sm:$0xf]
    %v6073 = vld [vmem:[#allocation16 + $0xc] sm:$0xf]
    %v6074 = vld [vmem:[#allocation16 + $0x10] sm:$0xf]
    %v6075 = vld [vmem:[#allocation16 + $0x14] sm:$0xf]
    %v6076 = vld [vmem:[#allocation16 + $0x18] sm:$0xf]
    %v6077 = vld [vmem:[#allocation16 + $0x1c] sm:$0xf]
    %v6078 = vld [vmem:[#allocation16 + $0x20] sm:$0xf]
    %v6079 = vld [vmem:[#allocation16 + $0x24] sm:$0xf]
    %v6080 = vld [vmem:[#allocation16 + $0x28] sm:$0xf]
    %v6081 = vld [vmem:[#allocation16 + $0x2c] sm:$0xf]
    %v6082 = vld [vmem:[#allocation16 + $0x30] sm:$0xf]
    %v6083 = vld [vmem:[#allocation16 + $0x34] sm:$0xf]
    %v6084 = vld [vmem:[#allocation16 + $0x38] sm:$0xf]
    %v6085 = vld [vmem:[#allocation16 + $0x3c] sm:$0xf]
    %v6086 = vld [vmem:[%s10] sm:$0x1]
    %v6088 = vlaneseq
    %v6089 = vshrl.u32 %v6088, 7
    %v6090 = vsub.s32 0, %v6089
    %v6091 = vrot.slane %v6086, %v6090
    %v6109 = vunpack.c.l.b16 %v6070
    %v6110 = vunpack.c.l.b16 %v6071
    %v6111 = vunpack.c.l.b16 %v6072
    %v6112 = vunpack.c.l.b16 %v6073
    %v6113 = vunpack.c.l.b16 %v6074
    %v6114 = vunpack.c.l.b16 %v6075
    %v6115 = vunpack.c.l.b16 %v6076
    %v6116 = vunpack.c.l.b16 %v6077
    %v6117 = vunpack.c.l.b16 %v6078
    %v6118 = vunpack.c.l.b16 %v6079
    %v6119 = vunpack.c.l.b16 %v6080
    %v6120 = vunpack.c.l.b16 %v6081
    %v6121 = vunpack.c.l.b16 %v6082
    %v6122 = vunpack.c.l.b16 %v6083
    %v6123 = vunpack.c.l.b16 %v6084
    %v6124 = vunpack.c.l.b16 %v6085
    %v6125 = vpack.c.b16 %v6110, %v6109
    %v6126 = vpack.c.b16 %v6112, %v6111
    %v6127 = vpack.c.b16 %v6114, %v6113
    %v6128 = vpack.c.b16 %v6116, %v6115
    %v6129 = vpack.c.b16 %v6118, %v6117
    %v6130 = vpack.c.b16 %v6120, %v6119
    %v6131 = vpack.c.b16 %v6122, %v6121
    %v6132 = vpack.c.b16 %v6124, %v6123
    %6141 = vmatprep.subr.bf16.mxu0 0
    %6142 = vmatpush1.bf16.msra.mxu0 %v6132
    %6143 = vmatprep.subr.bf16.mxu0 0
    %6144 = vmatpush1.bf16.msra.mxu0 %v6131
    %6145 = vmatprep.subr.bf16.mxu0 0
    %6146 = vmatpush1.bf16.msra.mxu0 %v6130
    %6147 = vmatprep.subr.bf16.mxu0 0
    %6148 = vmatpush1.bf16.msra.mxu0 %v6129
    %6149 = vmatprep.subr.bf16.mxu0 0
    %6150 = vmatpush1.bf16.msra.mxu0 %v6128
    %6151 = vmatprep.subr.bf16.mxu0 0
    %6152 = vmatpush1.bf16.msra.mxu0 %v6127
    %6153 = vmatprep.subr.bf16.mxu0 0
    %6154 = vmatpush1.bf16.msra.mxu0 %v6126
    %6155 = vmatprep.subr.bf16.mxu0 0
    %6156 = vmatpush1.bf16.msra.mxu0 %v6125
    %6157 = vmatprep.subr.bf16.mxu0 0
    %6158 = vmatpush2.bf16.msra.mxu0 0
    %6159 = vmatprep.subr.bf16.mxu0 0
    %6160 = vmatpush2.bf16.msra.mxu0 0
    %6161 = vmatprep.subr.bf16.mxu0 0
    %6162 = vmatpush2.bf16.msra.mxu0 0
    %6163 = vmatprep.subr.bf16.mxu0 0
    %6164 = vmatpush2.bf16.msra.mxu0 0
    %6165 = vmatprep.subr.bf16.mxu0 0
    %6166 = vmatpush2.bf16.msra.mxu0 0
    %6167 = vmatprep.subr.bf16.mxu0 0
    %6168 = vmatpush2.bf16.msra.mxu0 0
    %6169 = vmatprep.subr.bf16.mxu0 0
    %6170 = vmatpush2.bf16.msra.mxu0 0
    %6171 = vmatprep.subr.bf16.mxu0 0
    %6172 = vmatpush2.bf16.msra.mxu0 0
    %6173 = vmatprep.mubr.bf16.mxu0 0
    %6174 = vmatmul.mubr.bf16.gmra.mxu0 %v6069
    %v6175 = vpop.f32.mrf.mxu0
    %v6176 = vadd.f32 %v6091, %v6175
    %v6177 = vpop.f32.mrf.mxu0
    %v6178 = vpop.f32.mrf.mxu0
    %v6179 = vadd.f32 %v6091, %v6178
    %v6180 = vpop.f32.mrf.mxu0
    %6181 = vdwg.mxu0
    %6182 = vst [vmem:[#allocation18] sm:$0xff] %v6176
    %6183 = vst [vmem:[#allocation18 + $0x8] sm:$0xff] %v6179
    // Predicated region
    $region78: #{tpu_custom_call.1} parent=1 // pred_check
      _
    $region79: #{tpu_custom_call.1} parent=1 // pred_check_branch
      %6185 = sbr.rel (0) target = $region81
    $region80: #{tpu_custom_call.1} parent=1 // pred_region
      %s6187 = ssub.s32 256, 256
      %6188 = vsyncadd [#allocation6], %s6187
      %s6189 = sshll.u32 [#allocation18], 4
      %s6190 = int_to_ptr.vmem [resolvable:$true] %s6189
      %6195 = dma.vmem_to_hbm [thread:$0]  %s6190, 256, %s11, [#allocation6], 128, 128, 8
    $region81: #{tpu_custom_call.1} parent=1 // pred_fallthru
      _
    // Predicated region
    $region82: #{tpu_custom_call.1} parent=1 // pred_check
      _
    $region83: #{tpu_custom_call.1} parent=1 // pred_check_branch
      %6197 = sbr.rel (0) target = $region85
    $region84: #{tpu_custom_call.1} parent=1 // pred_region
      %s6199 = ssub.s32 512, 512
      %6200 = vsyncadd [#allocation20], %s6199
      %s6201 = sshll.u32 [#allocation19], 4
      %s6202 = int_to_ptr.vmem [resolvable:$true] %s6201
      %6207 = dma.vmem_to_hbm [thread:$0]  %s6202, 512, %s12, [#allocation20], 128, 128, 8
    $region85: #{tpu_custom_call.1} parent=1 // pred_fallthru
      _
    // Predicated region
    $region86: #{tpu_custom_call.1} parent=1 // pred_check
      _
    $region87: #{tpu_custom_call.1} parent=1 // pred_check_branch
      %6209 = sbr.rel (0) target = $region89
    $region88: #{tpu_custom_call.1} parent=1 // pred_region
      %s6211 = ssub.s32 512, 512
      %6212 = vsyncadd [#allocation20], %s6211
      %s6213 = sshll.u32 [#allocation21], 4
      %s6214 = int_to_ptr.vmem [resolvable:$true] %s6213
      %6219 = dma.vmem_to_hbm [thread:$0]  %s6214, 512, %s13, [#allocation20], 128, 128, 8
    $region89: #{tpu_custom_call.1} parent=1 // pred_fallthru
      _
    // Predicated region
    $region90: #{tpu_custom_call.1} parent=1 // pred_check
      _
    $region91: #{tpu_custom_call.1} parent=1 // pred_check_branch
      %6221 = sbr.rel (0) target = $region93
    $region92: #{tpu_custom_call.1} parent=1 // pred_region
      %6222 = dma.done [#allocation6], 256
    $region93: #{tpu_custom_call.1} parent=1 // pred_fallthru
      _
    // Predicated region
    $region94: #{tpu_custom_call.1} parent=1 // pred_check
      _
    $region95: #{tpu_custom_call.1} parent=1 // pred_check_branch
      %6224 = sbr.rel (0) target = $region97
    $region96: #{tpu_custom_call.1} parent=1 // pred_region
      %6225 = dma.done [#allocation20], 512
    $region97: #{tpu_custom_call.1} parent=1 // pred_fallthru
      _
    // Predicated region
    $region98: #{tpu_custom_call.1} parent=1 // pred_check
      _
    $region99: #{tpu_custom_call.1} parent=1 // pred_check_branch
      %6227 = sbr.rel (0) target = $region101
    $region100: #{tpu_custom_call.1} parent=1 // pred_region
      %6228 = dma.done [#allocation20], 512
    $region101: #{tpu_custom_call.1} parent=1 // pred_fallthru
      _
    %6229 = vsyncpa [#allocation5], 1
    %6230 = vsyncpa [#allocation8], 1
    %6231 = vsyncpa [#allocation11], 1
    %6232 = vsyncpa [#allocation14], 1
    %6233 = vsyncpa [#allocation17], 1
    %6234 = vsyncpa [#allocation6], 1
    %6235 = vsyncpa [#allocation20], 1

</llo_original>
